<compile_context>
chip_gen: v5e
topology: v5e:2x2
jax: 0.10.0
libtpu: 0.0.40
codegen_flags: <defaults>
</compile_context>

<pallas_src>
import functools
from math import sqrt

import jax
import jax.numpy as jnp
from jax.experimental import pallas as pl
from jax.experimental.pallas import tpu as pltpu


def _round_up(v, m):
    return ((v + m - 1) // m) * m


# ------------------------------ Pallas kernel ------------------------------ #
def _drrn_kernel(x_col_ref, res_ref, w_in_ref, w1_ref, w2_ref, w_out_ref,
                 o_ref, col_a, col_b, inputs_buf, *, H, W, ch, num_recursions):
    """Full DRRN forward for one batch element.

    x_col_ref : (HW, 9*cin_p) bf16  im2col of the (channel-padded) input image
    res_ref   : (HW, cin_p)   f32   residual (the raw input)
    w_in_ref  : (9*cin_p, ch) bf16  input conv, 3x3 taps folded into K
    w1_ref    : (9*ch, ch)    bf16  conv1
    w2_ref    : (9*ch, ch)    bf16  conv2
    w_out_ref : (9*ch, cin_p) bf16  output conv (Cout zero-padded to cin_p)
    o_ref     : (HW, cin_p)   f32   final output (residual already added)
    col_a     : VMEM (HW, 9*ch) bf16  persistent im2col of relu(out)
    col_b     : VMEM (HW, 9*ch) bf16  persistent im2col of relu(conv1(relu(out)))
    inputs_buf: VMEM (HW, ch)   f32   the `inputs` activation (f32 add chain)
    """
    HW = H * W

    def store_act(col, act):
        # relu -> bf16 -> 1-pixel zero pad (the conv's SAME padding) -> write
        # each 3x3 tap's shifted window into its K-column block of the
        # persistent im2col buffer.  Every block is fully rewritten, so no
        # scratch initialization is ever required.  With ch a multiple of 128
        # each block store is a full, lane-aligned, unmasked store.
        a = jnp.maximum(act, 0.0).astype(col.dtype).reshape(H, W, ch)
        zx = jnp.zeros((H, 1, ch), a.dtype)
        aw = jnp.concatenate([zx, a, zx], axis=1)            # (H,   W+2, ch)
        zy = jnp.zeros((1, W + 2, ch), a.dtype)
        ap = jnp.concatenate([zy, aw, zy], axis=0)           # (H+2, W+2, ch)
        for ky in range(3):
            for kx in range(3):
                t = ky * 3 + kx
                col[:, t * ch:(t + 1) * ch] = (
                    ap[ky:ky + H, kx:kx + W, :].reshape(HW, ch))

    def conv(col, w_ref):
        # One MXU matmul per conv, K = 9*ch, bf16 operands, f32 accumulation.
        return jnp.dot(col[...], w_ref[...],
                       preferred_element_type=jnp.float32)

    # inputs = self.input(x); out = inputs
    inputs = jnp.dot(x_col_ref[...], w_in_ref[...],
                     preferred_element_type=jnp.float32)     # (HW, ch) f32
    inputs_buf[...] = inputs
    store_act(col_a, inputs)                                 # col_a <- im2col(relu(out))

    # 25 x { out = conv2(relu(conv1(relu(out)))) + inputs }
    @pl.loop(0, num_recursions)
    def _(step):
        h1 = conv(col_a, w1_ref)                             # conv1(relu(out))
        store_act(col_b, h1)                                 # col_b <- im2col(relu(h1))
        out = conv(col_b, w2_ref) + inputs_buf[...]          # conv2(...) + inputs (f32)
        store_act(col_a, out)                                # col_a <- im2col(relu(out))

    # out = self.output(relu(out)) + residual
    y = conv(col_a, w_out_ref)                               # (HW, cin_p) f32
    o_ref[...] = (y + res_ref[...]).astype(o_ref.dtype)


# ------------------------------- wrapper ----------------------------------- #
def _to_tap_matrix(w_oihw, cin_pad=None, cout_pad=None):
    """PyTorch OIHW (Cout, Cin, 3, 3) -> bf16 (9*Cin[_pad], Cout[_pad]).

    Row ordering is tap-major (ky*3 + kx), input-channel-minor, matching the
    im2col K layout used inside the kernel.  Optional zero padding of Cin/Cout.
    """
    cout, cin, kh, kw = w_oihw.shape
    w = jnp.transpose(w_oihw, (2, 3, 1, 0))                  # (3, 3, Cin, Cout)
    if cin_pad is not None and cin_pad > cin:
        w = jnp.pad(w, ((0, 0), (0, 0), (0, cin_pad - cin), (0, 0)))
        cin = cin_pad
    if cout_pad is not None and cout_pad > cout:
        w = jnp.pad(w, ((0, 0), (0, 0), (0, 0), (0, cout_pad - cout)))
        cout = cout_pad
    return w.reshape(kh * kw * cin, cout).astype(jnp.bfloat16)


def drrn_forward(x_nchw, params, num_recursions=25):
    n, cin, h, w = x_nchw.shape
    ch = params["conv1"].shape[0]
    cin_p = _round_up(cin, 8)            # avoid 3-lane arrays inside the kernel
    hw = h * w

    x = jnp.transpose(x_nchw, (0, 2, 3, 1))                          # NHWC, f32
    x_p = jnp.pad(x, ((0, 0), (0, 0), (0, 0), (0, cin_p - cin)))     # (N,H,W,cin_p)

    # Residual, kept in f32 (the accumulation chain never sees bf16).
    res = x_p.reshape(n, hw, cin_p)

    # im2col of the input image for the first conv only (tiny, built once by
    # XLA); K layout = tap-major / channel-minor, cast to bf16 (MXU operand).
    xpad = jnp.pad(x_p, ((0, 0), (1, 1), (1, 1), (0, 0)))            # (N,H+2,W+2,cin_p)
    taps = [xpad[:, ky:ky + h, kx:kx + w, :]
            for ky in range(3) for kx in range(3)]
    x_col = jnp.concatenate(taps, axis=-1).reshape(n, hw, 9 * cin_p)
    x_col = x_col.astype(jnp.bfloat16)

    w_in = _to_tap_matrix(params["input"], cin_pad=cin_p)            # (9*cin_p, ch)
    w1 = _to_tap_matrix(params["conv1"])                             # (9*ch, ch)
    w2 = _to_tap_matrix(params["conv2"])                             # (9*ch, ch)
    w_out = _to_tap_matrix(params["output"], cout_pad=cin_p)         # (9*ch, cin_p)

    kernel = functools.partial(_drrn_kernel, H=h, W=w, ch=ch,
                               num_recursions=num_recursions)
    out = pl.pallas_call(
        kernel,
        out_shape=jax.ShapeDtypeStruct((n, hw, cin_p), x.dtype),
        grid_spec=pltpu.PrefetchScalarGridSpec(
            num_scalar_prefetch=0,
            grid=(n,),
            in_specs=[
                pl.BlockSpec((None, hw, 9 * cin_p), lambda b: (b, 0, 0)),
                pl.BlockSpec((None, hw, cin_p), lambda b: (b, 0, 0)),
                pl.BlockSpec(w_in.shape, lambda b: (0, 0)),
                pl.BlockSpec(w1.shape, lambda b: (0, 0)),
                pl.BlockSpec(w2.shape, lambda b: (0, 0)),
                pl.BlockSpec(w_out.shape, lambda b: (0, 0)),
            ],
            out_specs=pl.BlockSpec((None, hw, cin_p), lambda b: (b, 0, 0)),
            scratch_shapes=[
                pltpu.VMEM((hw, 9 * ch), jnp.bfloat16),   # col_a (im2col of relu(out))
                pltpu.VMEM((hw, 9 * ch), jnp.bfloat16),   # col_b (im2col of relu(conv1))
                pltpu.VMEM((hw, ch), jnp.float32),        # inputs_buf (f32)
            ],
        ),
        compiler_params=pltpu.CompilerParams(
            dimension_semantics=("parallel",),
            vmem_limit_bytes=32 * 1024 * 1024,
        ),
    )(x_col, res, w_in, w1, w2, w_out)

    out = out.reshape(n, h, w, cin_p)[..., :cin]
    return jnp.transpose(out, (0, 3, 1, 2))                          # NHWC -> NCHW


# ------------------------ deterministic init (He) --------------------------- #
def init_params(key, num_channels=3, ch=128):
    """PyTorch-layout OIHW weights, normal(0, sqrt(2 / (k*k*Cout)))."""
    def make(k, cout, cin):
        std = sqrt(2.0 / (3 * 3 * cout))
        return std * jax.random.normal(k, (cout, cin, 3, 3), jnp.float32)

    k1, k2, k3, k4 = jax.random.split(key, 4)
    return {
        "input": make(k1, ch, num_channels),
        "conv1": make(k2, ch, ch),
        "conv2": make(k3, ch, ch),
        "output": make(k4, num_channels, ch),
    }


# ----------------------- pure-JAX references (check) ------------------------ #
def _conv3x3_ref(x_nhwc, w_oihw, mxu_bf16):
    hwio = jnp.transpose(w_oihw, (2, 3, 1, 0))
    if mxu_bf16:
        x_nhwc = x_nhwc.astype(jnp.bfloat16)
        hwio = hwio.astype(jnp.bfloat16)
    return jax.lax.conv_general_dilated(
        x_nhwc, hwio, window_strides=(1, 1), padding="SAME",
        dimension_numbers=("NHWC", "HWIO", "NHWC"),
        preferred_element_type=jnp.float32)


def drrn_ref(x_nchw, params, num_recursions=25, mxu_bf16=True):
    """Reference.  mxu_bf16=True mirrors the kernel's precision contract
    (bf16 conv operands, f32 accumulation / relu / adds)."""
    x = jnp.transpose(x_nchw, (0, 2, 3, 1)).astype(jnp.float32)
    residual = x
    inputs = _conv3x3_ref(x, params["input"], mxu_bf16)
    out = inputs
    for _ in range(num_recursions):
        h = _conv3x3_ref(jax.nn.relu(out), params["conv1"], mxu_bf16)
        out = _conv3x3_ref(jax.nn.relu(h), params["conv2"], mxu_bf16) + inputs
    out = _conv3x3_ref(jax.nn.relu(out), params["output"], mxu_bf16) + residual
    return jnp.transpose(out, (0, 3, 1, 2))


if __name__ == "__main__":
    key = jax.random.PRNGKey(0)
    kx, kp = jax.random.split(key)

    num_channels, ch = 3, 128        # the module's default channel width
    N, H, W = 2, 16, 16
    x = jax.random.normal(kx, (N, num_channels, H, W), jnp.float32)
    params = init_params(kp, num_channels=num_channels, ch=ch)

    out = jax.block_until_ready(jax.jit(drrn_forward)(x, params))
    assert out.shape == x.shape, (out.shape, x.shape)

    # Tight structural check vs. a reference with the SAME precision contract
    # (bf16 conv operands, f32 accumulation / adds).
    ref_b = jax.block_until_ready(jax.jit(drrn_ref)(x, params))
    err_b = float(jnp.max(jnp.abs(out - ref_b)) / (jnp.max(jnp.abs(ref_b)) + 1e-6))
    assert err_b < 2e-2, f"mismatch vs bf16-operand reference: rel_err={err_b}"

    # Loose end-to-end check vs. the full-f32 module (bounds bf16 drift over
    # the 25 recursions).
    ref_f = jax.block_until_ready(
        jax.jit(functools.partial(drrn_ref, mxu_bf16=False))(x, params))
    err_f = float(jnp.max(jnp.abs(out - ref_f)) / (jnp.max(jnp.abs(ref_f)) + 1e-6))
    assert err_f < 1.5e-1, f"excessive bf16 drift vs f32 reference: rel_err={err_f}"

    print("KERNEL_OK")
</pallas_src>

<mosaic_0001>
module attributes {stable_mosaic.version = 11 : i64} {
  func.func @_drrn_kernel(%arg0: i32, %arg1: memref<1x256x72xbf16, #tpu.memory_space<vmem>>, %arg2: memref<1x256x8xf32, #tpu.memory_space<vmem>>, %arg3: memref<72x128xbf16, #tpu.memory_space<vmem>>, %arg4: memref<1152x128xbf16, #tpu.memory_space<vmem>>, %arg5: memref<1152x128xbf16, #tpu.memory_space<vmem>>, %arg6: memref<1152x8xbf16, #tpu.memory_space<vmem>>, %arg7: memref<1x256x8xf32, #tpu.memory_space<vmem>>, %arg8: memref<256x1152xbf16, #tpu.memory_space<vmem>>, %arg9: memref<256x1152xbf16, #tpu.memory_space<vmem>>, %arg10: memref<256x128xf32, #tpu.memory_space<vmem>>) attributes {dimension_semantics = [#tpu.dimension_semantics<parallel>], iteration_bounds = array<i64: 2>, scalar_prefetch = 0 : i64, scratch_operands = 3 : i64, tpu.core_type = #tpu.core_type<tc>, window_params = [{transform_indices = @transform_0, window_bounds = array<i64: 1, 256, 72>}, {transform_indices = @transform_1, window_bounds = array<i64: 1, 256, 8>}, {pipeline_mode = #tpu.pipeline_mode<synchronous>, transform_indices = @transform_2, window_bounds = array<i64: 72, 128>}, {pipeline_mode = #tpu.pipeline_mode<synchronous>, transform_indices = @transform_3, window_bounds = array<i64: 1152, 128>}, {pipeline_mode = #tpu.pipeline_mode<synchronous>, transform_indices = @transform_4, window_bounds = array<i64: 1152, 128>}, {pipeline_mode = #tpu.pipeline_mode<synchronous>, transform_indices = @transform_5, window_bounds = array<i64: 1152, 8>}, {transform_indices = @transform_6, window_bounds = array<i64: 1, 256, 8>}]} {
    %c0 = arith.constant 0 : index
    %c0_0 = arith.constant 0 : index
    %c0_1 = arith.constant 0 : index
    %0 = vector.load %arg1[%c0, %c0_0, %c0_1] : memref<1x256x72xbf16, #tpu.memory_space<vmem>>, vector<1x256x72xbf16>
    %1 = vector.shape_cast %0 : vector<1x256x72xbf16> to vector<256x72xbf16>
    %c0_2 = arith.constant 0 : index
    %c0_3 = arith.constant 0 : index
    %2 = vector.load %arg3[%c0_2, %c0_3] : memref<72x128xbf16, #tpu.memory_space<vmem>>, vector<72x128xbf16>
    %cst = arith.constant dense<0.000000e+00> : vector<256x128xf32>
    %3 = tpu.matmul %1, %2, %cst {dimension_numbers = #tpu.dot_dimension_numbers<[1], [0], [0], [1], [0, 0, 1, 1], [], []>} : vector<256x72xbf16>, vector<72x128xbf16>, vector<256x128xf32> -> vector<256x128xf32>
    %c0_4 = arith.constant 0 : index
    %c0_5 = arith.constant 0 : index
    %4 = vector.load %arg10[%c0_4, %c0_5] : memref<256x128xf32, #tpu.memory_space<vmem>>, vector<256x128xf32>
    tpu.vector_store %arg10[%c0_4, %c0_5], %3 {strides = array<i32>} : memref<256x128xf32, #tpu.memory_space<vmem>>, vector<256x128xf32>,
    %cst_6 = arith.constant 0.000000e+00 : f32
    %5 = vector.broadcast %cst_6 : f32 to vector<256x128xf32>
    %6 = arith.maximumf %3, %5 : vector<256x128xf32>
    %7 = arith.truncf %6 : vector<256x128xf32> to vector<256x128xbf16>
    %8 = vector.shape_cast %7 : vector<256x128xbf16> to vector<16x16x128xbf16>
    %cst_7 = arith.constant 0.000000e+00 : bf16
    %9 = vector.broadcast %cst_7 : bf16 to vector<16x1x128xbf16>
    %10 = tpu.concatenate %9, %8, %9 in 1 : vector<16x1x128xbf16>, vector<16x16x128xbf16>, vector<16x1x128xbf16> -> vector<16x18x128xbf16>
    %cst_8 = arith.constant 0.000000e+00 : bf16
    %11 = vector.broadcast %cst_8 : bf16 to vector<1x18x128xbf16>
    %12 = tpu.concatenate %11, %10, %11 in 0 : vector<1x18x128xbf16>, vector<16x18x128xbf16>, vector<1x18x128xbf16> -> vector<18x18x128xbf16>
    %13 = vector.extract_strided_slice %12 {offsets = [0, 0, 0], sizes = [16, 16, 128], strides = [1, 1, 1]} : vector<18x18x128xbf16> to vector<16x16x128xbf16>
    %14 = vector.shape_cast %13 : vector<16x16x128xbf16> to vector<256x128xbf16>
    %c0_9 = arith.constant 0 : index
    %c0_10 = arith.constant 0 : index
    %15 = vector.load %arg8[%c0_9, %c0_10] : memref<256x1152xbf16, #tpu.memory_space<vmem>>, vector<256x128xbf16>
    tpu.vector_store %arg8[%c0_9, %c0_10], %14 {strides = array<i32>} : memref<256x1152xbf16, #tpu.memory_space<vmem>>, vector<256x128xbf16>,
    %16 = vector.extract_strided_slice %12 {offsets = [0, 1, 0], sizes = [16, 16, 128], strides = [1, 1, 1]} : vector<18x18x128xbf16> to vector<16x16x128xbf16>
    %17 = vector.shape_cast %16 : vector<16x16x128xbf16> to vector<256x128xbf16>
    %c0_11 = arith.constant 0 : index
    %c128 = arith.constant 128 : index
    %18 = vector.load %arg8[%c0_11, %c128] : memref<256x1152xbf16, #tpu.memory_space<vmem>>, vector<256x128xbf16>
    tpu.vector_store %arg8[%c0_11, %c128], %17 {strides = array<i32>} : memref<256x1152xbf16, #tpu.memory_space<vmem>>, vector<256x128xbf16>,
    %19 = vector.extract_strided_slice %12 {offsets = [0, 2, 0], sizes = [16, 16, 128], strides = [1, 1, 1]} : vector<18x18x128xbf16> to vector<16x16x128xbf16>
    %20 = vector.shape_cast %19 : vector<16x16x128xbf16> to vector<256x128xbf16>
    %c0_12 = arith.constant 0 : index
    %c256 = arith.constant 256 : index
    %21 = vector.load %arg8[%c0_12, %c256] : memref<256x1152xbf16, #tpu.memory_space<vmem>>, vector<256x128xbf16>
    tpu.vector_store %arg8[%c0_12, %c256], %20 {strides = array<i32>} : memref<256x1152xbf16, #tpu.memory_space<vmem>>, vector<256x128xbf16>,
    %22 = vector.extract_strided_slice %12 {offsets = [1, 0, 0], sizes = [16, 16, 128], strides = [1, 1, 1]} : vector<18x18x128xbf16> to vector<16x16x128xbf16>
    %23 = vector.shape_cast %22 : vector<16x16x128xbf16> to vector<256x128xbf16>
    %c0_13 = arith.constant 0 : index
    %c384 = arith.constant 384 : index
    %24 = vector.load %arg8[%c0_13, %c384] : memref<256x1152xbf16, #tpu.memory_space<vmem>>, vector<256x128xbf16>
    tpu.vector_store %arg8[%c0_13, %c384], %23 {strides = array<i32>} : memref<256x1152xbf16, #tpu.memory_space<vmem>>, vector<256x128xbf16>,
    %25 = vector.extract_strided_slice %12 {offsets = [1, 1, 0], sizes = [16, 16, 128], strides = [1, 1, 1]} : vector<18x18x128xbf16> to vector<16x16x128xbf16>
    %26 = vector.shape_cast %25 : vector<16x16x128xbf16> to vector<256x128xbf16>
    %c0_14 = arith.constant 0 : index
    %c512 = arith.constant 512 : index
    %27 = vector.load %arg8[%c0_14, %c512] : memref<256x1152xbf16, #tpu.memory_space<vmem>>, vector<256x128xbf16>
    tpu.vector_store %arg8[%c0_14, %c512], %26 {strides = array<i32>} : memref<256x1152xbf16, #tpu.memory_space<vmem>>, vector<256x128xbf16>,
    %28 = vector.extract_strided_slice %12 {offsets = [1, 2, 0], sizes = [16, 16, 128], strides = [1, 1, 1]} : vector<18x18x128xbf16> to vector<16x16x128xbf16>
    %29 = vector.shape_cast %28 : vector<16x16x128xbf16> to vector<256x128xbf16>
    %c0_15 = arith.constant 0 : index
    %c640 = arith.constant 640 : index
    %30 = vector.load %arg8[%c0_15, %c640] : memref<256x1152xbf16, #tpu.memory_space<vmem>>, vector<256x128xbf16>
    tpu.vector_store %arg8[%c0_15, %c640], %29 {strides = array<i32>} : memref<256x1152xbf16, #tpu.memory_space<vmem>>, vector<256x128xbf16>,
    %31 = vector.extract_strided_slice %12 {offsets = [2, 0, 0], sizes = [16, 16, 128], strides = [1, 1, 1]} : vector<18x18x128xbf16> to vector<16x16x128xbf16>
    %32 = vector.shape_cast %31 : vector<16x16x128xbf16> to vector<256x128xbf16>
    %c0_16 = arith.constant 0 : index
    %c768 = arith.constant 768 : index
    %33 = vector.load %arg8[%c0_16, %c768] : memref<256x1152xbf16, #tpu.memory_space<vmem>>, vector<256x128xbf16>
    tpu.vector_store %arg8[%c0_16, %c768], %32 {strides = array<i32>} : memref<256x1152xbf16, #tpu.memory_space<vmem>>, vector<256x128xbf16>,
    %34 = vector.extract_strided_slice %12 {offsets = [2, 1, 0], sizes = [16, 16, 128], strides = [1, 1, 1]} : vector<18x18x128xbf16> to vector<16x16x128xbf16>
    %35 = vector.shape_cast %34 : vector<16x16x128xbf16> to vector<256x128xbf16>
    %c0_17 = arith.constant 0 : index
    %c896 = arith.constant 896 : index
    %36 = vector.load %arg8[%c0_17, %c896] : memref<256x1152xbf16, #tpu.memory_space<vmem>>, vector<256x128xbf16>
    tpu.vector_store %arg8[%c0_17, %c896], %35 {strides = array<i32>} : memref<256x1152xbf16, #tpu.memory_space<vmem>>, vector<256x128xbf16>,
    %37 = vector.extract_strided_slice %12 {offsets = [2, 2, 0], sizes = [16, 16, 128], strides = [1, 1, 1]} : vector<18x18x128xbf16> to vector<16x16x128xbf16>
    %38 = vector.shape_cast %37 : vector<16x16x128xbf16> to vector<256x128xbf16>
    %c0_18 = arith.constant 0 : index
    %c1024 = arith.constant 1024 : index
    %39 = vector.load %arg8[%c0_18, %c1024] : memref<256x1152xbf16, #tpu.memory_space<vmem>>, vector<256x128xbf16>
    tpu.vector_store %arg8[%c0_18, %c1024], %38 {strides = array<i32>} : memref<256x1152xbf16, #tpu.memory_space<vmem>>, vector<256x128xbf16>,
    %c0_i32 = arith.constant 0 : i32
    %c25_i32 = arith.constant 25 : i32
    %40 = arith.addi %c0_i32, %c25_i32 : i32
    %c1_i32 = arith.constant 1 : i32
    scf.for %arg11 = %c0_i32 to %40 step %c1_i32  : i32 {
      %c0_30 = arith.constant 0 : index
      %c0_31 = arith.constant 0 : index
      %50 = vector.load %arg8[%c0_30, %c0_31] : memref<256x1152xbf16, #tpu.memory_space<vmem>>, vector<256x1152xbf16>
      %c0_32 = arith.constant 0 : index
      %c0_33 = arith.constant 0 : index
      %51 = vector.load %arg4[%c0_32, %c0_33] : memref<1152x128xbf16, #tpu.memory_space<vmem>>, vector<1152x128xbf16>
      %cst_34 = arith.constant dense<0.000000e+00> : vector<256x128xf32>
      %52 = tpu.matmul %50, %51, %cst_34 {dimension_numbers = #tpu.dot_dimension_numbers<[1], [0], [0], [1], [0, 0, 1, 1], [], []>} : vector<256x1152xbf16>, vector<1152x128xbf16>, vector<256x128xf32> -> vector<256x128xf32>
      %cst_35 = arith.constant 0.000000e+00 : f32
      %53 = vector.broadcast %cst_35 : f32 to vector<256x128xf32>
      %54 = arith.maximumf %52, %53 : vector<256x128xf32>
      %55 = arith.truncf %54 : vector<256x128xf32> to vector<256x128xbf16>
      %56 = vector.shape_cast %55 : vector<256x128xbf16> to vector<16x16x128xbf16>
      %cst_36 = arith.constant 0.000000e+00 : bf16
      %57 = vector.broadcast %cst_36 : bf16 to vector<16x1x128xbf16>
      %58 = tpu.concatenate %57, %56, %57 in 1 : vector<16x1x128xbf16>, vector<16x16x128xbf16>, vector<16x1x128xbf16> -> vector<16x18x128xbf16>
      %cst_37 = arith.constant 0.000000e+00 : bf16
      %59 = vector.broadcast %cst_37 : bf16 to vector<1x18x128xbf16>
      %60 = tpu.concatenate %59, %58, %59 in 0 : vector<1x18x128xbf16>, vector<16x18x128xbf16>, vector<1x18x128xbf16> -> vector<18x18x128xbf16>
      %61 = vector.extract_strided_slice %60 {offsets = [0, 0, 0], sizes = [16, 16, 128], strides = [1, 1, 1]} : vector<18x18x128xbf16> to vector<16x16x128xbf16>
      %62 = vector.shape_cast %61 : vector<16x16x128xbf16> to vector<256x128xbf16>
      %c0_38 = arith.constant 0 : index
      %c0_39 = arith.constant 0 : index
      %63 = vector.load %arg9[%c0_38, %c0_39] : memref<256x1152xbf16, #tpu.memory_space<vmem>>, vector<256x128xbf16>
      tpu.vector_store %arg9[%c0_38, %c0_39], %62 {strides = array<i32>} : memref<256x1152xbf16, #tpu.memory_space<vmem>>, vector<256x128xbf16>,
      %64 = vector.extract_strided_slice %60 {offsets = [0, 1, 0], sizes = [16, 16, 128], strides = [1, 1, 1]} : vector<18x18x128xbf16> to vector<16x16x128xbf16>
      %65 = vector.shape_cast %64 : vector<16x16x128xbf16> to vector<256x128xbf16>
      %c0_40 = arith.constant 0 : index
      %c128_41 = arith.constant 128 : index
      %66 = vector.load %arg9[%c0_40, %c128_41] : memref<256x1152xbf16, #tpu.memory_space<vmem>>, vector<256x128xbf16>
      tpu.vector_store %arg9[%c0_40, %c128_41], %65 {strides = array<i32>} : memref<256x1152xbf16, #tpu.memory_space<vmem>>, vector<256x128xbf16>,
      %67 = vector.extract_strided_slice %60 {offsets = [0, 2, 0], sizes = [16, 16, 128], strides = [1, 1, 1]} : vector<18x18x128xbf16> to vector<16x16x128xbf16>
      %68 = vector.shape_cast %67 : vector<16x16x128xbf16> to vector<256x128xbf16>
      %c0_42 = arith.constant 0 : index
      %c256_43 = arith.constant 256 : index
      %69 = vector.load %arg9[%c0_42, %c256_43] : memref<256x1152xbf16, #tpu.memory_space<vmem>>, vector<256x128xbf16>
      tpu.vector_store %arg9[%c0_42, %c256_43], %68 {strides = array<i32>} : memref<256x1152xbf16, #tpu.memory_space<vmem>>, vector<256x128xbf16>,
      %70 = vector.extract_strided_slice %60 {offsets = [1, 0, 0], sizes = [16, 16, 128], strides = [1, 1, 1]} : vector<18x18x128xbf16> to vector<16x16x128xbf16>
      %71 = vector.shape_cast %70 : vector<16x16x128xbf16> to vector<256x128xbf16>
      %c0_44 = arith.constant 0 : index
      %c384_45 = arith.constant 384 : index
      %72 = vector.load %arg9[%c0_44, %c384_45] : memref<256x1152xbf16, #tpu.memory_space<vmem>>, vector<256x128xbf16>
      tpu.vector_store %arg9[%c0_44, %c384_45], %71 {strides = array<i32>} : memref<256x1152xbf16, #tpu.memory_space<vmem>>, vector<256x128xbf16>,
      %73 = vector.extract_strided_slice %60 {offsets = [1, 1, 0], sizes = [16, 16, 128], strides = [1, 1, 1]} : vector<18x18x128xbf16> to vector<16x16x128xbf16>
      %74 = vector.shape_cast %73 : vector<16x16x128xbf16> to vector<256x128xbf16>
      %c0_46 = arith.constant 0 : index
      %c512_47 = arith.constant 512 : index
      %75 = vector.load %arg9[%c0_46, %c512_47] : memref<256x1152xbf16, #tpu.memory_space<vmem>>, vector<256x128xbf16>
      tpu.vector_store %arg9[%c0_46, %c512_47], %74 {strides = array<i32>} : memref<256x1152xbf16, #tpu.memory_space<vmem>>, vector<256x128xbf16>,
      %76 = vector.extract_strided_slice %60 {offsets = [1, 2, 0], sizes = [16, 16, 128], strides = [1, 1, 1]} : vector<18x18x128xbf16> to vector<16x16x128xbf16>
      %77 = vector.shape_cast %76 : vector<16x16x128xbf16> to vector<256x128xbf16>
      %c0_48 = arith.constant 0 : index
      %c640_49 = arith.constant 640 : index
      %78 = vector.load %arg9[%c0_48, %c640_49] : memref<256x1152xbf16, #tpu.memory_space<vmem>>, vector<256x128xbf16>
      tpu.vector_store %arg9[%c0_48, %c640_49], %77 {strides = array<i32>} : memref<256x1152xbf16, #tpu.memory_space<vmem>>, vector<256x128xbf16>,
      %79 = vector.extract_strided_slice %60 {offsets = [2, 0, 0], sizes = [16, 16, 128], strides = [1, 1, 1]} : vector<18x18x128xbf16> to vector<16x16x128xbf16>
      %80 = vector.shape_cast %79 : vector<16x16x128xbf16> to vector<256x128xbf16>
      %c0_50 = arith.constant 0 : index
      %c768_51 = arith.constant 768 : index
      %81 = vector.load %arg9[%c0_50, %c768_51] : memref<256x1152xbf16, #tpu.memory_space<vmem>>, vector<256x128xbf16>
      tpu.vector_store %arg9[%c0_50, %c768_51], %80 {strides = array<i32>} : memref<256x1152xbf16, #tpu.memory_space<vmem>>, vector<256x128xbf16>,
      %82 = vector.extract_strided_slice %60 {offsets = [2, 1, 0], sizes = [16, 16, 128], strides = [1, 1, 1]} : vector<18x18x128xbf16> to vector<16x16x128xbf16>
      %83 = vector.shape_cast %82 : vector<16x16x128xbf16> to vector<256x128xbf16>
      %c0_52 = arith.constant 0 : index
      %c896_53 = arith.constant 896 : index
      %84 = vector.load %arg9[%c0_52, %c896_53] : memref<256x1152xbf16, #tpu.memory_space<vmem>>, vector<256x128xbf16>
      tpu.vector_store %arg9[%c0_52, %c896_53], %83 {strides = array<i32>} : memref<256x1152xbf16, #tpu.memory_space<vmem>>, vector<256x128xbf16>,
      %85 = vector.extract_strided_slice %60 {offsets = [2, 2, 0], sizes = [16, 16, 128], strides = [1, 1, 1]} : vector<18x18x128xbf16> to vector<16x16x128xbf16>
      %86 = vector.shape_cast %85 : vector<16x16x128xbf16> to vector<256x128xbf16>
      %c0_54 = arith.constant 0 : index
      %c1024_55 = arith.constant 1024 : index
      %87 = vector.load %arg9[%c0_54, %c1024_55] : memref<256x1152xbf16, #tpu.memory_space<vmem>>, vector<256x128xbf16>
      tpu.vector_store %arg9[%c0_54, %c1024_55], %86 {strides = array<i32>} : memref<256x1152xbf16, #tpu.memory_space<vmem>>, vector<256x128xbf16>,
      %c0_56 = arith.constant 0 : index
      %c0_57 = arith.constant 0 : index
      %88 = vector.load %arg9[%c0_56, %c0_57] : memref<256x1152xbf16, #tpu.memory_space<vmem>>, vector<256x1152xbf16>
      %c0_58 = arith.constant 0 : index
      %c0_59 = arith.constant 0 : index
      %89 = vector.load %arg5[%c0_58, %c0_59] : memref<1152x128xbf16, #tpu.memory_space<vmem>>, vector<1152x128xbf16>
      %cst_60 = arith.constant dense<0.000000e+00> : vector<256x128xf32>
      %90 = tpu.matmul %88, %89, %cst_60 {dimension_numbers = #tpu.dot_dimension_numbers<[1], [0], [0], [1], [0, 0, 1, 1], [], []>} : vector<256x1152xbf16>, vector<1152x128xbf16>, vector<256x128xf32> -> vector<256x128xf32>
      %c0_61 = arith.constant 0 : index
      %c0_62 = arith.constant 0 : index
      %91 = vector.load %arg10[%c0_61, %c0_62] : memref<256x128xf32, #tpu.memory_space<vmem>>, vector<256x128xf32>
      %92 = arith.addf %90, %91 : vector<256x128xf32>
      %cst_63 = arith.constant 0.000000e+00 : f32
      %93 = vector.broadcast %cst_63 : f32 to vector<256x128xf32>
      %94 = arith.maximumf %92, %93 : vector<256x128xf32>
      %95 = arith.truncf %94 : vector<256x128xf32> to vector<256x128xbf16>
      %96 = vector.shape_cast %95 : vector<256x128xbf16> to vector<16x16x128xbf16>
      %cst_64 = arith.constant 0.000000e+00 : bf16
      %97 = vector.broadcast %cst_64 : bf16 to vector<16x1x128xbf16>
      %98 = tpu.concatenate %97, %96, %97 in 1 : vector<16x1x128xbf16>, vector<16x16x128xbf16>, vector<16x1x128xbf16> -> vector<16x18x128xbf16>
      %cst_65 = arith.constant 0.000000e+00 : bf16
      %99 = vector.broadcast %cst_65 : bf16 to vector<1x18x128xbf16>
      %100 = tpu.concatenate %99, %98, %99 in 0 : vector<1x18x128xbf16>, vector<16x18x128xbf16>, vector<1x18x128xbf16> -> vector<18x18x128xbf16>
      %101 = vector.extract_strided_slice %100 {offsets = [0, 0, 0], sizes = [16, 16, 128], strides = [1, 1, 1]} : vector<18x18x128xbf16> to vector<16x16x128xbf16>
      %102 = vector.shape_cast %101 : vector<16x16x128xbf16> to vector<256x128xbf16>
      %c0_66 = arith.constant 0 : index
      %c0_67 = arith.constant 0 : index
      %103 = vector.load %arg8[%c0_66, %c0_67] : memref<256x1152xbf16, #tpu.memory_space<vmem>>, vector<256x128xbf16>
      tpu.vector_store %arg8[%c0_66, %c0_67], %102 {strides = array<i32>} : memref<256x1152xbf16, #tpu.memory_space<vmem>>, vector<256x128xbf16>,
      %104 = vector.extract_strided_slice %100 {offsets = [0, 1, 0], sizes = [16, 16, 128], strides = [1, 1, 1]} : vector<18x18x128xbf16> to vector<16x16x128xbf16>
      %105 = vector.shape_cast %104 : vector<16x16x128xbf16> to vector<256x128xbf16>
      %c0_68 = arith.constant 0 : index
      %c128_69 = arith.constant 128 : index
      %106 = vector.load %arg8[%c0_68, %c128_69] : memref<256x1152xbf16, #tpu.memory_space<vmem>>, vector<256x128xbf16>
      tpu.vector_store %arg8[%c0_68, %c128_69], %105 {strides = array<i32>} : memref<256x1152xbf16, #tpu.memory_space<vmem>>, vector<256x128xbf16>,
      %107 = vector.extract_strided_slice %100 {offsets = [0, 2, 0], sizes = [16, 16, 128], strides = [1, 1, 1]} : vector<18x18x128xbf16> to vector<16x16x128xbf16>
      %108 = vector.shape_cast %107 : vector<16x16x128xbf16> to vector<256x128xbf16>
      %c0_70 = arith.constant 0 : index
      %c256_71 = arith.constant 256 : index
      %109 = vector.load %arg8[%c0_70, %c256_71] : memref<256x1152xbf16, #tpu.memory_space<vmem>>, vector<256x128xbf16>
      tpu.vector_store %arg8[%c0_70, %c256_71], %108 {strides = array<i32>} : memref<256x1152xbf16, #tpu.memory_space<vmem>>, vector<256x128xbf16>,
      %110 = vector.extract_strided_slice %100 {offsets = [1, 0, 0], sizes = [16, 16, 128], strides = [1, 1, 1]} : vector<18x18x128xbf16> to vector<16x16x128xbf16>
      %111 = vector.shape_cast %110 : vector<16x16x128xbf16> to vector<256x128xbf16>
      %c0_72 = arith.constant 0 : index
      %c384_73 = arith.constant 384 : index
      %112 = vector.load %arg8[%c0_72, %c384_73] : memref<256x1152xbf16, #tpu.memory_space<vmem>>, vector<256x128xbf16>
      tpu.vector_store %arg8[%c0_72, %c384_73], %111 {strides = array<i32>} : memref<256x1152xbf16, #tpu.memory_space<vmem>>, vector<256x128xbf16>,
      %113 = vector.extract_strided_slice %100 {offsets = [1, 1, 0], sizes = [16, 16, 128], strides = [1, 1, 1]} : vector<18x18x128xbf16> to vector<16x16x128xbf16>
      %114 = vector.shape_cast %113 : vector<16x16x128xbf16> to vector<256x128xbf16>
      %c0_74 = arith.constant 0 : index
      %c512_75 = arith.constant 512 : index
      %115 = vector.load %arg8[%c0_74, %c512_75] : memref<256x1152xbf16, #tpu.memory_space<vmem>>, vector<256x128xbf16>
      tpu.vector_store %arg8[%c0_74, %c512_75], %114 {strides = array<i32>} : memref<256x1152xbf16, #tpu.memory_space<vmem>>, vector<256x128xbf16>,
      %116 = vector.extract_strided_slice %100 {offsets = [1, 2, 0], sizes = [16, 16, 128], strides = [1, 1, 1]} : vector<18x18x128xbf16> to vector<16x16x128xbf16>
      %117 = vector.shape_cast %116 : vector<16x16x128xbf16> to vector<256x128xbf16>
      %c0_76 = arith.constant 0 : index
      %c640_77 = arith.constant 640 : index
      %118 = vector.load %arg8[%c0_76, %c640_77] : memref<256x1152xbf16, #tpu.memory_space<vmem>>, vector<256x128xbf16>
      tpu.vector_store %arg8[%c0_76, %c640_77], %117 {strides = array<i32>} : memref<256x1152xbf16, #tpu.memory_space<vmem>>, vector<256x128xbf16>,
      %119 = vector.extract_strided_slice %100 {offsets = [2, 0, 0], sizes = [16, 16, 128], strides = [1, 1, 1]} : vector<18x18x128xbf16> to vector<16x16x128xbf16>
      %120 = vector.shape_cast %119 : vector<16x16x128xbf16> to vector<256x128xbf16>
      %c0_78 = arith.constant 0 : index
      %c768_79 = arith.constant 768 : index
      %121 = vector.load %arg8[%c0_78, %c768_79] : memref<256x1152xbf16, #tpu.memory_space<vmem>>, vector<256x128xbf16>
      tpu.vector_store %arg8[%c0_78, %c768_79], %120 {strides = array<i32>} : memref<256x1152xbf16, #tpu.memory_space<vmem>>, vector<256x128xbf16>,
      %122 = vector.extract_strided_slice %100 {offsets = [2, 1, 0], sizes = [16, 16, 128], strides = [1, 1, 1]} : vector<18x18x128xbf16> to vector<16x16x128xbf16>
      %123 = vector.shape_cast %122 : vector<16x16x128xbf16> to vector<256x128xbf16>
      %c0_80 = arith.constant 0 : index
      %c896_81 = arith.constant 896 : index
      %124 = vector.load %arg8[%c0_80, %c896_81] : memref<256x1152xbf16, #tpu.memory_space<vmem>>, vector<256x128xbf16>
      tpu.vector_store %arg8[%c0_80, %c896_81], %123 {strides = array<i32>} : memref<256x1152xbf16, #tpu.memory_space<vmem>>, vector<256x128xbf16>,
      %125 = vector.extract_strided_slice %100 {offsets = [2, 2, 0], sizes = [16, 16, 128], strides = [1, 1, 1]} : vector<18x18x128xbf16> to vector<16x16x128xbf16>
      %126 = vector.shape_cast %125 : vector<16x16x128xbf16> to vector<256x128xbf16>
      %c0_82 = arith.constant 0 : index
      %c1024_83 = arith.constant 1024 : index
      %127 = vector.load %arg8[%c0_82, %c1024_83] : memref<256x1152xbf16, #tpu.memory_space<vmem>>, vector<256x128xbf16>
      tpu.vector_store %arg8[%c0_82, %c1024_83], %126 {strides = array<i32>} : memref<256x1152xbf16, #tpu.memory_space<vmem>>, vector<256x128xbf16>,
    }
    %c0_19 = arith.constant 0 : index
    %c0_20 = arith.constant 0 : index
    %41 = vector.load %arg8[%c0_19, %c0_20] : memref<256x1152xbf16, #tpu.memory_space<vmem>>, vector<256x1152xbf16>
    %c0_21 = arith.constant 0 : index
    %c0_22 = arith.constant 0 : index
    %42 = vector.load %arg6[%c0_21, %c0_22] : memref<1152x8xbf16, #tpu.memory_space<vmem>>, vector<1152x8xbf16>
    %cst_23 = arith.constant dense<0.000000e+00> : vector<256x8xf32>
    %43 = tpu.matmul %41, %42, %cst_23 {dimension_numbers = #tpu.dot_dimension_numbers<[1], [0], [0], [1], [0, 0, 1, 1], [], []>} : vector<256x1152xbf16>, vector<1152x8xbf16>, vector<256x8xf32> -> vector<256x8xf32>
    %c0_24 = arith.constant 0 : index
    %c0_25 = arith.constant 0 : index
    %c0_26 = arith.constant 0 : index
    %44 = vector.load %arg2[%c0_24, %c0_25, %c0_26] : memref<1x256x8xf32, #tpu.memory_space<vmem>>, vector<1x256x8xf32>
    %45 = vector.shape_cast %44 : vector<1x256x8xf32> to vector<256x8xf32>
    %46 = arith.addf %43, %45 : vector<256x8xf32>
    %c0_27 = arith.constant 0 : index
    %c0_28 = arith.constant 0 : index
    %c0_29 = arith.constant 0 : index
    %47 = vector.load %arg7[%c0_27, %c0_28, %c0_29] : memref<1x256x8xf32, #tpu.memory_space<vmem>>, vector<1x256x8xf32>
    %48 = vector.shape_cast %47 : vector<1x256x8xf32> to vector<256x8xf32>
    %49 = vector.shape_cast %46 : vector<256x8xf32> to vector<1x256x8xf32>
    tpu.vector_store %arg7[%c0_27, %c0_28, %c0_29], %49 {strides = array<i32>} : memref<1x256x8xf32, #tpu.memory_space<vmem>>, vector<1x256x8xf32>,
    return
  }
  func.func @transform_0(%arg0: i32) -> (i32, i32, i32) {
    %c0_i32 = arith.constant 0 : i32
    %c0_i32_0 = arith.constant 0 : i32
    %c0_i32_1 = arith.constant 0 : i32
    return %arg0, %c0_i32, %c0_i32_0 : i32, i32, i32
  }
  func.func @transform_1(%arg0: i32) -> (i32, i32, i32) {
    %c0_i32 = arith.constant 0 : i32
    %c0_i32_0 = arith.constant 0 : i32
    %c0_i32_1 = arith.constant 0 : i32
    return %arg0, %c0_i32, %c0_i32_0 : i32, i32, i32
  }
  func.func @transform_2(%arg0: i32) -> (i32, i32) {
    %c0_i32 = arith.constant 0 : i32
    %c0_i32_0 = arith.constant 0 : i32
    %c0_i32_1 = arith.constant 0 : i32
    return %c0_i32, %c0_i32_0 : i32, i32
  }
  func.func @transform_3(%arg0: i32) -> (i32, i32) {
    %c0_i32 = arith.constant 0 : i32
    %c0_i32_0 = arith.constant 0 : i32
    %c0_i32_1 = arith.constant 0 : i32
    return %c0_i32, %c0_i32_0 : i32, i32
  }
  func.func @transform_4(%arg0: i32) -> (i32, i32) {
    %c0_i32 = arith.constant 0 : i32
    %c0_i32_0 = arith.constant 0 : i32
    %c0_i32_1 = arith.constant 0 : i32
    return %c0_i32, %c0_i32_0 : i32, i32
  }
  func.func @transform_5(%arg0: i32) -> (i32, i32) {
    %c0_i32 = arith.constant 0 : i32
    %c0_i32_0 = arith.constant 0 : i32
    %c0_i32_1 = arith.constant 0 : i32
    return %c0_i32, %c0_i32_0 : i32, i32
  }
  func.func @transform_6(%arg0: i32) -> (i32, i32, i32) {
    %c0_i32 = arith.constant 0 : i32
    %c0_i32_0 = arith.constant 0 : i32
    %c0_i32_1 = arith.constant 0 : i32
    return %arg0, %c0_i32, %c0_i32_0 : i32, i32, i32
  }
}

</mosaic_0001>

<llo_original>
// kernel: drrn_forward.1
$region0: #{drrn_forward.1}
  #allocation0 [shape = 'u32[]', space=smem, size = 0x4, offset = 0x4, fixed_abs, tag = 'smem constant byte address 0x4 - core index']
  #allocation1 [shape = 'u32[72,128]{1,0:T(1,128)}', space=vmem, size = 0x9000, scoped, tag = 'internal scratch']
  #allocation2 [shape = 'bf16[256,1152]{1,0:T(8,128)(2,1)}', space=vmem, size = 0x90000, scoped, tag = 'scratch operand']
  #allocation3 [shape = 'bf16[256,1152]{1,0:T(8,128)(2,1)}', space=vmem, size = 0x90000, scoped, tag = 'scratch operand']
  #allocation4 [shape = 'f32[256,128]{1,0:T(8,128)}', space=vmem, size = 0x20000, scoped, tag = 'scratch operand']
  %s0 = inlined_call_operand.vmem [shape: bf16[2,256,72], index: 0, kind: input, shape index: {}]
  %s1 = inlined_call_operand.vmem [shape: f32[2,256,8], index: 1, kind: input, shape index: {}]
  %s2 = inlined_call_operand.vmem [shape: bf16[72,128], index: 2, kind: input, shape index: {}]
  %s3 = inlined_call_operand.vmem [shape: bf16[1152,128], index: 3, kind: input, shape index: {}]
  %s4 = inlined_call_operand.vmem [shape: bf16[1152,128], index: 4, kind: input, shape index: {}]
  %s5 = inlined_call_operand.vmem [shape: bf16[1152,8], index: 5, kind: input, shape index: {}]
  %s6 = inlined_call_operand.vmem [shape: f32[2,256,8], index: 6, kind: output, shape index: {}]
  %s7 = sld [smem:[#allocation0]]
  $region64: #{drrn_forward.1} parent=0
    _
  %s9 = ssub.s32 1, %s7
  %s10 = scalar_select 0, %s9, %s7
  loop: start=0, step=1, limit=4
  $region2: #{drrn_forward.1} parent=0 // loop_pre_header
    _
  $region3: #{drrn_forward.1} parent=0 // loop_header
    %s12 = sphi 0, %s16
    %p13 = scmp.ge.s32.totalorder %s12, 4
    %s22 = sphi 0, %s24
    %s25 = sphi 0, %s22
    %s26 = sphi 0, %s25
    %s42 = sphi 0, %s26
    %s48 = sphi 0, %s50
    %s51 = sphi 0, %s48
    %s52 = sphi 0, %s51
    %s68 = sphi 0, %s52
    %s72 = sphi 0, %s72
    %s74 = sphi 0, %s72
    %s75 = sphi 0, %s74
    %s89 = sphi 0, %s75
    %s93 = sphi 0, %s93
    %s95 = sphi 0, %s93
    %s96 = sphi 0, %s95
    %s110 = sphi 0, %s96
    %s114 = sphi 0, %s114
    %s116 = sphi 0, %s114
    %s117 = sphi 0, %s116
    %s131 = sphi 0, %s117
    %s135 = sphi 0, %s135
    %s137 = sphi 0, %s135
    %s138 = sphi 0, %s137
    %s152 = sphi 0, %s138
    %s158 = sphi 0, %s160
    %s161 = sphi 0, %s158
    %s162 = sphi 0, %s161
    %s178 = sphi 0, %s162
  $region4: #{drrn_forward.1} parent=0 // loop_header_branch
    %15 = sbr.rel (%p13) target = $region8
  $region5: #{drrn_forward.1} parent=0 // loop_body
    %s17 = ssub.s32 %s12, 1
    %s18 = ssub.s32 %s12, 2
    %s19 = sadd.s32 %s12, 1
    %s20 = ssub.s32 %s12, %s19
    %p21 = scmp.eq.s32.totalorder %s20, 0
    %s23 = sadd.s32 %s22, 1
    %s24 = scalar_select %p21, %s22, %s23
    %p27 = pneg %p21
    %p28 = scmp.eq.s32.totalorder %s12, 1
    %p29 = por %p27, %p28
    %p30 = scmp.ne.s32.totalorder %s22, %s25
    %p31 = scmp.eq.s32.totalorder %s12, 0
    %p32 = por %p30, %p31
    %p33 = scmp.ne.s32.totalorder %s22, %s25
    %p34 = scmp.eq.s32.totalorder %s17, 1
    %p35 = por %p33, %p34
    %p36 = scmp.ne.s32.totalorder %s25, %s26
    %p37 = scmp.eq.s32.totalorder %s17, 0
    %p38 = por %p36, %p37
    %p39 = scmp.ne.s32.totalorder %s25, %s26
    %p40 = scmp.eq.s32.totalorder %s18, 1
    %p41 = por %p39, %p40
    %p43 = scmp.ne.s32.totalorder %s26, %s42
    %p44 = scmp.eq.s32.totalorder %s18, 0
    %p45 = por %p43, %p44
    %s46 = ssub.s32 %s12, %s19
    %p47 = scmp.eq.s32.totalorder %s46, 0
    %s49 = sadd.s32 %s48, 1
    %s50 = scalar_select %p47, %s48, %s49
    %p53 = pneg %p47
    %p54 = scmp.eq.s32.totalorder %s12, 1
    %p55 = por %p53, %p54
    %p56 = scmp.ne.s32.totalorder %s48, %s51
    %p57 = scmp.eq.s32.totalorder %s12, 0
    %p58 = por %p56, %p57
    %p59 = scmp.ne.s32.totalorder %s48, %s51
    %p60 = scmp.eq.s32.totalorder %s17, 1
    %p61 = por %p59, %p60
    %p62 = scmp.ne.s32.totalorder %s51, %s52
    %p63 = scmp.eq.s32.totalorder %s17, 0
    %p64 = por %p62, %p63
    %p65 = scmp.ne.s32.totalorder %s51, %s52
    %p66 = scmp.eq.s32.totalorder %s18, 1
    %p67 = por %p65, %p66
    %p69 = scmp.ne.s32.totalorder %s52, %s68
    %p70 = scmp.eq.s32.totalorder %s18, 0
    %p71 = por %p69, %p70
    %s73 = sadd.s32 %s72, 1
    %p76 = scmp.eq.s32.totalorder %s12, 1
    %p77 = scmp.ne.s32.totalorder %s72, %s74
    %p78 = scmp.eq.s32.totalorder %s12, 0
    %p79 = por %p77, %p78
    %p80 = scmp.ne.s32.totalorder %s72, %s74
    %p81 = scmp.eq.s32.totalorder %s17, 1
    %p82 = por %p80, %p81
    %p83 = scmp.ne.s32.totalorder %s74, %s75
    %p84 = scmp.eq.s32.totalorder %s17, 0
    %p85 = por %p83, %p84
    %p86 = scmp.ne.s32.totalorder %s74, %s75
    %p87 = scmp.eq.s32.totalorder %s18, 1
    %p88 = por %p86, %p87
    %p90 = scmp.ne.s32.totalorder %s75, %s89
    %p91 = scmp.eq.s32.totalorder %s18, 0
    %p92 = por %p90, %p91
    %s94 = sadd.s32 %s93, 1
    %p97 = scmp.eq.s32.totalorder %s12, 1
    %p98 = scmp.ne.s32.totalorder %s93, %s95
    %p99 = scmp.eq.s32.totalorder %s12, 0
    %p100 = por %p98, %p99
    %p101 = scmp.ne.s32.totalorder %s93, %s95
    %p102 = scmp.eq.s32.totalorder %s17, 1
    %p103 = por %p101, %p102
    %p104 = scmp.ne.s32.totalorder %s95, %s96
    %p105 = scmp.eq.s32.totalorder %s17, 0
    %p106 = por %p104, %p105
    %p107 = scmp.ne.s32.totalorder %s95, %s96
    %p108 = scmp.eq.s32.totalorder %s18, 1
    %p109 = por %p107, %p108
    %p111 = scmp.ne.s32.totalorder %s96, %s110
    %p112 = scmp.eq.s32.totalorder %s18, 0
    %p113 = por %p111, %p112
    %s115 = sadd.s32 %s114, 1
    %p118 = scmp.eq.s32.totalorder %s12, 1
    %p119 = scmp.ne.s32.totalorder %s114, %s116
    %p120 = scmp.eq.s32.totalorder %s12, 0
    %p121 = por %p119, %p120
    %p122 = scmp.ne.s32.totalorder %s114, %s116
    %p123 = scmp.eq.s32.totalorder %s17, 1
    %p124 = por %p122, %p123
    %p125 = scmp.ne.s32.totalorder %s116, %s117
    %p126 = scmp.eq.s32.totalorder %s17, 0
    %p127 = por %p125, %p126
    %p128 = scmp.ne.s32.totalorder %s116, %s117
    %p129 = scmp.eq.s32.totalorder %s18, 1
    %p130 = por %p128, %p129
    %p132 = scmp.ne.s32.totalorder %s117, %s131
    %p133 = scmp.eq.s32.totalorder %s18, 0
    %p134 = por %p132, %p133
    %s136 = sadd.s32 %s135, 1
    %p139 = scmp.eq.s32.totalorder %s12, 1
    %p140 = scmp.ne.s32.totalorder %s135, %s137
    %p141 = scmp.eq.s32.totalorder %s12, 0
    %p142 = por %p140, %p141
    %p143 = scmp.ne.s32.totalorder %s135, %s137
    %p144 = scmp.eq.s32.totalorder %s17, 1
    %p145 = por %p143, %p144
    %p146 = scmp.ne.s32.totalorder %s137, %s138
    %p147 = scmp.eq.s32.totalorder %s17, 0
    %p148 = por %p146, %p147
    %p149 = scmp.ne.s32.totalorder %s137, %s138
    %p150 = scmp.eq.s32.totalorder %s18, 1
    %p151 = por %p149, %p150
    %p153 = scmp.ne.s32.totalorder %s138, %s152
    %p154 = scmp.eq.s32.totalorder %s18, 0
    %p155 = por %p153, %p154
    %s156 = ssub.s32 %s12, %s19
    %p157 = scmp.eq.s32.totalorder %s156, 0
    %s159 = sadd.s32 %s158, 1
    %s160 = scalar_select %p157, %s158, %s159
    %p163 = pneg %p157
    %p164 = scmp.eq.s32.totalorder %s12, 1
    %p165 = por %p163, %p164
    %p166 = scmp.ne.s32.totalorder %s158, %s161
    %p167 = scmp.eq.s32.totalorder %s12, 0
    %p168 = por %p166, %p167
    %p169 = scmp.ne.s32.totalorder %s158, %s161
    %p170 = scmp.eq.s32.totalorder %s17, 1
    %p171 = por %p169, %p170
    %p172 = scmp.ne.s32.totalorder %s161, %s162
    %p173 = scmp.eq.s32.totalorder %s17, 0
    %p174 = por %p172, %p173
    %p175 = scmp.ne.s32.totalorder %s161, %s162
    %p176 = scmp.eq.s32.totalorder %s18, 1
    %p177 = por %p175, %p176
    %p179 = scmp.ne.s32.totalorder %s162, %s178
    %p180 = scmp.eq.s32.totalorder %s18, 0
    %p181 = por %p179, %p180
    %p182 = scmp.le.s32.totalorder 1, %s12
    %p183 = scmp.lt.s32.totalorder %s12, 3
    %p184 = pnand %p182, %p183
    %p185 = pneg %p184
    // Predicated region
    $region9: #{drrn_forward.1} parent=5 // pred_check
      _
    $region10: #{drrn_forward.1} parent=5 // pred_check_branch
      %187 = sbr.rel (%p184) target = $region12
    $region11: #{drrn_forward.1} parent=5 // pred_region
      %s188 = ssub.s32 %s12, 1
      // Predicated region
      $region13: #{drrn_forward.1} parent=11 // pred_check
        %p189 = pneg %p85
      $region14: #{drrn_forward.1} parent=11 // pred_check_branch
        %191 = sbr.rel (%p189) target = $region16
      $region15: #{drrn_forward.1} parent=11 // pred_region
        _
      $region16: #{drrn_forward.1} parent=11 // pred_fallthru
        _
      // Predicated region
      $region17: #{drrn_forward.1} parent=11 // pred_check
        %p192 = pneg %p106
      $region18: #{drrn_forward.1} parent=11 // pred_check_branch
        %194 = sbr.rel (%p192) target = $region20
      $region19: #{drrn_forward.1} parent=11 // pred_region
        _
      $region20: #{drrn_forward.1} parent=11 // pred_fallthru
        _
      // Predicated region
      $region21: #{drrn_forward.1} parent=11 // pred_check
        %p195 = pneg %p127
      $region22: #{drrn_forward.1} parent=11 // pred_check_branch
        %197 = sbr.rel (%p195) target = $region24
      $region23: #{drrn_forward.1} parent=11 // pred_region
        _
      $region24: #{drrn_forward.1} parent=11 // pred_fallthru
        _
      // Predicated region
      $region25: #{drrn_forward.1} parent=11 // pred_check
        %p198 = pneg %p148
      $region26: #{drrn_forward.1} parent=11 // pred_check_branch
        %200 = sbr.rel (%p198) target = $region28
      $region27: #{drrn_forward.1} parent=11 // pred_region
        _
      $region28: #{drrn_forward.1} parent=11 // pred_fallthru
        _
    $region12: #{drrn_forward.1} parent=5 // pred_fallthru
      _
    %p201 = scmp.lt.s32.totalorder %s12, 2
    // Predicated region
    $region29: #{drrn_forward.1} parent=5 // pred_check
      %p202 = pneg %p201
    $region30: #{drrn_forward.1} parent=5 // pred_check_branch
      %204 = sbr.rel (%p202) target = $region32
    $region31: #{drrn_forward.1} parent=5 // pred_region
      // Predicated region
      $region33: #{drrn_forward.1} parent=31 // pred_check
        %p205 = pneg %p32
      $region34: #{drrn_forward.1} parent=31 // pred_check_branch
        %207 = sbr.rel (%p205) target = $region36
      $region35: #{drrn_forward.1} parent=31 // pred_region
        %p208 = scmp.lt.s32.totalorder %s12, 1
        %s209 = scalar_select %p208, %s12, 1
        %s210 = smul.addr %s209, 32
        %s211 = smul.addr %s210, 4
        %s212 = scalar_lea.vmem %s0, %s211
      $region36: #{drrn_forward.1} parent=31 // pred_fallthru
        _
      // Predicated region
      $region37: #{drrn_forward.1} parent=31 // pred_check
        %p213 = pneg %p58
      $region38: #{drrn_forward.1} parent=31 // pred_check_branch
        %215 = sbr.rel (%p213) target = $region40
      $region39: #{drrn_forward.1} parent=31 // pred_region
        %p216 = scmp.lt.s32.totalorder %s12, 1
        %s217 = scalar_select %p216, %s12, 1
        %s218 = smul.addr %s217, 32
        %s219 = smul.addr %s218, 8
        %s220 = scalar_lea.vmem %s1, %s219
      $region40: #{drrn_forward.1} parent=31 // pred_fallthru
        _
    $region32: #{drrn_forward.1} parent=5 // pred_fallthru
      _
    %p221 = scmp.le.s32.totalorder 1, %s12
    %p222 = scmp.lt.s32.totalorder %s12, 3
    %p223 = pnand %p221, %p222
    %p224 = pneg %p223
    // Predicated region
    $region41: #{drrn_forward.1} parent=5 // pred_check
      _
    $region42: #{drrn_forward.1} parent=5 // pred_check_branch
      %226 = sbr.rel (%p223) target = $region44
    $region43: #{drrn_forward.1} parent=5 // pred_region
      %s227 = ssub.s32 %s12, 1
      %p228 = scmp.lt.s32.totalorder %s17, 1
      %s229 = scalar_select %p228, %s17, 1
      %s230 = smul.addr %s229, 32
      %s231 = smul.addr %s230, 4
      %s232 = scalar_lea.vmem %s0, %s231
      %p233 = pneg %p38
      %p234 = pneg %p35
      %p235 = scmp.lt.s32.totalorder %s17, 1
      %s236 = scalar_select %p235, %s17, 1
      %s237 = smul.addr %s236, 32
      %s238 = smul.addr %s237, 8
      %s239 = scalar_lea.vmem %s1, %s238
      %p240 = pneg %p64
      %p241 = pneg %p61
      %p242 = pneg %p85
      %p243 = pneg %p82
      %p244 = pneg %p106
      %p245 = pneg %p103
      %p246 = pneg %p127
      %p247 = pneg %p124
      %p248 = pneg %p148
      %p249 = pneg %p145
      %p250 = pneg %p174
      %p251 = pneg %p171
      %p252 = scmp.lt.s32.totalorder %s17, 1
      %s253 = scalar_select %p252, %s17, 1
      %s254 = smul.addr %s253, 32
      %s255 = smul.addr %s254, 8
      %s256 = scalar_lea.vmem %s6, %s255
      %p257 = scmp.lt.s32.totalorder %s17, 1
      %s258 = scalar_select %p257, %s17, 1
      %s259 = smul.addr %s258, 32
      %s260 = smul.addr %s259, 4
      %s261 = scalar_lea.vmem %s0, %s260
      %p262 = scmp.lt.s32.totalorder %s17, 1
      %s263 = scalar_select %p262, %s17, 1
      %s264 = smul.addr %s263, 32
      %s265 = smul.addr %s264, 8
      %s266 = scalar_lea.vmem %s1, %s265
      %p267 = scmp.lt.s32.totalorder %s17, 1
      %s268 = scalar_select %p267, %s17, 1
      %s269 = smul.addr %s268, 32
      %s270 = smul.addr %s269, 8
      %s271 = scalar_lea.vmem %s6, %s270
      %v273 = vld [vmem:[%s261] sm:$0xf]
      %v274 = vld [vmem:[%s261 + $0x4] sm:$0xf]
      %v275 = vld [vmem:[%s261 + $0x8] sm:$0xf]
      %v276 = vld [vmem:[%s261 + $0xc] sm:$0xf]
      %v277 = vld [vmem:[%s261 + $0x10] sm:$0xf]
      %v278 = vld [vmem:[%s261 + $0x14] sm:$0xf]
      %v279 = vld [vmem:[%s261 + $0x18] sm:$0xf]
      %v280 = vld [vmem:[%s261 + $0x1c] sm:$0xf]
      %v281 = vld [vmem:[%s261 + $0x20] sm:$0xf]
      %v282 = vld [vmem:[%s261 + $0x24] sm:$0xf]
      %v283 = vld [vmem:[%s261 + $0x28] sm:$0xf]
      %v284 = vld [vmem:[%s261 + $0x2c] sm:$0xf]
      %v285 = vld [vmem:[%s261 + $0x30] sm:$0xf]
      %v286 = vld [vmem:[%s261 + $0x34] sm:$0xf]
      %v287 = vld [vmem:[%s261 + $0x38] sm:$0xf]
      %v288 = vld [vmem:[%s261 + $0x3c] sm:$0xf]
      %v289 = vld [vmem:[%s261 + $0x40] sm:$0xf]
      %v290 = vld [vmem:[%s261 + $0x44] sm:$0xf]
      %v291 = vld [vmem:[%s261 + $0x48] sm:$0xf]
      %v292 = vld [vmem:[%s261 + $0x4c] sm:$0xf]
      %v293 = vld [vmem:[%s261 + $0x50] sm:$0xf]
      %v294 = vld [vmem:[%s261 + $0x54] sm:$0xf]
      %v295 = vld [vmem:[%s261 + $0x58] sm:$0xf]
      %v296 = vld [vmem:[%s261 + $0x5c] sm:$0xf]
      %v297 = vld [vmem:[%s261 + $0x60] sm:$0xf]
      %v298 = vld [vmem:[%s261 + $0x64] sm:$0xf]
      %v299 = vld [vmem:[%s261 + $0x68] sm:$0xf]
      %v300 = vld [vmem:[%s261 + $0x6c] sm:$0xf]
      %v301 = vld [vmem:[%s261 + $0x70] sm:$0xf]
      %v302 = vld [vmem:[%s261 + $0x74] sm:$0xf]
      %v303 = vld [vmem:[%s261 + $0x78] sm:$0xf]
      %v304 = vld [vmem:[%s261 + $0x7c] sm:$0xf]
      %v305 = vld [vmem:[%s2] sm:$0xf]
      %v306 = vld [vmem:[%s2 + $0x4] sm:$0xf]
      %v307 = vld [vmem:[%s2 + $0x8] sm:$0xf]
      %v308 = vld [vmem:[%s2 + $0xc] sm:$0xf]
      %v309 = vld [vmem:[%s2 + $0x10] sm:$0xf]
      %v310 = vld [vmem:[%s2 + $0x14] sm:$0xf]
      %v311 = vld [vmem:[%s2 + $0x18] sm:$0xf]
      %v312 = vld [vmem:[%s2 + $0x1c] sm:$0xf]
      %v313 = vld [vmem:[%s2 + $0x20] sm:$0xf]
      %v346 = vunpack.c.l.b16 %v273
      %v347 = vunpack.c.l.b16 %v274
      %v348 = vunpack.c.l.b16 %v275
      %v349 = vunpack.c.l.b16 %v276
      %v350 = vunpack.c.l.b16 %v277
      %v351 = vunpack.c.l.b16 %v278
      %v352 = vunpack.c.l.b16 %v279
      %v353 = vunpack.c.l.b16 %v280
      %v354 = vunpack.c.l.b16 %v281
      %v355 = vunpack.c.l.b16 %v282
      %v356 = vunpack.c.l.b16 %v283
      %v357 = vunpack.c.l.b16 %v284
      %v358 = vunpack.c.l.b16 %v285
      %v359 = vunpack.c.l.b16 %v286
      %v360 = vunpack.c.l.b16 %v287
      %v361 = vunpack.c.l.b16 %v288
      %v362 = vunpack.c.l.b16 %v289
      %v363 = vunpack.c.l.b16 %v290
      %v364 = vunpack.c.l.b16 %v291
      %v365 = vunpack.c.l.b16 %v292
      %v366 = vunpack.c.l.b16 %v293
      %v367 = vunpack.c.l.b16 %v294
      %v368 = vunpack.c.l.b16 %v295
      %v369 = vunpack.c.l.b16 %v296
      %v370 = vunpack.c.l.b16 %v297
      %v371 = vunpack.c.l.b16 %v298
      %v372 = vunpack.c.l.b16 %v299
      %v373 = vunpack.c.l.b16 %v300
      %v374 = vunpack.c.l.b16 %v301
      %v375 = vunpack.c.l.b16 %v302
      %v376 = vunpack.c.l.b16 %v303
      %v377 = vunpack.c.l.b16 %v304
      %v378 = vpack.c.b16 %v347, %v346
      %v379 = vpack.c.b16 %v349, %v348
      %v380 = vpack.c.b16 %v351, %v350
      %v381 = vpack.c.b16 %v353, %v352
      %v382 = vpack.c.b16 %v355, %v354
      %v383 = vpack.c.b16 %v357, %v356
      %v384 = vpack.c.b16 %v359, %v358
      %v385 = vpack.c.b16 %v361, %v360
      %v386 = vpack.c.b16 %v363, %v362
      %v387 = vpack.c.b16 %v365, %v364
      %v388 = vpack.c.b16 %v367, %v366
      %v389 = vpack.c.b16 %v369, %v368
      %v390 = vpack.c.b16 %v371, %v370
      %v391 = vpack.c.b16 %v373, %v372
      %v392 = vpack.c.b16 %v375, %v374
      %v393 = vpack.c.b16 %v377, %v376
      %v403 = vunpack.c.l.b16 %v305
      %v404 = vunpack.c.l.b16 %v306
      %v405 = vunpack.c.l.b16 %v307
      %v406 = vunpack.c.l.b16 %v308
      %v407 = vunpack.c.l.b16 %v309
      %v408 = vunpack.c.l.b16 %v310
      %v409 = vunpack.c.l.b16 %v311
      %v410 = vunpack.c.l.b16 %v312
      %v411 = vunpack.c.l.b16 %v313
      %v412 = vpack.c.b16 %v404, %v403
      %v413 = vpack.c.b16 %v406, %v405
      %v414 = vpack.c.b16 %v408, %v407
      %v415 = vpack.c.b16 %v410, %v409
      %v416 = vpack.c.b16 %v411, %v411
      %vm421 = vcmask 588800
      %v423 = vsel %vm421, %v378, 0
      %v426 = vsel %vm421, %v379, 0
      %v429 = vsel %vm421, %v380, 0
      %v432 = vsel %vm421, %v381, 0
      %v435 = vsel %vm421, %v382, 0
      %v438 = vsel %vm421, %v383, 0
      %v441 = vsel %vm421, %v384, 0
      %v444 = vsel %vm421, %v385, 0
      %v447 = vsel %vm421, %v386, 0
      %v450 = vsel %vm421, %v387, 0
      %v453 = vsel %vm421, %v388, 0
      %v456 = vsel %vm421, %v389, 0
      %v459 = vsel %vm421, %v390, 0
      %v462 = vsel %vm421, %v391, 0
      %v465 = vsel %vm421, %v392, 0
      %v468 = vsel %vm421, %v393, 0
      %vm470 = vcmask 1043456
      %v472 = vsel %vm470, %v416, 0
      %474 = vmatpush.bf16.msra.mxu0 0
      %475 = vmatpush.bf16.msra.mxu0 0
      %476 = vmatpush.bf16.msra.mxu0 0
      %477 = vmatpush.bf16.msra.mxu0 %v472
      %478 = vmatpush.bf16.msra.mxu0 %v415
      %479 = vmatpush.bf16.msra.mxu0 %v414
      %480 = vmatpush.bf16.msra.mxu0 %v413
      %481 = vmatpush.bf16.msra.mxu0 %v412
      %482 = vmatmul.bf16.gmra.mxu0 %v423
      %v483 = vpop.f32.mrf.mxu0
      %v484 = vadd.f32 0.0, %v483
      %v485 = vpop.f32.mrf.mxu0
      %v486 = vadd.f32 0.0, %v485
      %487 = vmatmul.bf16.gmra.mxu0 %v426
      %v488 = vpop.f32.mrf.mxu0
      %v489 = vadd.f32 0.0, %v488
      %v490 = vpop.f32.mrf.mxu0
      %v491 = vadd.f32 0.0, %v490
      %492 = vmatmul.bf16.gmra.mxu0 %v429
      %v493 = vpop.f32.mrf.mxu0
      %v494 = vadd.f32 0.0, %v493
      %v495 = vpop.f32.mrf.mxu0
      %v496 = vadd.f32 0.0, %v495
      %497 = vmatmul.bf16.gmra.mxu0 %v432
      %v498 = vpop.f32.mrf.mxu0
      %v499 = vadd.f32 0.0, %v498
      %v500 = vpop.f32.mrf.mxu0
      %v501 = vadd.f32 0.0, %v500
      %502 = vmatmul.bf16.gmra.mxu0 %v435
      %v503 = vpop.f32.mrf.mxu0
      %v504 = vadd.f32 0.0, %v503
      %v505 = vpop.f32.mrf.mxu0
      %v506 = vadd.f32 0.0, %v505
      %507 = vmatmul.bf16.gmra.mxu0 %v438
      %v508 = vpop.f32.mrf.mxu0
      %v509 = vadd.f32 0.0, %v508
      %v510 = vpop.f32.mrf.mxu0
      %v511 = vadd.f32 0.0, %v510
      %512 = vmatmul.bf16.gmra.mxu0 %v441
      %v513 = vpop.f32.mrf.mxu0
      %v514 = vadd.f32 0.0, %v513
      %v515 = vpop.f32.mrf.mxu0
      %v516 = vadd.f32 0.0, %v515
      %517 = vmatmul.bf16.gmra.mxu0 %v444
      %v518 = vpop.f32.mrf.mxu0
      %v519 = vadd.f32 0.0, %v518
      %v520 = vpop.f32.mrf.mxu0
      %v521 = vadd.f32 0.0, %v520
      %522 = vmatmul.bf16.gmra.mxu0 %v447
      %v523 = vpop.f32.mrf.mxu0
      %v524 = vadd.f32 0.0, %v523
      %v525 = vpop.f32.mrf.mxu0
      %v526 = vadd.f32 0.0, %v525
      %527 = vmatmul.bf16.gmra.mxu0 %v450
      %v528 = vpop.f32.mrf.mxu0
      %v529 = vadd.f32 0.0, %v528
      %v530 = vpop.f32.mrf.mxu0
      %v531 = vadd.f32 0.0, %v530
      %532 = vmatmul.bf16.gmra.mxu0 %v453
      %v533 = vpop.f32.mrf.mxu0
      %v534 = vadd.f32 0.0, %v533
      %v535 = vpop.f32.mrf.mxu0
      %v536 = vadd.f32 0.0, %v535
      %537 = vmatmul.bf16.gmra.mxu0 %v456
      %v538 = vpop.f32.mrf.mxu0
      %v539 = vadd.f32 0.0, %v538
      %v540 = vpop.f32.mrf.mxu0
      %v541 = vadd.f32 0.0, %v540
      %542 = vmatmul.bf16.gmra.mxu0 %v459
      %v543 = vpop.f32.mrf.mxu0
      %v544 = vadd.f32 0.0, %v543
      %v545 = vpop.f32.mrf.mxu0
      %v546 = vadd.f32 0.0, %v545
      %547 = vmatmul.bf16.gmra.mxu0 %v462
      %v548 = vpop.f32.mrf.mxu0
      %v549 = vadd.f32 0.0, %v548
      %v550 = vpop.f32.mrf.mxu0
      %v551 = vadd.f32 0.0, %v550
      %552 = vmatmul.bf16.gmra.mxu0 %v465
      %v553 = vpop.f32.mrf.mxu0
      %v554 = vadd.f32 0.0, %v553
      %v555 = vpop.f32.mrf.mxu0
      %v556 = vadd.f32 0.0, %v555
      %557 = vmatmul.bf16.gmra.mxu0 %v468
      %v558 = vpop.f32.mrf.mxu0
      %v559 = vadd.f32 0.0, %v558
      %v560 = vpop.f32.mrf.mxu0
      %v561 = vadd.f32 0.0, %v560
      %562 = vdwg.mxu0
      %563 = vst [vmem:[#allocation4] sm:$0xff] %v484
      %564 = vst [vmem:[#allocation4 + $0x8] sm:$0xff] %v486
      %565 = vst [vmem:[#allocation4 + $0x10] sm:$0xff] %v489
      %566 = vst [vmem:[#allocation4 + $0x18] sm:$0xff] %v491
      %567 = vst [vmem:[#allocation4 + $0x20] sm:$0xff] %v494
      %568 = vst [vmem:[#allocation4 + $0x28] sm:$0xff] %v496
      %569 = vst [vmem:[#allocation4 + $0x30] sm:$0xff] %v499
      %570 = vst [vmem:[#allocation4 + $0x38] sm:$0xff] %v501
      %571 = vst [vmem:[#allocation4 + $0x40] sm:$0xff] %v504
      %572 = vst [vmem:[#allocation4 + $0x48] sm:$0xff] %v506
      %573 = vst [vmem:[#allocation4 + $0x50] sm:$0xff] %v509
      %574 = vst [vmem:[#allocation4 + $0x58] sm:$0xff] %v511
      %575 = vst [vmem:[#allocation4 + $0x60] sm:$0xff] %v514
      %576 = vst [vmem:[#allocation4 + $0x68] sm:$0xff] %v516
      %577 = vst [vmem:[#allocation4 + $0x70] sm:$0xff] %v519
      %578 = vst [vmem:[#allocation4 + $0x78] sm:$0xff] %v521
      %579 = vst [vmem:[#allocation4 + $0x80] sm:$0xff] %v524
      %580 = vst [vmem:[#allocation4 + $0x88] sm:$0xff] %v526
      %581 = vst [vmem:[#allocation4 + $0x90] sm:$0xff] %v529
      %582 = vst [vmem:[#allocation4 + $0x98] sm:$0xff] %v531
      %583 = vst [vmem:[#allocation4 + $0xa0] sm:$0xff] %v534
      %584 = vst [vmem:[#allocation4 + $0xa8] sm:$0xff] %v536
      %585 = vst [vmem:[#allocation4 + $0xb0] sm:$0xff] %v539
      %586 = vst [vmem:[#allocation4 + $0xb8] sm:$0xff] %v541
      %587 = vst [vmem:[#allocation4 + $0xc0] sm:$0xff] %v544
      %588 = vst [vmem:[#allocation4 + $0xc8] sm:$0xff] %v546
      %589 = vst [vmem:[#allocation4 + $0xd0] sm:$0xff] %v549
      %590 = vst [vmem:[#allocation4 + $0xd8] sm:$0xff] %v551
      %591 = vst [vmem:[#allocation4 + $0xe0] sm:$0xff] %v554
      %592 = vst [vmem:[#allocation4 + $0xe8] sm:$0xff] %v556
      %593 = vst [vmem:[#allocation4 + $0xf0] sm:$0xff] %v559
      %594 = vst [vmem:[#allocation4 + $0xf8] sm:$0xff] %v561
      %v595 = vmax.f32 %v484, 0.0
      %v596 = vmax.f32 %v486, 0.0
      %v597 = vmax.f32 %v489, 0.0
      %v598 = vmax.f32 %v491, 0.0
      %v599 = vmax.f32 %v494, 0.0
      %v600 = vmax.f32 %v496, 0.0
      %v601 = vmax.f32 %v499, 0.0
      %v602 = vmax.f32 %v501, 0.0
      %v603 = vmax.f32 %v504, 0.0
      %v604 = vmax.f32 %v506, 0.0
      %v605 = vmax.f32 %v509, 0.0
      %v606 = vmax.f32 %v511, 0.0
      %v607 = vmax.f32 %v514, 0.0
      %v608 = vmax.f32 %v516, 0.0
      %v609 = vmax.f32 %v519, 0.0
      %v610 = vmax.f32 %v521, 0.0
      %v611 = vmax.f32 %v524, 0.0
      %v612 = vmax.f32 %v526, 0.0
      %v613 = vmax.f32 %v529, 0.0
      %v614 = vmax.f32 %v531, 0.0
      %v615 = vmax.f32 %v534, 0.0
      %v616 = vmax.f32 %v536, 0.0
      %v617 = vmax.f32 %v539, 0.0
      %v618 = vmax.f32 %v541, 0.0
      %v619 = vmax.f32 %v544, 0.0
      %v620 = vmax.f32 %v546, 0.0
      %v621 = vmax.f32 %v549, 0.0
      %v622 = vmax.f32 %v551, 0.0
      %v623 = vmax.f32 %v554, 0.0
      %v624 = vmax.f32 %v556, 0.0
      %v625 = vmax.f32 %v559, 0.0
      %v626 = vmax.f32 %v561, 0.0
      %v627 = vpack.c.bf16 %v595, %v595
      %v628 = vpack.c.bf16 %v596, %v596
      %v629 = vpack.c.bf16 %v597, %v597
      %v630 = vpack.c.bf16 %v598, %v598
      %v631 = vpack.c.bf16 %v599, %v599
      %v632 = vpack.c.bf16 %v600, %v600
      %v633 = vpack.c.bf16 %v601, %v601
      %v634 = vpack.c.bf16 %v602, %v602
      %v635 = vpack.c.bf16 %v603, %v603
      %v636 = vpack.c.bf16 %v604, %v604
      %v637 = vpack.c.bf16 %v605, %v605
      %v638 = vpack.c.bf16 %v606, %v606
      %v639 = vpack.c.bf16 %v607, %v607
      %v640 = vpack.c.bf16 %v608, %v608
      %v641 = vpack.c.bf16 %v609, %v609
      %v642 = vpack.c.bf16 %v610, %v610
      %v643 = vpack.c.bf16 %v611, %v611
      %v644 = vpack.c.bf16 %v612, %v612
      %v645 = vpack.c.bf16 %v613, %v613
      %v646 = vpack.c.bf16 %v614, %v614
      %v647 = vpack.c.bf16 %v615, %v615
      %v648 = vpack.c.bf16 %v616, %v616
      %v649 = vpack.c.bf16 %v617, %v617
      %v650 = vpack.c.bf16 %v618, %v618
      %v651 = vpack.c.bf16 %v619, %v619
      %v652 = vpack.c.bf16 %v620, %v620
      %v653 = vpack.c.bf16 %v621, %v621
      %v654 = vpack.c.bf16 %v622, %v622
      %v655 = vpack.c.bf16 %v623, %v623
      %v656 = vpack.c.bf16 %v624, %v624
      %v657 = vpack.c.bf16 %v625, %v625
      %v658 = vpack.c.bf16 %v626, %v626
      %v691 = vunpack.c.l.b16 %v627
      %v692 = vunpack.c.l.b16 %v628
      %v693 = vunpack.c.l.b16 %v629
      %v694 = vunpack.c.l.b16 %v630
      %v695 = vunpack.c.l.b16 %v631
      %v696 = vunpack.c.l.b16 %v632
      %v697 = vunpack.c.l.b16 %v633
      %v698 = vunpack.c.l.b16 %v634
      %v699 = vunpack.c.l.b16 %v635
      %v700 = vunpack.c.l.b16 %v636
      %v701 = vunpack.c.l.b16 %v637
      %v702 = vunpack.c.l.b16 %v638
      %v703 = vunpack.c.l.b16 %v639
      %v704 = vunpack.c.l.b16 %v640
      %v705 = vunpack.c.l.b16 %v641
      %v706 = vunpack.c.l.b16 %v642
      %v707 = vunpack.c.l.b16 %v643
      %v708 = vunpack.c.l.b16 %v644
      %v709 = vunpack.c.l.b16 %v645
      %v710 = vunpack.c.l.b16 %v646
      %v711 = vunpack.c.l.b16 %v647
      %v712 = vunpack.c.l.b16 %v648
      %v713 = vunpack.c.l.b16 %v649
      %v714 = vunpack.c.l.b16 %v650
      %v715 = vunpack.c.l.b16 %v651
      %v716 = vunpack.c.l.b16 %v652
      %v717 = vunpack.c.l.b16 %v653
      %v718 = vunpack.c.l.b16 %v654
      %v719 = vunpack.c.l.b16 %v655
      %v720 = vunpack.c.l.b16 %v656
      %v721 = vunpack.c.l.b16 %v657
      %v722 = vunpack.c.l.b16 %v658
      %v723 = vpack.c.b16 %v692, %v691
      %v724 = vpack.c.b16 %v694, %v693
      %v725 = vpack.c.b16 %v696, %v695
      %v726 = vpack.c.b16 %v698, %v697
      %v727 = vpack.c.b16 %v700, %v699
      %v728 = vpack.c.b16 %v702, %v701
      %v729 = vpack.c.b16 %v704, %v703
      %v730 = vpack.c.b16 %v706, %v705
      %v731 = vpack.c.b16 %v708, %v707
      %v732 = vpack.c.b16 %v710, %v709
      %v733 = vpack.c.b16 %v712, %v711
      %v734 = vpack.c.b16 %v714, %v713
      %v735 = vpack.c.b16 %v716, %v715
      %v736 = vpack.c.b16 %v718, %v717
      %v737 = vpack.c.b16 %v720, %v719
      %v738 = vpack.c.b16 %v722, %v721
      %v740 = vshrl.u32 %v723, 16
      %v742 = vrot.slane %v740, 7
      %v743 = vshll.u32 %v723, 16
      %v745 = vor.u32 %v742, %v743
      %v747 = vshrl.u32 %v724, 16
      %v749 = vrot.slane %v747, 7
      %v750 = vshll.u32 %v724, 16
      %v752 = vor.u32 %v749, %v750
      %v754 = vshrl.u32 %v725, 16
      %v756 = vrot.slane %v754, 7
      %v757 = vshll.u32 %v725, 16
      %v759 = vor.u32 %v756, %v757
      %v761 = vshrl.u32 %v726, 16
      %v763 = vrot.slane %v761, 7
      %v764 = vshll.u32 %v726, 16
      %v766 = vor.u32 %v763, %v764
      %v768 = vshrl.u32 %v727, 16
      %v770 = vrot.slane %v768, 7
      %v771 = vshll.u32 %v727, 16
      %v773 = vor.u32 %v770, %v771
      %v775 = vshrl.u32 %v728, 16
      %v777 = vrot.slane %v775, 7
      %v778 = vshll.u32 %v728, 16
      %v780 = vor.u32 %v777, %v778
      %v782 = vshrl.u32 %v729, 16
      %v784 = vrot.slane %v782, 7
      %v785 = vshll.u32 %v729, 16
      %v787 = vor.u32 %v784, %v785
      %v789 = vshrl.u32 %v730, 16
      %v791 = vrot.slane %v789, 7
      %v792 = vshll.u32 %v730, 16
      %v794 = vor.u32 %v791, %v792
      %v796 = vshrl.u32 %v731, 16
      %v798 = vrot.slane %v796, 7
      %v799 = vshll.u32 %v731, 16
      %v801 = vor.u32 %v798, %v799
      %v803 = vshrl.u32 %v732, 16
      %v805 = vrot.slane %v803, 7
      %v806 = vshll.u32 %v732, 16
      %v808 = vor.u32 %v805, %v806
      %v810 = vshrl.u32 %v733, 16
      %v812 = vrot.slane %v810, 7
      %v813 = vshll.u32 %v733, 16
      %v815 = vor.u32 %v812, %v813
      %v817 = vshrl.u32 %v734, 16
      %v819 = vrot.slane %v817, 7
      %v820 = vshll.u32 %v734, 16
      %v822 = vor.u32 %v819, %v820
      %v824 = vshrl.u32 %v735, 16
      %v826 = vrot.slane %v824, 7
      %v827 = vshll.u32 %v735, 16
      %v829 = vor.u32 %v826, %v827
      %v831 = vshrl.u32 %v736, 16
      %v833 = vrot.slane %v831, 7
      %v834 = vshll.u32 %v736, 16
      %v836 = vor.u32 %v833, %v834
      %v838 = vshrl.u32 %v737, 16
      %v840 = vrot.slane %v838, 7
      %v841 = vshll.u32 %v737, 16
      %v843 = vor.u32 %v840, %v841
      %v845 = vshrl.u32 %v738, 16
      %v847 = vrot.slane %v845, 7
      %v848 = vshll.u32 %v738, 16
      %v850 = vor.u32 %v847, %v848
      %vm883 = vcmask 1040384
      %vm884 = vsmask.f32 256
      %vm885 = vmand %vm883, %vm884
      %v886 = vsel %vm885, 0, %v745
      %v887 = vsel %vm885, 0, %v752
      %v888 = vsel %vm885, 0, %v759
      %v889 = vsel %vm885, 0, %v766
      %v890 = vsel %vm885, 0, %v773
      %v891 = vsel %vm885, 0, %v780
      %v892 = vsel %vm885, 0, %v787
      %v893 = vsel %vm885, 0, %v794
      %v894 = vsel %vm885, 0, %v801
      %v895 = vsel %vm885, 0, %v808
      %v896 = vsel %vm885, 0, %v815
      %v897 = vsel %vm885, 0, %v822
      %v898 = vsel %vm885, 0, %v829
      %v899 = vsel %vm885, 0, %v836
      %v900 = vsel %vm885, 0, %v843
      %v901 = vsel %vm885, 0, %v850
      %v902 = vsel %vm885, %v742, 0
      %v903 = vsel %vm885, %v749, 0
      %v904 = vsel %vm885, %v756, 0
      %v905 = vsel %vm885, %v763, 0
      %v906 = vsel %vm885, %v770, 0
      %v907 = vsel %vm885, %v777, 0
      %v908 = vsel %vm885, %v784, 0
      %v909 = vsel %vm885, %v791, 0
      %v910 = vsel %vm885, %v798, 0
      %v911 = vsel %vm885, %v805, 0
      %v912 = vsel %vm885, %v812, 0
      %v913 = vsel %vm885, %v819, 0
      %v914 = vsel %vm885, %v826, 0
      %v915 = vsel %vm885, %v833, 0
      %v916 = vsel %vm885, %v840, 0
      %v917 = vsel %vm885, %v847, 0
      %v934 = vunpack.c.l.b16 0
      %v935 = vunpack.c.h.b16 0
      %v936 = vunpack.c.l.b16 %v886
      %v937 = vunpack.c.h.b16 %v886
      %v938 = vunpack.c.l.b16 %v887
      %v939 = vunpack.c.h.b16 %v887
      %v940 = vunpack.c.l.b16 %v888
      %v941 = vunpack.c.h.b16 %v888
      %v942 = vunpack.c.l.b16 %v889
      %v943 = vunpack.c.h.b16 %v889
      %v944 = vunpack.c.l.b16 %v890
      %v945 = vunpack.c.h.b16 %v890
      %v946 = vunpack.c.l.b16 %v891
      %v947 = vunpack.c.h.b16 %v891
      %v948 = vunpack.c.l.b16 %v892
      %v949 = vunpack.c.h.b16 %v892
      %v950 = vunpack.c.l.b16 %v893
      %v951 = vunpack.c.h.b16 %v893
      %v952 = vunpack.c.l.b16 %v894
      %v953 = vunpack.c.h.b16 %v894
      %v954 = vunpack.c.l.b16 %v895
      %v955 = vunpack.c.h.b16 %v895
      %v956 = vunpack.c.l.b16 %v896
      %v957 = vunpack.c.h.b16 %v896
      %v958 = vunpack.c.l.b16 %v897
      %v959 = vunpack.c.h.b16 %v897
      %v960 = vunpack.c.l.b16 %v898
      %v961 = vunpack.c.h.b16 %v898
      %v962 = vunpack.c.l.b16 %v899
      %v963 = vunpack.c.h.b16 %v899
      %v964 = vunpack.c.l.b16 %v900
      %v965 = vunpack.c.h.b16 %v900
      %v966 = vpack.c.b16 %v934, %v934
      %v967 = vpack.c.b16 %v935, %v935
      %v968 = vpack.c.b16 %v936, %v936
      %v969 = vpack.c.b16 %v937, %v937
      %v970 = vpack.c.b16 %v938, %v938
      %v971 = vpack.c.b16 %v939, %v939
      %v972 = vpack.c.b16 %v940, %v940
      %v973 = vpack.c.b16 %v941, %v941
      %v974 = vpack.c.b16 %v942, %v942
      %v975 = vpack.c.b16 %v943, %v943
      %v976 = vpack.c.b16 %v944, %v944
      %v977 = vpack.c.b16 %v945, %v945
      %v978 = vpack.c.b16 %v946, %v946
      %v979 = vpack.c.b16 %v947, %v947
      %v980 = vpack.c.b16 %v948, %v948
      %v981 = vpack.c.b16 %v949, %v949
      %v982 = vpack.c.b16 %v950, %v950
      %v983 = vpack.c.b16 %v951, %v951
      %v984 = vpack.c.b16 %v952, %v952
      %v985 = vpack.c.b16 %v953, %v953
      %v986 = vpack.c.b16 %v954, %v954
      %v987 = vpack.c.b16 %v955, %v955
      %v988 = vpack.c.b16 %v956, %v956
      %v989 = vpack.c.b16 %v957, %v957
      %v990 = vpack.c.b16 %v958, %v958
      %v991 = vpack.c.b16 %v959, %v959
      %v992 = vpack.c.b16 %v960, %v960
      %v993 = vpack.c.b16 %v961, %v961
      %v994 = vpack.c.b16 %v962, %v962
      %v995 = vpack.c.b16 %v963, %v963
      %v996 = vpack.c.b16 %v964, %v964
      %v997 = vpack.c.b16 %v965, %v965
      %1030 = vst [vmem:[#allocation2] sm:$0xf] %v966
      %1031 = vst [vmem:[#allocation2 + $0x24] sm:$0xf] %v967
      %1032 = vst [vmem:[#allocation2 + $0x48] sm:$0xf] %v968
      %1033 = vst [vmem:[#allocation2 + $0x6c] sm:$0xf] %v969
      %1034 = vst [vmem:[#allocation2 + $0x90] sm:$0xf] %v970
      %1035 = vst [vmem:[#allocation2 + $0xb4] sm:$0xf] %v971
      %1036 = vst [vmem:[#allocation2 + $0xd8] sm:$0xf] %v972
      %1037 = vst [vmem:[#allocation2 + $0xfc] sm:$0xf] %v973
      %1038 = vst [vmem:[#allocation2 + $0x120] sm:$0xf] %v974
      %1039 = vst [vmem:[#allocation2 + $0x144] sm:$0xf] %v975
      %1040 = vst [vmem:[#allocation2 + $0x168] sm:$0xf] %v976
      %1041 = vst [vmem:[#allocation2 + $0x18c] sm:$0xf] %v977
      %1042 = vst [vmem:[#allocation2 + $0x1b0] sm:$0xf] %v978
      %1043 = vst [vmem:[#allocation2 + $0x1d4] sm:$0xf] %v979
      %1044 = vst [vmem:[#allocation2 + $0x1f8] sm:$0xf] %v980
      %1045 = vst [vmem:[#allocation2 + $0x21c] sm:$0xf] %v981
      %1046 = vst [vmem:[#allocation2 + $0x240] sm:$0xf] %v982
      %1047 = vst [vmem:[#allocation2 + $0x264] sm:$0xf] %v983
      %1048 = vst [vmem:[#allocation2 + $0x288] sm:$0xf] %v984
      %1049 = vst [vmem:[#allocation2 + $0x2ac] sm:$0xf] %v985
      %1050 = vst [vmem:[#allocation2 + $0x2d0] sm:$0xf] %v986
      %1051 = vst [vmem:[#allocation2 + $0x2f4] sm:$0xf] %v987
      %1052 = vst [vmem:[#allocation2 + $0x318] sm:$0xf] %v988
      %1053 = vst [vmem:[#allocation2 + $0x33c] sm:$0xf] %v989
      %1054 = vst [vmem:[#allocation2 + $0x360] sm:$0xf] %v990
      %1055 = vst [vmem:[#allocation2 + $0x384] sm:$0xf] %v991
      %1056 = vst [vmem:[#allocation2 + $0x3a8] sm:$0xf] %v992
      %1057 = vst [vmem:[#allocation2 + $0x3cc] sm:$0xf] %v993
      %1058 = vst [vmem:[#allocation2 + $0x3f0] sm:$0xf] %v994
      %1059 = vst [vmem:[#allocation2 + $0x414] sm:$0xf] %v995
      %1060 = vst [vmem:[#allocation2 + $0x438] sm:$0xf] %v996
      %1061 = vst [vmem:[#allocation2 + $0x45c] sm:$0xf] %v997
      %vm1062 = vsmask.f32 7424
      %v1064 = vshrl.u32 0, 16
      %v1066 = vshll.u32 0, 16
      %v1068 = vrot.slane %v1066, 1
      %v1069 = vor.u32 %v1064, %v1068
      %v1070 = vsel %vm1062, %v1069, %v1068
      %v1072 = vshrl.u32 %v886, 16
      %v1074 = vshll.u32 %v886, 16
      %v1076 = vrot.slane %v1074, 1
      %v1077 = vor.u32 %v1072, %v1076
      %v1079 = vshll.u32 %v902, 16
      %v1081 = vrot.slane %v1079, 1
      %v1082 = vsel %vm1062, %v1077, %v1081
      %v1084 = vshrl.u32 %v887, 16
      %v1086 = vshll.u32 %v887, 16
      %v1088 = vrot.slane %v1086, 1
      %v1089 = vor.u32 %v1084, %v1088
      %v1091 = vshll.u32 %v903, 16
      %v1093 = vrot.slane %v1091, 1
      %v1094 = vsel %vm1062, %v1089, %v1093
      %v1096 = vshrl.u32 %v888, 16
      %v1098 = vshll.u32 %v888, 16
      %v1100 = vrot.slane %v1098, 1
      %v1101 = vor.u32 %v1096, %v1100
      %v1103 = vshll.u32 %v904, 16
      %v1105 = vrot.slane %v1103, 1
      %v1106 = vsel %vm1062, %v1101, %v1105
      %v1108 = vshrl.u32 %v889, 16
      %v1110 = vshll.u32 %v889, 16
      %v1112 = vrot.slane %v1110, 1
      %v1113 = vor.u32 %v1108, %v1112
      %v1115 = vshll.u32 %v905, 16
      %v1117 = vrot.slane %v1115, 1
      %v1118 = vsel %vm1062, %v1113, %v1117
      %v1120 = vshrl.u32 %v890, 16
      %v1122 = vshll.u32 %v890, 16
      %v1124 = vrot.slane %v1122, 1
      %v1125 = vor.u32 %v1120, %v1124
      %v1127 = vshll.u32 %v906, 16
      %v1129 = vrot.slane %v1127, 1
      %v1130 = vsel %vm1062, %v1125, %v1129
      %v1132 = vshrl.u32 %v891, 16
      %v1134 = vshll.u32 %v891, 16
      %v1136 = vrot.slane %v1134, 1
      %v1137 = vor.u32 %v1132, %v1136
      %v1139 = vshll.u32 %v907, 16
      %v1141 = vrot.slane %v1139, 1
      %v1142 = vsel %vm1062, %v1137, %v1141
      %v1144 = vshrl.u32 %v892, 16
      %v1146 = vshll.u32 %v892, 16
      %v1148 = vrot.slane %v1146, 1
      %v1149 = vor.u32 %v1144, %v1148
      %v1151 = vshll.u32 %v908, 16
      %v1153 = vrot.slane %v1151, 1
      %v1154 = vsel %vm1062, %v1149, %v1153
      %v1156 = vshrl.u32 %v893, 16
      %v1158 = vshll.u32 %v893, 16
      %v1160 = vrot.slane %v1158, 1
      %v1161 = vor.u32 %v1156, %v1160
      %v1163 = vshll.u32 %v909, 16
      %v1165 = vrot.slane %v1163, 1
      %v1166 = vsel %vm1062, %v1161, %v1165
      %v1168 = vshrl.u32 %v894, 16
      %v1170 = vshll.u32 %v894, 16
      %v1172 = vrot.slane %v1170, 1
      %v1173 = vor.u32 %v1168, %v1172
      %v1175 = vshll.u32 %v910, 16
      %v1177 = vrot.slane %v1175, 1
      %v1178 = vsel %vm1062, %v1173, %v1177
      %v1180 = vshrl.u32 %v895, 16
      %v1182 = vshll.u32 %v895, 16
      %v1184 = vrot.slane %v1182, 1
      %v1185 = vor.u32 %v1180, %v1184
      %v1187 = vshll.u32 %v911, 16
      %v1189 = vrot.slane %v1187, 1
      %v1190 = vsel %vm1062, %v1185, %v1189
      %v1192 = vshrl.u32 %v896, 16
      %v1194 = vshll.u32 %v896, 16
      %v1196 = vrot.slane %v1194, 1
      %v1197 = vor.u32 %v1192, %v1196
      %v1199 = vshll.u32 %v912, 16
      %v1201 = vrot.slane %v1199, 1
      %v1202 = vsel %vm1062, %v1197, %v1201
      %v1204 = vshrl.u32 %v897, 16
      %v1206 = vshll.u32 %v897, 16
      %v1208 = vrot.slane %v1206, 1
      %v1209 = vor.u32 %v1204, %v1208
      %v1211 = vshll.u32 %v913, 16
      %v1213 = vrot.slane %v1211, 1
      %v1214 = vsel %vm1062, %v1209, %v1213
      %v1216 = vshrl.u32 %v898, 16
      %v1218 = vshll.u32 %v898, 16
      %v1220 = vrot.slane %v1218, 1
      %v1221 = vor.u32 %v1216, %v1220
      %v1223 = vshll.u32 %v914, 16
      %v1225 = vrot.slane %v1223, 1
      %v1226 = vsel %vm1062, %v1221, %v1225
      %v1228 = vshrl.u32 %v899, 16
      %v1230 = vshll.u32 %v899, 16
      %v1232 = vrot.slane %v1230, 1
      %v1233 = vor.u32 %v1228, %v1232
      %v1235 = vshll.u32 %v915, 16
      %v1237 = vrot.slane %v1235, 1
      %v1238 = vsel %vm1062, %v1233, %v1237
      %v1240 = vshrl.u32 %v900, 16
      %v1242 = vshll.u32 %v900, 16
      %v1244 = vrot.slane %v1242, 1
      %v1245 = vor.u32 %v1240, %v1244
      %v1247 = vshll.u32 %v916, 16
      %v1249 = vrot.slane %v1247, 1
      %v1250 = vsel %vm1062, %v1245, %v1249
      %v1251 = vunpack.c.l.b16 %v1070
      %v1252 = vunpack.c.h.b16 %v1070
      %v1253 = vunpack.c.l.b16 %v1082
      %v1254 = vunpack.c.h.b16 %v1082
      %v1255 = vunpack.c.l.b16 %v1094
      %v1256 = vunpack.c.h.b16 %v1094
      %v1257 = vunpack.c.l.b16 %v1106
      %v1258 = vunpack.c.h.b16 %v1106
      %v1259 = vunpack.c.l.b16 %v1118
      %v1260 = vunpack.c.h.b16 %v1118
      %v1261 = vunpack.c.l.b16 %v1130
      %v1262 = vunpack.c.h.b16 %v1130
      %v1263 = vunpack.c.l.b16 %v1142
      %v1264 = vunpack.c.h.b16 %v1142
      %v1265 = vunpack.c.l.b16 %v1154
      %v1266 = vunpack.c.h.b16 %v1154
      %v1267 = vunpack.c.l.b16 %v1166
      %v1268 = vunpack.c.h.b16 %v1166
      %v1269 = vunpack.c.l.b16 %v1178
      %v1270 = vunpack.c.h.b16 %v1178
      %v1271 = vunpack.c.l.b16 %v1190
      %v1272 = vunpack.c.h.b16 %v1190
      %v1273 = vunpack.c.l.b16 %v1202
      %v1274 = vunpack.c.h.b16 %v1202
      %v1275 = vunpack.c.l.b16 %v1214
      %v1276 = vunpack.c.h.b16 %v1214
      %v1277 = vunpack.c.l.b16 %v1226
      %v1278 = vunpack.c.h.b16 %v1226
      %v1279 = vunpack.c.l.b16 %v1238
      %v1280 = vunpack.c.h.b16 %v1238
      %v1281 = vunpack.c.l.b16 %v1250
      %v1282 = vunpack.c.h.b16 %v1250
      %v1283 = vpack.c.b16 %v1251, %v1251
      %v1284 = vpack.c.b16 %v1252, %v1252
      %v1285 = vpack.c.b16 %v1253, %v1253
      %v1286 = vpack.c.b16 %v1254, %v1254
      %v1287 = vpack.c.b16 %v1255, %v1255
      %v1288 = vpack.c.b16 %v1256, %v1256
      %v1289 = vpack.c.b16 %v1257, %v1257
      %v1290 = vpack.c.b16 %v1258, %v1258
      %v1291 = vpack.c.b16 %v1259, %v1259
      %v1292 = vpack.c.b16 %v1260, %v1260
      %v1293 = vpack.c.b16 %v1261, %v1261
      %v1294 = vpack.c.b16 %v1262, %v1262
      %v1295 = vpack.c.b16 %v1263, %v1263
      %v1296 = vpack.c.b16 %v1264, %v1264
      %v1297 = vpack.c.b16 %v1265, %v1265
      %v1298 = vpack.c.b16 %v1266, %v1266
      %v1299 = vpack.c.b16 %v1267, %v1267
      %v1300 = vpack.c.b16 %v1268, %v1268
      %v1301 = vpack.c.b16 %v1269, %v1269
      %v1302 = vpack.c.b16 %v1270, %v1270
      %v1303 = vpack.c.b16 %v1271, %v1271
      %v1304 = vpack.c.b16 %v1272, %v1272
      %v1305 = vpack.c.b16 %v1273, %v1273
      %v1306 = vpack.c.b16 %v1274, %v1274
      %v1307 = vpack.c.b16 %v1275, %v1275
      %v1308 = vpack.c.b16 %v1276, %v1276
      %v1309 = vpack.c.b16 %v1277, %v1277
      %v1310 = vpack.c.b16 %v1278, %v1278
      %v1311 = vpack.c.b16 %v1279, %v1279
      %v1312 = vpack.c.b16 %v1280, %v1280
      %v1313 = vpack.c.b16 %v1281, %v1281
      %v1314 = vpack.c.b16 %v1282, %v1282
      %1347 = vst [vmem:[#allocation2 + $0x4] sm:$0xf] %v1283
      %1348 = vst [vmem:[#allocation2 + $0x28] sm:$0xf] %v1284
      %1349 = vst [vmem:[#allocation2 + $0x4c] sm:$0xf] %v1285
      %1350 = vst [vmem:[#allocation2 + $0x70] sm:$0xf] %v1286
      %1351 = vst [vmem:[#allocation2 + $0x94] sm:$0xf] %v1287
      %1352 = vst [vmem:[#allocation2 + $0xb8] sm:$0xf] %v1288
      %1353 = vst [vmem:[#allocation2 + $0xdc] sm:$0xf] %v1289
      %1354 = vst [vmem:[#allocation2 + $0x100] sm:$0xf] %v1290
      %1355 = vst [vmem:[#allocation2 + $0x124] sm:$0xf] %v1291
      %1356 = vst [vmem:[#allocation2 + $0x148] sm:$0xf] %v1292
      %1357 = vst [vmem:[#allocation2 + $0x16c] sm:$0xf] %v1293
      %1358 = vst [vmem:[#allocation2 + $0x190] sm:$0xf] %v1294
      %1359 = vst [vmem:[#allocation2 + $0x1b4] sm:$0xf] %v1295
      %1360 = vst [vmem:[#allocation2 + $0x1d8] sm:$0xf] %v1296
      %1361 = vst [vmem:[#allocation2 + $0x1fc] sm:$0xf] %v1297
      %1362 = vst [vmem:[#allocation2 + $0x220] sm:$0xf] %v1298
      %1363 = vst [vmem:[#allocation2 + $0x244] sm:$0xf] %v1299
      %1364 = vst [vmem:[#allocation2 + $0x268] sm:$0xf] %v1300
      %1365 = vst [vmem:[#allocation2 + $0x28c] sm:$0xf] %v1301
      %1366 = vst [vmem:[#allocation2 + $0x2b0] sm:$0xf] %v1302
      %1367 = vst [vmem:[#allocation2 + $0x2d4] sm:$0xf] %v1303
      %1368 = vst [vmem:[#allocation2 + $0x2f8] sm:$0xf] %v1304
      %1369 = vst [vmem:[#allocation2 + $0x31c] sm:$0xf] %v1305
      %1370 = vst [vmem:[#allocation2 + $0x340] sm:$0xf] %v1306
      %1371 = vst [vmem:[#allocation2 + $0x364] sm:$0xf] %v1307
      %1372 = vst [vmem:[#allocation2 + $0x388] sm:$0xf] %v1308
      %1373 = vst [vmem:[#allocation2 + $0x3ac] sm:$0xf] %v1309
      %1374 = vst [vmem:[#allocation2 + $0x3d0] sm:$0xf] %v1310
      %1375 = vst [vmem:[#allocation2 + $0x3f4] sm:$0xf] %v1311
      %1376 = vst [vmem:[#allocation2 + $0x418] sm:$0xf] %v1312
      %1377 = vst [vmem:[#allocation2 + $0x43c] sm:$0xf] %v1313
      %1378 = vst [vmem:[#allocation2 + $0x460] sm:$0xf] %v1314
      %vm1394 = vcmask 1046528
      %v1395 = vrot.slane 0, 1
      %v1396 = vsel %vm1394, %v1395, %v1395
      %v1397 = vrot.slane %v886, 1
      %v1398 = vrot.slane %v902, 1
      %v1399 = vsel %vm1394, %v1397, %v1398
      %v1400 = vrot.slane %v887, 1
      %v1401 = vrot.slane %v903, 1
      %v1402 = vsel %vm1394, %v1400, %v1401
      %v1403 = vrot.slane %v888, 1
      %v1404 = vrot.slane %v904, 1
      %v1405 = vsel %vm1394, %v1403, %v1404
      %v1406 = vrot.slane %v889, 1
      %v1407 = vrot.slane %v905, 1
      %v1408 = vsel %vm1394, %v1406, %v1407
      %v1409 = vrot.slane %v890, 1
      %v1410 = vrot.slane %v906, 1
      %v1411 = vsel %vm1394, %v1409, %v1410
      %v1412 = vrot.slane %v891, 1
      %v1413 = vrot.slane %v907, 1
      %v1414 = vsel %vm1394, %v1412, %v1413
      %v1415 = vrot.slane %v892, 1
      %v1416 = vrot.slane %v908, 1
      %v1417 = vsel %vm1394, %v1415, %v1416
      %v1418 = vrot.slane %v893, 1
      %v1419 = vrot.slane %v909, 1
      %v1420 = vsel %vm1394, %v1418, %v1419
      %v1421 = vrot.slane %v894, 1
      %v1422 = vrot.slane %v910, 1
      %v1423 = vsel %vm1394, %v1421, %v1422
      %v1424 = vrot.slane %v895, 1
      %v1425 = vrot.slane %v911, 1
      %v1426 = vsel %vm1394, %v1424, %v1425
      %v1427 = vrot.slane %v896, 1
      %v1428 = vrot.slane %v912, 1
      %v1429 = vsel %vm1394, %v1427, %v1428
      %v1430 = vrot.slane %v897, 1
      %v1431 = vrot.slane %v913, 1
      %v1432 = vsel %vm1394, %v1430, %v1431
      %v1433 = vrot.slane %v898, 1
      %v1434 = vrot.slane %v914, 1
      %v1435 = vsel %vm1394, %v1433, %v1434
      %v1436 = vrot.slane %v899, 1
      %v1437 = vrot.slane %v915, 1
      %v1438 = vsel %vm1394, %v1436, %v1437
      %v1439 = vrot.slane %v900, 1
      %v1440 = vrot.slane %v916, 1
      %v1441 = vsel %vm1394, %v1439, %v1440
      %v1442 = vunpack.c.l.b16 %v1396
      %v1443 = vunpack.c.h.b16 %v1396
      %v1444 = vunpack.c.l.b16 %v1399
      %v1445 = vunpack.c.h.b16 %v1399
      %v1446 = vunpack.c.l.b16 %v1402
      %v1447 = vunpack.c.h.b16 %v1402
      %v1448 = vunpack.c.l.b16 %v1405
      %v1449 = vunpack.c.h.b16 %v1405
      %v1450 = vunpack.c.l.b16 %v1408
      %v1451 = vunpack.c.h.b16 %v1408
      %v1452 = vunpack.c.l.b16 %v1411
      %v1453 = vunpack.c.h.b16 %v1411
      %v1454 = vunpack.c.l.b16 %v1414
      %v1455 = vunpack.c.h.b16 %v1414
      %v1456 = vunpack.c.l.b16 %v1417
      %v1457 = vunpack.c.h.b16 %v1417
      %v1458 = vunpack.c.l.b16 %v1420
      %v1459 = vunpack.c.h.b16 %v1420
      %v1460 = vunpack.c.l.b16 %v1423
      %v1461 = vunpack.c.h.b16 %v1423
      %v1462 = vunpack.c.l.b16 %v1426
      %v1463 = vunpack.c.h.b16 %v1426
      %v1464 = vunpack.c.l.b16 %v1429
      %v1465 = vunpack.c.h.b16 %v1429
      %v1466 = vunpack.c.l.b16 %v1432
      %v1467 = vunpack.c.h.b16 %v1432
      %v1468 = vunpack.c.l.b16 %v1435
      %v1469 = vunpack.c.h.b16 %v1435
      %v1470 = vunpack.c.l.b16 %v1438
      %v1471 = vunpack.c.h.b16 %v1438
      %v1472 = vunpack.c.l.b16 %v1441
      %v1473 = vunpack.c.h.b16 %v1441
      %v1474 = vpack.c.b16 %v1442, %v1442
      %v1475 = vpack.c.b16 %v1443, %v1443
      %v1476 = vpack.c.b16 %v1444, %v1444
      %v1477 = vpack.c.b16 %v1445, %v1445
      %v1478 = vpack.c.b16 %v1446, %v1446
      %v1479 = vpack.c.b16 %v1447, %v1447
      %v1480 = vpack.c.b16 %v1448, %v1448
      %v1481 = vpack.c.b16 %v1449, %v1449
      %v1482 = vpack.c.b16 %v1450, %v1450
      %v1483 = vpack.c.b16 %v1451, %v1451
      %v1484 = vpack.c.b16 %v1452, %v1452
      %v1485 = vpack.c.b16 %v1453, %v1453
      %v1486 = vpack.c.b16 %v1454, %v1454
      %v1487 = vpack.c.b16 %v1455, %v1455
      %v1488 = vpack.c.b16 %v1456, %v1456
      %v1489 = vpack.c.b16 %v1457, %v1457
      %v1490 = vpack.c.b16 %v1458, %v1458
      %v1491 = vpack.c.b16 %v1459, %v1459
      %v1492 = vpack.c.b16 %v1460, %v1460
      %v1493 = vpack.c.b16 %v1461, %v1461
      %v1494 = vpack.c.b16 %v1462, %v1462
      %v1495 = vpack.c.b16 %v1463, %v1463
      %v1496 = vpack.c.b16 %v1464, %v1464
      %v1497 = vpack.c.b16 %v1465, %v1465
      %v1498 = vpack.c.b16 %v1466, %v1466
      %v1499 = vpack.c.b16 %v1467, %v1467
      %v1500 = vpack.c.b16 %v1468, %v1468
      %v1501 = vpack.c.b16 %v1469, %v1469
      %v1502 = vpack.c.b16 %v1470, %v1470
      %v1503 = vpack.c.b16 %v1471, %v1471
      %v1504 = vpack.c.b16 %v1472, %v1472
      %v1505 = vpack.c.b16 %v1473, %v1473
      %1538 = vst [vmem:[#allocation2 + $0x8] sm:$0xf] %v1474
      %1539 = vst [vmem:[#allocation2 + $0x2c] sm:$0xf] %v1475
      %1540 = vst [vmem:[#allocation2 + $0x50] sm:$0xf] %v1476
      %1541 = vst [vmem:[#allocation2 + $0x74] sm:$0xf] %v1477
      %1542 = vst [vmem:[#allocation2 + $0x98] sm:$0xf] %v1478
      %1543 = vst [vmem:[#allocation2 + $0xbc] sm:$0xf] %v1479
      %1544 = vst [vmem:[#allocation2 + $0xe0] sm:$0xf] %v1480
      %1545 = vst [vmem:[#allocation2 + $0x104] sm:$0xf] %v1481
      %1546 = vst [vmem:[#allocation2 + $0x128] sm:$0xf] %v1482
      %1547 = vst [vmem:[#allocation2 + $0x14c] sm:$0xf] %v1483
      %1548 = vst [vmem:[#allocation2 + $0x170] sm:$0xf] %v1484
      %1549 = vst [vmem:[#allocation2 + $0x194] sm:$0xf] %v1485
      %1550 = vst [vmem:[#allocation2 + $0x1b8] sm:$0xf] %v1486
      %1551 = vst [vmem:[#allocation2 + $0x1dc] sm:$0xf] %v1487
      %1552 = vst [vmem:[#allocation2 + $0x200] sm:$0xf] %v1488
      %1553 = vst [vmem:[#allocation2 + $0x224] sm:$0xf] %v1489
      %1554 = vst [vmem:[#allocation2 + $0x248] sm:$0xf] %v1490
      %1555 = vst [vmem:[#allocation2 + $0x26c] sm:$0xf] %v1491
      %1556 = vst [vmem:[#allocation2 + $0x290] sm:$0xf] %v1492
      %1557 = vst [vmem:[#allocation2 + $0x2b4] sm:$0xf] %v1493
      %1558 = vst [vmem:[#allocation2 + $0x2d8] sm:$0xf] %v1494
      %1559 = vst [vmem:[#allocation2 + $0x2fc] sm:$0xf] %v1495
      %1560 = vst [vmem:[#allocation2 + $0x320] sm:$0xf] %v1496
      %1561 = vst [vmem:[#allocation2 + $0x344] sm:$0xf] %v1497
      %1562 = vst [vmem:[#allocation2 + $0x368] sm:$0xf] %v1498
      %1563 = vst [vmem:[#allocation2 + $0x38c] sm:$0xf] %v1499
      %1564 = vst [vmem:[#allocation2 + $0x3b0] sm:$0xf] %v1500
      %1565 = vst [vmem:[#allocation2 + $0x3d4] sm:$0xf] %v1501
      %1566 = vst [vmem:[#allocation2 + $0x3f8] sm:$0xf] %v1502
      %1567 = vst [vmem:[#allocation2 + $0x41c] sm:$0xf] %v1503
      %1568 = vst [vmem:[#allocation2 + $0x440] sm:$0xf] %v1504
      %1569 = vst [vmem:[#allocation2 + $0x464] sm:$0xf] %v1505
      %v1571 = vunpack.c.l.b16 %v901
      %v1572 = vunpack.c.h.b16 %v901
      %v1573 = vpack.c.b16 %v1571, %v1571
      %v1574 = vpack.c.b16 %v1572, %v1572
      %1577 = vst [vmem:[#allocation2 + $0xc] sm:$0xf] %v968
      %1578 = vst [vmem:[#allocation2 + $0x30] sm:$0xf] %v969
      %1579 = vst [vmem:[#allocation2 + $0x54] sm:$0xf] %v970
      %1580 = vst [vmem:[#allocation2 + $0x78] sm:$0xf] %v971
      %1581 = vst [vmem:[#allocation2 + $0x9c] sm:$0xf] %v972
      %1582 = vst [vmem:[#allocation2 + $0xc0] sm:$0xf] %v973
      %1583 = vst [vmem:[#allocation2 + $0xe4] sm:$0xf] %v974
      %1584 = vst [vmem:[#allocation2 + $0x108] sm:$0xf] %v975
      %1585 = vst [vmem:[#allocation2 + $0x12c] sm:$0xf] %v976
      %1586 = vst [vmem:[#allocation2 + $0x150] sm:$0xf] %v977
      %1587 = vst [vmem:[#allocation2 + $0x174] sm:$0xf] %v978
      %1588 = vst [vmem:[#allocation2 + $0x198] sm:$0xf] %v979
      %1589 = vst [vmem:[#allocation2 + $0x1bc] sm:$0xf] %v980
      %1590 = vst [vmem:[#allocation2 + $0x1e0] sm:$0xf] %v981
      %1591 = vst [vmem:[#allocation2 + $0x204] sm:$0xf] %v982
      %1592 = vst [vmem:[#allocation2 + $0x228] sm:$0xf] %v983
      %1593 = vst [vmem:[#allocation2 + $0x24c] sm:$0xf] %v984
      %1594 = vst [vmem:[#allocation2 + $0x270] sm:$0xf] %v985
      %1595 = vst [vmem:[#allocation2 + $0x294] sm:$0xf] %v986
      %1596 = vst [vmem:[#allocation2 + $0x2b8] sm:$0xf] %v987
      %1597 = vst [vmem:[#allocation2 + $0x2dc] sm:$0xf] %v988
      %1598 = vst [vmem:[#allocation2 + $0x300] sm:$0xf] %v989
      %1599 = vst [vmem:[#allocation2 + $0x324] sm:$0xf] %v990
      %1600 = vst [vmem:[#allocation2 + $0x348] sm:$0xf] %v991
      %1601 = vst [vmem:[#allocation2 + $0x36c] sm:$0xf] %v992
      %1602 = vst [vmem:[#allocation2 + $0x390] sm:$0xf] %v993
      %1603 = vst [vmem:[#allocation2 + $0x3b4] sm:$0xf] %v994
      %1604 = vst [vmem:[#allocation2 + $0x3d8] sm:$0xf] %v995
      %1605 = vst [vmem:[#allocation2 + $0x3fc] sm:$0xf] %v996
      %1606 = vst [vmem:[#allocation2 + $0x420] sm:$0xf] %v997
      %1607 = vst [vmem:[#allocation2 + $0x444] sm:$0xf] %v1573
      %1608 = vst [vmem:[#allocation2 + $0x468] sm:$0xf] %v1574
      %v1610 = vshrl.u32 %v901, 16
      %v1612 = vshll.u32 %v901, 16
      %v1614 = vrot.slane %v1612, 1
      %v1615 = vor.u32 %v1610, %v1614
      %v1617 = vshll.u32 %v917, 16
      %v1619 = vrot.slane %v1617, 1
      %v1620 = vsel %vm1062, %v1615, %v1619
      %v1621 = vunpack.c.l.b16 %v1620
      %v1622 = vunpack.c.h.b16 %v1620
      %v1623 = vpack.c.b16 %v1621, %v1621
      %v1624 = vpack.c.b16 %v1622, %v1622
      %1627 = vst [vmem:[#allocation2 + $0x10] sm:$0xf] %v1285
      %1628 = vst [vmem:[#allocation2 + $0x34] sm:$0xf] %v1286
      %1629 = vst [vmem:[#allocation2 + $0x58] sm:$0xf] %v1287
      %1630 = vst [vmem:[#allocation2 + $0x7c] sm:$0xf] %v1288
      %1631 = vst [vmem:[#allocation2 + $0xa0] sm:$0xf] %v1289
      %1632 = vst [vmem:[#allocation2 + $0xc4] sm:$0xf] %v1290
      %1633 = vst [vmem:[#allocation2 + $0xe8] sm:$0xf] %v1291
      %1634 = vst [vmem:[#allocation2 + $0x10c] sm:$0xf] %v1292
      %1635 = vst [vmem:[#allocation2 + $0x130] sm:$0xf] %v1293
      %1636 = vst [vmem:[#allocation2 + $0x154] sm:$0xf] %v1294
      %1637 = vst [vmem:[#allocation2 + $0x178] sm:$0xf] %v1295
      %1638 = vst [vmem:[#allocation2 + $0x19c] sm:$0xf] %v1296
      %1639 = vst [vmem:[#allocation2 + $0x1c0] sm:$0xf] %v1297
      %1640 = vst [vmem:[#allocation2 + $0x1e4] sm:$0xf] %v1298
      %1641 = vst [vmem:[#allocation2 + $0x208] sm:$0xf] %v1299
      %1642 = vst [vmem:[#allocation2 + $0x22c] sm:$0xf] %v1300
      %1643 = vst [vmem:[#allocation2 + $0x250] sm:$0xf] %v1301
      %1644 = vst [vmem:[#allocation2 + $0x274] sm:$0xf] %v1302
      %1645 = vst [vmem:[#allocation2 + $0x298] sm:$0xf] %v1303
      %1646 = vst [vmem:[#allocation2 + $0x2bc] sm:$0xf] %v1304
      %1647 = vst [vmem:[#allocation2 + $0x2e0] sm:$0xf] %v1305
      %1648 = vst [vmem:[#allocation2 + $0x304] sm:$0xf] %v1306
      %1649 = vst [vmem:[#allocation2 + $0x328] sm:$0xf] %v1307
      %1650 = vst [vmem:[#allocation2 + $0x34c] sm:$0xf] %v1308
      %1651 = vst [vmem:[#allocation2 + $0x370] sm:$0xf] %v1309
      %1652 = vst [vmem:[#allocation2 + $0x394] sm:$0xf] %v1310
      %1653 = vst [vmem:[#allocation2 + $0x3b8] sm:$0xf] %v1311
      %1654 = vst [vmem:[#allocation2 + $0x3dc] sm:$0xf] %v1312
      %1655 = vst [vmem:[#allocation2 + $0x400] sm:$0xf] %v1313
      %1656 = vst [vmem:[#allocation2 + $0x424] sm:$0xf] %v1314
      %1657 = vst [vmem:[#allocation2 + $0x448] sm:$0xf] %v1623
      %1658 = vst [vmem:[#allocation2 + $0x46c] sm:$0xf] %v1624
      %v1660 = vrot.slane %v901, 1
      %v1661 = vrot.slane %v917, 1
      %v1662 = vsel %vm1394, %v1660, %v1661
      %v1663 = vunpack.c.l.b16 %v1662
      %v1664 = vunpack.c.h.b16 %v1662
      %v1665 = vpack.c.b16 %v1663, %v1663
      %v1666 = vpack.c.b16 %v1664, %v1664
      %1669 = vst [vmem:[#allocation2 + $0x14] sm:$0xf] %v1476
      %1670 = vst [vmem:[#allocation2 + $0x38] sm:$0xf] %v1477
      %1671 = vst [vmem:[#allocation2 + $0x5c] sm:$0xf] %v1478
      %1672 = vst [vmem:[#allocation2 + $0x80] sm:$0xf] %v1479
      %1673 = vst [vmem:[#allocation2 + $0xa4] sm:$0xf] %v1480
      %1674 = vst [vmem:[#allocation2 + $0xc8] sm:$0xf] %v1481
      %1675 = vst [vmem:[#allocation2 + $0xec] sm:$0xf] %v1482
      %1676 = vst [vmem:[#allocation2 + $0x110] sm:$0xf] %v1483
      %1677 = vst [vmem:[#allocation2 + $0x134] sm:$0xf] %v1484
      %1678 = vst [vmem:[#allocation2 + $0x158] sm:$0xf] %v1485
      %1679 = vst [vmem:[#allocation2 + $0x17c] sm:$0xf] %v1486
      %1680 = vst [vmem:[#allocation2 + $0x1a0] sm:$0xf] %v1487
      %1681 = vst [vmem:[#allocation2 + $0x1c4] sm:$0xf] %v1488
      %1682 = vst [vmem:[#allocation2 + $0x1e8] sm:$0xf] %v1489
      %1683 = vst [vmem:[#allocation2 + $0x20c] sm:$0xf] %v1490
      %1684 = vst [vmem:[#allocation2 + $0x230] sm:$0xf] %v1491
      %1685 = vst [vmem:[#allocation2 + $0x254] sm:$0xf] %v1492
      %1686 = vst [vmem:[#allocation2 + $0x278] sm:$0xf] %v1493
      %1687 = vst [vmem:[#allocation2 + $0x29c] sm:$0xf] %v1494
      %1688 = vst [vmem:[#allocation2 + $0x2c0] sm:$0xf] %v1495
      %1689 = vst [vmem:[#allocation2 + $0x2e4] sm:$0xf] %v1496
      %1690 = vst [vmem:[#allocation2 + $0x308] sm:$0xf] %v1497
      %1691 = vst [vmem:[#allocation2 + $0x32c] sm:$0xf] %v1498
      %1692 = vst [vmem:[#allocation2 + $0x350] sm:$0xf] %v1499
      %1693 = vst [vmem:[#allocation2 + $0x374] sm:$0xf] %v1500
      %1694 = vst [vmem:[#allocation2 + $0x398] sm:$0xf] %v1501
      %1695 = vst [vmem:[#allocation2 + $0x3bc] sm:$0xf] %v1502
      %1696 = vst [vmem:[#allocation2 + $0x3e0] sm:$0xf] %v1503
      %1697 = vst [vmem:[#allocation2 + $0x404] sm:$0xf] %v1504
      %1698 = vst [vmem:[#allocation2 + $0x428] sm:$0xf] %v1505
      %1699 = vst [vmem:[#allocation2 + $0x44c] sm:$0xf] %v1665
      %1700 = vst [vmem:[#allocation2 + $0x470] sm:$0xf] %v1666
      %1701 = vst [vmem:[#allocation2 + $0x18] sm:$0xf] %v970
      %1702 = vst [vmem:[#allocation2 + $0x3c] sm:$0xf] %v971
      %1703 = vst [vmem:[#allocation2 + $0x60] sm:$0xf] %v972
      %1704 = vst [vmem:[#allocation2 + $0x84] sm:$0xf] %v973
      %1705 = vst [vmem:[#allocation2 + $0xa8] sm:$0xf] %v974
      %1706 = vst [vmem:[#allocation2 + $0xcc] sm:$0xf] %v975
      %1707 = vst [vmem:[#allocation2 + $0xf0] sm:$0xf] %v976
      %1708 = vst [vmem:[#allocation2 + $0x114] sm:$0xf] %v977
      %1709 = vst [vmem:[#allocation2 + $0x138] sm:$0xf] %v978
      %1710 = vst [vmem:[#allocation2 + $0x15c] sm:$0xf] %v979
      %1711 = vst [vmem:[#allocation2 + $0x180] sm:$0xf] %v980
      %1712 = vst [vmem:[#allocation2 + $0x1a4] sm:$0xf] %v981
      %1713 = vst [vmem:[#allocation2 + $0x1c8] sm:$0xf] %v982
      %1714 = vst [vmem:[#allocation2 + $0x1ec] sm:$0xf] %v983
      %1715 = vst [vmem:[#allocation2 + $0x210] sm:$0xf] %v984
      %1716 = vst [vmem:[#allocation2 + $0x234] sm:$0xf] %v985
      %1717 = vst [vmem:[#allocation2 + $0x258] sm:$0xf] %v986
      %1718 = vst [vmem:[#allocation2 + $0x27c] sm:$0xf] %v987
      %1719 = vst [vmem:[#allocation2 + $0x2a0] sm:$0xf] %v988
      %1720 = vst [vmem:[#allocation2 + $0x2c4] sm:$0xf] %v989
      %1721 = vst [vmem:[#allocation2 + $0x2e8] sm:$0xf] %v990
      %1722 = vst [vmem:[#allocation2 + $0x30c] sm:$0xf] %v991
      %1723 = vst [vmem:[#allocation2 + $0x330] sm:$0xf] %v992
      %1724 = vst [vmem:[#allocation2 + $0x354] sm:$0xf] %v993
      %1725 = vst [vmem:[#allocation2 + $0x378] sm:$0xf] %v994
      %1726 = vst [vmem:[#allocation2 + $0x39c] sm:$0xf] %v995
      %1727 = vst [vmem:[#allocation2 + $0x3c0] sm:$0xf] %v996
      %1728 = vst [vmem:[#allocation2 + $0x3e4] sm:$0xf] %v997
      %1729 = vst [vmem:[#allocation2 + $0x408] sm:$0xf] %v1573
      %1730 = vst [vmem:[#allocation2 + $0x42c] sm:$0xf] %v1574
      %1731 = vst [vmem:[#allocation2 + $0x450] sm:$0xf] %v966
      %1732 = vst [vmem:[#allocation2 + $0x474] sm:$0xf] %v967
      %1733 = vst [vmem:[#allocation2 + $0x1c] sm:$0xf] %v1287
      %1734 = vst [vmem:[#allocation2 + $0x40] sm:$0xf] %v1288
      %1735 = vst [vmem:[#allocation2 + $0x64] sm:$0xf] %v1289
      %1736 = vst [vmem:[#allocation2 + $0x88] sm:$0xf] %v1290
      %1737 = vst [vmem:[#allocation2 + $0xac] sm:$0xf] %v1291
      %1738 = vst [vmem:[#allocation2 + $0xd0] sm:$0xf] %v1292
      %1739 = vst [vmem:[#allocation2 + $0xf4] sm:$0xf] %v1293
      %1740 = vst [vmem:[#allocation2 + $0x118] sm:$0xf] %v1294
      %1741 = vst [vmem:[#allocation2 + $0x13c] sm:$0xf] %v1295
      %1742 = vst [vmem:[#allocation2 + $0x160] sm:$0xf] %v1296
      %1743 = vst [vmem:[#allocation2 + $0x184] sm:$0xf] %v1297
      %1744 = vst [vmem:[#allocation2 + $0x1a8] sm:$0xf] %v1298
      %1745 = vst [vmem:[#allocation2 + $0x1cc] sm:$0xf] %v1299
      %1746 = vst [vmem:[#allocation2 + $0x1f0] sm:$0xf] %v1300
      %1747 = vst [vmem:[#allocation2 + $0x214] sm:$0xf] %v1301
      %1748 = vst [vmem:[#allocation2 + $0x238] sm:$0xf] %v1302
      %1749 = vst [vmem:[#allocation2 + $0x25c] sm:$0xf] %v1303
      %1750 = vst [vmem:[#allocation2 + $0x280] sm:$0xf] %v1304
      %1751 = vst [vmem:[#allocation2 + $0x2a4] sm:$0xf] %v1305
      %1752 = vst [vmem:[#allocation2 + $0x2c8] sm:$0xf] %v1306
      %1753 = vst [vmem:[#allocation2 + $0x2ec] sm:$0xf] %v1307
      %1754 = vst [vmem:[#allocation2 + $0x310] sm:$0xf] %v1308
      %1755 = vst [vmem:[#allocation2 + $0x334] sm:$0xf] %v1309
      %1756 = vst [vmem:[#allocation2 + $0x358] sm:$0xf] %v1310
      %1757 = vst [vmem:[#allocation2 + $0x37c] sm:$0xf] %v1311
      %1758 = vst [vmem:[#allocation2 + $0x3a0] sm:$0xf] %v1312
      %1759 = vst [vmem:[#allocation2 + $0x3c4] sm:$0xf] %v1313
      %1760 = vst [vmem:[#allocation2 + $0x3e8] sm:$0xf] %v1314
      %1761 = vst [vmem:[#allocation2 + $0x40c] sm:$0xf] %v1623
      %1762 = vst [vmem:[#allocation2 + $0x430] sm:$0xf] %v1624
      %1763 = vst [vmem:[#allocation2 + $0x454] sm:$0xf] %v1283
      %1764 = vst [vmem:[#allocation2 + $0x478] sm:$0xf] %v1284
      %1765 = vst [vmem:[#allocation2 + $0x20] sm:$0xf] %v1478
      %1766 = vst [vmem:[#allocation2 + $0x44] sm:$0xf] %v1479
      %1767 = vst [vmem:[#allocation2 + $0x68] sm:$0xf] %v1480
      %1768 = vst [vmem:[#allocation2 + $0x8c] sm:$0xf] %v1481
      %1769 = vst [vmem:[#allocation2 + $0xb0] sm:$0xf] %v1482
      %1770 = vst [vmem:[#allocation2 + $0xd4] sm:$0xf] %v1483
      %1771 = vst [vmem:[#allocation2 + $0xf8] sm:$0xf] %v1484
      %1772 = vst [vmem:[#allocation2 + $0x11c] sm:$0xf] %v1485
      %1773 = vst [vmem:[#allocation2 + $0x140] sm:$0xf] %v1486
      %1774 = vst [vmem:[#allocation2 + $0x164] sm:$0xf] %v1487
      %1775 = vst [vmem:[#allocation2 + $0x188] sm:$0xf] %v1488
      %1776 = vst [vmem:[#allocation2 + $0x1ac] sm:$0xf] %v1489
      %1777 = vst [vmem:[#allocation2 + $0x1d0] sm:$0xf] %v1490
      %1778 = vst [vmem:[#allocation2 + $0x1f4] sm:$0xf] %v1491
      %1779 = vst [vmem:[#allocation2 + $0x218] sm:$0xf] %v1492
      %1780 = vst [vmem:[#allocation2 + $0x23c] sm:$0xf] %v1493
      %1781 = vst [vmem:[#allocation2 + $0x260] sm:$0xf] %v1494
      %1782 = vst [vmem:[#allocation2 + $0x284] sm:$0xf] %v1495
      %1783 = vst [vmem:[#allocation2 + $0x2a8] sm:$0xf] %v1496
      %1784 = vst [vmem:[#allocation2 + $0x2cc] sm:$0xf] %v1497
      %1785 = vst [vmem:[#allocation2 + $0x2f0] sm:$0xf] %v1498
      %1786 = vst [vmem:[#allocation2 + $0x314] sm:$0xf] %v1499
      %1787 = vst [vmem:[#allocation2 + $0x338] sm:$0xf] %v1500
      %1788 = vst [vmem:[#allocation2 + $0x35c] sm:$0xf] %v1501
      %1789 = vst [vmem:[#allocation2 + $0x380] sm:$0xf] %v1502
      %1790 = vst [vmem:[#allocation2 + $0x3a4] sm:$0xf] %v1503
      %1791 = vst [vmem:[#allocation2 + $0x3c8] sm:$0xf] %v1504
      %1792 = vst [vmem:[#allocation2 + $0x3ec] sm:$0xf] %v1505
      %1793 = vst [vmem:[#allocation2 + $0x410] sm:$0xf] %v1665
      %1794 = vst [vmem:[#allocation2 + $0x434] sm:$0xf] %v1666
      %1795 = vst [vmem:[#allocation2 + $0x458] sm:$0xf] %v1474
      %1796 = vst [vmem:[#allocation2 + $0x47c] sm:$0xf] %v1475
      loop: start=0, step=1, limit=25
      $region45: #{drrn_forward.1} parent=43 // loop_pre_header
        _
      $region46: #{drrn_forward.1} parent=43 // loop_header
        %s1798 = sphi 0, %s1802
        %p1799 = scmp.ge.s32.totalorder %s1798, 25
      $region47: #{drrn_forward.1} parent=43 // loop_header_branch
        %1801 = sbr.rel (%p1799) target = $region51
      $region48: #{drrn_forward.1} parent=43 // loop_body
        %v1803 = vld [vmem:[#allocation2] sm:$0xff]
        %v1804 = vld [vmem:[#allocation2 + $0x8] sm:$0xff]
        %v1805 = vld [vmem:[#allocation2 + $0x10] sm:$0xff]
        %v1806 = vld [vmem:[#allocation2 + $0x18] sm:$0xff]
        %v1807 = vld [vmem:[#allocation2 + $0x20] sm:$0xf]
        %v1808 = vld [vmem:[#allocation2 + $0x24] sm:$0xff]
        %v1809 = vld [vmem:[#allocation2 + $0x2c] sm:$0xff]
        %v1810 = vld [vmem:[#allocation2 + $0x34] sm:$0xff]
        %v1811 = vld [vmem:[#allocation2 + $0x3c] sm:$0xff]
        %v1812 = vld [vmem:[#allocation2 + $0x44] sm:$0xf]
        %v1813 = vld [vmem:[#allocation2 + $0x48] sm:$0xff]
        %v1814 = vld [vmem:[#allocation2 + $0x50] sm:$0xff]
        %v1815 = vld [vmem:[#allocation2 + $0x58] sm:$0xff]
        %v1816 = vld [vmem:[#allocation2 + $0x60] sm:$0xff]
        %v1817 = vld [vmem:[#allocation2 + $0x68] sm:$0xf]
        %v1818 = vld [vmem:[#allocation2 + $0x6c] sm:$0xff]
        %v1819 = vld [vmem:[#allocation2 + $0x74] sm:$0xff]
        %v1820 = vld [vmem:[#allocation2 + $0x7c] sm:$0xff]
        %v1821 = vld [vmem:[#allocation2 + $0x84] sm:$0xff]
        %v1822 = vld [vmem:[#allocation2 + $0x8c] sm:$0xf]
        %v1823 = vld [vmem:[#allocation2 + $0x90] sm:$0xff]
        %v1824 = vld [vmem:[#allocation2 + $0x98] sm:$0xff]
        %v1825 = vld [vmem:[#allocation2 + $0xa0] sm:$0xff]
        %v1826 = vld [vmem:[#allocation2 + $0xa8] sm:$0xff]
        %v1827 = vld [vmem:[#allocation2 + $0xb0] sm:$0xf]
        %v1828 = vld [vmem:[#allocation2 + $0xb4] sm:$0xff]
        %v1829 = vld [vmem:[#allocation2 + $0xbc] sm:$0xff]
        %v1830 = vld [vmem:[#allocation2 + $0xc4] sm:$0xff]
        %v1831 = vld [vmem:[#allocation2 + $0xcc] sm:$0xff]
        %v1832 = vld [vmem:[#allocation2 + $0xd4] sm:$0xf]
        %v1833 = vld [vmem:[#allocation2 + $0xd8] sm:$0xff]
        %v1834 = vld [vmem:[#allocation2 + $0xe0] sm:$0xff]
        %v1835 = vld [vmem:[#allocation2 + $0xe8] sm:$0xff]
        %v1836 = vld [vmem:[#allocation2 + $0xf0] sm:$0xff]
        %v1837 = vld [vmem:[#allocation2 + $0xf8] sm:$0xf]
        %v1838 = vld [vmem:[#allocation2 + $0xfc] sm:$0xff]
        %v1839 = vld [vmem:[#allocation2 + $0x104] sm:$0xff]
        %v1840 = vld [vmem:[#allocation2 + $0x10c] sm:$0xff]
        %v1841 = vld [vmem:[#allocation2 + $0x114] sm:$0xff]
        %v1842 = vld [vmem:[#allocation2 + $0x11c] sm:$0xf]
        %v1843 = vld [vmem:[#allocation2 + $0x120] sm:$0xff]
        %v1844 = vld [vmem:[#allocation2 + $0x128] sm:$0xff]
        %v1845 = vld [vmem:[#allocation2 + $0x130] sm:$0xff]
        %v1846 = vld [vmem:[#allocation2 + $0x138] sm:$0xff]
        %v1847 = vld [vmem:[#allocation2 + $0x140] sm:$0xf]
        %v1848 = vld [vmem:[#allocation2 + $0x144] sm:$0xff]
        %v1849 = vld [vmem:[#allocation2 + $0x14c] sm:$0xff]
        %v1850 = vld [vmem:[#allocation2 + $0x154] sm:$0xff]
        %v1851 = vld [vmem:[#allocation2 + $0x15c] sm:$0xff]
        %v1852 = vld [vmem:[#allocation2 + $0x164] sm:$0xf]
        %v1853 = vld [vmem:[#allocation2 + $0x168] sm:$0xff]
        %v1854 = vld [vmem:[#allocation2 + $0x170] sm:$0xff]
        %v1855 = vld [vmem:[#allocation2 + $0x178] sm:$0xff]
        %v1856 = vld [vmem:[#allocation2 + $0x180] sm:$0xff]
        %v1857 = vld [vmem:[#allocation2 + $0x188] sm:$0xf]
        %v1858 = vld [vmem:[#allocation2 + $0x18c] sm:$0xff]
        %v1859 = vld [vmem:[#allocation2 + $0x194] sm:$0xff]
        %v1860 = vld [vmem:[#allocation2 + $0x19c] sm:$0xff]
        %v1861 = vld [vmem:[#allocation2 + $0x1a4] sm:$0xff]
        %v1862 = vld [vmem:[#allocation2 + $0x1ac] sm:$0xf]
        %v1863 = vld [vmem:[#allocation2 + $0x1b0] sm:$0xff]
        %v1864 = vld [vmem:[#allocation2 + $0x1b8] sm:$0xff]
        %v1865 = vld [vmem:[#allocation2 + $0x1c0] sm:$0xff]
        %v1866 = vld [vmem:[#allocation2 + $0x1c8] sm:$0xff]
        %v1867 = vld [vmem:[#allocation2 + $0x1d0] sm:$0xf]
        %v1868 = vld [vmem:[#allocation2 + $0x1d4] sm:$0xff]
        %v1869 = vld [vmem:[#allocation2 + $0x1dc] sm:$0xff]
        %v1870 = vld [vmem:[#allocation2 + $0x1e4] sm:$0xff]
        %v1871 = vld [vmem:[#allocation2 + $0x1ec] sm:$0xff]
        %v1872 = vld [vmem:[#allocation2 + $0x1f4] sm:$0xf]
        %v1873 = vld [vmem:[#allocation2 + $0x1f8] sm:$0xff]
        %v1874 = vld [vmem:[#allocation2 + $0x200] sm:$0xff]
        %v1875 = vld [vmem:[#allocation2 + $0x208] sm:$0xff]
        %v1876 = vld [vmem:[#allocation2 + $0x210] sm:$0xff]
        %v1877 = vld [vmem:[#allocation2 + $0x218] sm:$0xf]
        %v1878 = vld [vmem:[#allocation2 + $0x21c] sm:$0xff]
        %v1879 = vld [vmem:[#allocation2 + $0x224] sm:$0xff]
        %v1880 = vld [vmem:[#allocation2 + $0x22c] sm:$0xff]
        %v1881 = vld [vmem:[#allocation2 + $0x234] sm:$0xff]
        %v1882 = vld [vmem:[#allocation2 + $0x23c] sm:$0xf]
        %v1883 = vld [vmem:[#allocation2 + $0x240] sm:$0xff]
        %v1884 = vld [vmem:[#allocation2 + $0x248] sm:$0xff]
        %v1885 = vld [vmem:[#allocation2 + $0x250] sm:$0xff]
        %v1886 = vld [vmem:[#allocation2 + $0x258] sm:$0xff]
        %v1887 = vld [vmem:[#allocation2 + $0x260] sm:$0xf]
        %v1888 = vld [vmem:[#allocation2 + $0x264] sm:$0xff]
        %v1889 = vld [vmem:[#allocation2 + $0x26c] sm:$0xff]
        %v1890 = vld [vmem:[#allocation2 + $0x274] sm:$0xff]
        %v1891 = vld [vmem:[#allocation2 + $0x27c] sm:$0xff]
        %v1892 = vld [vmem:[#allocation2 + $0x284] sm:$0xf]
        %v1893 = vld [vmem:[#allocation2 + $0x288] sm:$0xff]
        %v1894 = vld [vmem:[#allocation2 + $0x290] sm:$0xff]
        %v1895 = vld [vmem:[#allocation2 + $0x298] sm:$0xff]
        %v1896 = vld [vmem:[#allocation2 + $0x2a0] sm:$0xff]
        %v1897 = vld [vmem:[#allocation2 + $0x2a8] sm:$0xf]
        %v1898 = vld [vmem:[#allocation2 + $0x2ac] sm:$0xff]
        %v1899 = vld [vmem:[#allocation2 + $0x2b4] sm:$0xff]
        %v1900 = vld [vmem:[#allocation2 + $0x2bc] sm:$0xff]
        %v1901 = vld [vmem:[#allocation2 + $0x2c4] sm:$0xff]
        %v1902 = vld [vmem:[#allocation2 + $0x2cc] sm:$0xf]
        %v1903 = vld [vmem:[#allocation2 + $0x2d0] sm:$0xff]
        %v1904 = vld [vmem:[#allocation2 + $0x2d8] sm:$0xff]
        %v1905 = vld [vmem:[#allocation2 + $0x2e0] sm:$0xff]
        %v1906 = vld [vmem:[#allocation2 + $0x2e8] sm:$0xff]
        %v1907 = vld [vmem:[#allocation2 + $0x2f0] sm:$0xf]
        %v1908 = vld [vmem:[#allocation2 + $0x2f4] sm:$0xff]
        %v1909 = vld [vmem:[#allocation2 + $0x2fc] sm:$0xff]
        %v1910 = vld [vmem:[#allocation2 + $0x304] sm:$0xff]
        %v1911 = vld [vmem:[#allocation2 + $0x30c] sm:$0xff]
        %v1912 = vld [vmem:[#allocation2 + $0x314] sm:$0xf]
        %v1913 = vld [vmem:[#allocation2 + $0x318] sm:$0xff]
        %v1914 = vld [vmem:[#allocation2 + $0x320] sm:$0xff]
        %v1915 = vld [vmem:[#allocation2 + $0x328] sm:$0xff]
        %v1916 = vld [vmem:[#allocation2 + $0x330] sm:$0xff]
        %v1917 = vld [vmem:[#allocation2 + $0x338] sm:$0xf]
        %v1918 = vld [vmem:[#allocation2 + $0x33c] sm:$0xff]
        %v1919 = vld [vmem:[#allocation2 + $0x344] sm:$0xff]
        %v1920 = vld [vmem:[#allocation2 + $0x34c] sm:$0xff]
        %v1921 = vld [vmem:[#allocation2 + $0x354] sm:$0xff]
        %v1922 = vld [vmem:[#allocation2 + $0x35c] sm:$0xf]
        %v1923 = vld [vmem:[#allocation2 + $0x360] sm:$0xff]
        %v1924 = vld [vmem:[#allocation2 + $0x368] sm:$0xff]
        %v1925 = vld [vmem:[#allocation2 + $0x370] sm:$0xff]
        %v1926 = vld [vmem:[#allocation2 + $0x378] sm:$0xff]
        %v1927 = vld [vmem:[#allocation2 + $0x380] sm:$0xf]
        %v1928 = vld [vmem:[#allocation2 + $0x384] sm:$0xff]
        %v1929 = vld [vmem:[#allocation2 + $0x38c] sm:$0xff]
        %v1930 = vld [vmem:[#allocation2 + $0x394] sm:$0xff]
        %v1931 = vld [vmem:[#allocation2 + $0x39c] sm:$0xff]
        %v1932 = vld [vmem:[#allocation2 + $0x3a4] sm:$0xf]
        %v1933 = vld [vmem:[#allocation2 + $0x3a8] sm:$0xff]
        %v1934 = vld [vmem:[#allocation2 + $0x3b0] sm:$0xff]
        %v1935 = vld [vmem:[#allocation2 + $0x3b8] sm:$0xff]
        %v1936 = vld [vmem:[#allocation2 + $0x3c0] sm:$0xff]
        %v1937 = vld [vmem:[#allocation2 + $0x3c8] sm:$0xf]
        %v1938 = vld [vmem:[#allocation2 + $0x3cc] sm:$0xff]
        %v1939 = vld [vmem:[#allocation2 + $0x3d4] sm:$0xff]
        %v1940 = vld [vmem:[#allocation2 + $0x3dc] sm:$0xff]
        %v1941 = vld [vmem:[#allocation2 + $0x3e4] sm:$0xff]
        %v1942 = vld [vmem:[#allocation2 + $0x3ec] sm:$0xf]
        %v1943 = vld [vmem:[#allocation2 + $0x3f0] sm:$0xff]
        %v1944 = vld [vmem:[#allocation2 + $0x3f8] sm:$0xff]
        %v1945 = vld [vmem:[#allocation2 + $0x400] sm:$0xff]
        %v1946 = vld [vmem:[#allocation2 + $0x408] sm:$0xff]
        %v1947 = vld [vmem:[#allocation2 + $0x410] sm:$0xf]
        %v1948 = vld [vmem:[#allocation2 + $0x414] sm:$0xff]
        %v1949 = vld [vmem:[#allocation2 + $0x41c] sm:$0xff]
        %v1950 = vld [vmem:[#allocation2 + $0x424] sm:$0xff]
        %v1951 = vld [vmem:[#allocation2 + $0x42c] sm:$0xff]
        %v1952 = vld [vmem:[#allocation2 + $0x434] sm:$0xf]
        %v1953 = vld [vmem:[#allocation2 + $0x438] sm:$0xff]
        %v1954 = vld [vmem:[#allocation2 + $0x440] sm:$0xff]
        %v1955 = vld [vmem:[#allocation2 + $0x448] sm:$0xff]
        %v1956 = vld [vmem:[#allocation2 + $0x450] sm:$0xff]
        %v1957 = vld [vmem:[#allocation2 + $0x458] sm:$0xf]
        %v1958 = vld [vmem:[#allocation2 + $0x45c] sm:$0xff]
        %v1959 = vld [vmem:[#allocation2 + $0x464] sm:$0xff]
        %v1960 = vld [vmem:[#allocation2 + $0x46c] sm:$0xff]
        %v1961 = vld [vmem:[#allocation2 + $0x474] sm:$0xff]
        %v1962 = vld [vmem:[#allocation2 + $0x47c] sm:$0xf]
        %v1963 = vld [vmem:[%s3] sm:$0xf]
        %v1964 = vld [vmem:[%s3 + $0x4] sm:$0xf]
        %v1965 = vld [vmem:[%s3 + $0x8] sm:$0xf]
        %v1966 = vld [vmem:[%s3 + $0xc] sm:$0xf]
        %v1967 = vld [vmem:[%s3 + $0x10] sm:$0xf]
        %v1968 = vld [vmem:[%s3 + $0x14] sm:$0xf]
        %v1969 = vld [vmem:[%s3 + $0x18] sm:$0xf]
        %v1970 = vld [vmem:[%s3 + $0x1c] sm:$0xf]
        %v1971 = vld [vmem:[%s3 + $0x20] sm:$0xf]
        %v1972 = vld [vmem:[%s3 + $0x24] sm:$0xf]
        %v1973 = vld [vmem:[%s3 + $0x28] sm:$0xf]
        %v1974 = vld [vmem:[%s3 + $0x2c] sm:$0xf]
        %v1975 = vld [vmem:[%s3 + $0x30] sm:$0xf]
        %v1976 = vld [vmem:[%s3 + $0x34] sm:$0xf]
        %v1977 = vld [vmem:[%s3 + $0x38] sm:$0xf]
        %v1978 = vld [vmem:[%s3 + $0x3c] sm:$0xf]
        %v1979 = vld [vmem:[%s3 + $0x40] sm:$0xf]
        %v1980 = vld [vmem:[%s3 + $0x44] sm:$0xf]
        %v1981 = vld [vmem:[%s3 + $0x48] sm:$0xf]
        %v1982 = vld [vmem:[%s3 + $0x4c] sm:$0xf]
        %v1983 = vld [vmem:[%s3 + $0x50] sm:$0xf]
        %v1984 = vld [vmem:[%s3 + $0x54] sm:$0xf]
        %v1985 = vld [vmem:[%s3 + $0x58] sm:$0xf]
        %v1986 = vld [vmem:[%s3 + $0x5c] sm:$0xf]
        %v1987 = vld [vmem:[%s3 + $0x60] sm:$0xf]
        %v1988 = vld [vmem:[%s3 + $0x64] sm:$0xf]
        %v1989 = vld [vmem:[%s3 + $0x68] sm:$0xf]
        %v1990 = vld [vmem:[%s3 + $0x6c] sm:$0xf]
        %v1991 = vld [vmem:[%s3 + $0x70] sm:$0xf]
        %v1992 = vld [vmem:[%s3 + $0x74] sm:$0xf]
        %v1993 = vld [vmem:[%s3 + $0x78] sm:$0xf]
        %v1994 = vld [vmem:[%s3 + $0x7c] sm:$0xf]
        %v1995 = vld [vmem:[%s3 + $0x80] sm:$0xf]
        %v1996 = vld [vmem:[%s3 + $0x84] sm:$0xf]
        %v1997 = vld [vmem:[%s3 + $0x88] sm:$0xf]
        %v1998 = vld [vmem:[%s3 + $0x8c] sm:$0xf]
        %v1999 = vld [vmem:[%s3 + $0x90] sm:$0xf]
        %v2000 = vld [vmem:[%s3 + $0x94] sm:$0xf]
        %v2001 = vld [vmem:[%s3 + $0x98] sm:$0xf]
        %v2002 = vld [vmem:[%s3 + $0x9c] sm:$0xf]
        %v2003 = vld [vmem:[%s3 + $0xa0] sm:$0xf]
        %v2004 = vld [vmem:[%s3 + $0xa4] sm:$0xf]
        %v2005 = vld [vmem:[%s3 + $0xa8] sm:$0xf]
        %v2006 = vld [vmem:[%s3 + $0xac] sm:$0xf]
        %v2007 = vld [vmem:[%s3 + $0xb0] sm:$0xf]
        %v2008 = vld [vmem:[%s3 + $0xb4] sm:$0xf]
        %v2009 = vld [vmem:[%s3 + $0xb8] sm:$0xf]
        %v2010 = vld [vmem:[%s3 + $0xbc] sm:$0xf]
        %v2011 = vld [vmem:[%s3 + $0xc0] sm:$0xf]
        %v2012 = vld [vmem:[%s3 + $0xc4] sm:$0xf]
        %v2013 = vld [vmem:[%s3 + $0xc8] sm:$0xf]
        %v2014 = vld [vmem:[%s3 + $0xcc] sm:$0xf]
        %v2015 = vld [vmem:[%s3 + $0xd0] sm:$0xf]
        %v2016 = vld [vmem:[%s3 + $0xd4] sm:$0xf]
        %v2017 = vld [vmem:[%s3 + $0xd8] sm:$0xf]
        %v2018 = vld [vmem:[%s3 + $0xdc] sm:$0xf]
        %v2019 = vld [vmem:[%s3 + $0xe0] sm:$0xf]
        %v2020 = vld [vmem:[%s3 + $0xe4] sm:$0xf]
        %v2021 = vld [vmem:[%s3 + $0xe8] sm:$0xf]
        %v2022 = vld [vmem:[%s3 + $0xec] sm:$0xf]
        %v2023 = vld [vmem:[%s3 + $0xf0] sm:$0xf]
        %v2024 = vld [vmem:[%s3 + $0xf4] sm:$0xf]
        %v2025 = vld [vmem:[%s3 + $0xf8] sm:$0xf]
        %v2026 = vld [vmem:[%s3 + $0xfc] sm:$0xf]
        %v2027 = vld [vmem:[%s3 + $0x100] sm:$0xf]
        %v2028 = vld [vmem:[%s3 + $0x104] sm:$0xf]
        %v2029 = vld [vmem:[%s3 + $0x108] sm:$0xf]
        %v2030 = vld [vmem:[%s3 + $0x10c] sm:$0xf]
        %v2031 = vld [vmem:[%s3 + $0x110] sm:$0xf]
        %v2032 = vld [vmem:[%s3 + $0x114] sm:$0xf]
        %v2033 = vld [vmem:[%s3 + $0x118] sm:$0xf]
        %v2034 = vld [vmem:[%s3 + $0x11c] sm:$0xf]
        %v2035 = vld [vmem:[%s3 + $0x120] sm:$0xf]
        %v2036 = vld [vmem:[%s3 + $0x124] sm:$0xf]
        %v2037 = vld [vmem:[%s3 + $0x128] sm:$0xf]
        %v2038 = vld [vmem:[%s3 + $0x12c] sm:$0xf]
        %v2039 = vld [vmem:[%s3 + $0x130] sm:$0xf]
        %v2040 = vld [vmem:[%s3 + $0x134] sm:$0xf]
        %v2041 = vld [vmem:[%s3 + $0x138] sm:$0xf]
        %v2042 = vld [vmem:[%s3 + $0x13c] sm:$0xf]
        %v2043 = vld [vmem:[%s3 + $0x140] sm:$0xf]
        %v2044 = vld [vmem:[%s3 + $0x144] sm:$0xf]
        %v2045 = vld [vmem:[%s3 + $0x148] sm:$0xf]
        %v2046 = vld [vmem:[%s3 + $0x14c] sm:$0xf]
        %v2047 = vld [vmem:[%s3 + $0x150] sm:$0xf]
        %v2048 = vld [vmem:[%s3 + $0x154] sm:$0xf]
        %v2049 = vld [vmem:[%s3 + $0x158] sm:$0xf]
        %v2050 = vld [vmem:[%s3 + $0x15c] sm:$0xf]
        %v2051 = vld [vmem:[%s3 + $0x160] sm:$0xf]
        %v2052 = vld [vmem:[%s3 + $0x164] sm:$0xf]
        %v2053 = vld [vmem:[%s3 + $0x168] sm:$0xf]
        %v2054 = vld [vmem:[%s3 + $0x16c] sm:$0xf]
        %v2055 = vld [vmem:[%s3 + $0x170] sm:$0xf]
        %v2056 = vld [vmem:[%s3 + $0x174] sm:$0xf]
        %v2057 = vld [vmem:[%s3 + $0x178] sm:$0xf]
        %v2058 = vld [vmem:[%s3 + $0x17c] sm:$0xf]
        %v2059 = vld [vmem:[%s3 + $0x180] sm:$0xf]
        %v2060 = vld [vmem:[%s3 + $0x184] sm:$0xf]
        %v2061 = vld [vmem:[%s3 + $0x188] sm:$0xf]
        %v2062 = vld [vmem:[%s3 + $0x18c] sm:$0xf]
        %v2063 = vld [vmem:[%s3 + $0x190] sm:$0xf]
        %v2064 = vld [vmem:[%s3 + $0x194] sm:$0xf]
        %v2065 = vld [vmem:[%s3 + $0x198] sm:$0xf]
        %v2066 = vld [vmem:[%s3 + $0x19c] sm:$0xf]
        %v2067 = vld [vmem:[%s3 + $0x1a0] sm:$0xf]
        %v2068 = vld [vmem:[%s3 + $0x1a4] sm:$0xf]
        %v2069 = vld [vmem:[%s3 + $0x1a8] sm:$0xf]
        %v2070 = vld [vmem:[%s3 + $0x1ac] sm:$0xf]
        %v2071 = vld [vmem:[%s3 + $0x1b0] sm:$0xf]
        %v2072 = vld [vmem:[%s3 + $0x1b4] sm:$0xf]
        %v2073 = vld [vmem:[%s3 + $0x1b8] sm:$0xf]
        %v2074 = vld [vmem:[%s3 + $0x1bc] sm:$0xf]
        %v2075 = vld [vmem:[%s3 + $0x1c0] sm:$0xf]
        %v2076 = vld [vmem:[%s3 + $0x1c4] sm:$0xf]
        %v2077 = vld [vmem:[%s3 + $0x1c8] sm:$0xf]
        %v2078 = vld [vmem:[%s3 + $0x1cc] sm:$0xf]
        %v2079 = vld [vmem:[%s3 + $0x1d0] sm:$0xf]
        %v2080 = vld [vmem:[%s3 + $0x1d4] sm:$0xf]
        %v2081 = vld [vmem:[%s3 + $0x1d8] sm:$0xf]
        %v2082 = vld [vmem:[%s3 + $0x1dc] sm:$0xf]
        %v2083 = vld [vmem:[%s3 + $0x1e0] sm:$0xf]
        %v2084 = vld [vmem:[%s3 + $0x1e4] sm:$0xf]
        %v2085 = vld [vmem:[%s3 + $0x1e8] sm:$0xf]
        %v2086 = vld [vmem:[%s3 + $0x1ec] sm:$0xf]
        %v2087 = vld [vmem:[%s3 + $0x1f0] sm:$0xf]
        %v2088 = vld [vmem:[%s3 + $0x1f4] sm:$0xf]
        %v2089 = vld [vmem:[%s3 + $0x1f8] sm:$0xf]
        %v2090 = vld [vmem:[%s3 + $0x1fc] sm:$0xf]
        %v2091 = vld [vmem:[%s3 + $0x200] sm:$0xf]
        %v2092 = vld [vmem:[%s3 + $0x204] sm:$0xf]
        %v2093 = vld [vmem:[%s3 + $0x208] sm:$0xf]
        %v2094 = vld [vmem:[%s3 + $0x20c] sm:$0xf]
        %v2095 = vld [vmem:[%s3 + $0x210] sm:$0xf]
        %v2096 = vld [vmem:[%s3 + $0x214] sm:$0xf]
        %v2097 = vld [vmem:[%s3 + $0x218] sm:$0xf]
        %v2098 = vld [vmem:[%s3 + $0x21c] sm:$0xf]
        %v2099 = vld [vmem:[%s3 + $0x220] sm:$0xf]
        %v2100 = vld [vmem:[%s3 + $0x224] sm:$0xf]
        %v2101 = vld [vmem:[%s3 + $0x228] sm:$0xf]
        %v2102 = vld [vmem:[%s3 + $0x22c] sm:$0xf]
        %v2103 = vld [vmem:[%s3 + $0x230] sm:$0xf]
        %v2104 = vld [vmem:[%s3 + $0x234] sm:$0xf]
        %v2105 = vld [vmem:[%s3 + $0x238] sm:$0xf]
        %v2106 = vld [vmem:[%s3 + $0x23c] sm:$0xf]
        %v2267 = vunpack.c.l.b16 %v1803
        %v2268 = vunpack.c.h.b16 %v1803
        %v2269 = vunpack.c.l.b16 %v1804
        %v2270 = vunpack.c.h.b16 %v1804
        %v2271 = vunpack.c.l.b16 %v1805
        %v2272 = vunpack.c.h.b16 %v1805
        %v2273 = vunpack.c.l.b16 %v1806
        %v2274 = vunpack.c.h.b16 %v1806
        %v2275 = vunpack.c.l.b16 %v1807
        %v2276 = vunpack.c.l.b16 %v1808
        %v2277 = vunpack.c.h.b16 %v1808
        %v2278 = vunpack.c.l.b16 %v1809
        %v2279 = vunpack.c.h.b16 %v1809
        %v2280 = vunpack.c.l.b16 %v1810
        %v2281 = vunpack.c.h.b16 %v1810
        %v2282 = vunpack.c.l.b16 %v1811
        %v2283 = vunpack.c.h.b16 %v1811
        %v2284 = vunpack.c.l.b16 %v1812
        %v2285 = vunpack.c.l.b16 %v1813
        %v2286 = vunpack.c.h.b16 %v1813
        %v2287 = vunpack.c.l.b16 %v1814
        %v2288 = vunpack.c.h.b16 %v1814
        %v2289 = vunpack.c.l.b16 %v1815
        %v2290 = vunpack.c.h.b16 %v1815
        %v2291 = vunpack.c.l.b16 %v1816
        %v2292 = vunpack.c.h.b16 %v1816
        %v2293 = vunpack.c.l.b16 %v1817
        %v2294 = vunpack.c.l.b16 %v1818
        %v2295 = vunpack.c.h.b16 %v1818
        %v2296 = vunpack.c.l.b16 %v1819
        %v2297 = vunpack.c.h.b16 %v1819
        %v2298 = vunpack.c.l.b16 %v1820
        %v2299 = vunpack.c.h.b16 %v1820
        %v2300 = vunpack.c.l.b16 %v1821
        %v2301 = vunpack.c.h.b16 %v1821
        %v2302 = vunpack.c.l.b16 %v1822
        %v2303 = vunpack.c.l.b16 %v1823
        %v2304 = vunpack.c.h.b16 %v1823
        %v2305 = vunpack.c.l.b16 %v1824
        %v2306 = vunpack.c.h.b16 %v1824
        %v2307 = vunpack.c.l.b16 %v1825
        %v2308 = vunpack.c.h.b16 %v1825
        %v2309 = vunpack.c.l.b16 %v1826
        %v2310 = vunpack.c.h.b16 %v1826
        %v2311 = vunpack.c.l.b16 %v1827
        %v2312 = vunpack.c.l.b16 %v1828
        %v2313 = vunpack.c.h.b16 %v1828
        %v2314 = vunpack.c.l.b16 %v1829
        %v2315 = vunpack.c.h.b16 %v1829
        %v2316 = vunpack.c.l.b16 %v1830
        %v2317 = vunpack.c.h.b16 %v1830
        %v2318 = vunpack.c.l.b16 %v1831
        %v2319 = vunpack.c.h.b16 %v1831
        %v2320 = vunpack.c.l.b16 %v1832
        %v2321 = vunpack.c.l.b16 %v1833
        %v2322 = vunpack.c.h.b16 %v1833
        %v2323 = vunpack.c.l.b16 %v1834
        %v2324 = vunpack.c.h.b16 %v1834
        %v2325 = vunpack.c.l.b16 %v1835
        %v2326 = vunpack.c.h.b16 %v1835
        %v2327 = vunpack.c.l.b16 %v1836
        %v2328 = vunpack.c.h.b16 %v1836
        %v2329 = vunpack.c.l.b16 %v1837
        %v2330 = vunpack.c.l.b16 %v1838
        %v2331 = vunpack.c.h.b16 %v1838
        %v2332 = vunpack.c.l.b16 %v1839
        %v2333 = vunpack.c.h.b16 %v1839
        %v2334 = vunpack.c.l.b16 %v1840
        %v2335 = vunpack.c.h.b16 %v1840
        %v2336 = vunpack.c.l.b16 %v1841
        %v2337 = vunpack.c.h.b16 %v1841
        %v2338 = vunpack.c.l.b16 %v1842
        %v2339 = vunpack.c.l.b16 %v1843
        %v2340 = vunpack.c.h.b16 %v1843
        %v2341 = vunpack.c.l.b16 %v1844
        %v2342 = vunpack.c.h.b16 %v1844
        %v2343 = vunpack.c.l.b16 %v1845
        %v2344 = vunpack.c.h.b16 %v1845
        %v2345 = vunpack.c.l.b16 %v1846
        %v2346 = vunpack.c.h.b16 %v1846
        %v2347 = vunpack.c.l.b16 %v1847
        %v2348 = vunpack.c.l.b16 %v1848
        %v2349 = vunpack.c.h.b16 %v1848
        %v2350 = vunpack.c.l.b16 %v1849
        %v2351 = vunpack.c.h.b16 %v1849
        %v2352 = vunpack.c.l.b16 %v1850
        %v2353 = vunpack.c.h.b16 %v1850
        %v2354 = vunpack.c.l.b16 %v1851
        %v2355 = vunpack.c.h.b16 %v1851
        %v2356 = vunpack.c.l.b16 %v1852
        %v2357 = vunpack.c.l.b16 %v1853
        %v2358 = vunpack.c.h.b16 %v1853
        %v2359 = vunpack.c.l.b16 %v1854
        %v2360 = vunpack.c.h.b16 %v1854
        %v2361 = vunpack.c.l.b16 %v1855
        %v2362 = vunpack.c.h.b16 %v1855
        %v2363 = vunpack.c.l.b16 %v1856
        %v2364 = vunpack.c.h.b16 %v1856
        %v2365 = vunpack.c.l.b16 %v1857
        %v2366 = vunpack.c.l.b16 %v1858
        %v2367 = vunpack.c.h.b16 %v1858
        %v2368 = vunpack.c.l.b16 %v1859
        %v2369 = vunpack.c.h.b16 %v1859
        %v2370 = vunpack.c.l.b16 %v1860
        %v2371 = vunpack.c.h.b16 %v1860
        %v2372 = vunpack.c.l.b16 %v1861
        %v2373 = vunpack.c.h.b16 %v1861
        %v2374 = vunpack.c.l.b16 %v1862
        %v2375 = vunpack.c.l.b16 %v1863
        %v2376 = vunpack.c.h.b16 %v1863
        %v2377 = vunpack.c.l.b16 %v1864
        %v2378 = vunpack.c.h.b16 %v1864
        %v2379 = vunpack.c.l.b16 %v1865
        %v2380 = vunpack.c.h.b16 %v1865
        %v2381 = vunpack.c.l.b16 %v1866
        %v2382 = vunpack.c.h.b16 %v1866
        %v2383 = vunpack.c.l.b16 %v1867
        %v2384 = vunpack.c.l.b16 %v1868
        %v2385 = vunpack.c.h.b16 %v1868
        %v2386 = vunpack.c.l.b16 %v1869
        %v2387 = vunpack.c.h.b16 %v1869
        %v2388 = vunpack.c.l.b16 %v1870
        %v2389 = vunpack.c.h.b16 %v1870
        %v2390 = vunpack.c.l.b16 %v1871
        %v2391 = vunpack.c.h.b16 %v1871
        %v2392 = vunpack.c.l.b16 %v1872
        %v2393 = vunpack.c.l.b16 %v1873
        %v2394 = vunpack.c.h.b16 %v1873
        %v2395 = vunpack.c.l.b16 %v1874
        %v2396 = vunpack.c.h.b16 %v1874
        %v2397 = vunpack.c.l.b16 %v1875
        %v2398 = vunpack.c.h.b16 %v1875
        %v2399 = vunpack.c.l.b16 %v1876
        %v2400 = vunpack.c.h.b16 %v1876
        %v2401 = vunpack.c.l.b16 %v1877
        %v2402 = vunpack.c.l.b16 %v1878
        %v2403 = vunpack.c.h.b16 %v1878
        %v2404 = vunpack.c.l.b16 %v1879
        %v2405 = vunpack.c.h.b16 %v1879
        %v2406 = vunpack.c.l.b16 %v1880
        %v2407 = vunpack.c.h.b16 %v1880
        %v2408 = vunpack.c.l.b16 %v1881
        %v2409 = vunpack.c.h.b16 %v1881
        %v2410 = vunpack.c.l.b16 %v1882
        %v2411 = vunpack.c.l.b16 %v1883
        %v2412 = vunpack.c.h.b16 %v1883
        %v2413 = vunpack.c.l.b16 %v1884
        %v2414 = vunpack.c.h.b16 %v1884
        %v2415 = vunpack.c.l.b16 %v1885
        %v2416 = vunpack.c.h.b16 %v1885
        %v2417 = vunpack.c.l.b16 %v1886
        %v2418 = vunpack.c.h.b16 %v1886
        %v2419 = vunpack.c.l.b16 %v1887
        %v2420 = vunpack.c.l.b16 %v1888
        %v2421 = vunpack.c.h.b16 %v1888
        %v2422 = vunpack.c.l.b16 %v1889
        %v2423 = vunpack.c.h.b16 %v1889
        %v2424 = vunpack.c.l.b16 %v1890
        %v2425 = vunpack.c.h.b16 %v1890
        %v2426 = vunpack.c.l.b16 %v1891
        %v2427 = vunpack.c.h.b16 %v1891
        %v2428 = vunpack.c.l.b16 %v1892
        %v2429 = vunpack.c.l.b16 %v1893
        %v2430 = vunpack.c.h.b16 %v1893
        %v2431 = vunpack.c.l.b16 %v1894
        %v2432 = vunpack.c.h.b16 %v1894
        %v2433 = vunpack.c.l.b16 %v1895
        %v2434 = vunpack.c.h.b16 %v1895
        %v2435 = vunpack.c.l.b16 %v1896
        %v2436 = vunpack.c.h.b16 %v1896
        %v2437 = vunpack.c.l.b16 %v1897
        %v2438 = vunpack.c.l.b16 %v1898
        %v2439 = vunpack.c.h.b16 %v1898
        %v2440 = vunpack.c.l.b16 %v1899
        %v2441 = vunpack.c.h.b16 %v1899
        %v2442 = vunpack.c.l.b16 %v1900
        %v2443 = vunpack.c.h.b16 %v1900
        %v2444 = vunpack.c.l.b16 %v1901
        %v2445 = vunpack.c.h.b16 %v1901
        %v2446 = vunpack.c.l.b16 %v1902
        %v2447 = vunpack.c.l.b16 %v1903
        %v2448 = vunpack.c.h.b16 %v1903
        %v2449 = vunpack.c.l.b16 %v1904
        %v2450 = vunpack.c.h.b16 %v1904
        %v2451 = vunpack.c.l.b16 %v1905
        %v2452 = vunpack.c.h.b16 %v1905
        %v2453 = vunpack.c.l.b16 %v1906
        %v2454 = vunpack.c.h.b16 %v1906
        %v2455 = vunpack.c.l.b16 %v1907
        %v2456 = vunpack.c.l.b16 %v1908
        %v2457 = vunpack.c.h.b16 %v1908
        %v2458 = vunpack.c.l.b16 %v1909
        %v2459 = vunpack.c.h.b16 %v1909
        %v2460 = vunpack.c.l.b16 %v1910
        %v2461 = vunpack.c.h.b16 %v1910
        %v2462 = vunpack.c.l.b16 %v1911
        %v2463 = vunpack.c.h.b16 %v1911
        %v2464 = vunpack.c.l.b16 %v1912
        %v2465 = vunpack.c.l.b16 %v1913
        %v2466 = vunpack.c.h.b16 %v1913
        %v2467 = vunpack.c.l.b16 %v1914
        %v2468 = vunpack.c.h.b16 %v1914
        %v2469 = vunpack.c.l.b16 %v1915
        %v2470 = vunpack.c.h.b16 %v1915
        %v2471 = vunpack.c.l.b16 %v1916
        %v2472 = vunpack.c.h.b16 %v1916
        %v2473 = vunpack.c.l.b16 %v1917
        %v2474 = vunpack.c.l.b16 %v1918
        %v2475 = vunpack.c.h.b16 %v1918
        %v2476 = vunpack.c.l.b16 %v1919
        %v2477 = vunpack.c.h.b16 %v1919
        %v2478 = vunpack.c.l.b16 %v1920
        %v2479 = vunpack.c.h.b16 %v1920
        %v2480 = vunpack.c.l.b16 %v1921
        %v2481 = vunpack.c.h.b16 %v1921
        %v2482 = vunpack.c.l.b16 %v1922
        %v2483 = vunpack.c.l.b16 %v1923
        %v2484 = vunpack.c.h.b16 %v1923
        %v2485 = vunpack.c.l.b16 %v1924
        %v2486 = vunpack.c.h.b16 %v1924
        %v2487 = vunpack.c.l.b16 %v1925
        %v2488 = vunpack.c.h.b16 %v1925
        %v2489 = vunpack.c.l.b16 %v1926
        %v2490 = vunpack.c.h.b16 %v1926
        %v2491 = vunpack.c.l.b16 %v1927
        %v2492 = vunpack.c.l.b16 %v1928
        %v2493 = vunpack.c.h.b16 %v1928
        %v2494 = vunpack.c.l.b16 %v1929
        %v2495 = vunpack.c.h.b16 %v1929
        %v2496 = vunpack.c.l.b16 %v1930
        %v2497 = vunpack.c.h.b16 %v1930
        %v2498 = vunpack.c.l.b16 %v1931
        %v2499 = vunpack.c.h.b16 %v1931
        %v2500 = vunpack.c.l.b16 %v1932
        %v2501 = vunpack.c.l.b16 %v1933
        %v2502 = vunpack.c.h.b16 %v1933
        %v2503 = vunpack.c.l.b16 %v1934
        %v2504 = vunpack.c.h.b16 %v1934
        %v2505 = vunpack.c.l.b16 %v1935
        %v2506 = vunpack.c.h.b16 %v1935
        %v2507 = vunpack.c.l.b16 %v1936
        %v2508 = vunpack.c.h.b16 %v1936
        %v2509 = vunpack.c.l.b16 %v1937
        %v2510 = vunpack.c.l.b16 %v1938
        %v2511 = vunpack.c.h.b16 %v1938
        %v2512 = vunpack.c.l.b16 %v1939
        %v2513 = vunpack.c.h.b16 %v1939
        %v2514 = vunpack.c.l.b16 %v1940
        %v2515 = vunpack.c.h.b16 %v1940
        %v2516 = vunpack.c.l.b16 %v1941
        %v2517 = vunpack.c.h.b16 %v1941
        %v2518 = vunpack.c.l.b16 %v1942
        %v2519 = vunpack.c.l.b16 %v1943
        %v2520 = vunpack.c.h.b16 %v1943
        %v2521 = vunpack.c.l.b16 %v1944
        %v2522 = vunpack.c.h.b16 %v1944
        %v2523 = vunpack.c.l.b16 %v1945
        %v2524 = vunpack.c.h.b16 %v1945
        %v2525 = vunpack.c.l.b16 %v1946
        %v2526 = vunpack.c.h.b16 %v1946
        %v2527 = vunpack.c.l.b16 %v1947
        %v2528 = vunpack.c.l.b16 %v1948
        %v2529 = vunpack.c.h.b16 %v1948
        %v2530 = vunpack.c.l.b16 %v1949
        %v2531 = vunpack.c.h.b16 %v1949
        %v2532 = vunpack.c.l.b16 %v1950
        %v2533 = vunpack.c.h.b16 %v1950
        %v2534 = vunpack.c.l.b16 %v1951
        %v2535 = vunpack.c.h.b16 %v1951
        %v2536 = vunpack.c.l.b16 %v1952
        %v2537 = vunpack.c.l.b16 %v1953
        %v2538 = vunpack.c.h.b16 %v1953
        %v2539 = vunpack.c.l.b16 %v1954
        %v2540 = vunpack.c.h.b16 %v1954
        %v2541 = vunpack.c.l.b16 %v1955
        %v2542 = vunpack.c.h.b16 %v1955
        %v2543 = vunpack.c.l.b16 %v1956
        %v2544 = vunpack.c.h.b16 %v1956
        %v2545 = vunpack.c.l.b16 %v1957
        %v2546 = vunpack.c.l.b16 %v1958
        %v2547 = vunpack.c.h.b16 %v1958
        %v2548 = vunpack.c.l.b16 %v1959
        %v2549 = vunpack.c.h.b16 %v1959
        %v2550 = vunpack.c.l.b16 %v1960
        %v2551 = vunpack.c.h.b16 %v1960
        %v2552 = vunpack.c.l.b16 %v1961
        %v2553 = vunpack.c.h.b16 %v1961
        %v2554 = vunpack.c.l.b16 %v1962
        %v2555 = vpack.c.b16 %v2276, %v2267
        %v2556 = vpack.c.b16 %v2277, %v2268
        %v2557 = vpack.c.b16 %v2278, %v2269
        %v2558 = vpack.c.b16 %v2279, %v2270
        %v2559 = vpack.c.b16 %v2280, %v2271
        %v2560 = vpack.c.b16 %v2281, %v2272
        %v2561 = vpack.c.b16 %v2282, %v2273
        %v2562 = vpack.c.b16 %v2283, %v2274
        %v2563 = vpack.c.b16 %v2284, %v2275
        %v2564 = vpack.c.b16 %v2294, %v2285
        %v2565 = vpack.c.b16 %v2295, %v2286
        %v2566 = vpack.c.b16 %v2296, %v2287
        %v2567 = vpack.c.b16 %v2297, %v2288
        %v2568 = vpack.c.b16 %v2298, %v2289
        %v2569 = vpack.c.b16 %v2299, %v2290
        %v2570 = vpack.c.b16 %v2300, %v2291
        %v2571 = vpack.c.b16 %v2301, %v2292
        %v2572 = vpack.c.b16 %v2302, %v2293
        %v2573 = vpack.c.b16 %v2312, %v2303
        %v2574 = vpack.c.b16 %v2313, %v2304
        %v2575 = vpack.c.b16 %v2314, %v2305
        %v2576 = vpack.c.b16 %v2315, %v2306
        %v2577 = vpack.c.b16 %v2316, %v2307
        %v2578 = vpack.c.b16 %v2317, %v2308
        %v2579 = vpack.c.b16 %v2318, %v2309
        %v2580 = vpack.c.b16 %v2319, %v2310
        %v2581 = vpack.c.b16 %v2320, %v2311
        %v2582 = vpack.c.b16 %v2330, %v2321
        %v2583 = vpack.c.b16 %v2331, %v2322
        %v2584 = vpack.c.b16 %v2332, %v2323
        %v2585 = vpack.c.b16 %v2333, %v2324
        %v2586 = vpack.c.b16 %v2334, %v2325
        %v2587 = vpack.c.b16 %v2335, %v2326
        %v2588 = vpack.c.b16 %v2336, %v2327
        %v2589 = vpack.c.b16 %v2337, %v2328
        %v2590 = vpack.c.b16 %v2338, %v2329
        %v2591 = vpack.c.b16 %v2348, %v2339
        %v2592 = vpack.c.b16 %v2349, %v2340
        %v2593 = vpack.c.b16 %v2350, %v2341
        %v2594 = vpack.c.b16 %v2351, %v2342
        %v2595 = vpack.c.b16 %v2352, %v2343
        %v2596 = vpack.c.b16 %v2353, %v2344
        %v2597 = vpack.c.b16 %v2354, %v2345
        %v2598 = vpack.c.b16 %v2355, %v2346
        %v2599 = vpack.c.b16 %v2356, %v2347
        %v2600 = vpack.c.b16 %v2366, %v2357
        %v2601 = vpack.c.b16 %v2367, %v2358
        %v2602 = vpack.c.b16 %v2368, %v2359
        %v2603 = vpack.c.b16 %v2369, %v2360
        %v2604 = vpack.c.b16 %v2370, %v2361
        %v2605 = vpack.c.b16 %v2371, %v2362
        %v2606 = vpack.c.b16 %v2372, %v2363
        %v2607 = vpack.c.b16 %v2373, %v2364
        %v2608 = vpack.c.b16 %v2374, %v2365
        %v2609 = vpack.c.b16 %v2384, %v2375
        %v2610 = vpack.c.b16 %v2385, %v2376
        %v2611 = vpack.c.b16 %v2386, %v2377
        %v2612 = vpack.c.b16 %v2387, %v2378
        %v2613 = vpack.c.b16 %v2388, %v2379
        %v2614 = vpack.c.b16 %v2389, %v2380
        %v2615 = vpack.c.b16 %v2390, %v2381
        %v2616 = vpack.c.b16 %v2391, %v2382
        %v2617 = vpack.c.b16 %v2392, %v2383
        %v2618 = vpack.c.b16 %v2402, %v2393
        %v2619 = vpack.c.b16 %v2403, %v2394
        %v2620 = vpack.c.b16 %v2404, %v2395
        %v2621 = vpack.c.b16 %v2405, %v2396
        %v2622 = vpack.c.b16 %v2406, %v2397
        %v2623 = vpack.c.b16 %v2407, %v2398
        %v2624 = vpack.c.b16 %v2408, %v2399
        %v2625 = vpack.c.b16 %v2409, %v2400
        %v2626 = vpack.c.b16 %v2410, %v2401
        %v2627 = vpack.c.b16 %v2420, %v2411
        %v2628 = vpack.c.b16 %v2421, %v2412
        %v2629 = vpack.c.b16 %v2422, %v2413
        %v2630 = vpack.c.b16 %v2423, %v2414
        %v2631 = vpack.c.b16 %v2424, %v2415
        %v2632 = vpack.c.b16 %v2425, %v2416
        %v2633 = vpack.c.b16 %v2426, %v2417
        %v2634 = vpack.c.b16 %v2427, %v2418
        %v2635 = vpack.c.b16 %v2428, %v2419
        %v2636 = vpack.c.b16 %v2438, %v2429
        %v2637 = vpack.c.b16 %v2439, %v2430
        %v2638 = vpack.c.b16 %v2440, %v2431
        %v2639 = vpack.c.b16 %v2441, %v2432
        %v2640 = vpack.c.b16 %v2442, %v2433
        %v2641 = vpack.c.b16 %v2443, %v2434
        %v2642 = vpack.c.b16 %v2444, %v2435
        %v2643 = vpack.c.b16 %v2445, %v2436
        %v2644 = vpack.c.b16 %v2446, %v2437
        %v2645 = vpack.c.b16 %v2456, %v2447
        %v2646 = vpack.c.b16 %v2457, %v2448
        %v2647 = vpack.c.b16 %v2458, %v2449
        %v2648 = vpack.c.b16 %v2459, %v2450
        %v2649 = vpack.c.b16 %v2460, %v2451
        %v2650 = vpack.c.b16 %v2461, %v2452
        %v2651 = vpack.c.b16 %v2462, %v2453
        %v2652 = vpack.c.b16 %v2463, %v2454
        %v2653 = vpack.c.b16 %v2464, %v2455
        %v2654 = vpack.c.b16 %v2474, %v2465
        %v2655 = vpack.c.b16 %v2475, %v2466
        %v2656 = vpack.c.b16 %v2476, %v2467
        %v2657 = vpack.c.b16 %v2477, %v2468
        %v2658 = vpack.c.b16 %v2478, %v2469
        %v2659 = vpack.c.b16 %v2479, %v2470
        %v2660 = vpack.c.b16 %v2480, %v2471
        %v2661 = vpack.c.b16 %v2481, %v2472
        %v2662 = vpack.c.b16 %v2482, %v2473
        %v2663 = vpack.c.b16 %v2492, %v2483
        %v2664 = vpack.c.b16 %v2493, %v2484
        %v2665 = vpack.c.b16 %v2494, %v2485
        %v2666 = vpack.c.b16 %v2495, %v2486
        %v2667 = vpack.c.b16 %v2496, %v2487
        %v2668 = vpack.c.b16 %v2497, %v2488
        %v2669 = vpack.c.b16 %v2498, %v2489
        %v2670 = vpack.c.b16 %v2499, %v2490
        %v2671 = vpack.c.b16 %v2500, %v2491
        %v2672 = vpack.c.b16 %v2510, %v2501
        %v2673 = vpack.c.b16 %v2511, %v2502
        %v2674 = vpack.c.b16 %v2512, %v2503
        %v2675 = vpack.c.b16 %v2513, %v2504
        %v2676 = vpack.c.b16 %v2514, %v2505
        %v2677 = vpack.c.b16 %v2515, %v2506
        %v2678 = vpack.c.b16 %v2516, %v2507
        %v2679 = vpack.c.b16 %v2517, %v2508
        %v2680 = vpack.c.b16 %v2518, %v2509
        %v2681 = vpack.c.b16 %v2528, %v2519
        %v2682 = vpack.c.b16 %v2529, %v2520
        %v2683 = vpack.c.b16 %v2530, %v2521
        %v2684 = vpack.c.b16 %v2531, %v2522
        %v2685 = vpack.c.b16 %v2532, %v2523
        %v2686 = vpack.c.b16 %v2533, %v2524
        %v2687 = vpack.c.b16 %v2534, %v2525
        %v2688 = vpack.c.b16 %v2535, %v2526
        %v2689 = vpack.c.b16 %v2536, %v2527
        %v2690 = vpack.c.b16 %v2546, %v2537
        %v2691 = vpack.c.b16 %v2547, %v2538
        %v2692 = vpack.c.b16 %v2548, %v2539
        %v2693 = vpack.c.b16 %v2549, %v2540
        %v2694 = vpack.c.b16 %v2550, %v2541
        %v2695 = vpack.c.b16 %v2551, %v2542
        %v2696 = vpack.c.b16 %v2552, %v2543
        %v2697 = vpack.c.b16 %v2553, %v2544
        %v2698 = vpack.c.b16 %v2554, %v2545
        %v2987 = vunpack.c.l.b16 %v1963
        %v2988 = vunpack.c.l.b16 %v1964
        %v2989 = vunpack.c.l.b16 %v1965
        %v2990 = vunpack.c.l.b16 %v1966
        %v2991 = vunpack.c.l.b16 %v1967
        %v2992 = vunpack.c.l.b16 %v1968
        %v2993 = vunpack.c.l.b16 %v1969
        %v2994 = vunpack.c.l.b16 %v1970
        %v2995 = vunpack.c.l.b16 %v1971
        %v2996 = vunpack.c.l.b16 %v1972
        %v2997 = vunpack.c.l.b16 %v1973
        %v2998 = vunpack.c.l.b16 %v1974
        %v2999 = vunpack.c.l.b16 %v1975
        %v3000 = vunpack.c.l.b16 %v1976
        %v3001 = vunpack.c.l.b16 %v1977
        %v3002 = vunpack.c.l.b16 %v1978
        %v3003 = vunpack.c.l.b16 %v1979
        %v3004 = vunpack.c.l.b16 %v1980
        %v3005 = vunpack.c.l.b16 %v1981
        %v3006 = vunpack.c.l.b16 %v1982
        %v3007 = vunpack.c.l.b16 %v1983
        %v3008 = vunpack.c.l.b16 %v1984
        %v3009 = vunpack.c.l.b16 %v1985
        %v3010 = vunpack.c.l.b16 %v1986
        %v3011 = vunpack.c.l.b16 %v1987
        %v3012 = vunpack.c.l.b16 %v1988
        %v3013 = vunpack.c.l.b16 %v1989
        %v3014 = vunpack.c.l.b16 %v1990
        %v3015 = vunpack.c.l.b16 %v1991
        %v3016 = vunpack.c.l.b16 %v1992
        %v3017 = vunpack.c.l.b16 %v1993
        %v3018 = vunpack.c.l.b16 %v1994
        %v3019 = vunpack.c.l.b16 %v1995
        %v3020 = vunpack.c.l.b16 %v1996
        %v3021 = vunpack.c.l.b16 %v1997
        %v3022 = vunpack.c.l.b16 %v1998
        %v3023 = vunpack.c.l.b16 %v1999
        %v3024 = vunpack.c.l.b16 %v2000
        %v3025 = vunpack.c.l.b16 %v2001
        %v3026 = vunpack.c.l.b16 %v2002
        %v3027 = vunpack.c.l.b16 %v2003
        %v3028 = vunpack.c.l.b16 %v2004
        %v3029 = vunpack.c.l.b16 %v2005
        %v3030 = vunpack.c.l.b16 %v2006
        %v3031 = vunpack.c.l.b16 %v2007
        %v3032 = vunpack.c.l.b16 %v2008
        %v3033 = vunpack.c.l.b16 %v2009
        %v3034 = vunpack.c.l.b16 %v2010
        %v3035 = vunpack.c.l.b16 %v2011
        %v3036 = vunpack.c.l.b16 %v2012
        %v3037 = vunpack.c.l.b16 %v2013
        %v3038 = vunpack.c.l.b16 %v2014
        %v3039 = vunpack.c.l.b16 %v2015
        %v3040 = vunpack.c.l.b16 %v2016
        %v3041 = vunpack.c.l.b16 %v2017
        %v3042 = vunpack.c.l.b16 %v2018
        %v3043 = vunpack.c.l.b16 %v2019
        %v3044 = vunpack.c.l.b16 %v2020
        %v3045 = vunpack.c.l.b16 %v2021
        %v3046 = vunpack.c.l.b16 %v2022
        %v3047 = vunpack.c.l.b16 %v2023
        %v3048 = vunpack.c.l.b16 %v2024
        %v3049 = vunpack.c.l.b16 %v2025
        %v3050 = vunpack.c.l.b16 %v2026
        %v3051 = vunpack.c.l.b16 %v2027
        %v3052 = vunpack.c.l.b16 %v2028
        %v3053 = vunpack.c.l.b16 %v2029
        %v3054 = vunpack.c.l.b16 %v2030
        %v3055 = vunpack.c.l.b16 %v2031
        %v3056 = vunpack.c.l.b16 %v2032
        %v3057 = vunpack.c.l.b16 %v2033
        %v3058 = vunpack.c.l.b16 %v2034
        %v3059 = vunpack.c.l.b16 %v2035
        %v3060 = vunpack.c.l.b16 %v2036
        %v3061 = vunpack.c.l.b16 %v2037
        %v3062 = vunpack.c.l.b16 %v2038
        %v3063 = vunpack.c.l.b16 %v2039
        %v3064 = vunpack.c.l.b16 %v2040
        %v3065 = vunpack.c.l.b16 %v2041
        %v3066 = vunpack.c.l.b16 %v2042
        %v3067 = vunpack.c.l.b16 %v2043
        %v3068 = vunpack.c.l.b16 %v2044
        %v3069 = vunpack.c.l.b16 %v2045
        %v3070 = vunpack.c.l.b16 %v2046
        %v3071 = vunpack.c.l.b16 %v2047
        %v3072 = vunpack.c.l.b16 %v2048
        %v3073 = vunpack.c.l.b16 %v2049
        %v3074 = vunpack.c.l.b16 %v2050
        %v3075 = vunpack.c.l.b16 %v2051
        %v3076 = vunpack.c.l.b16 %v2052
        %v3077 = vunpack.c.l.b16 %v2053
        %v3078 = vunpack.c.l.b16 %v2054
        %v3079 = vunpack.c.l.b16 %v2055
        %v3080 = vunpack.c.l.b16 %v2056
        %v3081 = vunpack.c.l.b16 %v2057
        %v3082 = vunpack.c.l.b16 %v2058
        %v3083 = vunpack.c.l.b16 %v2059
        %v3084 = vunpack.c.l.b16 %v2060
        %v3085 = vunpack.c.l.b16 %v2061
        %v3086 = vunpack.c.l.b16 %v2062
        %v3087 = vunpack.c.l.b16 %v2063
        %v3088 = vunpack.c.l.b16 %v2064
        %v3089 = vunpack.c.l.b16 %v2065
        %v3090 = vunpack.c.l.b16 %v2066
        %v3091 = vunpack.c.l.b16 %v2067
        %v3092 = vunpack.c.l.b16 %v2068
        %v3093 = vunpack.c.l.b16 %v2069
        %v3094 = vunpack.c.l.b16 %v2070
        %v3095 = vunpack.c.l.b16 %v2071
        %v3096 = vunpack.c.l.b16 %v2072
        %v3097 = vunpack.c.l.b16 %v2073
        %v3098 = vunpack.c.l.b16 %v2074
        %v3099 = vunpack.c.l.b16 %v2075
        %v3100 = vunpack.c.l.b16 %v2076
        %v3101 = vunpack.c.l.b16 %v2077
        %v3102 = vunpack.c.l.b16 %v2078
        %v3103 = vunpack.c.l.b16 %v2079
        %v3104 = vunpack.c.l.b16 %v2080
        %v3105 = vunpack.c.l.b16 %v2081
        %v3106 = vunpack.c.l.b16 %v2082
        %v3107 = vunpack.c.l.b16 %v2083
        %v3108 = vunpack.c.l.b16 %v2084
        %v3109 = vunpack.c.l.b16 %v2085
        %v3110 = vunpack.c.l.b16 %v2086
        %v3111 = vunpack.c.l.b16 %v2087
        %v3112 = vunpack.c.l.b16 %v2088
        %v3113 = vunpack.c.l.b16 %v2089
        %v3114 = vunpack.c.l.b16 %v2090
        %v3115 = vunpack.c.l.b16 %v2091
        %v3116 = vunpack.c.l.b16 %v2092
        %v3117 = vunpack.c.l.b16 %v2093
        %v3118 = vunpack.c.l.b16 %v2094
        %v3119 = vunpack.c.l.b16 %v2095
        %v3120 = vunpack.c.l.b16 %v2096
        %v3121 = vunpack.c.l.b16 %v2097
        %v3122 = vunpack.c.l.b16 %v2098
        %v3123 = vunpack.c.l.b16 %v2099
        %v3124 = vunpack.c.l.b16 %v2100
        %v3125 = vunpack.c.l.b16 %v2101
        %v3126 = vunpack.c.l.b16 %v2102
        %v3127 = vunpack.c.l.b16 %v2103
        %v3128 = vunpack.c.l.b16 %v2104
        %v3129 = vunpack.c.l.b16 %v2105
        %v3130 = vunpack.c.l.b16 %v2106
        %v3131 = vpack.c.b16 %v2988, %v2987
        %v3132 = vpack.c.b16 %v2990, %v2989
        %v3133 = vpack.c.b16 %v2992, %v2991
        %v3134 = vpack.c.b16 %v2994, %v2993
        %v3135 = vpack.c.b16 %v2996, %v2995
        %v3136 = vpack.c.b16 %v2998, %v2997
        %v3137 = vpack.c.b16 %v3000, %v2999
        %v3138 = vpack.c.b16 %v3002, %v3001
        %v3139 = vpack.c.b16 %v3004, %v3003
        %v3140 = vpack.c.b16 %v3006, %v3005
        %v3141 = vpack.c.b16 %v3008, %v3007
        %v3142 = vpack.c.b16 %v3010, %v3009
        %v3143 = vpack.c.b16 %v3012, %v3011
        %v3144 = vpack.c.b16 %v3014, %v3013
        %v3145 = vpack.c.b16 %v3016, %v3015
        %v3146 = vpack.c.b16 %v3018, %v3017
        %v3147 = vpack.c.b16 %v3020, %v3019
        %v3148 = vpack.c.b16 %v3022, %v3021
        %v3149 = vpack.c.b16 %v3024, %v3023
        %v3150 = vpack.c.b16 %v3026, %v3025
        %v3151 = vpack.c.b16 %v3028, %v3027
        %v3152 = vpack.c.b16 %v3030, %v3029
        %v3153 = vpack.c.b16 %v3032, %v3031
        %v3154 = vpack.c.b16 %v3034, %v3033
        %v3155 = vpack.c.b16 %v3036, %v3035
        %v3156 = vpack.c.b16 %v3038, %v3037
        %v3157 = vpack.c.b16 %v3040, %v3039
        %v3158 = vpack.c.b16 %v3042, %v3041
        %v3159 = vpack.c.b16 %v3044, %v3043
        %v3160 = vpack.c.b16 %v3046, %v3045
        %v3161 = vpack.c.b16 %v3048, %v3047
        %v3162 = vpack.c.b16 %v3050, %v3049
        %v3163 = vpack.c.b16 %v3052, %v3051
        %v3164 = vpack.c.b16 %v3054, %v3053
        %v3165 = vpack.c.b16 %v3056, %v3055
        %v3166 = vpack.c.b16 %v3058, %v3057
        %v3167 = vpack.c.b16 %v3060, %v3059
        %v3168 = vpack.c.b16 %v3062, %v3061
        %v3169 = vpack.c.b16 %v3064, %v3063
        %v3170 = vpack.c.b16 %v3066, %v3065
        %v3171 = vpack.c.b16 %v3068, %v3067
        %v3172 = vpack.c.b16 %v3070, %v3069
        %v3173 = vpack.c.b16 %v3072, %v3071
        %v3174 = vpack.c.b16 %v3074, %v3073
        %v3175 = vpack.c.b16 %v3076, %v3075
        %v3176 = vpack.c.b16 %v3078, %v3077
        %v3177 = vpack.c.b16 %v3080, %v3079
        %v3178 = vpack.c.b16 %v3082, %v3081
        %v3179 = vpack.c.b16 %v3084, %v3083
        %v3180 = vpack.c.b16 %v3086, %v3085
        %v3181 = vpack.c.b16 %v3088, %v3087
        %v3182 = vpack.c.b16 %v3090, %v3089
        %v3183 = vpack.c.b16 %v3092, %v3091
        %v3184 = vpack.c.b16 %v3094, %v3093
        %v3185 = vpack.c.b16 %v3096, %v3095
        %v3186 = vpack.c.b16 %v3098, %v3097
        %v3187 = vpack.c.b16 %v3100, %v3099
        %v3188 = vpack.c.b16 %v3102, %v3101
        %v3189 = vpack.c.b16 %v3104, %v3103
        %v3190 = vpack.c.b16 %v3106, %v3105
        %v3191 = vpack.c.b16 %v3108, %v3107
        %v3192 = vpack.c.b16 %v3110, %v3109
        %v3193 = vpack.c.b16 %v3112, %v3111
        %v3194 = vpack.c.b16 %v3114, %v3113
        %v3195 = vpack.c.b16 %v3116, %v3115
        %v3196 = vpack.c.b16 %v3118, %v3117
        %v3197 = vpack.c.b16 %v3120, %v3119
        %v3198 = vpack.c.b16 %v3122, %v3121
        %v3199 = vpack.c.b16 %v3124, %v3123
        %v3200 = vpack.c.b16 %v3126, %v3125
        %v3201 = vpack.c.b16 %v3128, %v3127
        %v3202 = vpack.c.b16 %v3130, %v3129
        %3275 = vmatpush.bf16.msra.mxu0 %v3138
        %3276 = vmatpush.bf16.msra.mxu0 %v3137
        %3277 = vmatpush.bf16.msra.mxu0 %v3136
        %3278 = vmatpush.bf16.msra.mxu0 %v3135
        %3279 = vmatpush.bf16.msra.mxu0 %v3134
        %3280 = vmatpush.bf16.msra.mxu0 %v3133
        %3281 = vmatpush.bf16.msra.mxu0 %v3132
        %3282 = vmatpush.bf16.msra.mxu0 %v3131
        %3283 = vmatmul.bf16.gmra.mxu0 %v2555
        %v3284 = vpop.f32.mrf.mxu0
        %v3285 = vadd.f32 0.0, %v3284
        %v3286 = vpop.f32.mrf.mxu0
        %v3287 = vadd.f32 0.0, %v3286
        %3288 = vmatmul.bf16.gmra.mxu0 %v2564
        %v3289 = vpop.f32.mrf.mxu0
        %v3290 = vadd.f32 0.0, %v3289
        %v3291 = vpop.f32.mrf.mxu0
        %v3292 = vadd.f32 0.0, %v3291
        %3293 = vmatmul.bf16.gmra.mxu0 %v2573
        %v3294 = vpop.f32.mrf.mxu0
        %v3295 = vadd.f32 0.0, %v3294
        %v3296 = vpop.f32.mrf.mxu0
        %v3297 = vadd.f32 0.0, %v3296
        %3298 = vmatmul.bf16.gmra.mxu0 %v2582
        %v3299 = vpop.f32.mrf.mxu0
        %v3300 = vadd.f32 0.0, %v3299
        %v3301 = vpop.f32.mrf.mxu0
        %v3302 = vadd.f32 0.0, %v3301
        %3303 = vmatmul.bf16.gmra.mxu0 %v2591
        %v3304 = vpop.f32.mrf.mxu0
        %v3305 = vadd.f32 0.0, %v3304
        %v3306 = vpop.f32.mrf.mxu0
        %v3307 = vadd.f32 0.0, %v3306
        %3308 = vmatmul.bf16.gmra.mxu0 %v2600
        %v3309 = vpop.f32.mrf.mxu0
        %v3310 = vadd.f32 0.0, %v3309
        %v3311 = vpop.f32.mrf.mxu0
        %v3312 = vadd.f32 0.0, %v3311
        %3313 = vmatmul.bf16.gmra.mxu0 %v2609
        %v3314 = vpop.f32.mrf.mxu0
        %v3315 = vadd.f32 0.0, %v3314
        %v3316 = vpop.f32.mrf.mxu0
        %v3317 = vadd.f32 0.0, %v3316
        %3318 = vmatmul.bf16.gmra.mxu0 %v2618
        %v3319 = vpop.f32.mrf.mxu0
        %v3320 = vadd.f32 0.0, %v3319
        %v3321 = vpop.f32.mrf.mxu0
        %v3322 = vadd.f32 0.0, %v3321
        %3323 = vmatmul.bf16.gmra.mxu0 %v2627
        %v3324 = vpop.f32.mrf.mxu0
        %v3325 = vadd.f32 0.0, %v3324
        %v3326 = vpop.f32.mrf.mxu0
        %v3327 = vadd.f32 0.0, %v3326
        %3328 = vmatmul.bf16.gmra.mxu0 %v2636
        %v3329 = vpop.f32.mrf.mxu0
        %v3330 = vadd.f32 0.0, %v3329
        %v3331 = vpop.f32.mrf.mxu0
        %v3332 = vadd.f32 0.0, %v3331
        %3333 = vmatmul.bf16.gmra.mxu0 %v2645
        %v3334 = vpop.f32.mrf.mxu0
        %v3335 = vadd.f32 0.0, %v3334
        %v3336 = vpop.f32.mrf.mxu0
        %v3337 = vadd.f32 0.0, %v3336
        %3338 = vmatmul.bf16.gmra.mxu0 %v2654
        %v3339 = vpop.f32.mrf.mxu0
        %v3340 = vadd.f32 0.0, %v3339
        %v3341 = vpop.f32.mrf.mxu0
        %v3342 = vadd.f32 0.0, %v3341
        %3343 = vmatmul.bf16.gmra.mxu0 %v2663
        %v3344 = vpop.f32.mrf.mxu0
        %v3345 = vadd.f32 0.0, %v3344
        %v3346 = vpop.f32.mrf.mxu0
        %v3347 = vadd.f32 0.0, %v3346
        %3348 = vmatmul.bf16.gmra.mxu0 %v2672
        %v3349 = vpop.f32.mrf.mxu0
        %v3350 = vadd.f32 0.0, %v3349
        %v3351 = vpop.f32.mrf.mxu0
        %v3352 = vadd.f32 0.0, %v3351
        %3353 = vmatmul.bf16.gmra.mxu0 %v2681
        %v3354 = vpop.f32.mrf.mxu0
        %v3355 = vadd.f32 0.0, %v3354
        %v3356 = vpop.f32.mrf.mxu0
        %v3357 = vadd.f32 0.0, %v3356
        %3358 = vmatmul.bf16.gmra.mxu0 %v2690
        %v3359 = vpop.f32.mrf.mxu0
        %v3360 = vadd.f32 0.0, %v3359
        %v3361 = vpop.f32.mrf.mxu0
        %v3362 = vadd.f32 0.0, %v3361
        %3363 = vdwg.mxu0
        %3364 = vmatpush.bf16.msra.mxu0 %v3146
        %3365 = vmatpush.bf16.msra.mxu0 %v3145
        %3366 = vmatpush.bf16.msra.mxu0 %v3144
        %3367 = vmatpush.bf16.msra.mxu0 %v3143
        %3368 = vmatpush.bf16.msra.mxu0 %v3142
        %3369 = vmatpush.bf16.msra.mxu0 %v3141
        %3370 = vmatpush.bf16.msra.mxu0 %v3140
        %3371 = vmatpush.bf16.msra.mxu0 %v3139
        %3372 = vmatmul.bf16.gmra.mxu0 %v2556
        %v3373 = vpop.f32.mrf.mxu0
        %v3374 = vadd.f32 %v3285, %v3373
        %v3375 = vpop.f32.mrf.mxu0
        %v3376 = vadd.f32 %v3287, %v3375
        %3377 = vmatmul.bf16.gmra.mxu0 %v2565
        %v3378 = vpop.f32.mrf.mxu0
        %v3379 = vadd.f32 %v3290, %v3378
        %v3380 = vpop.f32.mrf.mxu0
        %v3381 = vadd.f32 %v3292, %v3380
        %3382 = vmatmul.bf16.gmra.mxu0 %v2574
        %v3383 = vpop.f32.mrf.mxu0
        %v3384 = vadd.f32 %v3295, %v3383
        %v3385 = vpop.f32.mrf.mxu0
        %v3386 = vadd.f32 %v3297, %v3385
        %3387 = vmatmul.bf16.gmra.mxu0 %v2583
        %v3388 = vpop.f32.mrf.mxu0
        %v3389 = vadd.f32 %v3300, %v3388
        %v3390 = vpop.f32.mrf.mxu0
        %v3391 = vadd.f32 %v3302, %v3390
        %3392 = vmatmul.bf16.gmra.mxu0 %v2592
        %v3393 = vpop.f32.mrf.mxu0
        %v3394 = vadd.f32 %v3305, %v3393
        %v3395 = vpop.f32.mrf.mxu0
        %v3396 = vadd.f32 %v3307, %v3395
        %3397 = vmatmul.bf16.gmra.mxu0 %v2601
        %v3398 = vpop.f32.mrf.mxu0
        %v3399 = vadd.f32 %v3310, %v3398
        %v3400 = vpop.f32.mrf.mxu0
        %v3401 = vadd.f32 %v3312, %v3400
        %3402 = vmatmul.bf16.gmra.mxu0 %v2610
        %v3403 = vpop.f32.mrf.mxu0
        %v3404 = vadd.f32 %v3315, %v3403
        %v3405 = vpop.f32.mrf.mxu0
        %v3406 = vadd.f32 %v3317, %v3405
        %3407 = vmatmul.bf16.gmra.mxu0 %v2619
        %v3408 = vpop.f32.mrf.mxu0
        %v3409 = vadd.f32 %v3320, %v3408
        %v3410 = vpop.f32.mrf.mxu0
        %v3411 = vadd.f32 %v3322, %v3410
        %3412 = vmatmul.bf16.gmra.mxu0 %v2628
        %v3413 = vpop.f32.mrf.mxu0
        %v3414 = vadd.f32 %v3325, %v3413
        %v3415 = vpop.f32.mrf.mxu0
        %v3416 = vadd.f32 %v3327, %v3415
        %3417 = vmatmul.bf16.gmra.mxu0 %v2637
        %v3418 = vpop.f32.mrf.mxu0
        %v3419 = vadd.f32 %v3330, %v3418
        %v3420 = vpop.f32.mrf.mxu0
        %v3421 = vadd.f32 %v3332, %v3420
        %3422 = vmatmul.bf16.gmra.mxu0 %v2646
        %v3423 = vpop.f32.mrf.mxu0
        %v3424 = vadd.f32 %v3335, %v3423
        %v3425 = vpop.f32.mrf.mxu0
        %v3426 = vadd.f32 %v3337, %v3425
        %3427 = vmatmul.bf16.gmra.mxu0 %v2655
        %v3428 = vpop.f32.mrf.mxu0
        %v3429 = vadd.f32 %v3340, %v3428
        %v3430 = vpop.f32.mrf.mxu0
        %v3431 = vadd.f32 %v3342, %v3430
        %3432 = vmatmul.bf16.gmra.mxu0 %v2664
        %v3433 = vpop.f32.mrf.mxu0
        %v3434 = vadd.f32 %v3345, %v3433
        %v3435 = vpop.f32.mrf.mxu0
        %v3436 = vadd.f32 %v3347, %v3435
        %3437 = vmatmul.bf16.gmra.mxu0 %v2673
        %v3438 = vpop.f32.mrf.mxu0
        %v3439 = vadd.f32 %v3350, %v3438
        %v3440 = vpop.f32.mrf.mxu0
        %v3441 = vadd.f32 %v3352, %v3440
        %3442 = vmatmul.bf16.gmra.mxu0 %v2682
        %v3443 = vpop.f32.mrf.mxu0
        %v3444 = vadd.f32 %v3355, %v3443
        %v3445 = vpop.f32.mrf.mxu0
        %v3446 = vadd.f32 %v3357, %v3445
        %3447 = vmatmul.bf16.gmra.mxu0 %v2691
        %v3448 = vpop.f32.mrf.mxu0
        %v3449 = vadd.f32 %v3360, %v3448
        %v3450 = vpop.f32.mrf.mxu0
        %v3451 = vadd.f32 %v3362, %v3450
        %3452 = vdwg.mxu0
        %3453 = vmatpush.bf16.msra.mxu0 %v3154
        %3454 = vmatpush.bf16.msra.mxu0 %v3153
        %3455 = vmatpush.bf16.msra.mxu0 %v3152
        %3456 = vmatpush.bf16.msra.mxu0 %v3151
        %3457 = vmatpush.bf16.msra.mxu0 %v3150
        %3458 = vmatpush.bf16.msra.mxu0 %v3149
        %3459 = vmatpush.bf16.msra.mxu0 %v3148
        %3460 = vmatpush.bf16.msra.mxu0 %v3147
        %3461 = vmatmul.bf16.gmra.mxu0 %v2557
        %v3462 = vpop.f32.mrf.mxu0
        %v3463 = vadd.f32 %v3374, %v3462
        %v3464 = vpop.f32.mrf.mxu0
        %v3465 = vadd.f32 %v3376, %v3464
        %3466 = vmatmul.bf16.gmra.mxu0 %v2566
        %v3467 = vpop.f32.mrf.mxu0
        %v3468 = vadd.f32 %v3379, %v3467
        %v3469 = vpop.f32.mrf.mxu0
        %v3470 = vadd.f32 %v3381, %v3469
        %3471 = vmatmul.bf16.gmra.mxu0 %v2575
        %v3472 = vpop.f32.mrf.mxu0
        %v3473 = vadd.f32 %v3384, %v3472
        %v3474 = vpop.f32.mrf.mxu0
        %v3475 = vadd.f32 %v3386, %v3474
        %3476 = vmatmul.bf16.gmra.mxu0 %v2584
        %v3477 = vpop.f32.mrf.mxu0
        %v3478 = vadd.f32 %v3389, %v3477
        %v3479 = vpop.f32.mrf.mxu0
        %v3480 = vadd.f32 %v3391, %v3479
        %3481 = vmatmul.bf16.gmra.mxu0 %v2593
        %v3482 = vpop.f32.mrf.mxu0
        %v3483 = vadd.f32 %v3394, %v3482
        %v3484 = vpop.f32.mrf.mxu0
        %v3485 = vadd.f32 %v3396, %v3484
        %3486 = vmatmul.bf16.gmra.mxu0 %v2602
        %v3487 = vpop.f32.mrf.mxu0
        %v3488 = vadd.f32 %v3399, %v3487
        %v3489 = vpop.f32.mrf.mxu0
        %v3490 = vadd.f32 %v3401, %v3489
        %3491 = vmatmul.bf16.gmra.mxu0 %v2611
        %v3492 = vpop.f32.mrf.mxu0
        %v3493 = vadd.f32 %v3404, %v3492
        %v3494 = vpop.f32.mrf.mxu0
        %v3495 = vadd.f32 %v3406, %v3494
        %3496 = vmatmul.bf16.gmra.mxu0 %v2620
        %v3497 = vpop.f32.mrf.mxu0
        %v3498 = vadd.f32 %v3409, %v3497
        %v3499 = vpop.f32.mrf.mxu0
        %v3500 = vadd.f32 %v3411, %v3499
        %3501 = vmatmul.bf16.gmra.mxu0 %v2629
        %v3502 = vpop.f32.mrf.mxu0
        %v3503 = vadd.f32 %v3414, %v3502
        %v3504 = vpop.f32.mrf.mxu0
        %v3505 = vadd.f32 %v3416, %v3504
        %3506 = vmatmul.bf16.gmra.mxu0 %v2638
        %v3507 = vpop.f32.mrf.mxu0
        %v3508 = vadd.f32 %v3419, %v3507
        %v3509 = vpop.f32.mrf.mxu0
        %v3510 = vadd.f32 %v3421, %v3509
        %3511 = vmatmul.bf16.gmra.mxu0 %v2647
        %v3512 = vpop.f32.mrf.mxu0
        %v3513 = vadd.f32 %v3424, %v3512
        %v3514 = vpop.f32.mrf.mxu0
        %v3515 = vadd.f32 %v3426, %v3514
        %3516 = vmatmul.bf16.gmra.mxu0 %v2656
        %v3517 = vpop.f32.mrf.mxu0
        %v3518 = vadd.f32 %v3429, %v3517
        %v3519 = vpop.f32.mrf.mxu0
        %v3520 = vadd.f32 %v3431, %v3519
        %3521 = vmatmul.bf16.gmra.mxu0 %v2665
        %v3522 = vpop.f32.mrf.mxu0
        %v3523 = vadd.f32 %v3434, %v3522
        %v3524 = vpop.f32.mrf.mxu0
        %v3525 = vadd.f32 %v3436, %v3524
        %3526 = vmatmul.bf16.gmra.mxu0 %v2674
        %v3527 = vpop.f32.mrf.mxu0
        %v3528 = vadd.f32 %v3439, %v3527
        %v3529 = vpop.f32.mrf.mxu0
        %v3530 = vadd.f32 %v3441, %v3529
        %3531 = vmatmul.bf16.gmra.mxu0 %v2683
        %v3532 = vpop.f32.mrf.mxu0
        %v3533 = vadd.f32 %v3444, %v3532
        %v3534 = vpop.f32.mrf.mxu0
        %v3535 = vadd.f32 %v3446, %v3534
        %3536 = vmatmul.bf16.gmra.mxu0 %v2692
        %v3537 = vpop.f32.mrf.mxu0
        %v3538 = vadd.f32 %v3449, %v3537
        %v3539 = vpop.f32.mrf.mxu0
        %v3540 = vadd.f32 %v3451, %v3539
        %3541 = vdwg.mxu0
        %3542 = vmatpush.bf16.msra.mxu0 %v3162
        %3543 = vmatpush.bf16.msra.mxu0 %v3161
        %3544 = vmatpush.bf16.msra.mxu0 %v3160
        %3545 = vmatpush.bf16.msra.mxu0 %v3159
        %3546 = vmatpush.bf16.msra.mxu0 %v3158
        %3547 = vmatpush.bf16.msra.mxu0 %v3157
        %3548 = vmatpush.bf16.msra.mxu0 %v3156
        %3549 = vmatpush.bf16.msra.mxu0 %v3155
        %3550 = vmatmul.bf16.gmra.mxu0 %v2558
        %v3551 = vpop.f32.mrf.mxu0
        %v3552 = vadd.f32 %v3463, %v3551
        %v3553 = vpop.f32.mrf.mxu0
        %v3554 = vadd.f32 %v3465, %v3553
        %3555 = vmatmul.bf16.gmra.mxu0 %v2567
        %v3556 = vpop.f32.mrf.mxu0
        %v3557 = vadd.f32 %v3468, %v3556
        %v3558 = vpop.f32.mrf.mxu0
        %v3559 = vadd.f32 %v3470, %v3558
        %3560 = vmatmul.bf16.gmra.mxu0 %v2576
        %v3561 = vpop.f32.mrf.mxu0
        %v3562 = vadd.f32 %v3473, %v3561
        %v3563 = vpop.f32.mrf.mxu0
        %v3564 = vadd.f32 %v3475, %v3563
        %3565 = vmatmul.bf16.gmra.mxu0 %v2585
        %v3566 = vpop.f32.mrf.mxu0
        %v3567 = vadd.f32 %v3478, %v3566
        %v3568 = vpop.f32.mrf.mxu0
        %v3569 = vadd.f32 %v3480, %v3568
        %3570 = vmatmul.bf16.gmra.mxu0 %v2594
        %v3571 = vpop.f32.mrf.mxu0
        %v3572 = vadd.f32 %v3483, %v3571
        %v3573 = vpop.f32.mrf.mxu0
        %v3574 = vadd.f32 %v3485, %v3573
        %3575 = vmatmul.bf16.gmra.mxu0 %v2603
        %v3576 = vpop.f32.mrf.mxu0
        %v3577 = vadd.f32 %v3488, %v3576
        %v3578 = vpop.f32.mrf.mxu0
        %v3579 = vadd.f32 %v3490, %v3578
        %3580 = vmatmul.bf16.gmra.mxu0 %v2612
        %v3581 = vpop.f32.mrf.mxu0
        %v3582 = vadd.f32 %v3493, %v3581
        %v3583 = vpop.f32.mrf.mxu0
        %v3584 = vadd.f32 %v3495, %v3583
        %3585 = vmatmul.bf16.gmra.mxu0 %v2621
        %v3586 = vpop.f32.mrf.mxu0
        %v3587 = vadd.f32 %v3498, %v3586
        %v3588 = vpop.f32.mrf.mxu0
        %v3589 = vadd.f32 %v3500, %v3588
        %3590 = vmatmul.bf16.gmra.mxu0 %v2630
        %v3591 = vpop.f32.mrf.mxu0
        %v3592 = vadd.f32 %v3503, %v3591
        %v3593 = vpop.f32.mrf.mxu0
        %v3594 = vadd.f32 %v3505, %v3593
        %3595 = vmatmul.bf16.gmra.mxu0 %v2639
        %v3596 = vpop.f32.mrf.mxu0
        %v3597 = vadd.f32 %v3508, %v3596
        %v3598 = vpop.f32.mrf.mxu0
        %v3599 = vadd.f32 %v3510, %v3598
        %3600 = vmatmul.bf16.gmra.mxu0 %v2648
        %v3601 = vpop.f32.mrf.mxu0
        %v3602 = vadd.f32 %v3513, %v3601
        %v3603 = vpop.f32.mrf.mxu0
        %v3604 = vadd.f32 %v3515, %v3603
        %3605 = vmatmul.bf16.gmra.mxu0 %v2657
        %v3606 = vpop.f32.mrf.mxu0
        %v3607 = vadd.f32 %v3518, %v3606
        %v3608 = vpop.f32.mrf.mxu0
        %v3609 = vadd.f32 %v3520, %v3608
        %3610 = vmatmul.bf16.gmra.mxu0 %v2666
        %v3611 = vpop.f32.mrf.mxu0
        %v3612 = vadd.f32 %v3523, %v3611
        %v3613 = vpop.f32.mrf.mxu0
        %v3614 = vadd.f32 %v3525, %v3613
        %3615 = vmatmul.bf16.gmra.mxu0 %v2675
        %v3616 = vpop.f32.mrf.mxu0
        %v3617 = vadd.f32 %v3528, %v3616
        %v3618 = vpop.f32.mrf.mxu0
        %v3619 = vadd.f32 %v3530, %v3618
        %3620 = vmatmul.bf16.gmra.mxu0 %v2684
        %v3621 = vpop.f32.mrf.mxu0
        %v3622 = vadd.f32 %v3533, %v3621
        %v3623 = vpop.f32.mrf.mxu0
        %v3624 = vadd.f32 %v3535, %v3623
        %3625 = vmatmul.bf16.gmra.mxu0 %v2693
        %v3626 = vpop.f32.mrf.mxu0
        %v3627 = vadd.f32 %v3538, %v3626
        %v3628 = vpop.f32.mrf.mxu0
        %v3629 = vadd.f32 %v3540, %v3628
        %3630 = vdwg.mxu0
        %3631 = vmatpush.bf16.msra.mxu0 %v3170
        %3632 = vmatpush.bf16.msra.mxu0 %v3169
        %3633 = vmatpush.bf16.msra.mxu0 %v3168
        %3634 = vmatpush.bf16.msra.mxu0 %v3167
        %3635 = vmatpush.bf16.msra.mxu0 %v3166
        %3636 = vmatpush.bf16.msra.mxu0 %v3165
        %3637 = vmatpush.bf16.msra.mxu0 %v3164
        %3638 = vmatpush.bf16.msra.mxu0 %v3163
        %3639 = vmatmul.bf16.gmra.mxu0 %v2559
        %v3640 = vpop.f32.mrf.mxu0
        %v3641 = vadd.f32 %v3552, %v3640
        %v3642 = vpop.f32.mrf.mxu0
        %v3643 = vadd.f32 %v3554, %v3642
        %3644 = vmatmul.bf16.gmra.mxu0 %v2568
        %v3645 = vpop.f32.mrf.mxu0
        %v3646 = vadd.f32 %v3557, %v3645
        %v3647 = vpop.f32.mrf.mxu0
        %v3648 = vadd.f32 %v3559, %v3647
        %3649 = vmatmul.bf16.gmra.mxu0 %v2577
        %v3650 = vpop.f32.mrf.mxu0
        %v3651 = vadd.f32 %v3562, %v3650
        %v3652 = vpop.f32.mrf.mxu0
        %v3653 = vadd.f32 %v3564, %v3652
        %3654 = vmatmul.bf16.gmra.mxu0 %v2586
        %v3655 = vpop.f32.mrf.mxu0
        %v3656 = vadd.f32 %v3567, %v3655
        %v3657 = vpop.f32.mrf.mxu0
        %v3658 = vadd.f32 %v3569, %v3657
        %3659 = vmatmul.bf16.gmra.mxu0 %v2595
        %v3660 = vpop.f32.mrf.mxu0
        %v3661 = vadd.f32 %v3572, %v3660
        %v3662 = vpop.f32.mrf.mxu0
        %v3663 = vadd.f32 %v3574, %v3662
        %3664 = vmatmul.bf16.gmra.mxu0 %v2604
        %v3665 = vpop.f32.mrf.mxu0
        %v3666 = vadd.f32 %v3577, %v3665
        %v3667 = vpop.f32.mrf.mxu0
        %v3668 = vadd.f32 %v3579, %v3667
        %3669 = vmatmul.bf16.gmra.mxu0 %v2613
        %v3670 = vpop.f32.mrf.mxu0
        %v3671 = vadd.f32 %v3582, %v3670
        %v3672 = vpop.f32.mrf.mxu0
        %v3673 = vadd.f32 %v3584, %v3672
        %3674 = vmatmul.bf16.gmra.mxu0 %v2622
        %v3675 = vpop.f32.mrf.mxu0
        %v3676 = vadd.f32 %v3587, %v3675
        %v3677 = vpop.f32.mrf.mxu0
        %v3678 = vadd.f32 %v3589, %v3677
        %3679 = vmatmul.bf16.gmra.mxu0 %v2631
        %v3680 = vpop.f32.mrf.mxu0
        %v3681 = vadd.f32 %v3592, %v3680
        %v3682 = vpop.f32.mrf.mxu0
        %v3683 = vadd.f32 %v3594, %v3682
        %3684 = vmatmul.bf16.gmra.mxu0 %v2640
        %v3685 = vpop.f32.mrf.mxu0
        %v3686 = vadd.f32 %v3597, %v3685
        %v3687 = vpop.f32.mrf.mxu0
        %v3688 = vadd.f32 %v3599, %v3687
        %3689 = vmatmul.bf16.gmra.mxu0 %v2649
        %v3690 = vpop.f32.mrf.mxu0
        %v3691 = vadd.f32 %v3602, %v3690
        %v3692 = vpop.f32.mrf.mxu0
        %v3693 = vadd.f32 %v3604, %v3692
        %3694 = vmatmul.bf16.gmra.mxu0 %v2658
        %v3695 = vpop.f32.mrf.mxu0
        %v3696 = vadd.f32 %v3607, %v3695
        %v3697 = vpop.f32.mrf.mxu0
        %v3698 = vadd.f32 %v3609, %v3697
        %3699 = vmatmul.bf16.gmra.mxu0 %v2667
        %v3700 = vpop.f32.mrf.mxu0
        %v3701 = vadd.f32 %v3612, %v3700
        %v3702 = vpop.f32.mrf.mxu0
        %v3703 = vadd.f32 %v3614, %v3702
        %3704 = vmatmul.bf16.gmra.mxu0 %v2676
        %v3705 = vpop.f32.mrf.mxu0
        %v3706 = vadd.f32 %v3617, %v3705
        %v3707 = vpop.f32.mrf.mxu0
        %v3708 = vadd.f32 %v3619, %v3707
        %3709 = vmatmul.bf16.gmra.mxu0 %v2685
        %v3710 = vpop.f32.mrf.mxu0
        %v3711 = vadd.f32 %v3622, %v3710
        %v3712 = vpop.f32.mrf.mxu0
        %v3713 = vadd.f32 %v3624, %v3712
        %3714 = vmatmul.bf16.gmra.mxu0 %v2694
        %v3715 = vpop.f32.mrf.mxu0
        %v3716 = vadd.f32 %v3627, %v3715
        %v3717 = vpop.f32.mrf.mxu0
        %v3718 = vadd.f32 %v3629, %v3717
        %3719 = vdwg.mxu0
        %3720 = vmatpush.bf16.msra.mxu0 %v3178
        %3721 = vmatpush.bf16.msra.mxu0 %v3177
        %3722 = vmatpush.bf16.msra.mxu0 %v3176
        %3723 = vmatpush.bf16.msra.mxu0 %v3175
        %3724 = vmatpush.bf16.msra.mxu0 %v3174
        %3725 = vmatpush.bf16.msra.mxu0 %v3173
        %3726 = vmatpush.bf16.msra.mxu0 %v3172
        %3727 = vmatpush.bf16.msra.mxu0 %v3171
        %3728 = vmatmul.bf16.gmra.mxu0 %v2560
        %v3729 = vpop.f32.mrf.mxu0
        %v3730 = vadd.f32 %v3641, %v3729
        %v3731 = vpop.f32.mrf.mxu0
        %v3732 = vadd.f32 %v3643, %v3731
        %3733 = vmatmul.bf16.gmra.mxu0 %v2569
        %v3734 = vpop.f32.mrf.mxu0
        %v3735 = vadd.f32 %v3646, %v3734
        %v3736 = vpop.f32.mrf.mxu0
        %v3737 = vadd.f32 %v3648, %v3736
        %3738 = vmatmul.bf16.gmra.mxu0 %v2578
        %v3739 = vpop.f32.mrf.mxu0
        %v3740 = vadd.f32 %v3651, %v3739
        %v3741 = vpop.f32.mrf.mxu0
        %v3742 = vadd.f32 %v3653, %v3741
        %3743 = vmatmul.bf16.gmra.mxu0 %v2587
        %v3744 = vpop.f32.mrf.mxu0
        %v3745 = vadd.f32 %v3656, %v3744
        %v3746 = vpop.f32.mrf.mxu0
        %v3747 = vadd.f32 %v3658, %v3746
        %3748 = vmatmul.bf16.gmra.mxu0 %v2596
        %v3749 = vpop.f32.mrf.mxu0
        %v3750 = vadd.f32 %v3661, %v3749
        %v3751 = vpop.f32.mrf.mxu0
        %v3752 = vadd.f32 %v3663, %v3751
        %3753 = vmatmul.bf16.gmra.mxu0 %v2605
        %v3754 = vpop.f32.mrf.mxu0
        %v3755 = vadd.f32 %v3666, %v3754
        %v3756 = vpop.f32.mrf.mxu0
        %v3757 = vadd.f32 %v3668, %v3756
        %3758 = vmatmul.bf16.gmra.mxu0 %v2614
        %v3759 = vpop.f32.mrf.mxu0
        %v3760 = vadd.f32 %v3671, %v3759
        %v3761 = vpop.f32.mrf.mxu0
        %v3762 = vadd.f32 %v3673, %v3761
        %3763 = vmatmul.bf16.gmra.mxu0 %v2623
        %v3764 = vpop.f32.mrf.mxu0
        %v3765 = vadd.f32 %v3676, %v3764
        %v3766 = vpop.f32.mrf.mxu0
        %v3767 = vadd.f32 %v3678, %v3766
        %3768 = vmatmul.bf16.gmra.mxu0 %v2632
        %v3769 = vpop.f32.mrf.mxu0
        %v3770 = vadd.f32 %v3681, %v3769
        %v3771 = vpop.f32.mrf.mxu0
        %v3772 = vadd.f32 %v3683, %v3771
        %3773 = vmatmul.bf16.gmra.mxu0 %v2641
        %v3774 = vpop.f32.mrf.mxu0
        %v3775 = vadd.f32 %v3686, %v3774
        %v3776 = vpop.f32.mrf.mxu0
        %v3777 = vadd.f32 %v3688, %v3776
        %3778 = vmatmul.bf16.gmra.mxu0 %v2650
        %v3779 = vpop.f32.mrf.mxu0
        %v3780 = vadd.f32 %v3691, %v3779
        %v3781 = vpop.f32.mrf.mxu0
        %v3782 = vadd.f32 %v3693, %v3781
        %3783 = vmatmul.bf16.gmra.mxu0 %v2659
        %v3784 = vpop.f32.mrf.mxu0
        %v3785 = vadd.f32 %v3696, %v3784
        %v3786 = vpop.f32.mrf.mxu0
        %v3787 = vadd.f32 %v3698, %v3786
        %3788 = vmatmul.bf16.gmra.mxu0 %v2668
        %v3789 = vpop.f32.mrf.mxu0
        %v3790 = vadd.f32 %v3701, %v3789
        %v3791 = vpop.f32.mrf.mxu0
        %v3792 = vadd.f32 %v3703, %v3791
        %3793 = vmatmul.bf16.gmra.mxu0 %v2677
        %v3794 = vpop.f32.mrf.mxu0
        %v3795 = vadd.f32 %v3706, %v3794
        %v3796 = vpop.f32.mrf.mxu0
        %v3797 = vadd.f32 %v3708, %v3796
        %3798 = vmatmul.bf16.gmra.mxu0 %v2686
        %v3799 = vpop.f32.mrf.mxu0
        %v3800 = vadd.f32 %v3711, %v3799
        %v3801 = vpop.f32.mrf.mxu0
        %v3802 = vadd.f32 %v3713, %v3801
        %3803 = vmatmul.bf16.gmra.mxu0 %v2695
        %v3804 = vpop.f32.mrf.mxu0
        %v3805 = vadd.f32 %v3716, %v3804
        %v3806 = vpop.f32.mrf.mxu0
        %v3807 = vadd.f32 %v3718, %v3806
        %3808 = vdwg.mxu0
        %3809 = vmatpush.bf16.msra.mxu0 %v3186
        %3810 = vmatpush.bf16.msra.mxu0 %v3185
        %3811 = vmatpush.bf16.msra.mxu0 %v3184
        %3812 = vmatpush.bf16.msra.mxu0 %v3183
        %3813 = vmatpush.bf16.msra.mxu0 %v3182
        %3814 = vmatpush.bf16.msra.mxu0 %v3181
        %3815 = vmatpush.bf16.msra.mxu0 %v3180
        %3816 = vmatpush.bf16.msra.mxu0 %v3179
        %3817 = vmatmul.bf16.gmra.mxu0 %v2561
        %v3818 = vpop.f32.mrf.mxu0
        %v3819 = vadd.f32 %v3730, %v3818
        %v3820 = vpop.f32.mrf.mxu0
        %v3821 = vadd.f32 %v3732, %v3820
        %3822 = vmatmul.bf16.gmra.mxu0 %v2570
        %v3823 = vpop.f32.mrf.mxu0
        %v3824 = vadd.f32 %v3735, %v3823
        %v3825 = vpop.f32.mrf.mxu0
        %v3826 = vadd.f32 %v3737, %v3825
        %3827 = vmatmul.bf16.gmra.mxu0 %v2579
        %v3828 = vpop.f32.mrf.mxu0
        %v3829 = vadd.f32 %v3740, %v3828
        %v3830 = vpop.f32.mrf.mxu0
        %v3831 = vadd.f32 %v3742, %v3830
        %3832 = vmatmul.bf16.gmra.mxu0 %v2588
        %v3833 = vpop.f32.mrf.mxu0
        %v3834 = vadd.f32 %v3745, %v3833
        %v3835 = vpop.f32.mrf.mxu0
        %v3836 = vadd.f32 %v3747, %v3835
        %3837 = vmatmul.bf16.gmra.mxu0 %v2597
        %v3838 = vpop.f32.mrf.mxu0
        %v3839 = vadd.f32 %v3750, %v3838
        %v3840 = vpop.f32.mrf.mxu0
        %v3841 = vadd.f32 %v3752, %v3840
        %3842 = vmatmul.bf16.gmra.mxu0 %v2606
        %v3843 = vpop.f32.mrf.mxu0
        %v3844 = vadd.f32 %v3755, %v3843
        %v3845 = vpop.f32.mrf.mxu0
        %v3846 = vadd.f32 %v3757, %v3845
        %3847 = vmatmul.bf16.gmra.mxu0 %v2615
        %v3848 = vpop.f32.mrf.mxu0
        %v3849 = vadd.f32 %v3760, %v3848
        %v3850 = vpop.f32.mrf.mxu0
        %v3851 = vadd.f32 %v3762, %v3850
        %3852 = vmatmul.bf16.gmra.mxu0 %v2624
        %v3853 = vpop.f32.mrf.mxu0
        %v3854 = vadd.f32 %v3765, %v3853
        %v3855 = vpop.f32.mrf.mxu0
        %v3856 = vadd.f32 %v3767, %v3855
        %3857 = vmatmul.bf16.gmra.mxu0 %v2633
        %v3858 = vpop.f32.mrf.mxu0
        %v3859 = vadd.f32 %v3770, %v3858
        %v3860 = vpop.f32.mrf.mxu0
        %v3861 = vadd.f32 %v3772, %v3860
        %3862 = vmatmul.bf16.gmra.mxu0 %v2642
        %v3863 = vpop.f32.mrf.mxu0
        %v3864 = vadd.f32 %v3775, %v3863
        %v3865 = vpop.f32.mrf.mxu0
        %v3866 = vadd.f32 %v3777, %v3865
        %3867 = vmatmul.bf16.gmra.mxu0 %v2651
        %v3868 = vpop.f32.mrf.mxu0
        %v3869 = vadd.f32 %v3780, %v3868
        %v3870 = vpop.f32.mrf.mxu0
        %v3871 = vadd.f32 %v3782, %v3870
        %3872 = vmatmul.bf16.gmra.mxu0 %v2660
        %v3873 = vpop.f32.mrf.mxu0
        %v3874 = vadd.f32 %v3785, %v3873
        %v3875 = vpop.f32.mrf.mxu0
        %v3876 = vadd.f32 %v3787, %v3875
        %3877 = vmatmul.bf16.gmra.mxu0 %v2669
        %v3878 = vpop.f32.mrf.mxu0
        %v3879 = vadd.f32 %v3790, %v3878
        %v3880 = vpop.f32.mrf.mxu0
        %v3881 = vadd.f32 %v3792, %v3880
        %3882 = vmatmul.bf16.gmra.mxu0 %v2678
        %v3883 = vpop.f32.mrf.mxu0
        %v3884 = vadd.f32 %v3795, %v3883
        %v3885 = vpop.f32.mrf.mxu0
        %v3886 = vadd.f32 %v3797, %v3885
        %3887 = vmatmul.bf16.gmra.mxu0 %v2687
        %v3888 = vpop.f32.mrf.mxu0
        %v3889 = vadd.f32 %v3800, %v3888
        %v3890 = vpop.f32.mrf.mxu0
        %v3891 = vadd.f32 %v3802, %v3890
        %3892 = vmatmul.bf16.gmra.mxu0 %v2696
        %v3893 = vpop.f32.mrf.mxu0
        %v3894 = vadd.f32 %v3805, %v3893
        %v3895 = vpop.f32.mrf.mxu0
        %v3896 = vadd.f32 %v3807, %v3895
        %3897 = vdwg.mxu0
        %3898 = vmatpush.bf16.msra.mxu0 %v3194
        %3899 = vmatpush.bf16.msra.mxu0 %v3193
        %3900 = vmatpush.bf16.msra.mxu0 %v3192
        %3901 = vmatpush.bf16.msra.mxu0 %v3191
        %3902 = vmatpush.bf16.msra.mxu0 %v3190
        %3903 = vmatpush.bf16.msra.mxu0 %v3189
        %3904 = vmatpush.bf16.msra.mxu0 %v3188
        %3905 = vmatpush.bf16.msra.mxu0 %v3187
        %3906 = vmatmul.bf16.gmra.mxu0 %v2562
        %v3907 = vpop.f32.mrf.mxu0
        %v3908 = vadd.f32 %v3819, %v3907
        %v3909 = vpop.f32.mrf.mxu0
        %v3910 = vadd.f32 %v3821, %v3909
        %3911 = vmatmul.bf16.gmra.mxu0 %v2571
        %v3912 = vpop.f32.mrf.mxu0
        %v3913 = vadd.f32 %v3824, %v3912
        %v3914 = vpop.f32.mrf.mxu0
        %v3915 = vadd.f32 %v3826, %v3914
        %3916 = vmatmul.bf16.gmra.mxu0 %v2580
        %v3917 = vpop.f32.mrf.mxu0
        %v3918 = vadd.f32 %v3829, %v3917
        %v3919 = vpop.f32.mrf.mxu0
        %v3920 = vadd.f32 %v3831, %v3919
        %3921 = vmatmul.bf16.gmra.mxu0 %v2589
        %v3922 = vpop.f32.mrf.mxu0
        %v3923 = vadd.f32 %v3834, %v3922
        %v3924 = vpop.f32.mrf.mxu0
        %v3925 = vadd.f32 %v3836, %v3924
        %3926 = vmatmul.bf16.gmra.mxu0 %v2598
        %v3927 = vpop.f32.mrf.mxu0
        %v3928 = vadd.f32 %v3839, %v3927
        %v3929 = vpop.f32.mrf.mxu0
        %v3930 = vadd.f32 %v3841, %v3929
        %3931 = vmatmul.bf16.gmra.mxu0 %v2607
        %v3932 = vpop.f32.mrf.mxu0
        %v3933 = vadd.f32 %v3844, %v3932
        %v3934 = vpop.f32.mrf.mxu0
        %v3935 = vadd.f32 %v3846, %v3934
        %3936 = vmatmul.bf16.gmra.mxu0 %v2616
        %v3937 = vpop.f32.mrf.mxu0
        %v3938 = vadd.f32 %v3849, %v3937
        %v3939 = vpop.f32.mrf.mxu0
        %v3940 = vadd.f32 %v3851, %v3939
        %3941 = vmatmul.bf16.gmra.mxu0 %v2625
        %v3942 = vpop.f32.mrf.mxu0
        %v3943 = vadd.f32 %v3854, %v3942
        %v3944 = vpop.f32.mrf.mxu0
        %v3945 = vadd.f32 %v3856, %v3944
        %3946 = vmatmul.bf16.gmra.mxu0 %v2634
        %v3947 = vpop.f32.mrf.mxu0
        %v3948 = vadd.f32 %v3859, %v3947
        %v3949 = vpop.f32.mrf.mxu0
        %v3950 = vadd.f32 %v3861, %v3949
        %3951 = vmatmul.bf16.gmra.mxu0 %v2643
        %v3952 = vpop.f32.mrf.mxu0
        %v3953 = vadd.f32 %v3864, %v3952
        %v3954 = vpop.f32.mrf.mxu0
        %v3955 = vadd.f32 %v3866, %v3954
        %3956 = vmatmul.bf16.gmra.mxu0 %v2652
        %v3957 = vpop.f32.mrf.mxu0
        %v3958 = vadd.f32 %v3869, %v3957
        %v3959 = vpop.f32.mrf.mxu0
        %v3960 = vadd.f32 %v3871, %v3959
        %3961 = vmatmul.bf16.gmra.mxu0 %v2661
        %v3962 = vpop.f32.mrf.mxu0
        %v3963 = vadd.f32 %v3874, %v3962
        %v3964 = vpop.f32.mrf.mxu0
        %v3965 = vadd.f32 %v3876, %v3964
        %3966 = vmatmul.bf16.gmra.mxu0 %v2670
        %v3967 = vpop.f32.mrf.mxu0
        %v3968 = vadd.f32 %v3879, %v3967
        %v3969 = vpop.f32.mrf.mxu0
        %v3970 = vadd.f32 %v3881, %v3969
        %3971 = vmatmul.bf16.gmra.mxu0 %v2679
        %v3972 = vpop.f32.mrf.mxu0
        %v3973 = vadd.f32 %v3884, %v3972
        %v3974 = vpop.f32.mrf.mxu0
        %v3975 = vadd.f32 %v3886, %v3974
        %3976 = vmatmul.bf16.gmra.mxu0 %v2688
        %v3977 = vpop.f32.mrf.mxu0
        %v3978 = vadd.f32 %v3889, %v3977
        %v3979 = vpop.f32.mrf.mxu0
        %v3980 = vadd.f32 %v3891, %v3979
        %3981 = vmatmul.bf16.gmra.mxu0 %v2697
        %v3982 = vpop.f32.mrf.mxu0
        %v3983 = vadd.f32 %v3894, %v3982
        %v3984 = vpop.f32.mrf.mxu0
        %v3985 = vadd.f32 %v3896, %v3984
        %3986 = vdwg.mxu0
        %3987 = vmatpush.bf16.msra.mxu0 %v3202
        %3988 = vmatpush.bf16.msra.mxu0 %v3201
        %3989 = vmatpush.bf16.msra.mxu0 %v3200
        %3990 = vmatpush.bf16.msra.mxu0 %v3199
        %3991 = vmatpush.bf16.msra.mxu0 %v3198
        %3992 = vmatpush.bf16.msra.mxu0 %v3197
        %3993 = vmatpush.bf16.msra.mxu0 %v3196
        %3994 = vmatpush.bf16.msra.mxu0 %v3195
        %3995 = vmatmul.bf16.gmra.mxu0 %v2563
        %v3996 = vpop.f32.mrf.mxu0
        %v3997 = vadd.f32 %v3908, %v3996
        %v3998 = vpop.f32.mrf.mxu0
        %v3999 = vadd.f32 %v3910, %v3998
        %4000 = vmatmul.bf16.gmra.mxu0 %v2572
        %v4001 = vpop.f32.mrf.mxu0
        %v4002 = vadd.f32 %v3913, %v4001
        %v4003 = vpop.f32.mrf.mxu0
        %v4004 = vadd.f32 %v3915, %v4003
        %4005 = vmatmul.bf16.gmra.mxu0 %v2581
        %v4006 = vpop.f32.mrf.mxu0
        %v4007 = vadd.f32 %v3918, %v4006
        %v4008 = vpop.f32.mrf.mxu0
        %v4009 = vadd.f32 %v3920, %v4008
        %4010 = vmatmul.bf16.gmra.mxu0 %v2590
        %v4011 = vpop.f32.mrf.mxu0
        %v4012 = vadd.f32 %v3923, %v4011
        %v4013 = vpop.f32.mrf.mxu0
        %v4014 = vadd.f32 %v3925, %v4013
        %4015 = vmatmul.bf16.gmra.mxu0 %v2599
        %v4016 = vpop.f32.mrf.mxu0
        %v4017 = vadd.f32 %v3928, %v4016
        %v4018 = vpop.f32.mrf.mxu0
        %v4019 = vadd.f32 %v3930, %v4018
        %4020 = vmatmul.bf16.gmra.mxu0 %v2608
        %v4021 = vpop.f32.mrf.mxu0
        %v4022 = vadd.f32 %v3933, %v4021
        %v4023 = vpop.f32.mrf.mxu0
        %v4024 = vadd.f32 %v3935, %v4023
        %4025 = vmatmul.bf16.gmra.mxu0 %v2617
        %v4026 = vpop.f32.mrf.mxu0
        %v4027 = vadd.f32 %v3938, %v4026
        %v4028 = vpop.f32.mrf.mxu0
        %v4029 = vadd.f32 %v3940, %v4028
        %4030 = vmatmul.bf16.gmra.mxu0 %v2626
        %v4031 = vpop.f32.mrf.mxu0
        %v4032 = vadd.f32 %v3943, %v4031
        %v4033 = vpop.f32.mrf.mxu0
        %v4034 = vadd.f32 %v3945, %v4033
        %4035 = vmatmul.bf16.gmra.mxu0 %v2635
        %v4036 = vpop.f32.mrf.mxu0
        %v4037 = vadd.f32 %v3948, %v4036
        %v4038 = vpop.f32.mrf.mxu0
        %v4039 = vadd.f32 %v3950, %v4038
        %4040 = vmatmul.bf16.gmra.mxu0 %v2644
        %v4041 = vpop.f32.mrf.mxu0
        %v4042 = vadd.f32 %v3953, %v4041
        %v4043 = vpop.f32.mrf.mxu0
        %v4044 = vadd.f32 %v3955, %v4043
        %4045 = vmatmul.bf16.gmra.mxu0 %v2653
        %v4046 = vpop.f32.mrf.mxu0
        %v4047 = vadd.f32 %v3958, %v4046
        %v4048 = vpop.f32.mrf.mxu0
        %v4049 = vadd.f32 %v3960, %v4048
        %4050 = vmatmul.bf16.gmra.mxu0 %v2662
        %v4051 = vpop.f32.mrf.mxu0
        %v4052 = vadd.f32 %v3963, %v4051
        %v4053 = vpop.f32.mrf.mxu0
        %v4054 = vadd.f32 %v3965, %v4053
        %4055 = vmatmul.bf16.gmra.mxu0 %v2671
        %v4056 = vpop.f32.mrf.mxu0
        %v4057 = vadd.f32 %v3968, %v4056
        %v4058 = vpop.f32.mrf.mxu0
        %v4059 = vadd.f32 %v3970, %v4058
        %4060 = vmatmul.bf16.gmra.mxu0 %v2680
        %v4061 = vpop.f32.mrf.mxu0
        %v4062 = vadd.f32 %v3973, %v4061
        %v4063 = vpop.f32.mrf.mxu0
        %v4064 = vadd.f32 %v3975, %v4063
        %4065 = vmatmul.bf16.gmra.mxu0 %v2689
        %v4066 = vpop.f32.mrf.mxu0
        %v4067 = vadd.f32 %v3978, %v4066
        %v4068 = vpop.f32.mrf.mxu0
        %v4069 = vadd.f32 %v3980, %v4068
        %4070 = vmatmul.bf16.gmra.mxu0 %v2698
        %v4071 = vpop.f32.mrf.mxu0
        %v4072 = vadd.f32 %v3983, %v4071
        %v4073 = vpop.f32.mrf.mxu0
        %v4074 = vadd.f32 %v3985, %v4073
        %4075 = vdwg.mxu0
        %v4076 = vmax.f32 %v3997, 0.0
        %v4077 = vmax.f32 %v3999, 0.0
        %v4078 = vmax.f32 %v4002, 0.0
        %v4079 = vmax.f32 %v4004, 0.0
        %v4080 = vmax.f32 %v4007, 0.0
        %v4081 = vmax.f32 %v4009, 0.0
        %v4082 = vmax.f32 %v4012, 0.0
        %v4083 = vmax.f32 %v4014, 0.0
        %v4084 = vmax.f32 %v4017, 0.0
        %v4085 = vmax.f32 %v4019, 0.0
        %v4086 = vmax.f32 %v4022, 0.0
        %v4087 = vmax.f32 %v4024, 0.0
        %v4088 = vmax.f32 %v4027, 0.0
        %v4089 = vmax.f32 %v4029, 0.0
        %v4090 = vmax.f32 %v4032, 0.0
        %v4091 = vmax.f32 %v4034, 0.0
        %v4092 = vmax.f32 %v4037, 0.0
        %v4093 = vmax.f32 %v4039, 0.0
        %v4094 = vmax.f32 %v4042, 0.0
        %v4095 = vmax.f32 %v4044, 0.0
        %v4096 = vmax.f32 %v4047, 0.0
        %v4097 = vmax.f32 %v4049, 0.0
        %v4098 = vmax.f32 %v4052, 0.0
        %v4099 = vmax.f32 %v4054, 0.0
        %v4100 = vmax.f32 %v4057, 0.0
        %v4101 = vmax.f32 %v4059, 0.0
        %v4102 = vmax.f32 %v4062, 0.0
        %v4103 = vmax.f32 %v4064, 0.0
        %v4104 = vmax.f32 %v4067, 0.0
        %v4105 = vmax.f32 %v4069, 0.0
        %v4106 = vmax.f32 %v4072, 0.0
        %v4107 = vmax.f32 %v4074, 0.0
        %v4108 = vpack.c.bf16 %v4076, %v4076
        %v4109 = vpack.c.bf16 %v4077, %v4077
        %v4110 = vpack.c.bf16 %v4078, %v4078
        %v4111 = vpack.c.bf16 %v4079, %v4079
        %v4112 = vpack.c.bf16 %v4080, %v4080
        %v4113 = vpack.c.bf16 %v4081, %v4081
        %v4114 = vpack.c.bf16 %v4082, %v4082
        %v4115 = vpack.c.bf16 %v4083, %v4083
        %v4116 = vpack.c.bf16 %v4084, %v4084
        %v4117 = vpack.c.bf16 %v4085, %v4085
        %v4118 = vpack.c.bf16 %v4086, %v4086
        %v4119 = vpack.c.bf16 %v4087, %v4087
        %v4120 = vpack.c.bf16 %v4088, %v4088
        %v4121 = vpack.c.bf16 %v4089, %v4089
        %v4122 = vpack.c.bf16 %v4090, %v4090
        %v4123 = vpack.c.bf16 %v4091, %v4091
        %v4124 = vpack.c.bf16 %v4092, %v4092
        %v4125 = vpack.c.bf16 %v4093, %v4093
        %v4126 = vpack.c.bf16 %v4094, %v4094
        %v4127 = vpack.c.bf16 %v4095, %v4095
        %v4128 = vpack.c.bf16 %v4096, %v4096
        %v4129 = vpack.c.bf16 %v4097, %v4097
        %v4130 = vpack.c.bf16 %v4098, %v4098
        %v4131 = vpack.c.bf16 %v4099, %v4099
        %v4132 = vpack.c.bf16 %v4100, %v4100
        %v4133 = vpack.c.bf16 %v4101, %v4101
        %v4134 = vpack.c.bf16 %v4102, %v4102
        %v4135 = vpack.c.bf16 %v4103, %v4103
        %v4136 = vpack.c.bf16 %v4104, %v4104
        %v4137 = vpack.c.bf16 %v4105, %v4105
        %v4138 = vpack.c.bf16 %v4106, %v4106
        %v4139 = vpack.c.bf16 %v4107, %v4107
        %v4172 = vunpack.c.l.b16 %v4108
        %v4173 = vunpack.c.l.b16 %v4109
        %v4174 = vunpack.c.l.b16 %v4110
        %v4175 = vunpack.c.l.b16 %v4111
        %v4176 = vunpack.c.l.b16 %v4112
        %v4177 = vunpack.c.l.b16 %v4113
        %v4178 = vunpack.c.l.b16 %v4114
        %v4179 = vunpack.c.l.b16 %v4115
        %v4180 = vunpack.c.l.b16 %v4116
        %v4181 = vunpack.c.l.b16 %v4117
        %v4182 = vunpack.c.l.b16 %v4118
        %v4183 = vunpack.c.l.b16 %v4119
        %v4184 = vunpack.c.l.b16 %v4120
        %v4185 = vunpack.c.l.b16 %v4121
        %v4186 = vunpack.c.l.b16 %v4122
        %v4187 = vunpack.c.l.b16 %v4123
        %v4188 = vunpack.c.l.b16 %v4124
        %v4189 = vunpack.c.l.b16 %v4125
        %v4190 = vunpack.c.l.b16 %v4126
        %v4191 = vunpack.c.l.b16 %v4127
        %v4192 = vunpack.c.l.b16 %v4128
        %v4193 = vunpack.c.l.b16 %v4129
        %v4194 = vunpack.c.l.b16 %v4130
        %v4195 = vunpack.c.l.b16 %v4131
        %v4196 = vunpack.c.l.b16 %v4132
        %v4197 = vunpack.c.l.b16 %v4133
        %v4198 = vunpack.c.l.b16 %v4134
        %v4199 = vunpack.c.l.b16 %v4135
        %v4200 = vunpack.c.l.b16 %v4136
        %v4201 = vunpack.c.l.b16 %v4137
        %v4202 = vunpack.c.l.b16 %v4138
        %v4203 = vunpack.c.l.b16 %v4139
        %v4204 = vpack.c.b16 %v4173, %v4172
        %v4205 = vpack.c.b16 %v4175, %v4174
        %v4206 = vpack.c.b16 %v4177, %v4176
        %v4207 = vpack.c.b16 %v4179, %v4178
        %v4208 = vpack.c.b16 %v4181, %v4180
        %v4209 = vpack.c.b16 %v4183, %v4182
        %v4210 = vpack.c.b16 %v4185, %v4184
        %v4211 = vpack.c.b16 %v4187, %v4186
        %v4212 = vpack.c.b16 %v4189, %v4188
        %v4213 = vpack.c.b16 %v4191, %v4190
        %v4214 = vpack.c.b16 %v4193, %v4192
        %v4215 = vpack.c.b16 %v4195, %v4194
        %v4216 = vpack.c.b16 %v4197, %v4196
        %v4217 = vpack.c.b16 %v4199, %v4198
        %v4218 = vpack.c.b16 %v4201, %v4200
        %v4219 = vpack.c.b16 %v4203, %v4202
        %v4221 = vshrl.u32 %v4204, 16
        %v4223 = vrot.slane %v4221, 7
        %v4224 = vshll.u32 %v4204, 16
        %v4226 = vor.u32 %v4223, %v4224
        %v4228 = vshrl.u32 %v4205, 16
        %v4230 = vrot.slane %v4228, 7
        %v4231 = vshll.u32 %v4205, 16
        %v4233 = vor.u32 %v4230, %v4231
        %v4235 = vshrl.u32 %v4206, 16
        %v4237 = vrot.slane %v4235, 7
        %v4238 = vshll.u32 %v4206, 16
        %v4240 = vor.u32 %v4237, %v4238
        %v4242 = vshrl.u32 %v4207, 16
        %v4244 = vrot.slane %v4242, 7
        %v4245 = vshll.u32 %v4207, 16
        %v4247 = vor.u32 %v4244, %v4245
        %v4249 = vshrl.u32 %v4208, 16
        %v4251 = vrot.slane %v4249, 7
        %v4252 = vshll.u32 %v4208, 16
        %v4254 = vor.u32 %v4251, %v4252
        %v4256 = vshrl.u32 %v4209, 16
        %v4258 = vrot.slane %v4256, 7
        %v4259 = vshll.u32 %v4209, 16
        %v4261 = vor.u32 %v4258, %v4259
        %v4263 = vshrl.u32 %v4210, 16
        %v4265 = vrot.slane %v4263, 7
        %v4266 = vshll.u32 %v4210, 16
        %v4268 = vor.u32 %v4265, %v4266
        %v4270 = vshrl.u32 %v4211, 16
        %v4272 = vrot.slane %v4270, 7
        %v4273 = vshll.u32 %v4211, 16
        %v4275 = vor.u32 %v4272, %v4273
        %v4277 = vshrl.u32 %v4212, 16
        %v4279 = vrot.slane %v4277, 7
        %v4280 = vshll.u32 %v4212, 16
        %v4282 = vor.u32 %v4279, %v4280
        %v4284 = vshrl.u32 %v4213, 16
        %v4286 = vrot.slane %v4284, 7
        %v4287 = vshll.u32 %v4213, 16
        %v4289 = vor.u32 %v4286, %v4287
        %v4291 = vshrl.u32 %v4214, 16
        %v4293 = vrot.slane %v4291, 7
        %v4294 = vshll.u32 %v4214, 16
        %v4296 = vor.u32 %v4293, %v4294
        %v4298 = vshrl.u32 %v4215, 16
        %v4300 = vrot.slane %v4298, 7
        %v4301 = vshll.u32 %v4215, 16
        %v4303 = vor.u32 %v4300, %v4301
        %v4305 = vshrl.u32 %v4216, 16
        %v4307 = vrot.slane %v4305, 7
        %v4308 = vshll.u32 %v4216, 16
        %v4310 = vor.u32 %v4307, %v4308
        %v4312 = vshrl.u32 %v4217, 16
        %v4314 = vrot.slane %v4312, 7
        %v4315 = vshll.u32 %v4217, 16
        %v4317 = vor.u32 %v4314, %v4315
        %v4319 = vshrl.u32 %v4218, 16
        %v4321 = vrot.slane %v4319, 7
        %v4322 = vshll.u32 %v4218, 16
        %v4324 = vor.u32 %v4321, %v4322
        %v4326 = vshrl.u32 %v4219, 16
        %v4328 = vrot.slane %v4326, 7
        %v4329 = vshll.u32 %v4219, 16
        %v4331 = vor.u32 %v4328, %v4329
        %v4364 = vsel %vm885, 0, %v4226
        %v4365 = vsel %vm885, 0, %v4233
        %v4366 = vsel %vm885, 0, %v4240
        %v4367 = vsel %vm885, 0, %v4247
        %v4368 = vsel %vm885, 0, %v4254
        %v4369 = vsel %vm885, 0, %v4261
        %v4370 = vsel %vm885, 0, %v4268
        %v4371 = vsel %vm885, 0, %v4275
        %v4372 = vsel %vm885, 0, %v4282
        %v4373 = vsel %vm885, 0, %v4289
        %v4374 = vsel %vm885, 0, %v4296
        %v4375 = vsel %vm885, 0, %v4303
        %v4376 = vsel %vm885, 0, %v4310
        %v4377 = vsel %vm885, 0, %v4317
        %v4378 = vsel %vm885, 0, %v4324
        %v4379 = vsel %vm885, 0, %v4331
        %v4380 = vsel %vm885, %v4223, 0
        %v4381 = vsel %vm885, %v4230, 0
        %v4382 = vsel %vm885, %v4237, 0
        %v4383 = vsel %vm885, %v4244, 0
        %v4384 = vsel %vm885, %v4251, 0
        %v4385 = vsel %vm885, %v4258, 0
        %v4386 = vsel %vm885, %v4265, 0
        %v4387 = vsel %vm885, %v4272, 0
        %v4388 = vsel %vm885, %v4279, 0
        %v4389 = vsel %vm885, %v4286, 0
        %v4390 = vsel %vm885, %v4293, 0
        %v4391 = vsel %vm885, %v4300, 0
        %v4392 = vsel %vm885, %v4307, 0
        %v4393 = vsel %vm885, %v4314, 0
        %v4394 = vsel %vm885, %v4321, 0
        %v4395 = vsel %vm885, %v4328, 0
        %v4411 = vunpack.c.l.b16 %v4364
        %v4412 = vunpack.c.h.b16 %v4364
        %v4413 = vunpack.c.l.b16 %v4365
        %v4414 = vunpack.c.h.b16 %v4365
        %v4415 = vunpack.c.l.b16 %v4366
        %v4416 = vunpack.c.h.b16 %v4366
        %v4417 = vunpack.c.l.b16 %v4367
        %v4418 = vunpack.c.h.b16 %v4367
        %v4419 = vunpack.c.l.b16 %v4368
        %v4420 = vunpack.c.h.b16 %v4368
        %v4421 = vunpack.c.l.b16 %v4369
        %v4422 = vunpack.c.h.b16 %v4369
        %v4423 = vunpack.c.l.b16 %v4370
        %v4424 = vunpack.c.h.b16 %v4370
        %v4425 = vunpack.c.l.b16 %v4371
        %v4426 = vunpack.c.h.b16 %v4371
        %v4427 = vunpack.c.l.b16 %v4372
        %v4428 = vunpack.c.h.b16 %v4372
        %v4429 = vunpack.c.l.b16 %v4373
        %v4430 = vunpack.c.h.b16 %v4373
        %v4431 = vunpack.c.l.b16 %v4374
        %v4432 = vunpack.c.h.b16 %v4374
        %v4433 = vunpack.c.l.b16 %v4375
        %v4434 = vunpack.c.h.b16 %v4375
        %v4435 = vunpack.c.l.b16 %v4376
        %v4436 = vunpack.c.h.b16 %v4376
        %v4437 = vunpack.c.l.b16 %v4377
        %v4438 = vunpack.c.h.b16 %v4377
        %v4439 = vunpack.c.l.b16 %v4378
        %v4440 = vunpack.c.h.b16 %v4378
        %v4441 = vpack.c.b16 %v4411, %v4411
        %v4442 = vpack.c.b16 %v4412, %v4412
        %v4443 = vpack.c.b16 %v4413, %v4413
        %v4444 = vpack.c.b16 %v4414, %v4414
        %v4445 = vpack.c.b16 %v4415, %v4415
        %v4446 = vpack.c.b16 %v4416, %v4416
        %v4447 = vpack.c.b16 %v4417, %v4417
        %v4448 = vpack.c.b16 %v4418, %v4418
        %v4449 = vpack.c.b16 %v4419, %v4419
        %v4450 = vpack.c.b16 %v4420, %v4420
        %v4451 = vpack.c.b16 %v4421, %v4421
        %v4452 = vpack.c.b16 %v4422, %v4422
        %v4453 = vpack.c.b16 %v4423, %v4423
        %v4454 = vpack.c.b16 %v4424, %v4424
        %v4455 = vpack.c.b16 %v4425, %v4425
        %v4456 = vpack.c.b16 %v4426, %v4426
        %v4457 = vpack.c.b16 %v4427, %v4427
        %v4458 = vpack.c.b16 %v4428, %v4428
        %v4459 = vpack.c.b16 %v4429, %v4429
        %v4460 = vpack.c.b16 %v4430, %v4430
        %v4461 = vpack.c.b16 %v4431, %v4431
        %v4462 = vpack.c.b16 %v4432, %v4432
        %v4463 = vpack.c.b16 %v4433, %v4433
        %v4464 = vpack.c.b16 %v4434, %v4434
        %v4465 = vpack.c.b16 %v4435, %v4435
        %v4466 = vpack.c.b16 %v4436, %v4436
        %v4467 = vpack.c.b16 %v4437, %v4437
        %v4468 = vpack.c.b16 %v4438, %v4438
        %v4469 = vpack.c.b16 %v4439, %v4439
        %v4470 = vpack.c.b16 %v4440, %v4440
        %4501 = vst [vmem:[#allocation3] sm:$0xf] %v966
        %4502 = vst [vmem:[#allocation3 + $0x24] sm:$0xf] %v967
        %4503 = vst [vmem:[#allocation3 + $0x48] sm:$0xf] %v4441
        %4504 = vst [vmem:[#allocation3 + $0x6c] sm:$0xf] %v4442
        %4505 = vst [vmem:[#allocation3 + $0x90] sm:$0xf] %v4443
        %4506 = vst [vmem:[#allocation3 + $0xb4] sm:$0xf] %v4444
        %4507 = vst [vmem:[#allocation3 + $0xd8] sm:$0xf] %v4445
        %4508 = vst [vmem:[#allocation3 + $0xfc] sm:$0xf] %v4446
        %4509 = vst [vmem:[#allocation3 + $0x120] sm:$0xf] %v4447
        %4510 = vst [vmem:[#allocation3 + $0x144] sm:$0xf] %v4448
        %4511 = vst [vmem:[#allocation3 + $0x168] sm:$0xf] %v4449
        %4512 = vst [vmem:[#allocation3 + $0x18c] sm:$0xf] %v4450
        %4513 = vst [vmem:[#allocation3 + $0x1b0] sm:$0xf] %v4451
        %4514 = vst [vmem:[#allocation3 + $0x1d4] sm:$0xf] %v4452
        %4515 = vst [vmem:[#allocation3 + $0x1f8] sm:$0xf] %v4453
        %4516 = vst [vmem:[#allocation3 + $0x21c] sm:$0xf] %v4454
        %4517 = vst [vmem:[#allocation3 + $0x240] sm:$0xf] %v4455
        %4518 = vst [vmem:[#allocation3 + $0x264] sm:$0xf] %v4456
        %4519 = vst [vmem:[#allocation3 + $0x288] sm:$0xf] %v4457
        %4520 = vst [vmem:[#allocation3 + $0x2ac] sm:$0xf] %v4458
        %4521 = vst [vmem:[#allocation3 + $0x2d0] sm:$0xf] %v4459
        %4522 = vst [vmem:[#allocation3 + $0x2f4] sm:$0xf] %v4460
        %4523 = vst [vmem:[#allocation3 + $0x318] sm:$0xf] %v4461
        %4524 = vst [vmem:[#allocation3 + $0x33c] sm:$0xf] %v4462
        %4525 = vst [vmem:[#allocation3 + $0x360] sm:$0xf] %v4463
        %4526 = vst [vmem:[#allocation3 + $0x384] sm:$0xf] %v4464
        %4527 = vst [vmem:[#allocation3 + $0x3a8] sm:$0xf] %v4465
        %4528 = vst [vmem:[#allocation3 + $0x3cc] sm:$0xf] %v4466
        %4529 = vst [vmem:[#allocation3 + $0x3f0] sm:$0xf] %v4467
        %4530 = vst [vmem:[#allocation3 + $0x414] sm:$0xf] %v4468
        %4531 = vst [vmem:[#allocation3 + $0x438] sm:$0xf] %v4469
        %4532 = vst [vmem:[#allocation3 + $0x45c] sm:$0xf] %v4470
        %v4534 = vshrl.u32 %v4364, 16
        %v4536 = vshll.u32 %v4364, 16
        %v4538 = vrot.slane %v4536, 1
        %v4539 = vor.u32 %v4534, %v4538
        %v4541 = vshll.u32 %v4380, 16
        %v4543 = vrot.slane %v4541, 1
        %v4544 = vsel %vm1062, %v4539, %v4543
        %v4546 = vshrl.u32 %v4365, 16
        %v4548 = vshll.u32 %v4365, 16
        %v4550 = vrot.slane %v4548, 1
        %v4551 = vor.u32 %v4546, %v4550
        %v4553 = vshll.u32 %v4381, 16
        %v4555 = vrot.slane %v4553, 1
        %v4556 = vsel %vm1062, %v4551, %v4555
        %v4558 = vshrl.u32 %v4366, 16
        %v4560 = vshll.u32 %v4366, 16
        %v4562 = vrot.slane %v4560, 1
        %v4563 = vor.u32 %v4558, %v4562
        %v4565 = vshll.u32 %v4382, 16
        %v4567 = vrot.slane %v4565, 1
        %v4568 = vsel %vm1062, %v4563, %v4567
        %v4570 = vshrl.u32 %v4367, 16
        %v4572 = vshll.u32 %v4367, 16
        %v4574 = vrot.slane %v4572, 1
        %v4575 = vor.u32 %v4570, %v4574
        %v4577 = vshll.u32 %v4383, 16
        %v4579 = vrot.slane %v4577, 1
        %v4580 = vsel %vm1062, %v4575, %v4579
        %v4582 = vshrl.u32 %v4368, 16
        %v4584 = vshll.u32 %v4368, 16
        %v4586 = vrot.slane %v4584, 1
        %v4587 = vor.u32 %v4582, %v4586
        %v4589 = vshll.u32 %v4384, 16
        %v4591 = vrot.slane %v4589, 1
        %v4592 = vsel %vm1062, %v4587, %v4591
        %v4594 = vshrl.u32 %v4369, 16
        %v4596 = vshll.u32 %v4369, 16
        %v4598 = vrot.slane %v4596, 1
        %v4599 = vor.u32 %v4594, %v4598
        %v4601 = vshll.u32 %v4385, 16
        %v4603 = vrot.slane %v4601, 1
        %v4604 = vsel %vm1062, %v4599, %v4603
        %v4606 = vshrl.u32 %v4370, 16
        %v4608 = vshll.u32 %v4370, 16
        %v4610 = vrot.slane %v4608, 1
        %v4611 = vor.u32 %v4606, %v4610
        %v4613 = vshll.u32 %v4386, 16
        %v4615 = vrot.slane %v4613, 1
        %v4616 = vsel %vm1062, %v4611, %v4615
        %v4618 = vshrl.u32 %v4371, 16
        %v4620 = vshll.u32 %v4371, 16
        %v4622 = vrot.slane %v4620, 1
        %v4623 = vor.u32 %v4618, %v4622
        %v4625 = vshll.u32 %v4387, 16
        %v4627 = vrot.slane %v4625, 1
        %v4628 = vsel %vm1062, %v4623, %v4627
        %v4630 = vshrl.u32 %v4372, 16
        %v4632 = vshll.u32 %v4372, 16
        %v4634 = vrot.slane %v4632, 1
        %v4635 = vor.u32 %v4630, %v4634
        %v4637 = vshll.u32 %v4388, 16
        %v4639 = vrot.slane %v4637, 1
        %v4640 = vsel %vm1062, %v4635, %v4639
        %v4642 = vshrl.u32 %v4373, 16
        %v4644 = vshll.u32 %v4373, 16
        %v4646 = vrot.slane %v4644, 1
        %v4647 = vor.u32 %v4642, %v4646
        %v4649 = vshll.u32 %v4389, 16
        %v4651 = vrot.slane %v4649, 1
        %v4652 = vsel %vm1062, %v4647, %v4651
        %v4654 = vshrl.u32 %v4374, 16
        %v4656 = vshll.u32 %v4374, 16
        %v4658 = vrot.slane %v4656, 1
        %v4659 = vor.u32 %v4654, %v4658
        %v4661 = vshll.u32 %v4390, 16
        %v4663 = vrot.slane %v4661, 1
        %v4664 = vsel %vm1062, %v4659, %v4663
        %v4666 = vshrl.u32 %v4375, 16
        %v4668 = vshll.u32 %v4375, 16
        %v4670 = vrot.slane %v4668, 1
        %v4671 = vor.u32 %v4666, %v4670
        %v4673 = vshll.u32 %v4391, 16
        %v4675 = vrot.slane %v4673, 1
        %v4676 = vsel %vm1062, %v4671, %v4675
        %v4678 = vshrl.u32 %v4376, 16
        %v4680 = vshll.u32 %v4376, 16
        %v4682 = vrot.slane %v4680, 1
        %v4683 = vor.u32 %v4678, %v4682
        %v4685 = vshll.u32 %v4392, 16
        %v4687 = vrot.slane %v4685, 1
        %v4688 = vsel %vm1062, %v4683, %v4687
        %v4690 = vshrl.u32 %v4377, 16
        %v4692 = vshll.u32 %v4377, 16
        %v4694 = vrot.slane %v4692, 1
        %v4695 = vor.u32 %v4690, %v4694
        %v4697 = vshll.u32 %v4393, 16
        %v4699 = vrot.slane %v4697, 1
        %v4700 = vsel %vm1062, %v4695, %v4699
        %v4702 = vshrl.u32 %v4378, 16
        %v4704 = vshll.u32 %v4378, 16
        %v4706 = vrot.slane %v4704, 1
        %v4707 = vor.u32 %v4702, %v4706
        %v4709 = vshll.u32 %v4394, 16
        %v4711 = vrot.slane %v4709, 1
        %v4712 = vsel %vm1062, %v4707, %v4711
        %v4713 = vunpack.c.l.b16 %v4544
        %v4714 = vunpack.c.h.b16 %v4544
        %v4715 = vunpack.c.l.b16 %v4556
        %v4716 = vunpack.c.h.b16 %v4556
        %v4717 = vunpack.c.l.b16 %v4568
        %v4718 = vunpack.c.h.b16 %v4568
        %v4719 = vunpack.c.l.b16 %v4580
        %v4720 = vunpack.c.h.b16 %v4580
        %v4721 = vunpack.c.l.b16 %v4592
        %v4722 = vunpack.c.h.b16 %v4592
        %v4723 = vunpack.c.l.b16 %v4604
        %v4724 = vunpack.c.h.b16 %v4604
        %v4725 = vunpack.c.l.b16 %v4616
        %v4726 = vunpack.c.h.b16 %v4616
        %v4727 = vunpack.c.l.b16 %v4628
        %v4728 = vunpack.c.h.b16 %v4628
        %v4729 = vunpack.c.l.b16 %v4640
        %v4730 = vunpack.c.h.b16 %v4640
        %v4731 = vunpack.c.l.b16 %v4652
        %v4732 = vunpack.c.h.b16 %v4652
        %v4733 = vunpack.c.l.b16 %v4664
        %v4734 = vunpack.c.h.b16 %v4664
        %v4735 = vunpack.c.l.b16 %v4676
        %v4736 = vunpack.c.h.b16 %v4676
        %v4737 = vunpack.c.l.b16 %v4688
        %v4738 = vunpack.c.h.b16 %v4688
        %v4739 = vunpack.c.l.b16 %v4700
        %v4740 = vunpack.c.h.b16 %v4700
        %v4741 = vunpack.c.l.b16 %v4712
        %v4742 = vunpack.c.h.b16 %v4712
        %v4743 = vpack.c.b16 %v4713, %v4713
        %v4744 = vpack.c.b16 %v4714, %v4714
        %v4745 = vpack.c.b16 %v4715, %v4715
        %v4746 = vpack.c.b16 %v4716, %v4716
        %v4747 = vpack.c.b16 %v4717, %v4717
        %v4748 = vpack.c.b16 %v4718, %v4718
        %v4749 = vpack.c.b16 %v4719, %v4719
        %v4750 = vpack.c.b16 %v4720, %v4720
        %v4751 = vpack.c.b16 %v4721, %v4721
        %v4752 = vpack.c.b16 %v4722, %v4722
        %v4753 = vpack.c.b16 %v4723, %v4723
        %v4754 = vpack.c.b16 %v4724, %v4724
        %v4755 = vpack.c.b16 %v4725, %v4725
        %v4756 = vpack.c.b16 %v4726, %v4726
        %v4757 = vpack.c.b16 %v4727, %v4727
        %v4758 = vpack.c.b16 %v4728, %v4728
        %v4759 = vpack.c.b16 %v4729, %v4729
        %v4760 = vpack.c.b16 %v4730, %v4730
        %v4761 = vpack.c.b16 %v4731, %v4731
        %v4762 = vpack.c.b16 %v4732, %v4732
        %v4763 = vpack.c.b16 %v4733, %v4733
        %v4764 = vpack.c.b16 %v4734, %v4734
        %v4765 = vpack.c.b16 %v4735, %v4735
        %v4766 = vpack.c.b16 %v4736, %v4736
        %v4767 = vpack.c.b16 %v4737, %v4737
        %v4768 = vpack.c.b16 %v4738, %v4738
        %v4769 = vpack.c.b16 %v4739, %v4739
        %v4770 = vpack.c.b16 %v4740, %v4740
        %v4771 = vpack.c.b16 %v4741, %v4741
        %v4772 = vpack.c.b16 %v4742, %v4742
        %4803 = vst [vmem:[#allocation3 + $0x4] sm:$0xf] %v1283
        %4804 = vst [vmem:[#allocation3 + $0x28] sm:$0xf] %v1284
        %4805 = vst [vmem:[#allocation3 + $0x4c] sm:$0xf] %v4743
        %4806 = vst [vmem:[#allocation3 + $0x70] sm:$0xf] %v4744
        %4807 = vst [vmem:[#allocation3 + $0x94] sm:$0xf] %v4745
        %4808 = vst [vmem:[#allocation3 + $0xb8] sm:$0xf] %v4746
        %4809 = vst [vmem:[#allocation3 + $0xdc] sm:$0xf] %v4747
        %4810 = vst [vmem:[#allocation3 + $0x100] sm:$0xf] %v4748
        %4811 = vst [vmem:[#allocation3 + $0x124] sm:$0xf] %v4749
        %4812 = vst [vmem:[#allocation3 + $0x148] sm:$0xf] %v4750
        %4813 = vst [vmem:[#allocation3 + $0x16c] sm:$0xf] %v4751
        %4814 = vst [vmem:[#allocation3 + $0x190] sm:$0xf] %v4752
        %4815 = vst [vmem:[#allocation3 + $0x1b4] sm:$0xf] %v4753
        %4816 = vst [vmem:[#allocation3 + $0x1d8] sm:$0xf] %v4754
        %4817 = vst [vmem:[#allocation3 + $0x1fc] sm:$0xf] %v4755
        %4818 = vst [vmem:[#allocation3 + $0x220] sm:$0xf] %v4756
        %4819 = vst [vmem:[#allocation3 + $0x244] sm:$0xf] %v4757
        %4820 = vst [vmem:[#allocation3 + $0x268] sm:$0xf] %v4758
        %4821 = vst [vmem:[#allocation3 + $0x28c] sm:$0xf] %v4759
        %4822 = vst [vmem:[#allocation3 + $0x2b0] sm:$0xf] %v4760
        %4823 = vst [vmem:[#allocation3 + $0x2d4] sm:$0xf] %v4761
        %4824 = vst [vmem:[#allocation3 + $0x2f8] sm:$0xf] %v4762
        %4825 = vst [vmem:[#allocation3 + $0x31c] sm:$0xf] %v4763
        %4826 = vst [vmem:[#allocation3 + $0x340] sm:$0xf] %v4764
        %4827 = vst [vmem:[#allocation3 + $0x364] sm:$0xf] %v4765
        %4828 = vst [vmem:[#allocation3 + $0x388] sm:$0xf] %v4766
        %4829 = vst [vmem:[#allocation3 + $0x3ac] sm:$0xf] %v4767
        %4830 = vst [vmem:[#allocation3 + $0x3d0] sm:$0xf] %v4768
        %4831 = vst [vmem:[#allocation3 + $0x3f4] sm:$0xf] %v4769
        %4832 = vst [vmem:[#allocation3 + $0x418] sm:$0xf] %v4770
        %4833 = vst [vmem:[#allocation3 + $0x43c] sm:$0xf] %v4771
        %4834 = vst [vmem:[#allocation3 + $0x460] sm:$0xf] %v4772
        %v4850 = vrot.slane %v4364, 1
        %v4851 = vrot.slane %v4380, 1
        %v4852 = vsel %vm1394, %v4850, %v4851
        %v4853 = vrot.slane %v4365, 1
        %v4854 = vrot.slane %v4381, 1
        %v4855 = vsel %vm1394, %v4853, %v4854
        %v4856 = vrot.slane %v4366, 1
        %v4857 = vrot.slane %v4382, 1
        %v4858 = vsel %vm1394, %v4856, %v4857
        %v4859 = vrot.slane %v4367, 1
        %v4860 = vrot.slane %v4383, 1
        %v4861 = vsel %vm1394, %v4859, %v4860
        %v4862 = vrot.slane %v4368, 1
        %v4863 = vrot.slane %v4384, 1
        %v4864 = vsel %vm1394, %v4862, %v4863
        %v4865 = vrot.slane %v4369, 1
        %v4866 = vrot.slane %v4385, 1
        %v4867 = vsel %vm1394, %v4865, %v4866
        %v4868 = vrot.slane %v4370, 1
        %v4869 = vrot.slane %v4386, 1
        %v4870 = vsel %vm1394, %v4868, %v4869
        %v4871 = vrot.slane %v4371, 1
        %v4872 = vrot.slane %v4387, 1
        %v4873 = vsel %vm1394, %v4871, %v4872
        %v4874 = vrot.slane %v4372, 1
        %v4875 = vrot.slane %v4388, 1
        %v4876 = vsel %vm1394, %v4874, %v4875
        %v4877 = vrot.slane %v4373, 1
        %v4878 = vrot.slane %v4389, 1
        %v4879 = vsel %vm1394, %v4877, %v4878
        %v4880 = vrot.slane %v4374, 1
        %v4881 = vrot.slane %v4390, 1
        %v4882 = vsel %vm1394, %v4880, %v4881
        %v4883 = vrot.slane %v4375, 1
        %v4884 = vrot.slane %v4391, 1
        %v4885 = vsel %vm1394, %v4883, %v4884
        %v4886 = vrot.slane %v4376, 1
        %v4887 = vrot.slane %v4392, 1
        %v4888 = vsel %vm1394, %v4886, %v4887
        %v4889 = vrot.slane %v4377, 1
        %v4890 = vrot.slane %v4393, 1
        %v4891 = vsel %vm1394, %v4889, %v4890
        %v4892 = vrot.slane %v4378, 1
        %v4893 = vrot.slane %v4394, 1
        %v4894 = vsel %vm1394, %v4892, %v4893
        %v4895 = vunpack.c.l.b16 %v4852
        %v4896 = vunpack.c.h.b16 %v4852
        %v4897 = vunpack.c.l.b16 %v4855
        %v4898 = vunpack.c.h.b16 %v4855
        %v4899 = vunpack.c.l.b16 %v4858
        %v4900 = vunpack.c.h.b16 %v4858
        %v4901 = vunpack.c.l.b16 %v4861
        %v4902 = vunpack.c.h.b16 %v4861
        %v4903 = vunpack.c.l.b16 %v4864
        %v4904 = vunpack.c.h.b16 %v4864
        %v4905 = vunpack.c.l.b16 %v4867
        %v4906 = vunpack.c.h.b16 %v4867
        %v4907 = vunpack.c.l.b16 %v4870
        %v4908 = vunpack.c.h.b16 %v4870
        %v4909 = vunpack.c.l.b16 %v4873
        %v4910 = vunpack.c.h.b16 %v4873
        %v4911 = vunpack.c.l.b16 %v4876
        %v4912 = vunpack.c.h.b16 %v4876
        %v4913 = vunpack.c.l.b16 %v4879
        %v4914 = vunpack.c.h.b16 %v4879
        %v4915 = vunpack.c.l.b16 %v4882
        %v4916 = vunpack.c.h.b16 %v4882
        %v4917 = vunpack.c.l.b16 %v4885
        %v4918 = vunpack.c.h.b16 %v4885
        %v4919 = vunpack.c.l.b16 %v4888
        %v4920 = vunpack.c.h.b16 %v4888
        %v4921 = vunpack.c.l.b16 %v4891
        %v4922 = vunpack.c.h.b16 %v4891
        %v4923 = vunpack.c.l.b16 %v4894
        %v4924 = vunpack.c.h.b16 %v4894
        %v4925 = vpack.c.b16 %v4895, %v4895
        %v4926 = vpack.c.b16 %v4896, %v4896
        %v4927 = vpack.c.b16 %v4897, %v4897
        %v4928 = vpack.c.b16 %v4898, %v4898
        %v4929 = vpack.c.b16 %v4899, %v4899
        %v4930 = vpack.c.b16 %v4900, %v4900
        %v4931 = vpack.c.b16 %v4901, %v4901
        %v4932 = vpack.c.b16 %v4902, %v4902
        %v4933 = vpack.c.b16 %v4903, %v4903
        %v4934 = vpack.c.b16 %v4904, %v4904
        %v4935 = vpack.c.b16 %v4905, %v4905
        %v4936 = vpack.c.b16 %v4906, %v4906
        %v4937 = vpack.c.b16 %v4907, %v4907
        %v4938 = vpack.c.b16 %v4908, %v4908
        %v4939 = vpack.c.b16 %v4909, %v4909
        %v4940 = vpack.c.b16 %v4910, %v4910
        %v4941 = vpack.c.b16 %v4911, %v4911
        %v4942 = vpack.c.b16 %v4912, %v4912
        %v4943 = vpack.c.b16 %v4913, %v4913
        %v4944 = vpack.c.b16 %v4914, %v4914
        %v4945 = vpack.c.b16 %v4915, %v4915
        %v4946 = vpack.c.b16 %v4916, %v4916
        %v4947 = vpack.c.b16 %v4917, %v4917
        %v4948 = vpack.c.b16 %v4918, %v4918
        %v4949 = vpack.c.b16 %v4919, %v4919
        %v4950 = vpack.c.b16 %v4920, %v4920
        %v4951 = vpack.c.b16 %v4921, %v4921
        %v4952 = vpack.c.b16 %v4922, %v4922
        %v4953 = vpack.c.b16 %v4923, %v4923
        %v4954 = vpack.c.b16 %v4924, %v4924
        %4985 = vst [vmem:[#allocation3 + $0x8] sm:$0xf] %v1474
        %4986 = vst [vmem:[#allocation3 + $0x2c] sm:$0xf] %v1475
        %4987 = vst [vmem:[#allocation3 + $0x50] sm:$0xf] %v4925
        %4988 = vst [vmem:[#allocation3 + $0x74] sm:$0xf] %v4926
        %4989 = vst [vmem:[#allocation3 + $0x98] sm:$0xf] %v4927
        %4990 = vst [vmem:[#allocation3 + $0xbc] sm:$0xf] %v4928
        %4991 = vst [vmem:[#allocation3 + $0xe0] sm:$0xf] %v4929
        %4992 = vst [vmem:[#allocation3 + $0x104] sm:$0xf] %v4930
        %4993 = vst [vmem:[#allocation3 + $0x128] sm:$0xf] %v4931
        %4994 = vst [vmem:[#allocation3 + $0x14c] sm:$0xf] %v4932
        %4995 = vst [vmem:[#allocation3 + $0x170] sm:$0xf] %v4933
        %4996 = vst [vmem:[#allocation3 + $0x194] sm:$0xf] %v4934
        %4997 = vst [vmem:[#allocation3 + $0x1b8] sm:$0xf] %v4935
        %4998 = vst [vmem:[#allocation3 + $0x1dc] sm:$0xf] %v4936
        %4999 = vst [vmem:[#allocation3 + $0x200] sm:$0xf] %v4937
        %5000 = vst [vmem:[#allocation3 + $0x224] sm:$0xf] %v4938
        %5001 = vst [vmem:[#allocation3 + $0x248] sm:$0xf] %v4939
        %5002 = vst [vmem:[#allocation3 + $0x26c] sm:$0xf] %v4940
        %5003 = vst [vmem:[#allocation3 + $0x290] sm:$0xf] %v4941
        %5004 = vst [vmem:[#allocation3 + $0x2b4] sm:$0xf] %v4942
        %5005 = vst [vmem:[#allocation3 + $0x2d8] sm:$0xf] %v4943
        %5006 = vst [vmem:[#allocation3 + $0x2fc] sm:$0xf] %v4944
        %5007 = vst [vmem:[#allocation3 + $0x320] sm:$0xf] %v4945
        %5008 = vst [vmem:[#allocation3 + $0x344] sm:$0xf] %v4946
        %5009 = vst [vmem:[#allocation3 + $0x368] sm:$0xf] %v4947
        %5010 = vst [vmem:[#allocation3 + $0x38c] sm:$0xf] %v4948
        %5011 = vst [vmem:[#allocation3 + $0x3b0] sm:$0xf] %v4949
        %5012 = vst [vmem:[#allocation3 + $0x3d4] sm:$0xf] %v4950
        %5013 = vst [vmem:[#allocation3 + $0x3f8] sm:$0xf] %v4951
        %5014 = vst [vmem:[#allocation3 + $0x41c] sm:$0xf] %v4952
        %5015 = vst [vmem:[#allocation3 + $0x440] sm:$0xf] %v4953
        %5016 = vst [vmem:[#allocation3 + $0x464] sm:$0xf] %v4954
        %v5018 = vunpack.c.l.b16 %v4379
        %v5019 = vunpack.c.h.b16 %v4379
        %v5020 = vpack.c.b16 %v5018, %v5018
        %v5021 = vpack.c.b16 %v5019, %v5019
        %5024 = vst [vmem:[#allocation3 + $0xc] sm:$0xf] %v4441
        %5025 = vst [vmem:[#allocation3 + $0x30] sm:$0xf] %v4442
        %5026 = vst [vmem:[#allocation3 + $0x54] sm:$0xf] %v4443
        %5027 = vst [vmem:[#allocation3 + $0x78] sm:$0xf] %v4444
        %5028 = vst [vmem:[#allocation3 + $0x9c] sm:$0xf] %v4445
        %5029 = vst [vmem:[#allocation3 + $0xc0] sm:$0xf] %v4446
        %5030 = vst [vmem:[#allocation3 + $0xe4] sm:$0xf] %v4447
        %5031 = vst [vmem:[#allocation3 + $0x108] sm:$0xf] %v4448
        %5032 = vst [vmem:[#allocation3 + $0x12c] sm:$0xf] %v4449
        %5033 = vst [vmem:[#allocation3 + $0x150] sm:$0xf] %v4450
        %5034 = vst [vmem:[#allocation3 + $0x174] sm:$0xf] %v4451
        %5035 = vst [vmem:[#allocation3 + $0x198] sm:$0xf] %v4452
        %5036 = vst [vmem:[#allocation3 + $0x1bc] sm:$0xf] %v4453
        %5037 = vst [vmem:[#allocation3 + $0x1e0] sm:$0xf] %v4454
        %5038 = vst [vmem:[#allocation3 + $0x204] sm:$0xf] %v4455
        %5039 = vst [vmem:[#allocation3 + $0x228] sm:$0xf] %v4456
        %5040 = vst [vmem:[#allocation3 + $0x24c] sm:$0xf] %v4457
        %5041 = vst [vmem:[#allocation3 + $0x270] sm:$0xf] %v4458
        %5042 = vst [vmem:[#allocation3 + $0x294] sm:$0xf] %v4459
        %5043 = vst [vmem:[#allocation3 + $0x2b8] sm:$0xf] %v4460
        %5044 = vst [vmem:[#allocation3 + $0x2dc] sm:$0xf] %v4461
        %5045 = vst [vmem:[#allocation3 + $0x300] sm:$0xf] %v4462
        %5046 = vst [vmem:[#allocation3 + $0x324] sm:$0xf] %v4463
        %5047 = vst [vmem:[#allocation3 + $0x348] sm:$0xf] %v4464
        %5048 = vst [vmem:[#allocation3 + $0x36c] sm:$0xf] %v4465
        %5049 = vst [vmem:[#allocation3 + $0x390] sm:$0xf] %v4466
        %5050 = vst [vmem:[#allocation3 + $0x3b4] sm:$0xf] %v4467
        %5051 = vst [vmem:[#allocation3 + $0x3d8] sm:$0xf] %v4468
        %5052 = vst [vmem:[#allocation3 + $0x3fc] sm:$0xf] %v4469
        %5053 = vst [vmem:[#allocation3 + $0x420] sm:$0xf] %v4470
        %5054 = vst [vmem:[#allocation3 + $0x444] sm:$0xf] %v5020
        %5055 = vst [vmem:[#allocation3 + $0x468] sm:$0xf] %v5021
        %v5057 = vshrl.u32 %v4379, 16
        %v5059 = vshll.u32 %v4379, 16
        %v5061 = vrot.slane %v5059, 1
        %v5062 = vor.u32 %v5057, %v5061
        %v5064 = vshll.u32 %v4395, 16
        %v5066 = vrot.slane %v5064, 1
        %v5067 = vsel %vm1062, %v5062, %v5066
        %v5068 = vunpack.c.l.b16 %v5067
        %v5069 = vunpack.c.h.b16 %v5067
        %v5070 = vpack.c.b16 %v5068, %v5068
        %v5071 = vpack.c.b16 %v5069, %v5069
        %5074 = vst [vmem:[#allocation3 + $0x10] sm:$0xf] %v4743
        %5075 = vst [vmem:[#allocation3 + $0x34] sm:$0xf] %v4744
        %5076 = vst [vmem:[#allocation3 + $0x58] sm:$0xf] %v4745
        %5077 = vst [vmem:[#allocation3 + $0x7c] sm:$0xf] %v4746
        %5078 = vst [vmem:[#allocation3 + $0xa0] sm:$0xf] %v4747
        %5079 = vst [vmem:[#allocation3 + $0xc4] sm:$0xf] %v4748
        %5080 = vst [vmem:[#allocation3 + $0xe8] sm:$0xf] %v4749
        %5081 = vst [vmem:[#allocation3 + $0x10c] sm:$0xf] %v4750
        %5082 = vst [vmem:[#allocation3 + $0x130] sm:$0xf] %v4751
        %5083 = vst [vmem:[#allocation3 + $0x154] sm:$0xf] %v4752
        %5084 = vst [vmem:[#allocation3 + $0x178] sm:$0xf] %v4753
        %5085 = vst [vmem:[#allocation3 + $0x19c] sm:$0xf] %v4754
        %5086 = vst [vmem:[#allocation3 + $0x1c0] sm:$0xf] %v4755
        %5087 = vst [vmem:[#allocation3 + $0x1e4] sm:$0xf] %v4756
        %5088 = vst [vmem:[#allocation3 + $0x208] sm:$0xf] %v4757
        %5089 = vst [vmem:[#allocation3 + $0x22c] sm:$0xf] %v4758
        %5090 = vst [vmem:[#allocation3 + $0x250] sm:$0xf] %v4759
        %5091 = vst [vmem:[#allocation3 + $0x274] sm:$0xf] %v4760
        %5092 = vst [vmem:[#allocation3 + $0x298] sm:$0xf] %v4761
        %5093 = vst [vmem:[#allocation3 + $0x2bc] sm:$0xf] %v4762
        %5094 = vst [vmem:[#allocation3 + $0x2e0] sm:$0xf] %v4763
        %5095 = vst [vmem:[#allocation3 + $0x304] sm:$0xf] %v4764
        %5096 = vst [vmem:[#allocation3 + $0x328] sm:$0xf] %v4765
        %5097 = vst [vmem:[#allocation3 + $0x34c] sm:$0xf] %v4766
        %5098 = vst [vmem:[#allocation3 + $0x370] sm:$0xf] %v4767
        %5099 = vst [vmem:[#allocation3 + $0x394] sm:$0xf] %v4768
        %5100 = vst [vmem:[#allocation3 + $0x3b8] sm:$0xf] %v4769
        %5101 = vst [vmem:[#allocation3 + $0x3dc] sm:$0xf] %v4770
        %5102 = vst [vmem:[#allocation3 + $0x400] sm:$0xf] %v4771
        %5103 = vst [vmem:[#allocation3 + $0x424] sm:$0xf] %v4772
        %5104 = vst [vmem:[#allocation3 + $0x448] sm:$0xf] %v5070
        %5105 = vst [vmem:[#allocation3 + $0x46c] sm:$0xf] %v5071
        %v5107 = vrot.slane %v4379, 1
        %v5108 = vrot.slane %v4395, 1
        %v5109 = vsel %vm1394, %v5107, %v5108
        %v5110 = vunpack.c.l.b16 %v5109
        %v5111 = vunpack.c.h.b16 %v5109
        %v5112 = vpack.c.b16 %v5110, %v5110
        %v5113 = vpack.c.b16 %v5111, %v5111
        %5116 = vst [vmem:[#allocation3 + $0x14] sm:$0xf] %v4925
        %5117 = vst [vmem:[#allocation3 + $0x38] sm:$0xf] %v4926
        %5118 = vst [vmem:[#allocation3 + $0x5c] sm:$0xf] %v4927
        %5119 = vst [vmem:[#allocation3 + $0x80] sm:$0xf] %v4928
        %5120 = vst [vmem:[#allocation3 + $0xa4] sm:$0xf] %v4929
        %5121 = vst [vmem:[#allocation3 + $0xc8] sm:$0xf] %v4930
        %5122 = vst [vmem:[#allocation3 + $0xec] sm:$0xf] %v4931
        %5123 = vst [vmem:[#allocation3 + $0x110] sm:$0xf] %v4932
        %5124 = vst [vmem:[#allocation3 + $0x134] sm:$0xf] %v4933
        %5125 = vst [vmem:[#allocation3 + $0x158] sm:$0xf] %v4934
        %5126 = vst [vmem:[#allocation3 + $0x17c] sm:$0xf] %v4935
        %5127 = vst [vmem:[#allocation3 + $0x1a0] sm:$0xf] %v4936
        %5128 = vst [vmem:[#allocation3 + $0x1c4] sm:$0xf] %v4937
        %5129 = vst [vmem:[#allocation3 + $0x1e8] sm:$0xf] %v4938
        %5130 = vst [vmem:[#allocation3 + $0x20c] sm:$0xf] %v4939
        %5131 = vst [vmem:[#allocation3 + $0x230] sm:$0xf] %v4940
        %5132 = vst [vmem:[#allocation3 + $0x254] sm:$0xf] %v4941
        %5133 = vst [vmem:[#allocation3 + $0x278] sm:$0xf] %v4942
        %5134 = vst [vmem:[#allocation3 + $0x29c] sm:$0xf] %v4943
        %5135 = vst [vmem:[#allocation3 + $0x2c0] sm:$0xf] %v4944
        %5136 = vst [vmem:[#allocation3 + $0x2e4] sm:$0xf] %v4945
        %5137 = vst [vmem:[#allocation3 + $0x308] sm:$0xf] %v4946
        %5138 = vst [vmem:[#allocation3 + $0x32c] sm:$0xf] %v4947
        %5139 = vst [vmem:[#allocation3 + $0x350] sm:$0xf] %v4948
        %5140 = vst [vmem:[#allocation3 + $0x374] sm:$0xf] %v4949
        %5141 = vst [vmem:[#allocation3 + $0x398] sm:$0xf] %v4950
        %5142 = vst [vmem:[#allocation3 + $0x3bc] sm:$0xf] %v4951
        %5143 = vst [vmem:[#allocation3 + $0x3e0] sm:$0xf] %v4952
        %5144 = vst [vmem:[#allocation3 + $0x404] sm:$0xf] %v4953
        %5145 = vst [vmem:[#allocation3 + $0x428] sm:$0xf] %v4954
        %5146 = vst [vmem:[#allocation3 + $0x44c] sm:$0xf] %v5112
        %5147 = vst [vmem:[#allocation3 + $0x470] sm:$0xf] %v5113
        %5148 = vst [vmem:[#allocation3 + $0x18] sm:$0xf] %v4443
        %5149 = vst [vmem:[#allocation3 + $0x3c] sm:$0xf] %v4444
        %5150 = vst [vmem:[#allocation3 + $0x60] sm:$0xf] %v4445
        %5151 = vst [vmem:[#allocation3 + $0x84] sm:$0xf] %v4446
        %5152 = vst [vmem:[#allocation3 + $0xa8] sm:$0xf] %v4447
        %5153 = vst [vmem:[#allocation3 + $0xcc] sm:$0xf] %v4448
        %5154 = vst [vmem:[#allocation3 + $0xf0] sm:$0xf] %v4449
        %5155 = vst [vmem:[#allocation3 + $0x114] sm:$0xf] %v4450
        %5156 = vst [vmem:[#allocation3 + $0x138] sm:$0xf] %v4451
        %5157 = vst [vmem:[#allocation3 + $0x15c] sm:$0xf] %v4452
        %5158 = vst [vmem:[#allocation3 + $0x180] sm:$0xf] %v4453
        %5159 = vst [vmem:[#allocation3 + $0x1a4] sm:$0xf] %v4454
        %5160 = vst [vmem:[#allocation3 + $0x1c8] sm:$0xf] %v4455
        %5161 = vst [vmem:[#allocation3 + $0x1ec] sm:$0xf] %v4456
        %5162 = vst [vmem:[#allocation3 + $0x210] sm:$0xf] %v4457
        %5163 = vst [vmem:[#allocation3 + $0x234] sm:$0xf] %v4458
        %5164 = vst [vmem:[#allocation3 + $0x258] sm:$0xf] %v4459
        %5165 = vst [vmem:[#allocation3 + $0x27c] sm:$0xf] %v4460
        %5166 = vst [vmem:[#allocation3 + $0x2a0] sm:$0xf] %v4461
        %5167 = vst [vmem:[#allocation3 + $0x2c4] sm:$0xf] %v4462
        %5168 = vst [vmem:[#allocation3 + $0x2e8] sm:$0xf] %v4463
        %5169 = vst [vmem:[#allocation3 + $0x30c] sm:$0xf] %v4464
        %5170 = vst [vmem:[#allocation3 + $0x330] sm:$0xf] %v4465
        %5171 = vst [vmem:[#allocation3 + $0x354] sm:$0xf] %v4466
        %5172 = vst [vmem:[#allocation3 + $0x378] sm:$0xf] %v4467
        %5173 = vst [vmem:[#allocation3 + $0x39c] sm:$0xf] %v4468
        %5174 = vst [vmem:[#allocation3 + $0x3c0] sm:$0xf] %v4469
        %5175 = vst [vmem:[#allocation3 + $0x3e4] sm:$0xf] %v4470
        %5176 = vst [vmem:[#allocation3 + $0x408] sm:$0xf] %v5020
        %5177 = vst [vmem:[#allocation3 + $0x42c] sm:$0xf] %v5021
        %5178 = vst [vmem:[#allocation3 + $0x450] sm:$0xf] %v966
        %5179 = vst [vmem:[#allocation3 + $0x474] sm:$0xf] %v967
        %5180 = vst [vmem:[#allocation3 + $0x1c] sm:$0xf] %v4745
        %5181 = vst [vmem:[#allocation3 + $0x40] sm:$0xf] %v4746
        %5182 = vst [vmem:[#allocation3 + $0x64] sm:$0xf] %v4747
        %5183 = vst [vmem:[#allocation3 + $0x88] sm:$0xf] %v4748
        %5184 = vst [vmem:[#allocation3 + $0xac] sm:$0xf] %v4749
        %5185 = vst [vmem:[#allocation3 + $0xd0] sm:$0xf] %v4750
        %5186 = vst [vmem:[#allocation3 + $0xf4] sm:$0xf] %v4751
        %5187 = vst [vmem:[#allocation3 + $0x118] sm:$0xf] %v4752
        %5188 = vst [vmem:[#allocation3 + $0x13c] sm:$0xf] %v4753
        %5189 = vst [vmem:[#allocation3 + $0x160] sm:$0xf] %v4754
        %5190 = vst [vmem:[#allocation3 + $0x184] sm:$0xf] %v4755
        %5191 = vst [vmem:[#allocation3 + $0x1a8] sm:$0xf] %v4756
        %5192 = vst [vmem:[#allocation3 + $0x1cc] sm:$0xf] %v4757
        %5193 = vst [vmem:[#allocation3 + $0x1f0] sm:$0xf] %v4758
        %5194 = vst [vmem:[#allocation3 + $0x214] sm:$0xf] %v4759
        %5195 = vst [vmem:[#allocation3 + $0x238] sm:$0xf] %v4760
        %5196 = vst [vmem:[#allocation3 + $0x25c] sm:$0xf] %v4761
        %5197 = vst [vmem:[#allocation3 + $0x280] sm:$0xf] %v4762
        %5198 = vst [vmem:[#allocation3 + $0x2a4] sm:$0xf] %v4763
        %5199 = vst [vmem:[#allocation3 + $0x2c8] sm:$0xf] %v4764
        %5200 = vst [vmem:[#allocation3 + $0x2ec] sm:$0xf] %v4765
        %5201 = vst [vmem:[#allocation3 + $0x310] sm:$0xf] %v4766
        %5202 = vst [vmem:[#allocation3 + $0x334] sm:$0xf] %v4767
        %5203 = vst [vmem:[#allocation3 + $0x358] sm:$0xf] %v4768
        %5204 = vst [vmem:[#allocation3 + $0x37c] sm:$0xf] %v4769
        %5205 = vst [vmem:[#allocation3 + $0x3a0] sm:$0xf] %v4770
        %5206 = vst [vmem:[#allocation3 + $0x3c4] sm:$0xf] %v4771
        %5207 = vst [vmem:[#allocation3 + $0x3e8] sm:$0xf] %v4772
        %5208 = vst [vmem:[#allocation3 + $0x40c] sm:$0xf] %v5070
        %5209 = vst [vmem:[#allocation3 + $0x430] sm:$0xf] %v5071
        %5210 = vst [vmem:[#allocation3 + $0x454] sm:$0xf] %v1283
        %5211 = vst [vmem:[#allocation3 + $0x478] sm:$0xf] %v1284
        %5212 = vst [vmem:[#allocation3 + $0x20] sm:$0xf] %v4927
        %5213 = vst [vmem:[#allocation3 + $0x44] sm:$0xf] %v4928
        %5214 = vst [vmem:[#allocation3 + $0x68] sm:$0xf] %v4929
        %5215 = vst [vmem:[#allocation3 + $0x8c] sm:$0xf] %v4930
        %5216 = vst [vmem:[#allocation3 + $0xb0] sm:$0xf] %v4931
        %5217 = vst [vmem:[#allocation3 + $0xd4] sm:$0xf] %v4932
        %5218 = vst [vmem:[#allocation3 + $0xf8] sm:$0xf] %v4933
        %5219 = vst [vmem:[#allocation3 + $0x11c] sm:$0xf] %v4934
        %5220 = vst [vmem:[#allocation3 + $0x140] sm:$0xf] %v4935
        %5221 = vst [vmem:[#allocation3 + $0x164] sm:$0xf] %v4936
        %5222 = vst [vmem:[#allocation3 + $0x188] sm:$0xf] %v4937
        %5223 = vst [vmem:[#allocation3 + $0x1ac] sm:$0xf] %v4938
        %5224 = vst [vmem:[#allocation3 + $0x1d0] sm:$0xf] %v4939
        %5225 = vst [vmem:[#allocation3 + $0x1f4] sm:$0xf] %v4940
        %5226 = vst [vmem:[#allocation3 + $0x218] sm:$0xf] %v4941
        %5227 = vst [vmem:[#allocation3 + $0x23c] sm:$0xf] %v4942
        %5228 = vst [vmem:[#allocation3 + $0x260] sm:$0xf] %v4943
        %5229 = vst [vmem:[#allocation3 + $0x284] sm:$0xf] %v4944
        %5230 = vst [vmem:[#allocation3 + $0x2a8] sm:$0xf] %v4945
        %5231 = vst [vmem:[#allocation3 + $0x2cc] sm:$0xf] %v4946
        %5232 = vst [vmem:[#allocation3 + $0x2f0] sm:$0xf] %v4947
        %5233 = vst [vmem:[#allocation3 + $0x314] sm:$0xf] %v4948
        %5234 = vst [vmem:[#allocation3 + $0x338] sm:$0xf] %v4949
        %5235 = vst [vmem:[#allocation3 + $0x35c] sm:$0xf] %v4950
        %5236 = vst [vmem:[#allocation3 + $0x380] sm:$0xf] %v4951
        %5237 = vst [vmem:[#allocation3 + $0x3a4] sm:$0xf] %v4952
        %5238 = vst [vmem:[#allocation3 + $0x3c8] sm:$0xf] %v4953
        %5239 = vst [vmem:[#allocation3 + $0x3ec] sm:$0xf] %v4954
        %5240 = vst [vmem:[#allocation3 + $0x410] sm:$0xf] %v5112
        %5241 = vst [vmem:[#allocation3 + $0x434] sm:$0xf] %v5113
        %5242 = vst [vmem:[#allocation3 + $0x458] sm:$0xf] %v1474
        %5243 = vst [vmem:[#allocation3 + $0x47c] sm:$0xf] %v1475
        %v5244 = vld [vmem:[#allocation3] sm:$0xff]
        %v5245 = vld [vmem:[#allocation3 + $0x8] sm:$0xff]
        %v5246 = vld [vmem:[#allocation3 + $0x10] sm:$0xff]
        %v5247 = vld [vmem:[#allocation3 + $0x18] sm:$0xff]
        %v5248 = vld [vmem:[#allocation3 + $0x20] sm:$0xf]
        %v5249 = vld [vmem:[#allocation3 + $0x24] sm:$0xff]
        %v5250 = vld [vmem:[#allocation3 + $0x2c] sm:$0xff]
        %v5251 = vld [vmem:[#allocation3 + $0x34] sm:$0xff]
        %v5252 = vld [vmem:[#allocation3 + $0x3c] sm:$0xff]
        %v5253 = vld [vmem:[#allocation3 + $0x44] sm:$0xf]
        %v5254 = vld [vmem:[#allocation3 + $0x48] sm:$0xff]
        %v5255 = vld [vmem:[#allocation3 + $0x50] sm:$0xff]
        %v5256 = vld [vmem:[#allocation3 + $0x58] sm:$0xff]
        %v5257 = vld [vmem:[#allocation3 + $0x60] sm:$0xff]
        %v5258 = vld [vmem:[#allocation3 + $0x68] sm:$0xf]
        %v5259 = vld [vmem:[#allocation3 + $0x6c] sm:$0xff]
        %v5260 = vld [vmem:[#allocation3 + $0x74] sm:$0xff]
        %v5261 = vld [vmem:[#allocation3 + $0x7c] sm:$0xff]
        %v5262 = vld [vmem:[#allocation3 + $0x84] sm:$0xff]
        %v5263 = vld [vmem:[#allocation3 + $0x8c] sm:$0xf]
        %v5264 = vld [vmem:[#allocation3 + $0x90] sm:$0xff]
        %v5265 = vld [vmem:[#allocation3 + $0x98] sm:$0xff]
        %v5266 = vld [vmem:[#allocation3 + $0xa0] sm:$0xff]
        %v5267 = vld [vmem:[#allocation3 + $0xa8] sm:$0xff]
        %v5268 = vld [vmem:[#allocation3 + $0xb0] sm:$0xf]
        %v5269 = vld [vmem:[#allocation3 + $0xb4] sm:$0xff]
        %v5270 = vld [vmem:[#allocation3 + $0xbc] sm:$0xff]
        %v5271 = vld [vmem:[#allocation3 + $0xc4] sm:$0xff]
        %v5272 = vld [vmem:[#allocation3 + $0xcc] sm:$0xff]
        %v5273 = vld [vmem:[#allocation3 + $0xd4] sm:$0xf]
        %v5274 = vld [vmem:[#allocation3 + $0xd8] sm:$0xff]
        %v5275 = vld [vmem:[#allocation3 + $0xe0] sm:$0xff]
        %v5276 = vld [vmem:[#allocation3 + $0xe8] sm:$0xff]
        %v5277 = vld [vmem:[#allocation3 + $0xf0] sm:$0xff]
        %v5278 = vld [vmem:[#allocation3 + $0xf8] sm:$0xf]
        %v5279 = vld [vmem:[#allocation3 + $0xfc] sm:$0xff]
        %v5280 = vld [vmem:[#allocation3 + $0x104] sm:$0xff]
        %v5281 = vld [vmem:[#allocation3 + $0x10c] sm:$0xff]
        %v5282 = vld [vmem:[#allocation3 + $0x114] sm:$0xff]
        %v5283 = vld [vmem:[#allocation3 + $0x11c] sm:$0xf]
        %v5284 = vld [vmem:[#allocation3 + $0x120] sm:$0xff]
        %v5285 = vld [vmem:[#allocation3 + $0x128] sm:$0xff]
        %v5286 = vld [vmem:[#allocation3 + $0x130] sm:$0xff]
        %v5287 = vld [vmem:[#allocation3 + $0x138] sm:$0xff]
        %v5288 = vld [vmem:[#allocation3 + $0x140] sm:$0xf]
        %v5289 = vld [vmem:[#allocation3 + $0x144] sm:$0xff]
        %v5290 = vld [vmem:[#allocation3 + $0x14c] sm:$0xff]
        %v5291 = vld [vmem:[#allocation3 + $0x154] sm:$0xff]
        %v5292 = vld [vmem:[#allocation3 + $0x15c] sm:$0xff]
        %v5293 = vld [vmem:[#allocation3 + $0x164] sm:$0xf]
        %v5294 = vld [vmem:[#allocation3 + $0x168] sm:$0xff]
        %v5295 = vld [vmem:[#allocation3 + $0x170] sm:$0xff]
        %v5296 = vld [vmem:[#allocation3 + $0x178] sm:$0xff]
        %v5297 = vld [vmem:[#allocation3 + $0x180] sm:$0xff]
        %v5298 = vld [vmem:[#allocation3 + $0x188] sm:$0xf]
        %v5299 = vld [vmem:[#allocation3 + $0x18c] sm:$0xff]
        %v5300 = vld [vmem:[#allocation3 + $0x194] sm:$0xff]
        %v5301 = vld [vmem:[#allocation3 + $0x19c] sm:$0xff]
        %v5302 = vld [vmem:[#allocation3 + $0x1a4] sm:$0xff]
        %v5303 = vld [vmem:[#allocation3 + $0x1ac] sm:$0xf]
        %v5304 = vld [vmem:[#allocation3 + $0x1b0] sm:$0xff]
        %v5305 = vld [vmem:[#allocation3 + $0x1b8] sm:$0xff]
        %v5306 = vld [vmem:[#allocation3 + $0x1c0] sm:$0xff]
        %v5307 = vld [vmem:[#allocation3 + $0x1c8] sm:$0xff]
        %v5308 = vld [vmem:[#allocation3 + $0x1d0] sm:$0xf]
        %v5309 = vld [vmem:[#allocation3 + $0x1d4] sm:$0xff]
        %v5310 = vld [vmem:[#allocation3 + $0x1dc] sm:$0xff]
        %v5311 = vld [vmem:[#allocation3 + $0x1e4] sm:$0xff]
        %v5312 = vld [vmem:[#allocation3 + $0x1ec] sm:$0xff]
        %v5313 = vld [vmem:[#allocation3 + $0x1f4] sm:$0xf]
        %v5314 = vld [vmem:[#allocation3 + $0x1f8] sm:$0xff]
        %v5315 = vld [vmem:[#allocation3 + $0x200] sm:$0xff]
        %v5316 = vld [vmem:[#allocation3 + $0x208] sm:$0xff]
        %v5317 = vld [vmem:[#allocation3 + $0x210] sm:$0xff]
        %v5318 = vld [vmem:[#allocation3 + $0x218] sm:$0xf]
        %v5319 = vld [vmem:[#allocation3 + $0x21c] sm:$0xff]
        %v5320 = vld [vmem:[#allocation3 + $0x224] sm:$0xff]
        %v5321 = vld [vmem:[#allocation3 + $0x22c] sm:$0xff]
        %v5322 = vld [vmem:[#allocation3 + $0x234] sm:$0xff]
        %v5323 = vld [vmem:[#allocation3 + $0x23c] sm:$0xf]
        %v5324 = vld [vmem:[#allocation3 + $0x240] sm:$0xff]
        %v5325 = vld [vmem:[#allocation3 + $0x248] sm:$0xff]
        %v5326 = vld [vmem:[#allocation3 + $0x250] sm:$0xff]
        %v5327 = vld [vmem:[#allocation3 + $0x258] sm:$0xff]
        %v5328 = vld [vmem:[#allocation3 + $0x260] sm:$0xf]
        %v5329 = vld [vmem:[#allocation3 + $0x264] sm:$0xff]
        %v5330 = vld [vmem:[#allocation3 + $0x26c] sm:$0xff]
        %v5331 = vld [vmem:[#allocation3 + $0x274] sm:$0xff]
        %v5332 = vld [vmem:[#allocation3 + $0x27c] sm:$0xff]
        %v5333 = vld [vmem:[#allocation3 + $0x284] sm:$0xf]
        %v5334 = vld [vmem:[#allocation3 + $0x288] sm:$0xff]
        %v5335 = vld [vmem:[#allocation3 + $0x290] sm:$0xff]
        %v5336 = vld [vmem:[#allocation3 + $0x298] sm:$0xff]
        %v5337 = vld [vmem:[#allocation3 + $0x2a0] sm:$0xff]
        %v5338 = vld [vmem:[#allocation3 + $0x2a8] sm:$0xf]
        %v5339 = vld [vmem:[#allocation3 + $0x2ac] sm:$0xff]
        %v5340 = vld [vmem:[#allocation3 + $0x2b4] sm:$0xff]
        %v5341 = vld [vmem:[#allocation3 + $0x2bc] sm:$0xff]
        %v5342 = vld [vmem:[#allocation3 + $0x2c4] sm:$0xff]
        %v5343 = vld [vmem:[#allocation3 + $0x2cc] sm:$0xf]
        %v5344 = vld [vmem:[#allocation3 + $0x2d0] sm:$0xff]
        %v5345 = vld [vmem:[#allocation3 + $0x2d8] sm:$0xff]
        %v5346 = vld [vmem:[#allocation3 + $0x2e0] sm:$0xff]
        %v5347 = vld [vmem:[#allocation3 + $0x2e8] sm:$0xff]
        %v5348 = vld [vmem:[#allocation3 + $0x2f0] sm:$0xf]
        %v5349 = vld [vmem:[#allocation3 + $0x2f4] sm:$0xff]
        %v5350 = vld [vmem:[#allocation3 + $0x2fc] sm:$0xff]
        %v5351 = vld [vmem:[#allocation3 + $0x304] sm:$0xff]
        %v5352 = vld [vmem:[#allocation3 + $0x30c] sm:$0xff]
        %v5353 = vld [vmem:[#allocation3 + $0x314] sm:$0xf]
        %v5354 = vld [vmem:[#allocation3 + $0x318] sm:$0xff]
        %v5355 = vld [vmem:[#allocation3 + $0x320] sm:$0xff]
        %v5356 = vld [vmem:[#allocation3 + $0x328] sm:$0xff]
        %v5357 = vld [vmem:[#allocation3 + $0x330] sm:$0xff]
        %v5358 = vld [vmem:[#allocation3 + $0x338] sm:$0xf]
        %v5359 = vld [vmem:[#allocation3 + $0x33c] sm:$0xff]
        %v5360 = vld [vmem:[#allocation3 + $0x344] sm:$0xff]
        %v5361 = vld [vmem:[#allocation3 + $0x34c] sm:$0xff]
        %v5362 = vld [vmem:[#allocation3 + $0x354] sm:$0xff]
        %v5363 = vld [vmem:[#allocation3 + $0x35c] sm:$0xf]
        %v5364 = vld [vmem:[#allocation3 + $0x360] sm:$0xff]
        %v5365 = vld [vmem:[#allocation3 + $0x368] sm:$0xff]
        %v5366 = vld [vmem:[#allocation3 + $0x370] sm:$0xff]
        %v5367 = vld [vmem:[#allocation3 + $0x378] sm:$0xff]
        %v5368 = vld [vmem:[#allocation3 + $0x380] sm:$0xf]
        %v5369 = vld [vmem:[#allocation3 + $0x384] sm:$0xff]
        %v5370 = vld [vmem:[#allocation3 + $0x38c] sm:$0xff]
        %v5371 = vld [vmem:[#allocation3 + $0x394] sm:$0xff]
        %v5372 = vld [vmem:[#allocation3 + $0x39c] sm:$0xff]
        %v5373 = vld [vmem:[#allocation3 + $0x3a4] sm:$0xf]
        %v5374 = vld [vmem:[#allocation3 + $0x3a8] sm:$0xff]
        %v5375 = vld [vmem:[#allocation3 + $0x3b0] sm:$0xff]
        %v5376 = vld [vmem:[#allocation3 + $0x3b8] sm:$0xff]
        %v5377 = vld [vmem:[#allocation3 + $0x3c0] sm:$0xff]
        %v5378 = vld [vmem:[#allocation3 + $0x3c8] sm:$0xf]
        %v5379 = vld [vmem:[#allocation3 + $0x3cc] sm:$0xff]
        %v5380 = vld [vmem:[#allocation3 + $0x3d4] sm:$0xff]
        %v5381 = vld [vmem:[#allocation3 + $0x3dc] sm:$0xff]
        %v5382 = vld [vmem:[#allocation3 + $0x3e4] sm:$0xff]
        %v5383 = vld [vmem:[#allocation3 + $0x3ec] sm:$0xf]
        %v5384 = vld [vmem:[#allocation3 + $0x3f0] sm:$0xff]
        %v5385 = vld [vmem:[#allocation3 + $0x3f8] sm:$0xff]
        %v5386 = vld [vmem:[#allocation3 + $0x400] sm:$0xff]
        %v5387 = vld [vmem:[#allocation3 + $0x408] sm:$0xff]
        %v5388 = vld [vmem:[#allocation3 + $0x410] sm:$0xf]
        %v5389 = vld [vmem:[#allocation3 + $0x414] sm:$0xff]
        %v5390 = vld [vmem:[#allocation3 + $0x41c] sm:$0xff]
        %v5391 = vld [vmem:[#allocation3 + $0x424] sm:$0xff]
        %v5392 = vld [vmem:[#allocation3 + $0x42c] sm:$0xff]
        %v5393 = vld [vmem:[#allocation3 + $0x434] sm:$0xf]
        %v5394 = vld [vmem:[#allocation3 + $0x438] sm:$0xff]
        %v5395 = vld [vmem:[#allocation3 + $0x440] sm:$0xff]
        %v5396 = vld [vmem:[#allocation3 + $0x448] sm:$0xff]
        %v5397 = vld [vmem:[#allocation3 + $0x450] sm:$0xff]
        %v5398 = vld [vmem:[#allocation3 + $0x458] sm:$0xf]
        %v5399 = vld [vmem:[#allocation3 + $0x45c] sm:$0xff]
        %v5400 = vld [vmem:[#allocation3 + $0x464] sm:$0xff]
        %v5401 = vld [vmem:[#allocation3 + $0x46c] sm:$0xff]
        %v5402 = vld [vmem:[#allocation3 + $0x474] sm:$0xff]
        %v5403 = vld [vmem:[#allocation3 + $0x47c] sm:$0xf]
        %v5404 = vld [vmem:[%s4] sm:$0xf]
        %v5405 = vld [vmem:[%s4 + $0x4] sm:$0xf]
        %v5406 = vld [vmem:[%s4 + $0x8] sm:$0xf]
        %v5407 = vld [vmem:[%s4 + $0xc] sm:$0xf]
        %v5408 = vld [vmem:[%s4 + $0x10] sm:$0xf]
        %v5409 = vld [vmem:[%s4 + $0x14] sm:$0xf]
        %v5410 = vld [vmem:[%s4 + $0x18] sm:$0xf]
        %v5411 = vld [vmem:[%s4 + $0x1c] sm:$0xf]
        %v5412 = vld [vmem:[%s4 + $0x20] sm:$0xf]
        %v5413 = vld [vmem:[%s4 + $0x24] sm:$0xf]
        %v5414 = vld [vmem:[%s4 + $0x28] sm:$0xf]
        %v5415 = vld [vmem:[%s4 + $0x2c] sm:$0xf]
        %v5416 = vld [vmem:[%s4 + $0x30] sm:$0xf]
        %v5417 = vld [vmem:[%s4 + $0x34] sm:$0xf]
        %v5418 = vld [vmem:[%s4 + $0x38] sm:$0xf]
        %v5419 = vld [vmem:[%s4 + $0x3c] sm:$0xf]
        %v5420 = vld [vmem:[%s4 + $0x40] sm:$0xf]
        %v5421 = vld [vmem:[%s4 + $0x44] sm:$0xf]
        %v5422 = vld [vmem:[%s4 + $0x48] sm:$0xf]
        %v5423 = vld [vmem:[%s4 + $0x4c] sm:$0xf]
        %v5424 = vld [vmem:[%s4 + $0x50] sm:$0xf]
        %v5425 = vld [vmem:[%s4 + $0x54] sm:$0xf]
        %v5426 = vld [vmem:[%s4 + $0x58] sm:$0xf]
        %v5427 = vld [vmem:[%s4 + $0x5c] sm:$0xf]
        %v5428 = vld [vmem:[%s4 + $0x60] sm:$0xf]
        %v5429 = vld [vmem:[%s4 + $0x64] sm:$0xf]
        %v5430 = vld [vmem:[%s4 + $0x68] sm:$0xf]
        %v5431 = vld [vmem:[%s4 + $0x6c] sm:$0xf]
        %v5432 = vld [vmem:[%s4 + $0x70] sm:$0xf]
        %v5433 = vld [vmem:[%s4 + $0x74] sm:$0xf]
        %v5434 = vld [vmem:[%s4 + $0x78] sm:$0xf]
        %v5435 = vld [vmem:[%s4 + $0x7c] sm:$0xf]
        %v5436 = vld [vmem:[%s4 + $0x80] sm:$0xf]
        %v5437 = vld [vmem:[%s4 + $0x84] sm:$0xf]
        %v5438 = vld [vmem:[%s4 + $0x88] sm:$0xf]
        %v5439 = vld [vmem:[%s4 + $0x8c] sm:$0xf]
        %v5440 = vld [vmem:[%s4 + $0x90] sm:$0xf]
        %v5441 = vld [vmem:[%s4 + $0x94] sm:$0xf]
        %v5442 = vld [vmem:[%s4 + $0x98] sm:$0xf]
        %v5443 = vld [vmem:[%s4 + $0x9c] sm:$0xf]
        %v5444 = vld [vmem:[%s4 + $0xa0] sm:$0xf]
        %v5445 = vld [vmem:[%s4 + $0xa4] sm:$0xf]
        %v5446 = vld [vmem:[%s4 + $0xa8] sm:$0xf]
        %v5447 = vld [vmem:[%s4 + $0xac] sm:$0xf]
        %v5448 = vld [vmem:[%s4 + $0xb0] sm:$0xf]
        %v5449 = vld [vmem:[%s4 + $0xb4] sm:$0xf]
        %v5450 = vld [vmem:[%s4 + $0xb8] sm:$0xf]
        %v5451 = vld [vmem:[%s4 + $0xbc] sm:$0xf]
        %v5452 = vld [vmem:[%s4 + $0xc0] sm:$0xf]
        %v5453 = vld [vmem:[%s4 + $0xc4] sm:$0xf]
        %v5454 = vld [vmem:[%s4 + $0xc8] sm:$0xf]
        %v5455 = vld [vmem:[%s4 + $0xcc] sm:$0xf]
        %v5456 = vld [vmem:[%s4 + $0xd0] sm:$0xf]
        %v5457 = vld [vmem:[%s4 + $0xd4] sm:$0xf]
        %v5458 = vld [vmem:[%s4 + $0xd8] sm:$0xf]
        %v5459 = vld [vmem:[%s4 + $0xdc] sm:$0xf]
        %v5460 = vld [vmem:[%s4 + $0xe0] sm:$0xf]
        %v5461 = vld [vmem:[%s4 + $0xe4] sm:$0xf]
        %v5462 = vld [vmem:[%s4 + $0xe8] sm:$0xf]
        %v5463 = vld [vmem:[%s4 + $0xec] sm:$0xf]
        %v5464 = vld [vmem:[%s4 + $0xf0] sm:$0xf]
        %v5465 = vld [vmem:[%s4 + $0xf4] sm:$0xf]
        %v5466 = vld [vmem:[%s4 + $0xf8] sm:$0xf]
        %v5467 = vld [vmem:[%s4 + $0xfc] sm:$0xf]
        %v5468 = vld [vmem:[%s4 + $0x100] sm:$0xf]
        %v5469 = vld [vmem:[%s4 + $0x104] sm:$0xf]
        %v5470 = vld [vmem:[%s4 + $0x108] sm:$0xf]
        %v5471 = vld [vmem:[%s4 + $0x10c] sm:$0xf]
        %v5472 = vld [vmem:[%s4 + $0x110] sm:$0xf]
        %v5473 = vld [vmem:[%s4 + $0x114] sm:$0xf]
        %v5474 = vld [vmem:[%s4 + $0x118] sm:$0xf]
        %v5475 = vld [vmem:[%s4 + $0x11c] sm:$0xf]
        %v5476 = vld [vmem:[%s4 + $0x120] sm:$0xf]
        %v5477 = vld [vmem:[%s4 + $0x124] sm:$0xf]
        %v5478 = vld [vmem:[%s4 + $0x128] sm:$0xf]
        %v5479 = vld [vmem:[%s4 + $0x12c] sm:$0xf]
        %v5480 = vld [vmem:[%s4 + $0x130] sm:$0xf]
        %v5481 = vld [vmem:[%s4 + $0x134] sm:$0xf]
        %v5482 = vld [vmem:[%s4 + $0x138] sm:$0xf]
        %v5483 = vld [vmem:[%s4 + $0x13c] sm:$0xf]
        %v5484 = vld [vmem:[%s4 + $0x140] sm:$0xf]
        %v5485 = vld [vmem:[%s4 + $0x144] sm:$0xf]
        %v5486 = vld [vmem:[%s4 + $0x148] sm:$0xf]
        %v5487 = vld [vmem:[%s4 + $0x14c] sm:$0xf]
        %v5488 = vld [vmem:[%s4 + $0x150] sm:$0xf]
        %v5489 = vld [vmem:[%s4 + $0x154] sm:$0xf]
        %v5490 = vld [vmem:[%s4 + $0x158] sm:$0xf]
        %v5491 = vld [vmem:[%s4 + $0x15c] sm:$0xf]
        %v5492 = vld [vmem:[%s4 + $0x160] sm:$0xf]
        %v5493 = vld [vmem:[%s4 + $0x164] sm:$0xf]
        %v5494 = vld [vmem:[%s4 + $0x168] sm:$0xf]
        %v5495 = vld [vmem:[%s4 + $0x16c] sm:$0xf]
        %v5496 = vld [vmem:[%s4 + $0x170] sm:$0xf]
        %v5497 = vld [vmem:[%s4 + $0x174] sm:$0xf]
        %v5498 = vld [vmem:[%s4 + $0x178] sm:$0xf]
        %v5499 = vld [vmem:[%s4 + $0x17c] sm:$0xf]
        %v5500 = vld [vmem:[%s4 + $0x180] sm:$0xf]
        %v5501 = vld [vmem:[%s4 + $0x184] sm:$0xf]
        %v5502 = vld [vmem:[%s4 + $0x188] sm:$0xf]
        %v5503 = vld [vmem:[%s4 + $0x18c] sm:$0xf]
        %v5504 = vld [vmem:[%s4 + $0x190] sm:$0xf]
        %v5505 = vld [vmem:[%s4 + $0x194] sm:$0xf]
        %v5506 = vld [vmem:[%s4 + $0x198] sm:$0xf]
        %v5507 = vld [vmem:[%s4 + $0x19c] sm:$0xf]
        %v5508 = vld [vmem:[%s4 + $0x1a0] sm:$0xf]
        %v5509 = vld [vmem:[%s4 + $0x1a4] sm:$0xf]
        %v5510 = vld [vmem:[%s4 + $0x1a8] sm:$0xf]
        %v5511 = vld [vmem:[%s4 + $0x1ac] sm:$0xf]
        %v5512 = vld [vmem:[%s4 + $0x1b0] sm:$0xf]
        %v5513 = vld [vmem:[%s4 + $0x1b4] sm:$0xf]
        %v5514 = vld [vmem:[%s4 + $0x1b8] sm:$0xf]
        %v5515 = vld [vmem:[%s4 + $0x1bc] sm:$0xf]
        %v5516 = vld [vmem:[%s4 + $0x1c0] sm:$0xf]
        %v5517 = vld [vmem:[%s4 + $0x1c4] sm:$0xf]
        %v5518 = vld [vmem:[%s4 + $0x1c8] sm:$0xf]
        %v5519 = vld [vmem:[%s4 + $0x1cc] sm:$0xf]
        %v5520 = vld [vmem:[%s4 + $0x1d0] sm:$0xf]
        %v5521 = vld [vmem:[%s4 + $0x1d4] sm:$0xf]
        %v5522 = vld [vmem:[%s4 + $0x1d8] sm:$0xf]
        %v5523 = vld [vmem:[%s4 + $0x1dc] sm:$0xf]
        %v5524 = vld [vmem:[%s4 + $0x1e0] sm:$0xf]
        %v5525 = vld [vmem:[%s4 + $0x1e4] sm:$0xf]
        %v5526 = vld [vmem:[%s4 + $0x1e8] sm:$0xf]
        %v5527 = vld [vmem:[%s4 + $0x1ec] sm:$0xf]
        %v5528 = vld [vmem:[%s4 + $0x1f0] sm:$0xf]
        %v5529 = vld [vmem:[%s4 + $0x1f4] sm:$0xf]
        %v5530 = vld [vmem:[%s4 + $0x1f8] sm:$0xf]
        %v5531 = vld [vmem:[%s4 + $0x1fc] sm:$0xf]
        %v5532 = vld [vmem:[%s4 + $0x200] sm:$0xf]
        %v5533 = vld [vmem:[%s4 + $0x204] sm:$0xf]
        %v5534 = vld [vmem:[%s4 + $0x208] sm:$0xf]
        %v5535 = vld [vmem:[%s4 + $0x20c] sm:$0xf]
        %v5536 = vld [vmem:[%s4 + $0x210] sm:$0xf]
        %v5537 = vld [vmem:[%s4 + $0x214] sm:$0xf]
        %v5538 = vld [vmem:[%s4 + $0x218] sm:$0xf]
        %v5539 = vld [vmem:[%s4 + $0x21c] sm:$0xf]
        %v5540 = vld [vmem:[%s4 + $0x220] sm:$0xf]
        %v5541 = vld [vmem:[%s4 + $0x224] sm:$0xf]
        %v5542 = vld [vmem:[%s4 + $0x228] sm:$0xf]
        %v5543 = vld [vmem:[%s4 + $0x22c] sm:$0xf]
        %v5544 = vld [vmem:[%s4 + $0x230] sm:$0xf]
        %v5545 = vld [vmem:[%s4 + $0x234] sm:$0xf]
        %v5546 = vld [vmem:[%s4 + $0x238] sm:$0xf]
        %v5547 = vld [vmem:[%s4 + $0x23c] sm:$0xf]
        %v5548 = vld [vmem:[#allocation4] sm:$0xff]
        %v5549 = vld [vmem:[#allocation4 + $0x8] sm:$0xff]
        %v5550 = vld [vmem:[#allocation4 + $0x10] sm:$0xff]
        %v5551 = vld [vmem:[#allocation4 + $0x18] sm:$0xff]
        %v5552 = vld [vmem:[#allocation4 + $0x20] sm:$0xff]
        %v5553 = vld [vmem:[#allocation4 + $0x28] sm:$0xff]
        %v5554 = vld [vmem:[#allocation4 + $0x30] sm:$0xff]
        %v5555 = vld [vmem:[#allocation4 + $0x38] sm:$0xff]
        %v5556 = vld [vmem:[#allocation4 + $0x40] sm:$0xff]
        %v5557 = vld [vmem:[#allocation4 + $0x48] sm:$0xff]
        %v5558 = vld [vmem:[#allocation4 + $0x50] sm:$0xff]
        %v5559 = vld [vmem:[#allocation4 + $0x58] sm:$0xff]
        %v5560 = vld [vmem:[#allocation4 + $0x60] sm:$0xff]
        %v5561 = vld [vmem:[#allocation4 + $0x68] sm:$0xff]
        %v5562 = vld [vmem:[#allocation4 + $0x70] sm:$0xff]
        %v5563 = vld [vmem:[#allocation4 + $0x78] sm:$0xff]
        %v5564 = vld [vmem:[#allocation4 + $0x80] sm:$0xff]
        %v5565 = vld [vmem:[#allocation4 + $0x88] sm:$0xff]
        %v5566 = vld [vmem:[#allocation4 + $0x90] sm:$0xff]
        %v5567 = vld [vmem:[#allocation4 + $0x98] sm:$0xff]
        %v5568 = vld [vmem:[#allocation4 + $0xa0] sm:$0xff]
        %v5569 = vld [vmem:[#allocation4 + $0xa8] sm:$0xff]
        %v5570 = vld [vmem:[#allocation4 + $0xb0] sm:$0xff]
        %v5571 = vld [vmem:[#allocation4 + $0xb8] sm:$0xff]
        %v5572 = vld [vmem:[#allocation4 + $0xc0] sm:$0xff]
        %v5573 = vld [vmem:[#allocation4 + $0xc8] sm:$0xff]
        %v5574 = vld [vmem:[#allocation4 + $0xd0] sm:$0xff]
        %v5575 = vld [vmem:[#allocation4 + $0xd8] sm:$0xff]
        %v5576 = vld [vmem:[#allocation4 + $0xe0] sm:$0xff]
        %v5577 = vld [vmem:[#allocation4 + $0xe8] sm:$0xff]
        %v5578 = vld [vmem:[#allocation4 + $0xf0] sm:$0xff]
        %v5579 = vld [vmem:[#allocation4 + $0xf8] sm:$0xff]
        %v5740 = vunpack.c.l.b16 %v5244
        %v5741 = vunpack.c.h.b16 %v5244
        %v5742 = vunpack.c.l.b16 %v5245
        %v5743 = vunpack.c.h.b16 %v5245
        %v5744 = vunpack.c.l.b16 %v5246
        %v5745 = vunpack.c.h.b16 %v5246
        %v5746 = vunpack.c.l.b16 %v5247
        %v5747 = vunpack.c.h.b16 %v5247
        %v5748 = vunpack.c.l.b16 %v5248
        %v5749 = vunpack.c.l.b16 %v5249
        %v5750 = vunpack.c.h.b16 %v5249
        %v5751 = vunpack.c.l.b16 %v5250
        %v5752 = vunpack.c.h.b16 %v5250
        %v5753 = vunpack.c.l.b16 %v5251
        %v5754 = vunpack.c.h.b16 %v5251
        %v5755 = vunpack.c.l.b16 %v5252
        %v5756 = vunpack.c.h.b16 %v5252
        %v5757 = vunpack.c.l.b16 %v5253
        %v5758 = vunpack.c.l.b16 %v5254
        %v5759 = vunpack.c.h.b16 %v5254
        %v5760 = vunpack.c.l.b16 %v5255
        %v5761 = vunpack.c.h.b16 %v5255
        %v5762 = vunpack.c.l.b16 %v5256
        %v5763 = vunpack.c.h.b16 %v5256
        %v5764 = vunpack.c.l.b16 %v5257
        %v5765 = vunpack.c.h.b16 %v5257
        %v5766 = vunpack.c.l.b16 %v5258
        %v5767 = vunpack.c.l.b16 %v5259
        %v5768 = vunpack.c.h.b16 %v5259
        %v5769 = vunpack.c.l.b16 %v5260
        %v5770 = vunpack.c.h.b16 %v5260
        %v5771 = vunpack.c.l.b16 %v5261
        %v5772 = vunpack.c.h.b16 %v5261
        %v5773 = vunpack.c.l.b16 %v5262
        %v5774 = vunpack.c.h.b16 %v5262
        %v5775 = vunpack.c.l.b16 %v5263
        %v5776 = vunpack.c.l.b16 %v5264
        %v5777 = vunpack.c.h.b16 %v5264
        %v5778 = vunpack.c.l.b16 %v5265
        %v5779 = vunpack.c.h.b16 %v5265
        %v5780 = vunpack.c.l.b16 %v5266
        %v5781 = vunpack.c.h.b16 %v5266
        %v5782 = vunpack.c.l.b16 %v5267
        %v5783 = vunpack.c.h.b16 %v5267
        %v5784 = vunpack.c.l.b16 %v5268
        %v5785 = vunpack.c.l.b16 %v5269
        %v5786 = vunpack.c.h.b16 %v5269
        %v5787 = vunpack.c.l.b16 %v5270
        %v5788 = vunpack.c.h.b16 %v5270
        %v5789 = vunpack.c.l.b16 %v5271
        %v5790 = vunpack.c.h.b16 %v5271
        %v5791 = vunpack.c.l.b16 %v5272
        %v5792 = vunpack.c.h.b16 %v5272
        %v5793 = vunpack.c.l.b16 %v5273
        %v5794 = vunpack.c.l.b16 %v5274
        %v5795 = vunpack.c.h.b16 %v5274
        %v5796 = vunpack.c.l.b16 %v5275
        %v5797 = vunpack.c.h.b16 %v5275
        %v5798 = vunpack.c.l.b16 %v5276
        %v5799 = vunpack.c.h.b16 %v5276
        %v5800 = vunpack.c.l.b16 %v5277
        %v5801 = vunpack.c.h.b16 %v5277
        %v5802 = vunpack.c.l.b16 %v5278
        %v5803 = vunpack.c.l.b16 %v5279
        %v5804 = vunpack.c.h.b16 %v5279
        %v5805 = vunpack.c.l.b16 %v5280
        %v5806 = vunpack.c.h.b16 %v5280
        %v5807 = vunpack.c.l.b16 %v5281
        %v5808 = vunpack.c.h.b16 %v5281
        %v5809 = vunpack.c.l.b16 %v5282
        %v5810 = vunpack.c.h.b16 %v5282
        %v5811 = vunpack.c.l.b16 %v5283
        %v5812 = vunpack.c.l.b16 %v5284
        %v5813 = vunpack.c.h.b16 %v5284
        %v5814 = vunpack.c.l.b16 %v5285
        %v5815 = vunpack.c.h.b16 %v5285
        %v5816 = vunpack.c.l.b16 %v5286
        %v5817 = vunpack.c.h.b16 %v5286
        %v5818 = vunpack.c.l.b16 %v5287
        %v5819 = vunpack.c.h.b16 %v5287
        %v5820 = vunpack.c.l.b16 %v5288
        %v5821 = vunpack.c.l.b16 %v5289
        %v5822 = vunpack.c.h.b16 %v5289
        %v5823 = vunpack.c.l.b16 %v5290
        %v5824 = vunpack.c.h.b16 %v5290
        %v5825 = vunpack.c.l.b16 %v5291
        %v5826 = vunpack.c.h.b16 %v5291
        %v5827 = vunpack.c.l.b16 %v5292
        %v5828 = vunpack.c.h.b16 %v5292
        %v5829 = vunpack.c.l.b16 %v5293
        %v5830 = vunpack.c.l.b16 %v5294
        %v5831 = vunpack.c.h.b16 %v5294
        %v5832 = vunpack.c.l.b16 %v5295
        %v5833 = vunpack.c.h.b16 %v5295
        %v5834 = vunpack.c.l.b16 %v5296
        %v5835 = vunpack.c.h.b16 %v5296
        %v5836 = vunpack.c.l.b16 %v5297
        %v5837 = vunpack.c.h.b16 %v5297
        %v5838 = vunpack.c.l.b16 %v5298
        %v5839 = vunpack.c.l.b16 %v5299
        %v5840 = vunpack.c.h.b16 %v5299
        %v5841 = vunpack.c.l.b16 %v5300
        %v5842 = vunpack.c.h.b16 %v5300
        %v5843 = vunpack.c.l.b16 %v5301
        %v5844 = vunpack.c.h.b16 %v5301
        %v5845 = vunpack.c.l.b16 %v5302
        %v5846 = vunpack.c.h.b16 %v5302
        %v5847 = vunpack.c.l.b16 %v5303
        %v5848 = vunpack.c.l.b16 %v5304
        %v5849 = vunpack.c.h.b16 %v5304
        %v5850 = vunpack.c.l.b16 %v5305
        %v5851 = vunpack.c.h.b16 %v5305
        %v5852 = vunpack.c.l.b16 %v5306
        %v5853 = vunpack.c.h.b16 %v5306
        %v5854 = vunpack.c.l.b16 %v5307
        %v5855 = vunpack.c.h.b16 %v5307
        %v5856 = vunpack.c.l.b16 %v5308
        %v5857 = vunpack.c.l.b16 %v5309
        %v5858 = vunpack.c.h.b16 %v5309
        %v5859 = vunpack.c.l.b16 %v5310
        %v5860 = vunpack.c.h.b16 %v5310
        %v5861 = vunpack.c.l.b16 %v5311
        %v5862 = vunpack.c.h.b16 %v5311
        %v5863 = vunpack.c.l.b16 %v5312
        %v5864 = vunpack.c.h.b16 %v5312
        %v5865 = vunpack.c.l.b16 %v5313
        %v5866 = vunpack.c.l.b16 %v5314
        %v5867 = vunpack.c.h.b16 %v5314
        %v5868 = vunpack.c.l.b16 %v5315
        %v5869 = vunpack.c.h.b16 %v5315
        %v5870 = vunpack.c.l.b16 %v5316
        %v5871 = vunpack.c.h.b16 %v5316
        %v5872 = vunpack.c.l.b16 %v5317
        %v5873 = vunpack.c.h.b16 %v5317
        %v5874 = vunpack.c.l.b16 %v5318
        %v5875 = vunpack.c.l.b16 %v5319
        %v5876 = vunpack.c.h.b16 %v5319
        %v5877 = vunpack.c.l.b16 %v5320
        %v5878 = vunpack.c.h.b16 %v5320
        %v5879 = vunpack.c.l.b16 %v5321
        %v5880 = vunpack.c.h.b16 %v5321
        %v5881 = vunpack.c.l.b16 %v5322
        %v5882 = vunpack.c.h.b16 %v5322
        %v5883 = vunpack.c.l.b16 %v5323
        %v5884 = vunpack.c.l.b16 %v5324
        %v5885 = vunpack.c.h.b16 %v5324
        %v5886 = vunpack.c.l.b16 %v5325
        %v5887 = vunpack.c.h.b16 %v5325
        %v5888 = vunpack.c.l.b16 %v5326
        %v5889 = vunpack.c.h.b16 %v5326
        %v5890 = vunpack.c.l.b16 %v5327
        %v5891 = vunpack.c.h.b16 %v5327
        %v5892 = vunpack.c.l.b16 %v5328
        %v5893 = vunpack.c.l.b16 %v5329
        %v5894 = vunpack.c.h.b16 %v5329
        %v5895 = vunpack.c.l.b16 %v5330
        %v5896 = vunpack.c.h.b16 %v5330
        %v5897 = vunpack.c.l.b16 %v5331
        %v5898 = vunpack.c.h.b16 %v5331
        %v5899 = vunpack.c.l.b16 %v5332
        %v5900 = vunpack.c.h.b16 %v5332
        %v5901 = vunpack.c.l.b16 %v5333
        %v5902 = vunpack.c.l.b16 %v5334
        %v5903 = vunpack.c.h.b16 %v5334
        %v5904 = vunpack.c.l.b16 %v5335
        %v5905 = vunpack.c.h.b16 %v5335
        %v5906 = vunpack.c.l.b16 %v5336
        %v5907 = vunpack.c.h.b16 %v5336
        %v5908 = vunpack.c.l.b16 %v5337
        %v5909 = vunpack.c.h.b16 %v5337
        %v5910 = vunpack.c.l.b16 %v5338
        %v5911 = vunpack.c.l.b16 %v5339
        %v5912 = vunpack.c.h.b16 %v5339
        %v5913 = vunpack.c.l.b16 %v5340
        %v5914 = vunpack.c.h.b16 %v5340
        %v5915 = vunpack.c.l.b16 %v5341
        %v5916 = vunpack.c.h.b16 %v5341
        %v5917 = vunpack.c.l.b16 %v5342
        %v5918 = vunpack.c.h.b16 %v5342
        %v5919 = vunpack.c.l.b16 %v5343
        %v5920 = vunpack.c.l.b16 %v5344
        %v5921 = vunpack.c.h.b16 %v5344
        %v5922 = vunpack.c.l.b16 %v5345
        %v5923 = vunpack.c.h.b16 %v5345
        %v5924 = vunpack.c.l.b16 %v5346
        %v5925 = vunpack.c.h.b16 %v5346
        %v5926 = vunpack.c.l.b16 %v5347
        %v5927 = vunpack.c.h.b16 %v5347
        %v5928 = vunpack.c.l.b16 %v5348
        %v5929 = vunpack.c.l.b16 %v5349
        %v5930 = vunpack.c.h.b16 %v5349
        %v5931 = vunpack.c.l.b16 %v5350
        %v5932 = vunpack.c.h.b16 %v5350
        %v5933 = vunpack.c.l.b16 %v5351
        %v5934 = vunpack.c.h.b16 %v5351
        %v5935 = vunpack.c.l.b16 %v5352
        %v5936 = vunpack.c.h.b16 %v5352
        %v5937 = vunpack.c.l.b16 %v5353
        %v5938 = vunpack.c.l.b16 %v5354
        %v5939 = vunpack.c.h.b16 %v5354
        %v5940 = vunpack.c.l.b16 %v5355
        %v5941 = vunpack.c.h.b16 %v5355
        %v5942 = vunpack.c.l.b16 %v5356
        %v5943 = vunpack.c.h.b16 %v5356
        %v5944 = vunpack.c.l.b16 %v5357
        %v5945 = vunpack.c.h.b16 %v5357
        %v5946 = vunpack.c.l.b16 %v5358
        %v5947 = vunpack.c.l.b16 %v5359
        %v5948 = vunpack.c.h.b16 %v5359
        %v5949 = vunpack.c.l.b16 %v5360
        %v5950 = vunpack.c.h.b16 %v5360
        %v5951 = vunpack.c.l.b16 %v5361
        %v5952 = vunpack.c.h.b16 %v5361
        %v5953 = vunpack.c.l.b16 %v5362
        %v5954 = vunpack.c.h.b16 %v5362
        %v5955 = vunpack.c.l.b16 %v5363
        %v5956 = vunpack.c.l.b16 %v5364
        %v5957 = vunpack.c.h.b16 %v5364
        %v5958 = vunpack.c.l.b16 %v5365
        %v5959 = vunpack.c.h.b16 %v5365
        %v5960 = vunpack.c.l.b16 %v5366
        %v5961 = vunpack.c.h.b16 %v5366
        %v5962 = vunpack.c.l.b16 %v5367
        %v5963 = vunpack.c.h.b16 %v5367
        %v5964 = vunpack.c.l.b16 %v5368
        %v5965 = vunpack.c.l.b16 %v5369
        %v5966 = vunpack.c.h.b16 %v5369
        %v5967 = vunpack.c.l.b16 %v5370
        %v5968 = vunpack.c.h.b16 %v5370
        %v5969 = vunpack.c.l.b16 %v5371
        %v5970 = vunpack.c.h.b16 %v5371
        %v5971 = vunpack.c.l.b16 %v5372
        %v5972 = vunpack.c.h.b16 %v5372
        %v5973 = vunpack.c.l.b16 %v5373
        %v5974 = vunpack.c.l.b16 %v5374
        %v5975 = vunpack.c.h.b16 %v5374
        %v5976 = vunpack.c.l.b16 %v5375
        %v5977 = vunpack.c.h.b16 %v5375
        %v5978 = vunpack.c.l.b16 %v5376
        %v5979 = vunpack.c.h.b16 %v5376
        %v5980 = vunpack.c.l.b16 %v5377
        %v5981 = vunpack.c.h.b16 %v5377
        %v5982 = vunpack.c.l.b16 %v5378
        %v5983 = vunpack.c.l.b16 %v5379
        %v5984 = vunpack.c.h.b16 %v5379
        %v5985 = vunpack.c.l.b16 %v5380
        %v5986 = vunpack.c.h.b16 %v5380
        %v5987 = vunpack.c.l.b16 %v5381
        %v5988 = vunpack.c.h.b16 %v5381
        %v5989 = vunpack.c.l.b16 %v5382
        %v5990 = vunpack.c.h.b16 %v5382
        %v5991 = vunpack.c.l.b16 %v5383
        %v5992 = vunpack.c.l.b16 %v5384
        %v5993 = vunpack.c.h.b16 %v5384
        %v5994 = vunpack.c.l.b16 %v5385
        %v5995 = vunpack.c.h.b16 %v5385
        %v5996 = vunpack.c.l.b16 %v5386
        %v5997 = vunpack.c.h.b16 %v5386
        %v5998 = vunpack.c.l.b16 %v5387
        %v5999 = vunpack.c.h.b16 %v5387
        %v6000 = vunpack.c.l.b16 %v5388
        %v6001 = vunpack.c.l.b16 %v5389
        %v6002 = vunpack.c.h.b16 %v5389
        %v6003 = vunpack.c.l.b16 %v5390
        %v6004 = vunpack.c.h.b16 %v5390
        %v6005 = vunpack.c.l.b16 %v5391
        %v6006 = vunpack.c.h.b16 %v5391
        %v6007 = vunpack.c.l.b16 %v5392
        %v6008 = vunpack.c.h.b16 %v5392
        %v6009 = vunpack.c.l.b16 %v5393
        %v6010 = vunpack.c.l.b16 %v5394
        %v6011 = vunpack.c.h.b16 %v5394
        %v6012 = vunpack.c.l.b16 %v5395
        %v6013 = vunpack.c.h.b16 %v5395
        %v6014 = vunpack.c.l.b16 %v5396
        %v6015 = vunpack.c.h.b16 %v5396
        %v6016 = vunpack.c.l.b16 %v5397
        %v6017 = vunpack.c.h.b16 %v5397
        %v6018 = vunpack.c.l.b16 %v5398
        %v6019 = vunpack.c.l.b16 %v5399
        %v6020 = vunpack.c.h.b16 %v5399
        %v6021 = vunpack.c.l.b16 %v5400
        %v6022 = vunpack.c.h.b16 %v5400
        %v6023 = vunpack.c.l.b16 %v5401
        %v6024 = vunpack.c.h.b16 %v5401
        %v6025 = vunpack.c.l.b16 %v5402
        %v6026 = vunpack.c.h.b16 %v5402
        %v6027 = vunpack.c.l.b16 %v5403
        %v6028 = vpack.c.b16 %v5749, %v5740
        %v6029 = vpack.c.b16 %v5750, %v5741
        %v6030 = vpack.c.b16 %v5751, %v5742
        %v6031 = vpack.c.b16 %v5752, %v5743
        %v6032 = vpack.c.b16 %v5753, %v5744
        %v6033 = vpack.c.b16 %v5754, %v5745
        %v6034 = vpack.c.b16 %v5755, %v5746
        %v6035 = vpack.c.b16 %v5756, %v5747
        %v6036 = vpack.c.b16 %v5757, %v5748
        %v6037 = vpack.c.b16 %v5767, %v5758
        %v6038 = vpack.c.b16 %v5768, %v5759
        %v6039 = vpack.c.b16 %v5769, %v5760
        %v6040 = vpack.c.b16 %v5770, %v5761
        %v6041 = vpack.c.b16 %v5771, %v5762
        %v6042 = vpack.c.b16 %v5772, %v5763
        %v6043 = vpack.c.b16 %v5773, %v5764
        %v6044 = vpack.c.b16 %v5774, %v5765
        %v6045 = vpack.c.b16 %v5775, %v5766
        %v6046 = vpack.c.b16 %v5785, %v5776
        %v6047 = vpack.c.b16 %v5786, %v5777
        %v6048 = vpack.c.b16 %v5787, %v5778
        %v6049 = vpack.c.b16 %v5788, %v5779
        %v6050 = vpack.c.b16 %v5789, %v5780
        %v6051 = vpack.c.b16 %v5790, %v5781
        %v6052 = vpack.c.b16 %v5791, %v5782
        %v6053 = vpack.c.b16 %v5792, %v5783
        %v6054 = vpack.c.b16 %v5793, %v5784
        %v6055 = vpack.c.b16 %v5803, %v5794
        %v6056 = vpack.c.b16 %v5804, %v5795
        %v6057 = vpack.c.b16 %v5805, %v5796
        %v6058 = vpack.c.b16 %v5806, %v5797
        %v6059 = vpack.c.b16 %v5807, %v5798
        %v6060 = vpack.c.b16 %v5808, %v5799
        %v6061 = vpack.c.b16 %v5809, %v5800
        %v6062 = vpack.c.b16 %v5810, %v5801
        %v6063 = vpack.c.b16 %v5811, %v5802
        %v6064 = vpack.c.b16 %v5821, %v5812
        %v6065 = vpack.c.b16 %v5822, %v5813
        %v6066 = vpack.c.b16 %v5823, %v5814
        %v6067 = vpack.c.b16 %v5824, %v5815
        %v6068 = vpack.c.b16 %v5825, %v5816
        %v6069 = vpack.c.b16 %v5826, %v5817
        %v6070 = vpack.c.b16 %v5827, %v5818
        %v6071 = vpack.c.b16 %v5828, %v5819
        %v6072 = vpack.c.b16 %v5829, %v5820
        %v6073 = vpack.c.b16 %v5839, %v5830
        %v6074 = vpack.c.b16 %v5840, %v5831
        %v6075 = vpack.c.b16 %v5841, %v5832
        %v6076 = vpack.c.b16 %v5842, %v5833
        %v6077 = vpack.c.b16 %v5843, %v5834
        %v6078 = vpack.c.b16 %v5844, %v5835
        %v6079 = vpack.c.b16 %v5845, %v5836
        %v6080 = vpack.c.b16 %v5846, %v5837
        %v6081 = vpack.c.b16 %v5847, %v5838
        %v6082 = vpack.c.b16 %v5857, %v5848
        %v6083 = vpack.c.b16 %v5858, %v5849
        %v6084 = vpack.c.b16 %v5859, %v5850
        %v6085 = vpack.c.b16 %v5860, %v5851
        %v6086 = vpack.c.b16 %v5861, %v5852
        %v6087 = vpack.c.b16 %v5862, %v5853
        %v6088 = vpack.c.b16 %v5863, %v5854
        %v6089 = vpack.c.b16 %v5864, %v5855
        %v6090 = vpack.c.b16 %v5865, %v5856
        %v6091 = vpack.c.b16 %v5875, %v5866
        %v6092 = vpack.c.b16 %v5876, %v5867
        %v6093 = vpack.c.b16 %v5877, %v5868
        %v6094 = vpack.c.b16 %v5878, %v5869
        %v6095 = vpack.c.b16 %v5879, %v5870
        %v6096 = vpack.c.b16 %v5880, %v5871
        %v6097 = vpack.c.b16 %v5881, %v5872
        %v6098 = vpack.c.b16 %v5882, %v5873
        %v6099 = vpack.c.b16 %v5883, %v5874
        %v6100 = vpack.c.b16 %v5893, %v5884
        %v6101 = vpack.c.b16 %v5894, %v5885
        %v6102 = vpack.c.b16 %v5895, %v5886
        %v6103 = vpack.c.b16 %v5896, %v5887
        %v6104 = vpack.c.b16 %v5897, %v5888
        %v6105 = vpack.c.b16 %v5898, %v5889
        %v6106 = vpack.c.b16 %v5899, %v5890
        %v6107 = vpack.c.b16 %v5900, %v5891
        %v6108 = vpack.c.b16 %v5901, %v5892
        %v6109 = vpack.c.b16 %v5911, %v5902
        %v6110 = vpack.c.b16 %v5912, %v5903
        %v6111 = vpack.c.b16 %v5913, %v5904
        %v6112 = vpack.c.b16 %v5914, %v5905
        %v6113 = vpack.c.b16 %v5915, %v5906
        %v6114 = vpack.c.b16 %v5916, %v5907
        %v6115 = vpack.c.b16 %v5917, %v5908
        %v6116 = vpack.c.b16 %v5918, %v5909
        %v6117 = vpack.c.b16 %v5919, %v5910
        %v6118 = vpack.c.b16 %v5929, %v5920
        %v6119 = vpack.c.b16 %v5930, %v5921
        %v6120 = vpack.c.b16 %v5931, %v5922
        %v6121 = vpack.c.b16 %v5932, %v5923
        %v6122 = vpack.c.b16 %v5933, %v5924
        %v6123 = vpack.c.b16 %v5934, %v5925
        %v6124 = vpack.c.b16 %v5935, %v5926
        %v6125 = vpack.c.b16 %v5936, %v5927
        %v6126 = vpack.c.b16 %v5937, %v5928
        %v6127 = vpack.c.b16 %v5947, %v5938
        %v6128 = vpack.c.b16 %v5948, %v5939
        %v6129 = vpack.c.b16 %v5949, %v5940
        %v6130 = vpack.c.b16 %v5950, %v5941
        %v6131 = vpack.c.b16 %v5951, %v5942
        %v6132 = vpack.c.b16 %v5952, %v5943
        %v6133 = vpack.c.b16 %v5953, %v5944
        %v6134 = vpack.c.b16 %v5954, %v5945
        %v6135 = vpack.c.b16 %v5955, %v5946
        %v6136 = vpack.c.b16 %v5965, %v5956
        %v6137 = vpack.c.b16 %v5966, %v5957
        %v6138 = vpack.c.b16 %v5967, %v5958
        %v6139 = vpack.c.b16 %v5968, %v5959
        %v6140 = vpack.c.b16 %v5969, %v5960
        %v6141 = vpack.c.b16 %v5970, %v5961
        %v6142 = vpack.c.b16 %v5971, %v5962
        %v6143 = vpack.c.b16 %v5972, %v5963
        %v6144 = vpack.c.b16 %v5973, %v5964
        %v6145 = vpack.c.b16 %v5983, %v5974
        %v6146 = vpack.c.b16 %v5984, %v5975
        %v6147 = vpack.c.b16 %v5985, %v5976
        %v6148 = vpack.c.b16 %v5986, %v5977
        %v6149 = vpack.c.b16 %v5987, %v5978
        %v6150 = vpack.c.b16 %v5988, %v5979
        %v6151 = vpack.c.b16 %v5989, %v5980
        %v6152 = vpack.c.b16 %v5990, %v5981
        %v6153 = vpack.c.b16 %v5991, %v5982
        %v6154 = vpack.c.b16 %v6001, %v5992
        %v6155 = vpack.c.b16 %v6002, %v5993
        %v6156 = vpack.c.b16 %v6003, %v5994
        %v6157 = vpack.c.b16 %v6004, %v5995
        %v6158 = vpack.c.b16 %v6005, %v5996
        %v6159 = vpack.c.b16 %v6006, %v5997
        %v6160 = vpack.c.b16 %v6007, %v5998
        %v6161 = vpack.c.b16 %v6008, %v5999
        %v6162 = vpack.c.b16 %v6009, %v6000
        %v6163 = vpack.c.b16 %v6019, %v6010
        %v6164 = vpack.c.b16 %v6020, %v6011
        %v6165 = vpack.c.b16 %v6021, %v6012
        %v6166 = vpack.c.b16 %v6022, %v6013
        %v6167 = vpack.c.b16 %v6023, %v6014
        %v6168 = vpack.c.b16 %v6024, %v6015
        %v6169 = vpack.c.b16 %v6025, %v6016
        %v6170 = vpack.c.b16 %v6026, %v6017
        %v6171 = vpack.c.b16 %v6027, %v6018
        %v6460 = vunpack.c.l.b16 %v5404
        %v6461 = vunpack.c.l.b16 %v5405
        %v6462 = vunpack.c.l.b16 %v5406
        %v6463 = vunpack.c.l.b16 %v5407
        %v6464 = vunpack.c.l.b16 %v5408
        %v6465 = vunpack.c.l.b16 %v5409
        %v6466 = vunpack.c.l.b16 %v5410
        %v6467 = vunpack.c.l.b16 %v5411
        %v6468 = vunpack.c.l.b16 %v5412
        %v6469 = vunpack.c.l.b16 %v5413
        %v6470 = vunpack.c.l.b16 %v5414
        %v6471 = vunpack.c.l.b16 %v5415
        %v6472 = vunpack.c.l.b16 %v5416
        %v6473 = vunpack.c.l.b16 %v5417
        %v6474 = vunpack.c.l.b16 %v5418
        %v6475 = vunpack.c.l.b16 %v5419
        %v6476 = vunpack.c.l.b16 %v5420
        %v6477 = vunpack.c.l.b16 %v5421
        %v6478 = vunpack.c.l.b16 %v5422
        %v6479 = vunpack.c.l.b16 %v5423
        %v6480 = vunpack.c.l.b16 %v5424
        %v6481 = vunpack.c.l.b16 %v5425
        %v6482 = vunpack.c.l.b16 %v5426
        %v6483 = vunpack.c.l.b16 %v5427
        %v6484 = vunpack.c.l.b16 %v5428
        %v6485 = vunpack.c.l.b16 %v5429
        %v6486 = vunpack.c.l.b16 %v5430
        %v6487 = vunpack.c.l.b16 %v5431
        %v6488 = vunpack.c.l.b16 %v5432
        %v6489 = vunpack.c.l.b16 %v5433
        %v6490 = vunpack.c.l.b16 %v5434
        %v6491 = vunpack.c.l.b16 %v5435
        %v6492 = vunpack.c.l.b16 %v5436
        %v6493 = vunpack.c.l.b16 %v5437
        %v6494 = vunpack.c.l.b16 %v5438
        %v6495 = vunpack.c.l.b16 %v5439
        %v6496 = vunpack.c.l.b16 %v5440
        %v6497 = vunpack.c.l.b16 %v5441
        %v6498 = vunpack.c.l.b16 %v5442
        %v6499 = vunpack.c.l.b16 %v5443
        %v6500 = vunpack.c.l.b16 %v5444
        %v6501 = vunpack.c.l.b16 %v5445
        %v6502 = vunpack.c.l.b16 %v5446
        %v6503 = vunpack.c.l.b16 %v5447
        %v6504 = vunpack.c.l.b16 %v5448
        %v6505 = vunpack.c.l.b16 %v5449
        %v6506 = vunpack.c.l.b16 %v5450
        %v6507 = vunpack.c.l.b16 %v5451
        %v6508 = vunpack.c.l.b16 %v5452
        %v6509 = vunpack.c.l.b16 %v5453
        %v6510 = vunpack.c.l.b16 %v5454
        %v6511 = vunpack.c.l.b16 %v5455
        %v6512 = vunpack.c.l.b16 %v5456
        %v6513 = vunpack.c.l.b16 %v5457
        %v6514 = vunpack.c.l.b16 %v5458
        %v6515 = vunpack.c.l.b16 %v5459
        %v6516 = vunpack.c.l.b16 %v5460
        %v6517 = vunpack.c.l.b16 %v5461
        %v6518 = vunpack.c.l.b16 %v5462
        %v6519 = vunpack.c.l.b16 %v5463
        %v6520 = vunpack.c.l.b16 %v5464
        %v6521 = vunpack.c.l.b16 %v5465
        %v6522 = vunpack.c.l.b16 %v5466
        %v6523 = vunpack.c.l.b16 %v5467
        %v6524 = vunpack.c.l.b16 %v5468
        %v6525 = vunpack.c.l.b16 %v5469
        %v6526 = vunpack.c.l.b16 %v5470
        %v6527 = vunpack.c.l.b16 %v5471
        %v6528 = vunpack.c.l.b16 %v5472
        %v6529 = vunpack.c.l.b16 %v5473
        %v6530 = vunpack.c.l.b16 %v5474
        %v6531 = vunpack.c.l.b16 %v5475
        %v6532 = vunpack.c.l.b16 %v5476
        %v6533 = vunpack.c.l.b16 %v5477
        %v6534 = vunpack.c.l.b16 %v5478
        %v6535 = vunpack.c.l.b16 %v5479
        %v6536 = vunpack.c.l.b16 %v5480
        %v6537 = vunpack.c.l.b16 %v5481
        %v6538 = vunpack.c.l.b16 %v5482
        %v6539 = vunpack.c.l.b16 %v5483
        %v6540 = vunpack.c.l.b16 %v5484
        %v6541 = vunpack.c.l.b16 %v5485
        %v6542 = vunpack.c.l.b16 %v5486
        %v6543 = vunpack.c.l.b16 %v5487
        %v6544 = vunpack.c.l.b16 %v5488
        %v6545 = vunpack.c.l.b16 %v5489
        %v6546 = vunpack.c.l.b16 %v5490
        %v6547 = vunpack.c.l.b16 %v5491
        %v6548 = vunpack.c.l.b16 %v5492
        %v6549 = vunpack.c.l.b16 %v5493
        %v6550 = vunpack.c.l.b16 %v5494
        %v6551 = vunpack.c.l.b16 %v5495
        %v6552 = vunpack.c.l.b16 %v5496
        %v6553 = vunpack.c.l.b16 %v5497
        %v6554 = vunpack.c.l.b16 %v5498
        %v6555 = vunpack.c.l.b16 %v5499
        %v6556 = vunpack.c.l.b16 %v5500
        %v6557 = vunpack.c.l.b16 %v5501
        %v6558 = vunpack.c.l.b16 %v5502
        %v6559 = vunpack.c.l.b16 %v5503
        %v6560 = vunpack.c.l.b16 %v5504
        %v6561 = vunpack.c.l.b16 %v5505
        %v6562 = vunpack.c.l.b16 %v5506
        %v6563 = vunpack.c.l.b16 %v5507
        %v6564 = vunpack.c.l.b16 %v5508
        %v6565 = vunpack.c.l.b16 %v5509
        %v6566 = vunpack.c.l.b16 %v5510
        %v6567 = vunpack.c.l.b16 %v5511
        %v6568 = vunpack.c.l.b16 %v5512
        %v6569 = vunpack.c.l.b16 %v5513
        %v6570 = vunpack.c.l.b16 %v5514
        %v6571 = vunpack.c.l.b16 %v5515
        %v6572 = vunpack.c.l.b16 %v5516
        %v6573 = vunpack.c.l.b16 %v5517
        %v6574 = vunpack.c.l.b16 %v5518
        %v6575 = vunpack.c.l.b16 %v5519
        %v6576 = vunpack.c.l.b16 %v5520
        %v6577 = vunpack.c.l.b16 %v5521
        %v6578 = vunpack.c.l.b16 %v5522
        %v6579 = vunpack.c.l.b16 %v5523
        %v6580 = vunpack.c.l.b16 %v5524
        %v6581 = vunpack.c.l.b16 %v5525
        %v6582 = vunpack.c.l.b16 %v5526
        %v6583 = vunpack.c.l.b16 %v5527
        %v6584 = vunpack.c.l.b16 %v5528
        %v6585 = vunpack.c.l.b16 %v5529
        %v6586 = vunpack.c.l.b16 %v5530
        %v6587 = vunpack.c.l.b16 %v5531
        %v6588 = vunpack.c.l.b16 %v5532
        %v6589 = vunpack.c.l.b16 %v5533
        %v6590 = vunpack.c.l.b16 %v5534
        %v6591 = vunpack.c.l.b16 %v5535
        %v6592 = vunpack.c.l.b16 %v5536
        %v6593 = vunpack.c.l.b16 %v5537
        %v6594 = vunpack.c.l.b16 %v5538
        %v6595 = vunpack.c.l.b16 %v5539
        %v6596 = vunpack.c.l.b16 %v5540
        %v6597 = vunpack.c.l.b16 %v5541
        %v6598 = vunpack.c.l.b16 %v5542
        %v6599 = vunpack.c.l.b16 %v5543
        %v6600 = vunpack.c.l.b16 %v5544
        %v6601 = vunpack.c.l.b16 %v5545
        %v6602 = vunpack.c.l.b16 %v5546
        %v6603 = vunpack.c.l.b16 %v5547
        %v6604 = vpack.c.b16 %v6461, %v6460
        %v6605 = vpack.c.b16 %v6463, %v6462
        %v6606 = vpack.c.b16 %v6465, %v6464
        %v6607 = vpack.c.b16 %v6467, %v6466
        %v6608 = vpack.c.b16 %v6469, %v6468
        %v6609 = vpack.c.b16 %v6471, %v6470
        %v6610 = vpack.c.b16 %v6473, %v6472
        %v6611 = vpack.c.b16 %v6475, %v6474
        %v6612 = vpack.c.b16 %v6477, %v6476
        %v6613 = vpack.c.b16 %v6479, %v6478
        %v6614 = vpack.c.b16 %v6481, %v6480
        %v6615 = vpack.c.b16 %v6483, %v6482
        %v6616 = vpack.c.b16 %v6485, %v6484
        %v6617 = vpack.c.b16 %v6487, %v6486
        %v6618 = vpack.c.b16 %v6489, %v6488
        %v6619 = vpack.c.b16 %v6491, %v6490
        %v6620 = vpack.c.b16 %v6493, %v6492
        %v6621 = vpack.c.b16 %v6495, %v6494
        %v6622 = vpack.c.b16 %v6497, %v6496
        %v6623 = vpack.c.b16 %v6499, %v6498
        %v6624 = vpack.c.b16 %v6501, %v6500
        %v6625 = vpack.c.b16 %v6503, %v6502
        %v6626 = vpack.c.b16 %v6505, %v6504
        %v6627 = vpack.c.b16 %v6507, %v6506
        %v6628 = vpack.c.b16 %v6509, %v6508
        %v6629 = vpack.c.b16 %v6511, %v6510
        %v6630 = vpack.c.b16 %v6513, %v6512
        %v6631 = vpack.c.b16 %v6515, %v6514
        %v6632 = vpack.c.b16 %v6517, %v6516
        %v6633 = vpack.c.b16 %v6519, %v6518
        %v6634 = vpack.c.b16 %v6521, %v6520
        %v6635 = vpack.c.b16 %v6523, %v6522
        %v6636 = vpack.c.b16 %v6525, %v6524
        %v6637 = vpack.c.b16 %v6527, %v6526
        %v6638 = vpack.c.b16 %v6529, %v6528
        %v6639 = vpack.c.b16 %v6531, %v6530
        %v6640 = vpack.c.b16 %v6533, %v6532
        %v6641 = vpack.c.b16 %v6535, %v6534
        %v6642 = vpack.c.b16 %v6537, %v6536
        %v6643 = vpack.c.b16 %v6539, %v6538
        %v6644 = vpack.c.b16 %v6541, %v6540
        %v6645 = vpack.c.b16 %v6543, %v6542
        %v6646 = vpack.c.b16 %v6545, %v6544
        %v6647 = vpack.c.b16 %v6547, %v6546
        %v6648 = vpack.c.b16 %v6549, %v6548
        %v6649 = vpack.c.b16 %v6551, %v6550
        %v6650 = vpack.c.b16 %v6553, %v6552
        %v6651 = vpack.c.b16 %v6555, %v6554
        %v6652 = vpack.c.b16 %v6557, %v6556
        %v6653 = vpack.c.b16 %v6559, %v6558
        %v6654 = vpack.c.b16 %v6561, %v6560
        %v6655 = vpack.c.b16 %v6563, %v6562
        %v6656 = vpack.c.b16 %v6565, %v6564
        %v6657 = vpack.c.b16 %v6567, %v6566
        %v6658 = vpack.c.b16 %v6569, %v6568
        %v6659 = vpack.c.b16 %v6571, %v6570
        %v6660 = vpack.c.b16 %v6573, %v6572
        %v6661 = vpack.c.b16 %v6575, %v6574
        %v6662 = vpack.c.b16 %v6577, %v6576
        %v6663 = vpack.c.b16 %v6579, %v6578
        %v6664 = vpack.c.b16 %v6581, %v6580
        %v6665 = vpack.c.b16 %v6583, %v6582
        %v6666 = vpack.c.b16 %v6585, %v6584
        %v6667 = vpack.c.b16 %v6587, %v6586
        %v6668 = vpack.c.b16 %v6589, %v6588
        %v6669 = vpack.c.b16 %v6591, %v6590
        %v6670 = vpack.c.b16 %v6593, %v6592
        %v6671 = vpack.c.b16 %v6595, %v6594
        %v6672 = vpack.c.b16 %v6597, %v6596
        %v6673 = vpack.c.b16 %v6599, %v6598
        %v6674 = vpack.c.b16 %v6601, %v6600
        %v6675 = vpack.c.b16 %v6603, %v6602
        %6748 = vmatpush.bf16.msra.mxu0 %v6611
        %6749 = vmatpush.bf16.msra.mxu0 %v6610
        %6750 = vmatpush.bf16.msra.mxu0 %v6609
        %6751 = vmatpush.bf16.msra.mxu0 %v6608
        %6752 = vmatpush.bf16.msra.mxu0 %v6607
        %6753 = vmatpush.bf16.msra.mxu0 %v6606
        %6754 = vmatpush.bf16.msra.mxu0 %v6605
        %6755 = vmatpush.bf16.msra.mxu0 %v6604
        %6756 = vmatmul.bf16.gmra.mxu0 %v6028
        %v6757 = vpop.f32.mrf.mxu0
        %v6758 = vadd.f32 %v5548, %v6757
        %v6759 = vpop.f32.mrf.mxu0
        %v6760 = vadd.f32 %v5549, %v6759
        %6761 = vmatmul.bf16.gmra.mxu0 %v6037
        %v6762 = vpop.f32.mrf.mxu0
        %v6763 = vadd.f32 %v5550, %v6762
        %v6764 = vpop.f32.mrf.mxu0
        %v6765 = vadd.f32 %v5551, %v6764
        %6766 = vmatmul.bf16.gmra.mxu0 %v6046
        %v6767 = vpop.f32.mrf.mxu0
        %v6768 = vadd.f32 %v5552, %v6767
        %v6769 = vpop.f32.mrf.mxu0
        %v6770 = vadd.f32 %v5553, %v6769
        %6771 = vmatmul.bf16.gmra.mxu0 %v6055
        %v6772 = vpop.f32.mrf.mxu0
        %v6773 = vadd.f32 %v5554, %v6772
        %v6774 = vpop.f32.mrf.mxu0
        %v6775 = vadd.f32 %v5555, %v6774
        %6776 = vmatmul.bf16.gmra.mxu0 %v6064
        %v6777 = vpop.f32.mrf.mxu0
        %v6778 = vadd.f32 %v5556, %v6777
        %v6779 = vpop.f32.mrf.mxu0
        %v6780 = vadd.f32 %v5557, %v6779
        %6781 = vmatmul.bf16.gmra.mxu0 %v6073
        %v6782 = vpop.f32.mrf.mxu0
        %v6783 = vadd.f32 %v5558, %v6782
        %v6784 = vpop.f32.mrf.mxu0
        %v6785 = vadd.f32 %v5559, %v6784
        %6786 = vmatmul.bf16.gmra.mxu0 %v6082
        %v6787 = vpop.f32.mrf.mxu0
        %v6788 = vadd.f32 %v5560, %v6787
        %v6789 = vpop.f32.mrf.mxu0
        %v6790 = vadd.f32 %v5561, %v6789
        %6791 = vmatmul.bf16.gmra.mxu0 %v6091
        %v6792 = vpop.f32.mrf.mxu0
        %v6793 = vadd.f32 %v5562, %v6792
        %v6794 = vpop.f32.mrf.mxu0
        %v6795 = vadd.f32 %v5563, %v6794
        %6796 = vmatmul.bf16.gmra.mxu0 %v6100
        %v6797 = vpop.f32.mrf.mxu0
        %v6798 = vadd.f32 %v5564, %v6797
        %v6799 = vpop.f32.mrf.mxu0
        %v6800 = vadd.f32 %v5565, %v6799
        %6801 = vmatmul.bf16.gmra.mxu0 %v6109
        %v6802 = vpop.f32.mrf.mxu0
        %v6803 = vadd.f32 %v5566, %v6802
        %v6804 = vpop.f32.mrf.mxu0
        %v6805 = vadd.f32 %v5567, %v6804
        %6806 = vmatmul.bf16.gmra.mxu0 %v6118
        %v6807 = vpop.f32.mrf.mxu0
        %v6808 = vadd.f32 %v5568, %v6807
        %v6809 = vpop.f32.mrf.mxu0
        %v6810 = vadd.f32 %v5569, %v6809
        %6811 = vmatmul.bf16.gmra.mxu0 %v6127
        %v6812 = vpop.f32.mrf.mxu0
        %v6813 = vadd.f32 %v5570, %v6812
        %v6814 = vpop.f32.mrf.mxu0
        %v6815 = vadd.f32 %v5571, %v6814
        %6816 = vmatmul.bf16.gmra.mxu0 %v6136
        %v6817 = vpop.f32.mrf.mxu0
        %v6818 = vadd.f32 %v5572, %v6817
        %v6819 = vpop.f32.mrf.mxu0
        %v6820 = vadd.f32 %v5573, %v6819
        %6821 = vmatmul.bf16.gmra.mxu0 %v6145
        %v6822 = vpop.f32.mrf.mxu0
        %v6823 = vadd.f32 %v5574, %v6822
        %v6824 = vpop.f32.mrf.mxu0
        %v6825 = vadd.f32 %v5575, %v6824
        %6826 = vmatmul.bf16.gmra.mxu0 %v6154
        %v6827 = vpop.f32.mrf.mxu0
        %v6828 = vadd.f32 %v5576, %v6827
        %v6829 = vpop.f32.mrf.mxu0
        %v6830 = vadd.f32 %v5577, %v6829
        %6831 = vmatmul.bf16.gmra.mxu0 %v6163
        %v6832 = vpop.f32.mrf.mxu0
        %v6833 = vadd.f32 %v5578, %v6832
        %v6834 = vpop.f32.mrf.mxu0
        %v6835 = vadd.f32 %v5579, %v6834
        %6836 = vdwg.mxu0
        %6837 = vmatpush.bf16.msra.mxu0 %v6619
        %6838 = vmatpush.bf16.msra.mxu0 %v6618
        %6839 = vmatpush.bf16.msra.mxu0 %v6617
        %6840 = vmatpush.bf16.msra.mxu0 %v6616
        %6841 = vmatpush.bf16.msra.mxu0 %v6615
        %6842 = vmatpush.bf16.msra.mxu0 %v6614
        %6843 = vmatpush.bf16.msra.mxu0 %v6613
        %6844 = vmatpush.bf16.msra.mxu0 %v6612
        %6845 = vmatmul.bf16.gmra.mxu0 %v6029
        %v6846 = vpop.f32.mrf.mxu0
        %v6847 = vadd.f32 %v6758, %v6846
        %v6848 = vpop.f32.mrf.mxu0
        %v6849 = vadd.f32 %v6760, %v6848
        %6850 = vmatmul.bf16.gmra.mxu0 %v6038
        %v6851 = vpop.f32.mrf.mxu0
        %v6852 = vadd.f32 %v6763, %v6851
        %v6853 = vpop.f32.mrf.mxu0
        %v6854 = vadd.f32 %v6765, %v6853
        %6855 = vmatmul.bf16.gmra.mxu0 %v6047
        %v6856 = vpop.f32.mrf.mxu0
        %v6857 = vadd.f32 %v6768, %v6856
        %v6858 = vpop.f32.mrf.mxu0
        %v6859 = vadd.f32 %v6770, %v6858
        %6860 = vmatmul.bf16.gmra.mxu0 %v6056
        %v6861 = vpop.f32.mrf.mxu0
        %v6862 = vadd.f32 %v6773, %v6861
        %v6863 = vpop.f32.mrf.mxu0
        %v6864 = vadd.f32 %v6775, %v6863
        %6865 = vmatmul.bf16.gmra.mxu0 %v6065
        %v6866 = vpop.f32.mrf.mxu0
        %v6867 = vadd.f32 %v6778, %v6866
        %v6868 = vpop.f32.mrf.mxu0
        %v6869 = vadd.f32 %v6780, %v6868
        %6870 = vmatmul.bf16.gmra.mxu0 %v6074
        %v6871 = vpop.f32.mrf.mxu0
        %v6872 = vadd.f32 %v6783, %v6871
        %v6873 = vpop.f32.mrf.mxu0
        %v6874 = vadd.f32 %v6785, %v6873
        %6875 = vmatmul.bf16.gmra.mxu0 %v6083
        %v6876 = vpop.f32.mrf.mxu0
        %v6877 = vadd.f32 %v6788, %v6876
        %v6878 = vpop.f32.mrf.mxu0
        %v6879 = vadd.f32 %v6790, %v6878
        %6880 = vmatmul.bf16.gmra.mxu0 %v6092
        %v6881 = vpop.f32.mrf.mxu0
        %v6882 = vadd.f32 %v6793, %v6881
        %v6883 = vpop.f32.mrf.mxu0
        %v6884 = vadd.f32 %v6795, %v6883
        %6885 = vmatmul.bf16.gmra.mxu0 %v6101
        %v6886 = vpop.f32.mrf.mxu0
        %v6887 = vadd.f32 %v6798, %v6886
        %v6888 = vpop.f32.mrf.mxu0
        %v6889 = vadd.f32 %v6800, %v6888
        %6890 = vmatmul.bf16.gmra.mxu0 %v6110
        %v6891 = vpop.f32.mrf.mxu0
        %v6892 = vadd.f32 %v6803, %v6891
        %v6893 = vpop.f32.mrf.mxu0
        %v6894 = vadd.f32 %v6805, %v6893
        %6895 = vmatmul.bf16.gmra.mxu0 %v6119
        %v6896 = vpop.f32.mrf.mxu0
        %v6897 = vadd.f32 %v6808, %v6896
        %v6898 = vpop.f32.mrf.mxu0
        %v6899 = vadd.f32 %v6810, %v6898
        %6900 = vmatmul.bf16.gmra.mxu0 %v6128
        %v6901 = vpop.f32.mrf.mxu0
        %v6902 = vadd.f32 %v6813, %v6901
        %v6903 = vpop.f32.mrf.mxu0
        %v6904 = vadd.f32 %v6815, %v6903
        %6905 = vmatmul.bf16.gmra.mxu0 %v6137
        %v6906 = vpop.f32.mrf.mxu0
        %v6907 = vadd.f32 %v6818, %v6906
        %v6908 = vpop.f32.mrf.mxu0
        %v6909 = vadd.f32 %v6820, %v6908
        %6910 = vmatmul.bf16.gmra.mxu0 %v6146
        %v6911 = vpop.f32.mrf.mxu0
        %v6912 = vadd.f32 %v6823, %v6911
        %v6913 = vpop.f32.mrf.mxu0
        %v6914 = vadd.f32 %v6825, %v6913
        %6915 = vmatmul.bf16.gmra.mxu0 %v6155
        %v6916 = vpop.f32.mrf.mxu0
        %v6917 = vadd.f32 %v6828, %v6916
        %v6918 = vpop.f32.mrf.mxu0
        %v6919 = vadd.f32 %v6830, %v6918
        %6920 = vmatmul.bf16.gmra.mxu0 %v6164
        %v6921 = vpop.f32.mrf.mxu0
        %v6922 = vadd.f32 %v6833, %v6921
        %v6923 = vpop.f32.mrf.mxu0
        %v6924 = vadd.f32 %v6835, %v6923
        %6925 = vdwg.mxu0
        %6926 = vmatpush.bf16.msra.mxu0 %v6627
        %6927 = vmatpush.bf16.msra.mxu0 %v6626
        %6928 = vmatpush.bf16.msra.mxu0 %v6625
        %6929 = vmatpush.bf16.msra.mxu0 %v6624
        %6930 = vmatpush.bf16.msra.mxu0 %v6623
        %6931 = vmatpush.bf16.msra.mxu0 %v6622
        %6932 = vmatpush.bf16.msra.mxu0 %v6621
        %6933 = vmatpush.bf16.msra.mxu0 %v6620
        %6934 = vmatmul.bf16.gmra.mxu0 %v6030
        %v6935 = vpop.f32.mrf.mxu0
        %v6936 = vadd.f32 %v6847, %v6935
        %v6937 = vpop.f32.mrf.mxu0
        %v6938 = vadd.f32 %v6849, %v6937
        %6939 = vmatmul.bf16.gmra.mxu0 %v6039
        %v6940 = vpop.f32.mrf.mxu0
        %v6941 = vadd.f32 %v6852, %v6940
        %v6942 = vpop.f32.mrf.mxu0
        %v6943 = vadd.f32 %v6854, %v6942
        %6944 = vmatmul.bf16.gmra.mxu0 %v6048
        %v6945 = vpop.f32.mrf.mxu0
        %v6946 = vadd.f32 %v6857, %v6945
        %v6947 = vpop.f32.mrf.mxu0
        %v6948 = vadd.f32 %v6859, %v6947
        %6949 = vmatmul.bf16.gmra.mxu0 %v6057
        %v6950 = vpop.f32.mrf.mxu0
        %v6951 = vadd.f32 %v6862, %v6950
        %v6952 = vpop.f32.mrf.mxu0
        %v6953 = vadd.f32 %v6864, %v6952
        %6954 = vmatmul.bf16.gmra.mxu0 %v6066
        %v6955 = vpop.f32.mrf.mxu0
        %v6956 = vadd.f32 %v6867, %v6955
        %v6957 = vpop.f32.mrf.mxu0
        %v6958 = vadd.f32 %v6869, %v6957
        %6959 = vmatmul.bf16.gmra.mxu0 %v6075
        %v6960 = vpop.f32.mrf.mxu0
        %v6961 = vadd.f32 %v6872, %v6960
        %v6962 = vpop.f32.mrf.mxu0
        %v6963 = vadd.f32 %v6874, %v6962
        %6964 = vmatmul.bf16.gmra.mxu0 %v6084
        %v6965 = vpop.f32.mrf.mxu0
        %v6966 = vadd.f32 %v6877, %v6965
        %v6967 = vpop.f32.mrf.mxu0
        %v6968 = vadd.f32 %v6879, %v6967
        %6969 = vmatmul.bf16.gmra.mxu0 %v6093
        %v6970 = vpop.f32.mrf.mxu0
        %v6971 = vadd.f32 %v6882, %v6970
        %v6972 = vpop.f32.mrf.mxu0
        %v6973 = vadd.f32 %v6884, %v6972
        %6974 = vmatmul.bf16.gmra.mxu0 %v6102
        %v6975 = vpop.f32.mrf.mxu0
        %v6976 = vadd.f32 %v6887, %v6975
        %v6977 = vpop.f32.mrf.mxu0
        %v6978 = vadd.f32 %v6889, %v6977
        %6979 = vmatmul.bf16.gmra.mxu0 %v6111
        %v6980 = vpop.f32.mrf.mxu0
        %v6981 = vadd.f32 %v6892, %v6980
        %v6982 = vpop.f32.mrf.mxu0
        %v6983 = vadd.f32 %v6894, %v6982
        %6984 = vmatmul.bf16.gmra.mxu0 %v6120
        %v6985 = vpop.f32.mrf.mxu0
        %v6986 = vadd.f32 %v6897, %v6985
        %v6987 = vpop.f32.mrf.mxu0
        %v6988 = vadd.f32 %v6899, %v6987
        %6989 = vmatmul.bf16.gmra.mxu0 %v6129
        %v6990 = vpop.f32.mrf.mxu0
        %v6991 = vadd.f32 %v6902, %v6990
        %v6992 = vpop.f32.mrf.mxu0
        %v6993 = vadd.f32 %v6904, %v6992
        %6994 = vmatmul.bf16.gmra.mxu0 %v6138
        %v6995 = vpop.f32.mrf.mxu0
        %v6996 = vadd.f32 %v6907, %v6995
        %v6997 = vpop.f32.mrf.mxu0
        %v6998 = vadd.f32 %v6909, %v6997
        %6999 = vmatmul.bf16.gmra.mxu0 %v6147
        %v7000 = vpop.f32.mrf.mxu0
        %v7001 = vadd.f32 %v6912, %v7000
        %v7002 = vpop.f32.mrf.mxu0
        %v7003 = vadd.f32 %v6914, %v7002
        %7004 = vmatmul.bf16.gmra.mxu0 %v6156
        %v7005 = vpop.f32.mrf.mxu0
        %v7006 = vadd.f32 %v6917, %v7005
        %v7007 = vpop.f32.mrf.mxu0
        %v7008 = vadd.f32 %v6919, %v7007
        %7009 = vmatmul.bf16.gmra.mxu0 %v6165
        %v7010 = vpop.f32.mrf.mxu0
        %v7011 = vadd.f32 %v6922, %v7010
        %v7012 = vpop.f32.mrf.mxu0
        %v7013 = vadd.f32 %v6924, %v7012
        %7014 = vdwg.mxu0
        %7015 = vmatpush.bf16.msra.mxu0 %v6635
        %7016 = vmatpush.bf16.msra.mxu0 %v6634
        %7017 = vmatpush.bf16.msra.mxu0 %v6633
        %7018 = vmatpush.bf16.msra.mxu0 %v6632
        %7019 = vmatpush.bf16.msra.mxu0 %v6631
        %7020 = vmatpush.bf16.msra.mxu0 %v6630
        %7021 = vmatpush.bf16.msra.mxu0 %v6629
        %7022 = vmatpush.bf16.msra.mxu0 %v6628
        %7023 = vmatmul.bf16.gmra.mxu0 %v6031
        %v7024 = vpop.f32.mrf.mxu0
        %v7025 = vadd.f32 %v6936, %v7024
        %v7026 = vpop.f32.mrf.mxu0
        %v7027 = vadd.f32 %v6938, %v7026
        %7028 = vmatmul.bf16.gmra.mxu0 %v6040
        %v7029 = vpop.f32.mrf.mxu0
        %v7030 = vadd.f32 %v6941, %v7029
        %v7031 = vpop.f32.mrf.mxu0
        %v7032 = vadd.f32 %v6943, %v7031
        %7033 = vmatmul.bf16.gmra.mxu0 %v6049
        %v7034 = vpop.f32.mrf.mxu0
        %v7035 = vadd.f32 %v6946, %v7034
        %v7036 = vpop.f32.mrf.mxu0
        %v7037 = vadd.f32 %v6948, %v7036
        %7038 = vmatmul.bf16.gmra.mxu0 %v6058
        %v7039 = vpop.f32.mrf.mxu0
        %v7040 = vadd.f32 %v6951, %v7039
        %v7041 = vpop.f32.mrf.mxu0
        %v7042 = vadd.f32 %v6953, %v7041
        %7043 = vmatmul.bf16.gmra.mxu0 %v6067
        %v7044 = vpop.f32.mrf.mxu0
        %v7045 = vadd.f32 %v6956, %v7044
        %v7046 = vpop.f32.mrf.mxu0
        %v7047 = vadd.f32 %v6958, %v7046
        %7048 = vmatmul.bf16.gmra.mxu0 %v6076
        %v7049 = vpop.f32.mrf.mxu0
        %v7050 = vadd.f32 %v6961, %v7049
        %v7051 = vpop.f32.mrf.mxu0
        %v7052 = vadd.f32 %v6963, %v7051
        %7053 = vmatmul.bf16.gmra.mxu0 %v6085
        %v7054 = vpop.f32.mrf.mxu0
        %v7055 = vadd.f32 %v6966, %v7054
        %v7056 = vpop.f32.mrf.mxu0
        %v7057 = vadd.f32 %v6968, %v7056
        %7058 = vmatmul.bf16.gmra.mxu0 %v6094
        %v7059 = vpop.f32.mrf.mxu0
        %v7060 = vadd.f32 %v6971, %v7059
        %v7061 = vpop.f32.mrf.mxu0
        %v7062 = vadd.f32 %v6973, %v7061
        %7063 = vmatmul.bf16.gmra.mxu0 %v6103
        %v7064 = vpop.f32.mrf.mxu0
        %v7065 = vadd.f32 %v6976, %v7064
        %v7066 = vpop.f32.mrf.mxu0
        %v7067 = vadd.f32 %v6978, %v7066
        %7068 = vmatmul.bf16.gmra.mxu0 %v6112
        %v7069 = vpop.f32.mrf.mxu0
        %v7070 = vadd.f32 %v6981, %v7069
        %v7071 = vpop.f32.mrf.mxu0
        %v7072 = vadd.f32 %v6983, %v7071
        %7073 = vmatmul.bf16.gmra.mxu0 %v6121
        %v7074 = vpop.f32.mrf.mxu0
        %v7075 = vadd.f32 %v6986, %v7074
        %v7076 = vpop.f32.mrf.mxu0
        %v7077 = vadd.f32 %v6988, %v7076
        %7078 = vmatmul.bf16.gmra.mxu0 %v6130
        %v7079 = vpop.f32.mrf.mxu0
        %v7080 = vadd.f32 %v6991, %v7079
        %v7081 = vpop.f32.mrf.mxu0
        %v7082 = vadd.f32 %v6993, %v7081
        %7083 = vmatmul.bf16.gmra.mxu0 %v6139
        %v7084 = vpop.f32.mrf.mxu0
        %v7085 = vadd.f32 %v6996, %v7084
        %v7086 = vpop.f32.mrf.mxu0
        %v7087 = vadd.f32 %v6998, %v7086
        %7088 = vmatmul.bf16.gmra.mxu0 %v6148
        %v7089 = vpop.f32.mrf.mxu0
        %v7090 = vadd.f32 %v7001, %v7089
        %v7091 = vpop.f32.mrf.mxu0
        %v7092 = vadd.f32 %v7003, %v7091
        %7093 = vmatmul.bf16.gmra.mxu0 %v6157
        %v7094 = vpop.f32.mrf.mxu0
        %v7095 = vadd.f32 %v7006, %v7094
        %v7096 = vpop.f32.mrf.mxu0
        %v7097 = vadd.f32 %v7008, %v7096
        %7098 = vmatmul.bf16.gmra.mxu0 %v6166
        %v7099 = vpop.f32.mrf.mxu0
        %v7100 = vadd.f32 %v7011, %v7099
        %v7101 = vpop.f32.mrf.mxu0
        %v7102 = vadd.f32 %v7013, %v7101
        %7103 = vdwg.mxu0
        %7104 = vmatpush.bf16.msra.mxu0 %v6643
        %7105 = vmatpush.bf16.msra.mxu0 %v6642
        %7106 = vmatpush.bf16.msra.mxu0 %v6641
        %7107 = vmatpush.bf16.msra.mxu0 %v6640
        %7108 = vmatpush.bf16.msra.mxu0 %v6639
        %7109 = vmatpush.bf16.msra.mxu0 %v6638
        %7110 = vmatpush.bf16.msra.mxu0 %v6637
        %7111 = vmatpush.bf16.msra.mxu0 %v6636
        %7112 = vmatmul.bf16.gmra.mxu0 %v6032
        %v7113 = vpop.f32.mrf.mxu0
        %v7114 = vadd.f32 %v7025, %v7113
        %v7115 = vpop.f32.mrf.mxu0
        %v7116 = vadd.f32 %v7027, %v7115
        %7117 = vmatmul.bf16.gmra.mxu0 %v6041
        %v7118 = vpop.f32.mrf.mxu0
        %v7119 = vadd.f32 %v7030, %v7118
        %v7120 = vpop.f32.mrf.mxu0
        %v7121 = vadd.f32 %v7032, %v7120
        %7122 = vmatmul.bf16.gmra.mxu0 %v6050
        %v7123 = vpop.f32.mrf.mxu0
        %v7124 = vadd.f32 %v7035, %v7123
        %v7125 = vpop.f32.mrf.mxu0
        %v7126 = vadd.f32 %v7037, %v7125
        %7127 = vmatmul.bf16.gmra.mxu0 %v6059
        %v7128 = vpop.f32.mrf.mxu0
        %v7129 = vadd.f32 %v7040, %v7128
        %v7130 = vpop.f32.mrf.mxu0
        %v7131 = vadd.f32 %v7042, %v7130
        %7132 = vmatmul.bf16.gmra.mxu0 %v6068
        %v7133 = vpop.f32.mrf.mxu0
        %v7134 = vadd.f32 %v7045, %v7133
        %v7135 = vpop.f32.mrf.mxu0
        %v7136 = vadd.f32 %v7047, %v7135
        %7137 = vmatmul.bf16.gmra.mxu0 %v6077
        %v7138 = vpop.f32.mrf.mxu0
        %v7139 = vadd.f32 %v7050, %v7138
        %v7140 = vpop.f32.mrf.mxu0
        %v7141 = vadd.f32 %v7052, %v7140
        %7142 = vmatmul.bf16.gmra.mxu0 %v6086
        %v7143 = vpop.f32.mrf.mxu0
        %v7144 = vadd.f32 %v7055, %v7143
        %v7145 = vpop.f32.mrf.mxu0
        %v7146 = vadd.f32 %v7057, %v7145
        %7147 = vmatmul.bf16.gmra.mxu0 %v6095
        %v7148 = vpop.f32.mrf.mxu0
        %v7149 = vadd.f32 %v7060, %v7148
        %v7150 = vpop.f32.mrf.mxu0
        %v7151 = vadd.f32 %v7062, %v7150
        %7152 = vmatmul.bf16.gmra.mxu0 %v6104
        %v7153 = vpop.f32.mrf.mxu0
        %v7154 = vadd.f32 %v7065, %v7153
        %v7155 = vpop.f32.mrf.mxu0
        %v7156 = vadd.f32 %v7067, %v7155
        %7157 = vmatmul.bf16.gmra.mxu0 %v6113
        %v7158 = vpop.f32.mrf.mxu0
        %v7159 = vadd.f32 %v7070, %v7158
        %v7160 = vpop.f32.mrf.mxu0
        %v7161 = vadd.f32 %v7072, %v7160
        %7162 = vmatmul.bf16.gmra.mxu0 %v6122
        %v7163 = vpop.f32.mrf.mxu0
        %v7164 = vadd.f32 %v7075, %v7163
        %v7165 = vpop.f32.mrf.mxu0
        %v7166 = vadd.f32 %v7077, %v7165
        %7167 = vmatmul.bf16.gmra.mxu0 %v6131
        %v7168 = vpop.f32.mrf.mxu0
        %v7169 = vadd.f32 %v7080, %v7168
        %v7170 = vpop.f32.mrf.mxu0
        %v7171 = vadd.f32 %v7082, %v7170
        %7172 = vmatmul.bf16.gmra.mxu0 %v6140
        %v7173 = vpop.f32.mrf.mxu0
        %v7174 = vadd.f32 %v7085, %v7173
        %v7175 = vpop.f32.mrf.mxu0
        %v7176 = vadd.f32 %v7087, %v7175
        %7177 = vmatmul.bf16.gmra.mxu0 %v6149
        %v7178 = vpop.f32.mrf.mxu0
        %v7179 = vadd.f32 %v7090, %v7178
        %v7180 = vpop.f32.mrf.mxu0
        %v7181 = vadd.f32 %v7092, %v7180
        %7182 = vmatmul.bf16.gmra.mxu0 %v6158
        %v7183 = vpop.f32.mrf.mxu0
        %v7184 = vadd.f32 %v7095, %v7183
        %v7185 = vpop.f32.mrf.mxu0
        %v7186 = vadd.f32 %v7097, %v7185
        %7187 = vmatmul.bf16.gmra.mxu0 %v6167
        %v7188 = vpop.f32.mrf.mxu0
        %v7189 = vadd.f32 %v7100, %v7188
        %v7190 = vpop.f32.mrf.mxu0
        %v7191 = vadd.f32 %v7102, %v7190
        %7192 = vdwg.mxu0
        %7193 = vmatpush.bf16.msra.mxu0 %v6651
        %7194 = vmatpush.bf16.msra.mxu0 %v6650
        %7195 = vmatpush.bf16.msra.mxu0 %v6649
        %7196 = vmatpush.bf16.msra.mxu0 %v6648
        %7197 = vmatpush.bf16.msra.mxu0 %v6647
        %7198 = vmatpush.bf16.msra.mxu0 %v6646
        %7199 = vmatpush.bf16.msra.mxu0 %v6645
        %7200 = vmatpush.bf16.msra.mxu0 %v6644
        %7201 = vmatmul.bf16.gmra.mxu0 %v6033
        %v7202 = vpop.f32.mrf.mxu0
        %v7203 = vadd.f32 %v7114, %v7202
        %v7204 = vpop.f32.mrf.mxu0
        %v7205 = vadd.f32 %v7116, %v7204
        %7206 = vmatmul.bf16.gmra.mxu0 %v6042
        %v7207 = vpop.f32.mrf.mxu0
        %v7208 = vadd.f32 %v7119, %v7207
        %v7209 = vpop.f32.mrf.mxu0
        %v7210 = vadd.f32 %v7121, %v7209
        %7211 = vmatmul.bf16.gmra.mxu0 %v6051
        %v7212 = vpop.f32.mrf.mxu0
        %v7213 = vadd.f32 %v7124, %v7212
        %v7214 = vpop.f32.mrf.mxu0
        %v7215 = vadd.f32 %v7126, %v7214
        %7216 = vmatmul.bf16.gmra.mxu0 %v6060
        %v7217 = vpop.f32.mrf.mxu0
        %v7218 = vadd.f32 %v7129, %v7217
        %v7219 = vpop.f32.mrf.mxu0
        %v7220 = vadd.f32 %v7131, %v7219
        %7221 = vmatmul.bf16.gmra.mxu0 %v6069
        %v7222 = vpop.f32.mrf.mxu0
        %v7223 = vadd.f32 %v7134, %v7222
        %v7224 = vpop.f32.mrf.mxu0
        %v7225 = vadd.f32 %v7136, %v7224
        %7226 = vmatmul.bf16.gmra.mxu0 %v6078
        %v7227 = vpop.f32.mrf.mxu0
        %v7228 = vadd.f32 %v7139, %v7227
        %v7229 = vpop.f32.mrf.mxu0
        %v7230 = vadd.f32 %v7141, %v7229
        %7231 = vmatmul.bf16.gmra.mxu0 %v6087
        %v7232 = vpop.f32.mrf.mxu0
        %v7233 = vadd.f32 %v7144, %v7232
        %v7234 = vpop.f32.mrf.mxu0
        %v7235 = vadd.f32 %v7146, %v7234
        %7236 = vmatmul.bf16.gmra.mxu0 %v6096
        %v7237 = vpop.f32.mrf.mxu0
        %v7238 = vadd.f32 %v7149, %v7237
        %v7239 = vpop.f32.mrf.mxu0
        %v7240 = vadd.f32 %v7151, %v7239
        %7241 = vmatmul.bf16.gmra.mxu0 %v6105
        %v7242 = vpop.f32.mrf.mxu0
        %v7243 = vadd.f32 %v7154, %v7242
        %v7244 = vpop.f32.mrf.mxu0
        %v7245 = vadd.f32 %v7156, %v7244
        %7246 = vmatmul.bf16.gmra.mxu0 %v6114
        %v7247 = vpop.f32.mrf.mxu0
        %v7248 = vadd.f32 %v7159, %v7247
        %v7249 = vpop.f32.mrf.mxu0
        %v7250 = vadd.f32 %v7161, %v7249
        %7251 = vmatmul.bf16.gmra.mxu0 %v6123
        %v7252 = vpop.f32.mrf.mxu0
        %v7253 = vadd.f32 %v7164, %v7252
        %v7254 = vpop.f32.mrf.mxu0
        %v7255 = vadd.f32 %v7166, %v7254
        %7256 = vmatmul.bf16.gmra.mxu0 %v6132
        %v7257 = vpop.f32.mrf.mxu0
        %v7258 = vadd.f32 %v7169, %v7257
        %v7259 = vpop.f32.mrf.mxu0
        %v7260 = vadd.f32 %v7171, %v7259
        %7261 = vmatmul.bf16.gmra.mxu0 %v6141
        %v7262 = vpop.f32.mrf.mxu0
        %v7263 = vadd.f32 %v7174, %v7262
        %v7264 = vpop.f32.mrf.mxu0
        %v7265 = vadd.f32 %v7176, %v7264
        %7266 = vmatmul.bf16.gmra.mxu0 %v6150
        %v7267 = vpop.f32.mrf.mxu0
        %v7268 = vadd.f32 %v7179, %v7267
        %v7269 = vpop.f32.mrf.mxu0
        %v7270 = vadd.f32 %v7181, %v7269
        %7271 = vmatmul.bf16.gmra.mxu0 %v6159
        %v7272 = vpop.f32.mrf.mxu0
        %v7273 = vadd.f32 %v7184, %v7272
        %v7274 = vpop.f32.mrf.mxu0
        %v7275 = vadd.f32 %v7186, %v7274
        %7276 = vmatmul.bf16.gmra.mxu0 %v6168
        %v7277 = vpop.f32.mrf.mxu0
        %v7278 = vadd.f32 %v7189, %v7277
        %v7279 = vpop.f32.mrf.mxu0
        %v7280 = vadd.f32 %v7191, %v7279
        %7281 = vdwg.mxu0
        %7282 = vmatpush.bf16.msra.mxu0 %v6659
        %7283 = vmatpush.bf16.msra.mxu0 %v6658
        %7284 = vmatpush.bf16.msra.mxu0 %v6657
        %7285 = vmatpush.bf16.msra.mxu0 %v6656
        %7286 = vmatpush.bf16.msra.mxu0 %v6655
        %7287 = vmatpush.bf16.msra.mxu0 %v6654
        %7288 = vmatpush.bf16.msra.mxu0 %v6653
        %7289 = vmatpush.bf16.msra.mxu0 %v6652
        %7290 = vmatmul.bf16.gmra.mxu0 %v6034
        %v7291 = vpop.f32.mrf.mxu0
        %v7292 = vadd.f32 %v7203, %v7291
        %v7293 = vpop.f32.mrf.mxu0
        %v7294 = vadd.f32 %v7205, %v7293
        %7295 = vmatmul.bf16.gmra.mxu0 %v6043
        %v7296 = vpop.f32.mrf.mxu0
        %v7297 = vadd.f32 %v7208, %v7296
        %v7298 = vpop.f32.mrf.mxu0
        %v7299 = vadd.f32 %v7210, %v7298
        %7300 = vmatmul.bf16.gmra.mxu0 %v6052
        %v7301 = vpop.f32.mrf.mxu0
        %v7302 = vadd.f32 %v7213, %v7301
        %v7303 = vpop.f32.mrf.mxu0
        %v7304 = vadd.f32 %v7215, %v7303
        %7305 = vmatmul.bf16.gmra.mxu0 %v6061
        %v7306 = vpop.f32.mrf.mxu0
        %v7307 = vadd.f32 %v7218, %v7306
        %v7308 = vpop.f32.mrf.mxu0
        %v7309 = vadd.f32 %v7220, %v7308
        %7310 = vmatmul.bf16.gmra.mxu0 %v6070
        %v7311 = vpop.f32.mrf.mxu0
        %v7312 = vadd.f32 %v7223, %v7311
        %v7313 = vpop.f32.mrf.mxu0
        %v7314 = vadd.f32 %v7225, %v7313
        %7315 = vmatmul.bf16.gmra.mxu0 %v6079
        %v7316 = vpop.f32.mrf.mxu0
        %v7317 = vadd.f32 %v7228, %v7316
        %v7318 = vpop.f32.mrf.mxu0
        %v7319 = vadd.f32 %v7230, %v7318
        %7320 = vmatmul.bf16.gmra.mxu0 %v6088
        %v7321 = vpop.f32.mrf.mxu0
        %v7322 = vadd.f32 %v7233, %v7321
        %v7323 = vpop.f32.mrf.mxu0
        %v7324 = vadd.f32 %v7235, %v7323
        %7325 = vmatmul.bf16.gmra.mxu0 %v6097
        %v7326 = vpop.f32.mrf.mxu0
        %v7327 = vadd.f32 %v7238, %v7326
        %v7328 = vpop.f32.mrf.mxu0
        %v7329 = vadd.f32 %v7240, %v7328
        %7330 = vmatmul.bf16.gmra.mxu0 %v6106
        %v7331 = vpop.f32.mrf.mxu0
        %v7332 = vadd.f32 %v7243, %v7331
        %v7333 = vpop.f32.mrf.mxu0
        %v7334 = vadd.f32 %v7245, %v7333
        %7335 = vmatmul.bf16.gmra.mxu0 %v6115
        %v7336 = vpop.f32.mrf.mxu0
        %v7337 = vadd.f32 %v7248, %v7336
        %v7338 = vpop.f32.mrf.mxu0
        %v7339 = vadd.f32 %v7250, %v7338
        %7340 = vmatmul.bf16.gmra.mxu0 %v6124
        %v7341 = vpop.f32.mrf.mxu0
        %v7342 = vadd.f32 %v7253, %v7341
        %v7343 = vpop.f32.mrf.mxu0
        %v7344 = vadd.f32 %v7255, %v7343
        %7345 = vmatmul.bf16.gmra.mxu0 %v6133
        %v7346 = vpop.f32.mrf.mxu0
        %v7347 = vadd.f32 %v7258, %v7346
        %v7348 = vpop.f32.mrf.mxu0
        %v7349 = vadd.f32 %v7260, %v7348
        %7350 = vmatmul.bf16.gmra.mxu0 %v6142
        %v7351 = vpop.f32.mrf.mxu0
        %v7352 = vadd.f32 %v7263, %v7351
        %v7353 = vpop.f32.mrf.mxu0
        %v7354 = vadd.f32 %v7265, %v7353
        %7355 = vmatmul.bf16.gmra.mxu0 %v6151
        %v7356 = vpop.f32.mrf.mxu0
        %v7357 = vadd.f32 %v7268, %v7356
        %v7358 = vpop.f32.mrf.mxu0
        %v7359 = vadd.f32 %v7270, %v7358
        %7360 = vmatmul.bf16.gmra.mxu0 %v6160
        %v7361 = vpop.f32.mrf.mxu0
        %v7362 = vadd.f32 %v7273, %v7361
        %v7363 = vpop.f32.mrf.mxu0
        %v7364 = vadd.f32 %v7275, %v7363
        %7365 = vmatmul.bf16.gmra.mxu0 %v6169
        %v7366 = vpop.f32.mrf.mxu0
        %v7367 = vadd.f32 %v7278, %v7366
        %v7368 = vpop.f32.mrf.mxu0
        %v7369 = vadd.f32 %v7280, %v7368
        %7370 = vdwg.mxu0
        %7371 = vmatpush.bf16.msra.mxu0 %v6667
        %7372 = vmatpush.bf16.msra.mxu0 %v6666
        %7373 = vmatpush.bf16.msra.mxu0 %v6665
        %7374 = vmatpush.bf16.msra.mxu0 %v6664
        %7375 = vmatpush.bf16.msra.mxu0 %v6663
        %7376 = vmatpush.bf16.msra.mxu0 %v6662
        %7377 = vmatpush.bf16.msra.mxu0 %v6661
        %7378 = vmatpush.bf16.msra.mxu0 %v6660
        %7379 = vmatmul.bf16.gmra.mxu0 %v6035
        %v7380 = vpop.f32.mrf.mxu0
        %v7381 = vadd.f32 %v7292, %v7380
        %v7382 = vpop.f32.mrf.mxu0
        %v7383 = vadd.f32 %v7294, %v7382
        %7384 = vmatmul.bf16.gmra.mxu0 %v6044
        %v7385 = vpop.f32.mrf.mxu0
        %v7386 = vadd.f32 %v7297, %v7385
        %v7387 = vpop.f32.mrf.mxu0
        %v7388 = vadd.f32 %v7299, %v7387
        %7389 = vmatmul.bf16.gmra.mxu0 %v6053
        %v7390 = vpop.f32.mrf.mxu0
        %v7391 = vadd.f32 %v7302, %v7390
        %v7392 = vpop.f32.mrf.mxu0
        %v7393 = vadd.f32 %v7304, %v7392
        %7394 = vmatmul.bf16.gmra.mxu0 %v6062
        %v7395 = vpop.f32.mrf.mxu0
        %v7396 = vadd.f32 %v7307, %v7395
        %v7397 = vpop.f32.mrf.mxu0
        %v7398 = vadd.f32 %v7309, %v7397
        %7399 = vmatmul.bf16.gmra.mxu0 %v6071
        %v7400 = vpop.f32.mrf.mxu0
        %v7401 = vadd.f32 %v7312, %v7400
        %v7402 = vpop.f32.mrf.mxu0
        %v7403 = vadd.f32 %v7314, %v7402
        %7404 = vmatmul.bf16.gmra.mxu0 %v6080
        %v7405 = vpop.f32.mrf.mxu0
        %v7406 = vadd.f32 %v7317, %v7405
        %v7407 = vpop.f32.mrf.mxu0
        %v7408 = vadd.f32 %v7319, %v7407
        %7409 = vmatmul.bf16.gmra.mxu0 %v6089
        %v7410 = vpop.f32.mrf.mxu0
        %v7411 = vadd.f32 %v7322, %v7410
        %v7412 = vpop.f32.mrf.mxu0
        %v7413 = vadd.f32 %v7324, %v7412
        %7414 = vmatmul.bf16.gmra.mxu0 %v6098
        %v7415 = vpop.f32.mrf.mxu0
        %v7416 = vadd.f32 %v7327, %v7415
        %v7417 = vpop.f32.mrf.mxu0
        %v7418 = vadd.f32 %v7329, %v7417
        %7419 = vmatmul.bf16.gmra.mxu0 %v6107
        %v7420 = vpop.f32.mrf.mxu0
        %v7421 = vadd.f32 %v7332, %v7420
        %v7422 = vpop.f32.mrf.mxu0
        %v7423 = vadd.f32 %v7334, %v7422
        %7424 = vmatmul.bf16.gmra.mxu0 %v6116
        %v7425 = vpop.f32.mrf.mxu0
        %v7426 = vadd.f32 %v7337, %v7425
        %v7427 = vpop.f32.mrf.mxu0
        %v7428 = vadd.f32 %v7339, %v7427
        %7429 = vmatmul.bf16.gmra.mxu0 %v6125
        %v7430 = vpop.f32.mrf.mxu0
        %v7431 = vadd.f32 %v7342, %v7430
        %v7432 = vpop.f32.mrf.mxu0
        %v7433 = vadd.f32 %v7344, %v7432
        %7434 = vmatmul.bf16.gmra.mxu0 %v6134
        %v7435 = vpop.f32.mrf.mxu0
        %v7436 = vadd.f32 %v7347, %v7435
        %v7437 = vpop.f32.mrf.mxu0
        %v7438 = vadd.f32 %v7349, %v7437
        %7439 = vmatmul.bf16.gmra.mxu0 %v6143
        %v7440 = vpop.f32.mrf.mxu0
        %v7441 = vadd.f32 %v7352, %v7440
        %v7442 = vpop.f32.mrf.mxu0
        %v7443 = vadd.f32 %v7354, %v7442
        %7444 = vmatmul.bf16.gmra.mxu0 %v6152
        %v7445 = vpop.f32.mrf.mxu0
        %v7446 = vadd.f32 %v7357, %v7445
        %v7447 = vpop.f32.mrf.mxu0
        %v7448 = vadd.f32 %v7359, %v7447
        %7449 = vmatmul.bf16.gmra.mxu0 %v6161
        %v7450 = vpop.f32.mrf.mxu0
        %v7451 = vadd.f32 %v7362, %v7450
        %v7452 = vpop.f32.mrf.mxu0
        %v7453 = vadd.f32 %v7364, %v7452
        %7454 = vmatmul.bf16.gmra.mxu0 %v6170
        %v7455 = vpop.f32.mrf.mxu0
        %v7456 = vadd.f32 %v7367, %v7455
        %v7457 = vpop.f32.mrf.mxu0
        %v7458 = vadd.f32 %v7369, %v7457
        %7459 = vdwg.mxu0
        %7460 = vmatpush.bf16.msra.mxu0 %v6675
        %7461 = vmatpush.bf16.msra.mxu0 %v6674
        %7462 = vmatpush.bf16.msra.mxu0 %v6673
        %7463 = vmatpush.bf16.msra.mxu0 %v6672
        %7464 = vmatpush.bf16.msra.mxu0 %v6671
        %7465 = vmatpush.bf16.msra.mxu0 %v6670
        %7466 = vmatpush.bf16.msra.mxu0 %v6669
        %7467 = vmatpush.bf16.msra.mxu0 %v6668
        %7468 = vmatmul.bf16.gmra.mxu0 %v6036
        %v7469 = vpop.f32.mrf.mxu0
        %v7470 = vadd.f32 %v7381, %v7469
        %v7471 = vpop.f32.mrf.mxu0
        %v7472 = vadd.f32 %v7383, %v7471
        %7473 = vmatmul.bf16.gmra.mxu0 %v6045
        %v7474 = vpop.f32.mrf.mxu0
        %v7475 = vadd.f32 %v7386, %v7474
        %v7476 = vpop.f32.mrf.mxu0
        %v7477 = vadd.f32 %v7388, %v7476
        %7478 = vmatmul.bf16.gmra.mxu0 %v6054
        %v7479 = vpop.f32.mrf.mxu0
        %v7480 = vadd.f32 %v7391, %v7479
        %v7481 = vpop.f32.mrf.mxu0
        %v7482 = vadd.f32 %v7393, %v7481
        %7483 = vmatmul.bf16.gmra.mxu0 %v6063
        %v7484 = vpop.f32.mrf.mxu0
        %v7485 = vadd.f32 %v7396, %v7484
        %v7486 = vpop.f32.mrf.mxu0
        %v7487 = vadd.f32 %v7398, %v7486
        %7488 = vmatmul.bf16.gmra.mxu0 %v6072
        %v7489 = vpop.f32.mrf.mxu0
        %v7490 = vadd.f32 %v7401, %v7489
        %v7491 = vpop.f32.mrf.mxu0
        %v7492 = vadd.f32 %v7403, %v7491
        %7493 = vmatmul.bf16.gmra.mxu0 %v6081
        %v7494 = vpop.f32.mrf.mxu0
        %v7495 = vadd.f32 %v7406, %v7494
        %v7496 = vpop.f32.mrf.mxu0
        %v7497 = vadd.f32 %v7408, %v7496
        %7498 = vmatmul.bf16.gmra.mxu0 %v6090
        %v7499 = vpop.f32.mrf.mxu0
        %v7500 = vadd.f32 %v7411, %v7499
        %v7501 = vpop.f32.mrf.mxu0
        %v7502 = vadd.f32 %v7413, %v7501
        %7503 = vmatmul.bf16.gmra.mxu0 %v6099
        %v7504 = vpop.f32.mrf.mxu0
        %v7505 = vadd.f32 %v7416, %v7504
        %v7506 = vpop.f32.mrf.mxu0
        %v7507 = vadd.f32 %v7418, %v7506
        %7508 = vmatmul.bf16.gmra.mxu0 %v6108
        %v7509 = vpop.f32.mrf.mxu0
        %v7510 = vadd.f32 %v7421, %v7509
        %v7511 = vpop.f32.mrf.mxu0
        %v7512 = vadd.f32 %v7423, %v7511
        %7513 = vmatmul.bf16.gmra.mxu0 %v6117
        %v7514 = vpop.f32.mrf.mxu0
        %v7515 = vadd.f32 %v7426, %v7514
        %v7516 = vpop.f32.mrf.mxu0
        %v7517 = vadd.f32 %v7428, %v7516
        %7518 = vmatmul.bf16.gmra.mxu0 %v6126
        %v7519 = vpop.f32.mrf.mxu0
        %v7520 = vadd.f32 %v7431, %v7519
        %v7521 = vpop.f32.mrf.mxu0
        %v7522 = vadd.f32 %v7433, %v7521
        %7523 = vmatmul.bf16.gmra.mxu0 %v6135
        %v7524 = vpop.f32.mrf.mxu0
        %v7525 = vadd.f32 %v7436, %v7524
        %v7526 = vpop.f32.mrf.mxu0
        %v7527 = vadd.f32 %v7438, %v7526
        %7528 = vmatmul.bf16.gmra.mxu0 %v6144
        %v7529 = vpop.f32.mrf.mxu0
        %v7530 = vadd.f32 %v7441, %v7529
        %v7531 = vpop.f32.mrf.mxu0
        %v7532 = vadd.f32 %v7443, %v7531
        %7533 = vmatmul.bf16.gmra.mxu0 %v6153
        %v7534 = vpop.f32.mrf.mxu0
        %v7535 = vadd.f32 %v7446, %v7534
        %v7536 = vpop.f32.mrf.mxu0
        %v7537 = vadd.f32 %v7448, %v7536
        %7538 = vmatmul.bf16.gmra.mxu0 %v6162
        %v7539 = vpop.f32.mrf.mxu0
        %v7540 = vadd.f32 %v7451, %v7539
        %v7541 = vpop.f32.mrf.mxu0
        %v7542 = vadd.f32 %v7453, %v7541
        %7543 = vmatmul.bf16.gmra.mxu0 %v6171
        %v7544 = vpop.f32.mrf.mxu0
        %v7545 = vadd.f32 %v7456, %v7544
        %v7546 = vpop.f32.mrf.mxu0
        %v7547 = vadd.f32 %v7458, %v7546
        %7548 = vdwg.mxu0
        %v7549 = vmax.f32 %v7470, 0.0
        %v7550 = vmax.f32 %v7472, 0.0
        %v7551 = vmax.f32 %v7475, 0.0
        %v7552 = vmax.f32 %v7477, 0.0
        %v7553 = vmax.f32 %v7480, 0.0
        %v7554 = vmax.f32 %v7482, 0.0
        %v7555 = vmax.f32 %v7485, 0.0
        %v7556 = vmax.f32 %v7487, 0.0
        %v7557 = vmax.f32 %v7490, 0.0
        %v7558 = vmax.f32 %v7492, 0.0
        %v7559 = vmax.f32 %v7495, 0.0
        %v7560 = vmax.f32 %v7497, 0.0
        %v7561 = vmax.f32 %v7500, 0.0
        %v7562 = vmax.f32 %v7502, 0.0
        %v7563 = vmax.f32 %v7505, 0.0
        %v7564 = vmax.f32 %v7507, 0.0
        %v7565 = vmax.f32 %v7510, 0.0
        %v7566 = vmax.f32 %v7512, 0.0
        %v7567 = vmax.f32 %v7515, 0.0
        %v7568 = vmax.f32 %v7517, 0.0
        %v7569 = vmax.f32 %v7520, 0.0
        %v7570 = vmax.f32 %v7522, 0.0
        %v7571 = vmax.f32 %v7525, 0.0
        %v7572 = vmax.f32 %v7527, 0.0
        %v7573 = vmax.f32 %v7530, 0.0
        %v7574 = vmax.f32 %v7532, 0.0
        %v7575 = vmax.f32 %v7535, 0.0
        %v7576 = vmax.f32 %v7537, 0.0
        %v7577 = vmax.f32 %v7540, 0.0
        %v7578 = vmax.f32 %v7542, 0.0
        %v7579 = vmax.f32 %v7545, 0.0
        %v7580 = vmax.f32 %v7547, 0.0
        %v7581 = vpack.c.bf16 %v7549, %v7549
        %v7582 = vpack.c.bf16 %v7550, %v7550
        %v7583 = vpack.c.bf16 %v7551, %v7551
        %v7584 = vpack.c.bf16 %v7552, %v7552
        %v7585 = vpack.c.bf16 %v7553, %v7553
        %v7586 = vpack.c.bf16 %v7554, %v7554
        %v7587 = vpack.c.bf16 %v7555, %v7555
        %v7588 = vpack.c.bf16 %v7556, %v7556
        %v7589 = vpack.c.bf16 %v7557, %v7557
        %v7590 = vpack.c.bf16 %v7558, %v7558
        %v7591 = vpack.c.bf16 %v7559, %v7559
        %v7592 = vpack.c.bf16 %v7560, %v7560
        %v7593 = vpack.c.bf16 %v7561, %v7561
        %v7594 = vpack.c.bf16 %v7562, %v7562
        %v7595 = vpack.c.bf16 %v7563, %v7563
        %v7596 = vpack.c.bf16 %v7564, %v7564
        %v7597 = vpack.c.bf16 %v7565, %v7565
        %v7598 = vpack.c.bf16 %v7566, %v7566
        %v7599 = vpack.c.bf16 %v7567, %v7567
        %v7600 = vpack.c.bf16 %v7568, %v7568
        %v7601 = vpack.c.bf16 %v7569, %v7569
        %v7602 = vpack.c.bf16 %v7570, %v7570
        %v7603 = vpack.c.bf16 %v7571, %v7571
        %v7604 = vpack.c.bf16 %v7572, %v7572
        %v7605 = vpack.c.bf16 %v7573, %v7573
        %v7606 = vpack.c.bf16 %v7574, %v7574
        %v7607 = vpack.c.bf16 %v7575, %v7575
        %v7608 = vpack.c.bf16 %v7576, %v7576
        %v7609 = vpack.c.bf16 %v7577, %v7577
        %v7610 = vpack.c.bf16 %v7578, %v7578
        %v7611 = vpack.c.bf16 %v7579, %v7579
        %v7612 = vpack.c.bf16 %v7580, %v7580
        %v7645 = vunpack.c.l.b16 %v7581
        %v7646 = vunpack.c.l.b16 %v7582
        %v7647 = vunpack.c.l.b16 %v7583
        %v7648 = vunpack.c.l.b16 %v7584
        %v7649 = vunpack.c.l.b16 %v7585
        %v7650 = vunpack.c.l.b16 %v7586
        %v7651 = vunpack.c.l.b16 %v7587
        %v7652 = vunpack.c.l.b16 %v7588
        %v7653 = vunpack.c.l.b16 %v7589
        %v7654 = vunpack.c.l.b16 %v7590
        %v7655 = vunpack.c.l.b16 %v7591
        %v7656 = vunpack.c.l.b16 %v7592
        %v7657 = vunpack.c.l.b16 %v7593
        %v7658 = vunpack.c.l.b16 %v7594
        %v7659 = vunpack.c.l.b16 %v7595
        %v7660 = vunpack.c.l.b16 %v7596
        %v7661 = vunpack.c.l.b16 %v7597
        %v7662 = vunpack.c.l.b16 %v7598
        %v7663 = vunpack.c.l.b16 %v7599
        %v7664 = vunpack.c.l.b16 %v7600
        %v7665 = vunpack.c.l.b16 %v7601
        %v7666 = vunpack.c.l.b16 %v7602
        %v7667 = vunpack.c.l.b16 %v7603
        %v7668 = vunpack.c.l.b16 %v7604
        %v7669 = vunpack.c.l.b16 %v7605
        %v7670 = vunpack.c.l.b16 %v7606
        %v7671 = vunpack.c.l.b16 %v7607
        %v7672 = vunpack.c.l.b16 %v7608
        %v7673 = vunpack.c.l.b16 %v7609
        %v7674 = vunpack.c.l.b16 %v7610
        %v7675 = vunpack.c.l.b16 %v7611
        %v7676 = vunpack.c.l.b16 %v7612
        %v7677 = vpack.c.b16 %v7646, %v7645
        %v7678 = vpack.c.b16 %v7648, %v7647
        %v7679 = vpack.c.b16 %v7650, %v7649
        %v7680 = vpack.c.b16 %v7652, %v7651
        %v7681 = vpack.c.b16 %v7654, %v7653
        %v7682 = vpack.c.b16 %v7656, %v7655
        %v7683 = vpack.c.b16 %v7658, %v7657
        %v7684 = vpack.c.b16 %v7660, %v7659
        %v7685 = vpack.c.b16 %v7662, %v7661
        %v7686 = vpack.c.b16 %v7664, %v7663
        %v7687 = vpack.c.b16 %v7666, %v7665
        %v7688 = vpack.c.b16 %v7668, %v7667
        %v7689 = vpack.c.b16 %v7670, %v7669
        %v7690 = vpack.c.b16 %v7672, %v7671
        %v7691 = vpack.c.b16 %v7674, %v7673
        %v7692 = vpack.c.b16 %v7676, %v7675
        %v7694 = vshrl.u32 %v7677, 16
        %v7696 = vrot.slane %v7694, 7
        %v7697 = vshll.u32 %v7677, 16
        %v7699 = vor.u32 %v7696, %v7697
        %v7701 = vshrl.u32 %v7678, 16
        %v7703 = vrot.slane %v7701, 7
        %v7704 = vshll.u32 %v7678, 16
        %v7706 = vor.u32 %v7703, %v7704
        %v7708 = vshrl.u32 %v7679, 16
        %v7710 = vrot.slane %v7708, 7
        %v7711 = vshll.u32 %v7679, 16
        %v7713 = vor.u32 %v7710, %v7711
        %v7715 = vshrl.u32 %v7680, 16
        %v7717 = vrot.slane %v7715, 7
        %v7718 = vshll.u32 %v7680, 16
        %v7720 = vor.u32 %v7717, %v7718
        %v7722 = vshrl.u32 %v7681, 16
        %v7724 = vrot.slane %v7722, 7
        %v7725 = vshll.u32 %v7681, 16
        %v7727 = vor.u32 %v7724, %v7725
        %v7729 = vshrl.u32 %v7682, 16
        %v7731 = vrot.slane %v7729, 7
        %v7732 = vshll.u32 %v7682, 16
        %v7734 = vor.u32 %v7731, %v7732
        %v7736 = vshrl.u32 %v7683, 16
        %v7738 = vrot.slane %v7736, 7
        %v7739 = vshll.u32 %v7683, 16
        %v7741 = vor.u32 %v7738, %v7739
        %v7743 = vshrl.u32 %v7684, 16
        %v7745 = vrot.slane %v7743, 7
        %v7746 = vshll.u32 %v7684, 16
        %v7748 = vor.u32 %v7745, %v7746
        %v7750 = vshrl.u32 %v7685, 16
        %v7752 = vrot.slane %v7750, 7
        %v7753 = vshll.u32 %v7685, 16
        %v7755 = vor.u32 %v7752, %v7753
        %v7757 = vshrl.u32 %v7686, 16
        %v7759 = vrot.slane %v7757, 7
        %v7760 = vshll.u32 %v7686, 16
        %v7762 = vor.u32 %v7759, %v7760
        %v7764 = vshrl.u32 %v7687, 16
        %v7766 = vrot.slane %v7764, 7
        %v7767 = vshll.u32 %v7687, 16
        %v7769 = vor.u32 %v7766, %v7767
        %v7771 = vshrl.u32 %v7688, 16
        %v7773 = vrot.slane %v7771, 7
        %v7774 = vshll.u32 %v7688, 16
        %v7776 = vor.u32 %v7773, %v7774
        %v7778 = vshrl.u32 %v7689, 16
        %v7780 = vrot.slane %v7778, 7
        %v7781 = vshll.u32 %v7689, 16
        %v7783 = vor.u32 %v7780, %v7781
        %v7785 = vshrl.u32 %v7690, 16
        %v7787 = vrot.slane %v7785, 7
        %v7788 = vshll.u32 %v7690, 16
        %v7790 = vor.u32 %v7787, %v7788
        %v7792 = vshrl.u32 %v7691, 16
        %v7794 = vrot.slane %v7792, 7
        %v7795 = vshll.u32 %v7691, 16
        %v7797 = vor.u32 %v7794, %v7795
        %v7799 = vshrl.u32 %v7692, 16
        %v7801 = vrot.slane %v7799, 7
        %v7802 = vshll.u32 %v7692, 16
        %v7804 = vor.u32 %v7801, %v7802
        %v7837 = vsel %vm885, 0, %v7699
        %v7838 = vsel %vm885, 0, %v7706
        %v7839 = vsel %vm885, 0, %v7713
        %v7840 = vsel %vm885, 0, %v7720
        %v7841 = vsel %vm885, 0, %v7727
        %v7842 = vsel %vm885, 0, %v7734
        %v7843 = vsel %vm885, 0, %v7741
        %v7844 = vsel %vm885, 0, %v7748
        %v7845 = vsel %vm885, 0, %v7755
        %v7846 = vsel %vm885, 0, %v7762
        %v7847 = vsel %vm885, 0, %v7769
        %v7848 = vsel %vm885, 0, %v7776
        %v7849 = vsel %vm885, 0, %v7783
        %v7850 = vsel %vm885, 0, %v7790
        %v7851 = vsel %vm885, 0, %v7797
        %v7852 = vsel %vm885, 0, %v7804
        %v7853 = vsel %vm885, %v7696, 0
        %v7854 = vsel %vm885, %v7703, 0
        %v7855 = vsel %vm885, %v7710, 0
        %v7856 = vsel %vm885, %v7717, 0
        %v7857 = vsel %vm885, %v7724, 0
        %v7858 = vsel %vm885, %v7731, 0
        %v7859 = vsel %vm885, %v7738, 0
        %v7860 = vsel %vm885, %v7745, 0
        %v7861 = vsel %vm885, %v7752, 0
        %v7862 = vsel %vm885, %v7759, 0
        %v7863 = vsel %vm885, %v7766, 0
        %v7864 = vsel %vm885, %v7773, 0
        %v7865 = vsel %vm885, %v7780, 0
        %v7866 = vsel %vm885, %v7787, 0
        %v7867 = vsel %vm885, %v7794, 0
        %v7868 = vsel %vm885, %v7801, 0
        %v7884 = vunpack.c.l.b16 %v7837
        %v7885 = vunpack.c.h.b16 %v7837
        %v7886 = vunpack.c.l.b16 %v7838
        %v7887 = vunpack.c.h.b16 %v7838
        %v7888 = vunpack.c.l.b16 %v7839
        %v7889 = vunpack.c.h.b16 %v7839
        %v7890 = vunpack.c.l.b16 %v7840
        %v7891 = vunpack.c.h.b16 %v7840
        %v7892 = vunpack.c.l.b16 %v7841
        %v7893 = vunpack.c.h.b16 %v7841
        %v7894 = vunpack.c.l.b16 %v7842
        %v7895 = vunpack.c.h.b16 %v7842
        %v7896 = vunpack.c.l.b16 %v7843
        %v7897 = vunpack.c.h.b16 %v7843
        %v7898 = vunpack.c.l.b16 %v7844
        %v7899 = vunpack.c.h.b16 %v7844
        %v7900 = vunpack.c.l.b16 %v7845
        %v7901 = vunpack.c.h.b16 %v7845
        %v7902 = vunpack.c.l.b16 %v7846
        %v7903 = vunpack.c.h.b16 %v7846
        %v7904 = vunpack.c.l.b16 %v7847
        %v7905 = vunpack.c.h.b16 %v7847
        %v7906 = vunpack.c.l.b16 %v7848
        %v7907 = vunpack.c.h.b16 %v7848
        %v7908 = vunpack.c.l.b16 %v7849
        %v7909 = vunpack.c.h.b16 %v7849
        %v7910 = vunpack.c.l.b16 %v7850
        %v7911 = vunpack.c.h.b16 %v7850
        %v7912 = vunpack.c.l.b16 %v7851
        %v7913 = vunpack.c.h.b16 %v7851
        %v7914 = vpack.c.b16 %v7884, %v7884
        %v7915 = vpack.c.b16 %v7885, %v7885
        %v7916 = vpack.c.b16 %v7886, %v7886
        %v7917 = vpack.c.b16 %v7887, %v7887
        %v7918 = vpack.c.b16 %v7888, %v7888
        %v7919 = vpack.c.b16 %v7889, %v7889
        %v7920 = vpack.c.b16 %v7890, %v7890
        %v7921 = vpack.c.b16 %v7891, %v7891
        %v7922 = vpack.c.b16 %v7892, %v7892
        %v7923 = vpack.c.b16 %v7893, %v7893
        %v7924 = vpack.c.b16 %v7894, %v7894
        %v7925 = vpack.c.b16 %v7895, %v7895
        %v7926 = vpack.c.b16 %v7896, %v7896
        %v7927 = vpack.c.b16 %v7897, %v7897
        %v7928 = vpack.c.b16 %v7898, %v7898
        %v7929 = vpack.c.b16 %v7899, %v7899
        %v7930 = vpack.c.b16 %v7900, %v7900
        %v7931 = vpack.c.b16 %v7901, %v7901
        %v7932 = vpack.c.b16 %v7902, %v7902
        %v7933 = vpack.c.b16 %v7903, %v7903
        %v7934 = vpack.c.b16 %v7904, %v7904
        %v7935 = vpack.c.b16 %v7905, %v7905
        %v7936 = vpack.c.b16 %v7906, %v7906
        %v7937 = vpack.c.b16 %v7907, %v7907
        %v7938 = vpack.c.b16 %v7908, %v7908
        %v7939 = vpack.c.b16 %v7909, %v7909
        %v7940 = vpack.c.b16 %v7910, %v7910
        %v7941 = vpack.c.b16 %v7911, %v7911
        %v7942 = vpack.c.b16 %v7912, %v7912
        %v7943 = vpack.c.b16 %v7913, %v7913
        %7974 = vst [vmem:[#allocation2] sm:$0xf] %v966
        %7975 = vst [vmem:[#allocation2 + $0x24] sm:$0xf] %v967
        %7976 = vst [vmem:[#allocation2 + $0x48] sm:$0xf] %v7914
        %7977 = vst [vmem:[#allocation2 + $0x6c] sm:$0xf] %v7915
        %7978 = vst [vmem:[#allocation2 + $0x90] sm:$0xf] %v7916
        %7979 = vst [vmem:[#allocation2 + $0xb4] sm:$0xf] %v7917
        %7980 = vst [vmem:[#allocation2 + $0xd8] sm:$0xf] %v7918
        %7981 = vst [vmem:[#allocation2 + $0xfc] sm:$0xf] %v7919
        %7982 = vst [vmem:[#allocation2 + $0x120] sm:$0xf] %v7920
        %7983 = vst [vmem:[#allocation2 + $0x144] sm:$0xf] %v7921
        %7984 = vst [vmem:[#allocation2 + $0x168] sm:$0xf] %v7922
        %7985 = vst [vmem:[#allocation2 + $0x18c] sm:$0xf] %v7923
        %7986 = vst [vmem:[#allocation2 + $0x1b0] sm:$0xf] %v7924
        %7987 = vst [vmem:[#allocation2 + $0x1d4] sm:$0xf] %v7925
        %7988 = vst [vmem:[#allocation2 + $0x1f8] sm:$0xf] %v7926
        %7989 = vst [vmem:[#allocation2 + $0x21c] sm:$0xf] %v7927
        %7990 = vst [vmem:[#allocation2 + $0x240] sm:$0xf] %v7928
        %7991 = vst [vmem:[#allocation2 + $0x264] sm:$0xf] %v7929
        %7992 = vst [vmem:[#allocation2 + $0x288] sm:$0xf] %v7930
        %7993 = vst [vmem:[#allocation2 + $0x2ac] sm:$0xf] %v7931
        %7994 = vst [vmem:[#allocation2 + $0x2d0] sm:$0xf] %v7932
        %7995 = vst [vmem:[#allocation2 + $0x2f4] sm:$0xf] %v7933
        %7996 = vst [vmem:[#allocation2 + $0x318] sm:$0xf] %v7934
        %7997 = vst [vmem:[#allocation2 + $0x33c] sm:$0xf] %v7935
        %7998 = vst [vmem:[#allocation2 + $0x360] sm:$0xf] %v7936
        %7999 = vst [vmem:[#allocation2 + $0x384] sm:$0xf] %v7937
        %8000 = vst [vmem:[#allocation2 + $0x3a8] sm:$0xf] %v7938
        %8001 = vst [vmem:[#allocation2 + $0x3cc] sm:$0xf] %v7939
        %8002 = vst [vmem:[#allocation2 + $0x3f0] sm:$0xf] %v7940
        %8003 = vst [vmem:[#allocation2 + $0x414] sm:$0xf] %v7941
        %8004 = vst [vmem:[#allocation2 + $0x438] sm:$0xf] %v7942
        %8005 = vst [vmem:[#allocation2 + $0x45c] sm:$0xf] %v7943
        %v8007 = vshrl.u32 %v7837, 16
        %v8009 = vshll.u32 %v7837, 16
        %v8011 = vrot.slane %v8009, 1
        %v8012 = vor.u32 %v8007, %v8011
        %v8014 = vshll.u32 %v7853, 16
        %v8016 = vrot.slane %v8014, 1
        %v8017 = vsel %vm1062, %v8012, %v8016
        %v8019 = vshrl.u32 %v7838, 16
        %v8021 = vshll.u32 %v7838, 16
        %v8023 = vrot.slane %v8021, 1
        %v8024 = vor.u32 %v8019, %v8023
        %v8026 = vshll.u32 %v7854, 16
        %v8028 = vrot.slane %v8026, 1
        %v8029 = vsel %vm1062, %v8024, %v8028
        %v8031 = vshrl.u32 %v7839, 16
        %v8033 = vshll.u32 %v7839, 16
        %v8035 = vrot.slane %v8033, 1
        %v8036 = vor.u32 %v8031, %v8035
        %v8038 = vshll.u32 %v7855, 16
        %v8040 = vrot.slane %v8038, 1
        %v8041 = vsel %vm1062, %v8036, %v8040
        %v8043 = vshrl.u32 %v7840, 16
        %v8045 = vshll.u32 %v7840, 16
        %v8047 = vrot.slane %v8045, 1
        %v8048 = vor.u32 %v8043, %v8047
        %v8050 = vshll.u32 %v7856, 16
        %v8052 = vrot.slane %v8050, 1
        %v8053 = vsel %vm1062, %v8048, %v8052
        %v8055 = vshrl.u32 %v7841, 16
        %v8057 = vshll.u32 %v7841, 16
        %v8059 = vrot.slane %v8057, 1
        %v8060 = vor.u32 %v8055, %v8059
        %v8062 = vshll.u32 %v7857, 16
        %v8064 = vrot.slane %v8062, 1
        %v8065 = vsel %vm1062, %v8060, %v8064
        %v8067 = vshrl.u32 %v7842, 16
        %v8069 = vshll.u32 %v7842, 16
        %v8071 = vrot.slane %v8069, 1
        %v8072 = vor.u32 %v8067, %v8071
        %v8074 = vshll.u32 %v7858, 16
        %v8076 = vrot.slane %v8074, 1
        %v8077 = vsel %vm1062, %v8072, %v8076
        %v8079 = vshrl.u32 %v7843, 16
        %v8081 = vshll.u32 %v7843, 16
        %v8083 = vrot.slane %v8081, 1
        %v8084 = vor.u32 %v8079, %v8083
        %v8086 = vshll.u32 %v7859, 16
        %v8088 = vrot.slane %v8086, 1
        %v8089 = vsel %vm1062, %v8084, %v8088
        %v8091 = vshrl.u32 %v7844, 16
        %v8093 = vshll.u32 %v7844, 16
        %v8095 = vrot.slane %v8093, 1
        %v8096 = vor.u32 %v8091, %v8095
        %v8098 = vshll.u32 %v7860, 16
        %v8100 = vrot.slane %v8098, 1
        %v8101 = vsel %vm1062, %v8096, %v8100
        %v8103 = vshrl.u32 %v7845, 16
        %v8105 = vshll.u32 %v7845, 16
        %v8107 = vrot.slane %v8105, 1
        %v8108 = vor.u32 %v8103, %v8107
        %v8110 = vshll.u32 %v7861, 16
        %v8112 = vrot.slane %v8110, 1
        %v8113 = vsel %vm1062, %v8108, %v8112
        %v8115 = vshrl.u32 %v7846, 16
        %v8117 = vshll.u32 %v7846, 16
        %v8119 = vrot.slane %v8117, 1
        %v8120 = vor.u32 %v8115, %v8119
        %v8122 = vshll.u32 %v7862, 16
        %v8124 = vrot.slane %v8122, 1
        %v8125 = vsel %vm1062, %v8120, %v8124
        %v8127 = vshrl.u32 %v7847, 16
        %v8129 = vshll.u32 %v7847, 16
        %v8131 = vrot.slane %v8129, 1
        %v8132 = vor.u32 %v8127, %v8131
        %v8134 = vshll.u32 %v7863, 16
        %v8136 = vrot.slane %v8134, 1
        %v8137 = vsel %vm1062, %v8132, %v8136
        %v8139 = vshrl.u32 %v7848, 16
        %v8141 = vshll.u32 %v7848, 16
        %v8143 = vrot.slane %v8141, 1
        %v8144 = vor.u32 %v8139, %v8143
        %v8146 = vshll.u32 %v7864, 16
        %v8148 = vrot.slane %v8146, 1
        %v8149 = vsel %vm1062, %v8144, %v8148
        %v8151 = vshrl.u32 %v7849, 16
        %v8153 = vshll.u32 %v7849, 16
        %v8155 = vrot.slane %v8153, 1
        %v8156 = vor.u32 %v8151, %v8155
        %v8158 = vshll.u32 %v7865, 16
        %v8160 = vrot.slane %v8158, 1
        %v8161 = vsel %vm1062, %v8156, %v8160
        %v8163 = vshrl.u32 %v7850, 16
        %v8165 = vshll.u32 %v7850, 16
        %v8167 = vrot.slane %v8165, 1
        %v8168 = vor.u32 %v8163, %v8167
        %v8170 = vshll.u32 %v7866, 16
        %v8172 = vrot.slane %v8170, 1
        %v8173 = vsel %vm1062, %v8168, %v8172
        %v8175 = vshrl.u32 %v7851, 16
        %v8177 = vshll.u32 %v7851, 16
        %v8179 = vrot.slane %v8177, 1
        %v8180 = vor.u32 %v8175, %v8179
        %v8182 = vshll.u32 %v7867, 16
        %v8184 = vrot.slane %v8182, 1
        %v8185 = vsel %vm1062, %v8180, %v8184
        %v8186 = vunpack.c.l.b16 %v8017
        %v8187 = vunpack.c.h.b16 %v8017
        %v8188 = vunpack.c.l.b16 %v8029
        %v8189 = vunpack.c.h.b16 %v8029
        %v8190 = vunpack.c.l.b16 %v8041
        %v8191 = vunpack.c.h.b16 %v8041
        %v8192 = vunpack.c.l.b16 %v8053
        %v8193 = vunpack.c.h.b16 %v8053
        %v8194 = vunpack.c.l.b16 %v8065
        %v8195 = vunpack.c.h.b16 %v8065
        %v8196 = vunpack.c.l.b16 %v8077
        %v8197 = vunpack.c.h.b16 %v8077
        %v8198 = vunpack.c.l.b16 %v8089
        %v8199 = vunpack.c.h.b16 %v8089
        %v8200 = vunpack.c.l.b16 %v8101
        %v8201 = vunpack.c.h.b16 %v8101
        %v8202 = vunpack.c.l.b16 %v8113
        %v8203 = vunpack.c.h.b16 %v8113
        %v8204 = vunpack.c.l.b16 %v8125
        %v8205 = vunpack.c.h.b16 %v8125
        %v8206 = vunpack.c.l.b16 %v8137
        %v8207 = vunpack.c.h.b16 %v8137
        %v8208 = vunpack.c.l.b16 %v8149
        %v8209 = vunpack.c.h.b16 %v8149
        %v8210 = vunpack.c.l.b16 %v8161
        %v8211 = vunpack.c.h.b16 %v8161
        %v8212 = vunpack.c.l.b16 %v8173
        %v8213 = vunpack.c.h.b16 %v8173
        %v8214 = vunpack.c.l.b16 %v8185
        %v8215 = vunpack.c.h.b16 %v8185
        %v8216 = vpack.c.b16 %v8186, %v8186
        %v8217 = vpack.c.b16 %v8187, %v8187
        %v8218 = vpack.c.b16 %v8188, %v8188
        %v8219 = vpack.c.b16 %v8189, %v8189
        %v8220 = vpack.c.b16 %v8190, %v8190
        %v8221 = vpack.c.b16 %v8191, %v8191
        %v8222 = vpack.c.b16 %v8192, %v8192
        %v8223 = vpack.c.b16 %v8193, %v8193
        %v8224 = vpack.c.b16 %v8194, %v8194
        %v8225 = vpack.c.b16 %v8195, %v8195
        %v8226 = vpack.c.b16 %v8196, %v8196
        %v8227 = vpack.c.b16 %v8197, %v8197
        %v8228 = vpack.c.b16 %v8198, %v8198
        %v8229 = vpack.c.b16 %v8199, %v8199
        %v8230 = vpack.c.b16 %v8200, %v8200
        %v8231 = vpack.c.b16 %v8201, %v8201
        %v8232 = vpack.c.b16 %v8202, %v8202
        %v8233 = vpack.c.b16 %v8203, %v8203
        %v8234 = vpack.c.b16 %v8204, %v8204
        %v8235 = vpack.c.b16 %v8205, %v8205
        %v8236 = vpack.c.b16 %v8206, %v8206
        %v8237 = vpack.c.b16 %v8207, %v8207
        %v8238 = vpack.c.b16 %v8208, %v8208
        %v8239 = vpack.c.b16 %v8209, %v8209
        %v8240 = vpack.c.b16 %v8210, %v8210
        %v8241 = vpack.c.b16 %v8211, %v8211
        %v8242 = vpack.c.b16 %v8212, %v8212
        %v8243 = vpack.c.b16 %v8213, %v8213
        %v8244 = vpack.c.b16 %v8214, %v8214
        %v8245 = vpack.c.b16 %v8215, %v8215
        %8276 = vst [vmem:[#allocation2 + $0x4] sm:$0xf] %v1283
        %8277 = vst [vmem:[#allocation2 + $0x28] sm:$0xf] %v1284
        %8278 = vst [vmem:[#allocation2 + $0x4c] sm:$0xf] %v8216
        %8279 = vst [vmem:[#allocation2 + $0x70] sm:$0xf] %v8217
        %8280 = vst [vmem:[#allocation2 + $0x94] sm:$0xf] %v8218
        %8281 = vst [vmem:[#allocation2 + $0xb8] sm:$0xf] %v8219
        %8282 = vst [vmem:[#allocation2 + $0xdc] sm:$0xf] %v8220
        %8283 = vst [vmem:[#allocation2 + $0x100] sm:$0xf] %v8221
        %8284 = vst [vmem:[#allocation2 + $0x124] sm:$0xf] %v8222
        %8285 = vst [vmem:[#allocation2 + $0x148] sm:$0xf] %v8223
        %8286 = vst [vmem:[#allocation2 + $0x16c] sm:$0xf] %v8224
        %8287 = vst [vmem:[#allocation2 + $0x190] sm:$0xf] %v8225
        %8288 = vst [vmem:[#allocation2 + $0x1b4] sm:$0xf] %v8226
        %8289 = vst [vmem:[#allocation2 + $0x1d8] sm:$0xf] %v8227
        %8290 = vst [vmem:[#allocation2 + $0x1fc] sm:$0xf] %v8228
        %8291 = vst [vmem:[#allocation2 + $0x220] sm:$0xf] %v8229
        %8292 = vst [vmem:[#allocation2 + $0x244] sm:$0xf] %v8230
        %8293 = vst [vmem:[#allocation2 + $0x268] sm:$0xf] %v8231
        %8294 = vst [vmem:[#allocation2 + $0x28c] sm:$0xf] %v8232
        %8295 = vst [vmem:[#allocation2 + $0x2b0] sm:$0xf] %v8233
        %8296 = vst [vmem:[#allocation2 + $0x2d4] sm:$0xf] %v8234
        %8297 = vst [vmem:[#allocation2 + $0x2f8] sm:$0xf] %v8235
        %8298 = vst [vmem:[#allocation2 + $0x31c] sm:$0xf] %v8236
        %8299 = vst [vmem:[#allocation2 + $0x340] sm:$0xf] %v8237
        %8300 = vst [vmem:[#allocation2 + $0x364] sm:$0xf] %v8238
        %8301 = vst [vmem:[#allocation2 + $0x388] sm:$0xf] %v8239
        %8302 = vst [vmem:[#allocation2 + $0x3ac] sm:$0xf] %v8240
        %8303 = vst [vmem:[#allocation2 + $0x3d0] sm:$0xf] %v8241
        %8304 = vst [vmem:[#allocation2 + $0x3f4] sm:$0xf] %v8242
        %8305 = vst [vmem:[#allocation2 + $0x418] sm:$0xf] %v8243
        %8306 = vst [vmem:[#allocation2 + $0x43c] sm:$0xf] %v8244
        %8307 = vst [vmem:[#allocation2 + $0x460] sm:$0xf] %v8245
        %v8323 = vrot.slane %v7837, 1
        %v8324 = vrot.slane %v7853, 1
        %v8325 = vsel %vm1394, %v8323, %v8324
        %v8326 = vrot.slane %v7838, 1
        %v8327 = vrot.slane %v7854, 1
        %v8328 = vsel %vm1394, %v8326, %v8327
        %v8329 = vrot.slane %v7839, 1
        %v8330 = vrot.slane %v7855, 1
        %v8331 = vsel %vm1394, %v8329, %v8330
        %v8332 = vrot.slane %v7840, 1
        %v8333 = vrot.slane %v7856, 1
        %v8334 = vsel %vm1394, %v8332, %v8333
        %v8335 = vrot.slane %v7841, 1
        %v8336 = vrot.slane %v7857, 1
        %v8337 = vsel %vm1394, %v8335, %v8336
        %v8338 = vrot.slane %v7842, 1
        %v8339 = vrot.slane %v7858, 1
        %v8340 = vsel %vm1394, %v8338, %v8339
        %v8341 = vrot.slane %v7843, 1
        %v8342 = vrot.slane %v7859, 1
        %v8343 = vsel %vm1394, %v8341, %v8342
        %v8344 = vrot.slane %v7844, 1
        %v8345 = vrot.slane %v7860, 1
        %v8346 = vsel %vm1394, %v8344, %v8345
        %v8347 = vrot.slane %v7845, 1
        %v8348 = vrot.slane %v7861, 1
        %v8349 = vsel %vm1394, %v8347, %v8348
        %v8350 = vrot.slane %v7846, 1
        %v8351 = vrot.slane %v7862, 1
        %v8352 = vsel %vm1394, %v8350, %v8351
        %v8353 = vrot.slane %v7847, 1
        %v8354 = vrot.slane %v7863, 1
        %v8355 = vsel %vm1394, %v8353, %v8354
        %v8356 = vrot.slane %v7848, 1
        %v8357 = vrot.slane %v7864, 1
        %v8358 = vsel %vm1394, %v8356, %v8357
        %v8359 = vrot.slane %v7849, 1
        %v8360 = vrot.slane %v7865, 1
        %v8361 = vsel %vm1394, %v8359, %v8360
        %v8362 = vrot.slane %v7850, 1
        %v8363 = vrot.slane %v7866, 1
        %v8364 = vsel %vm1394, %v8362, %v8363
        %v8365 = vrot.slane %v7851, 1
        %v8366 = vrot.slane %v7867, 1
        %v8367 = vsel %vm1394, %v8365, %v8366
        %v8368 = vunpack.c.l.b16 %v8325
        %v8369 = vunpack.c.h.b16 %v8325
        %v8370 = vunpack.c.l.b16 %v8328
        %v8371 = vunpack.c.h.b16 %v8328
        %v8372 = vunpack.c.l.b16 %v8331
        %v8373 = vunpack.c.h.b16 %v8331
        %v8374 = vunpack.c.l.b16 %v8334
        %v8375 = vunpack.c.h.b16 %v8334
        %v8376 = vunpack.c.l.b16 %v8337
        %v8377 = vunpack.c.h.b16 %v8337
        %v8378 = vunpack.c.l.b16 %v8340
        %v8379 = vunpack.c.h.b16 %v8340
        %v8380 = vunpack.c.l.b16 %v8343
        %v8381 = vunpack.c.h.b16 %v8343
        %v8382 = vunpack.c.l.b16 %v8346
        %v8383 = vunpack.c.h.b16 %v8346
        %v8384 = vunpack.c.l.b16 %v8349
        %v8385 = vunpack.c.h.b16 %v8349
        %v8386 = vunpack.c.l.b16 %v8352
        %v8387 = vunpack.c.h.b16 %v8352
        %v8388 = vunpack.c.l.b16 %v8355
        %v8389 = vunpack.c.h.b16 %v8355
        %v8390 = vunpack.c.l.b16 %v8358
        %v8391 = vunpack.c.h.b16 %v8358
        %v8392 = vunpack.c.l.b16 %v8361
        %v8393 = vunpack.c.h.b16 %v8361
        %v8394 = vunpack.c.l.b16 %v8364
        %v8395 = vunpack.c.h.b16 %v8364
        %v8396 = vunpack.c.l.b16 %v8367
        %v8397 = vunpack.c.h.b16 %v8367
        %v8398 = vpack.c.b16 %v8368, %v8368
        %v8399 = vpack.c.b16 %v8369, %v8369
        %v8400 = vpack.c.b16 %v8370, %v8370
        %v8401 = vpack.c.b16 %v8371, %v8371
        %v8402 = vpack.c.b16 %v8372, %v8372
        %v8403 = vpack.c.b16 %v8373, %v8373
        %v8404 = vpack.c.b16 %v8374, %v8374
        %v8405 = vpack.c.b16 %v8375, %v8375
        %v8406 = vpack.c.b16 %v8376, %v8376
        %v8407 = vpack.c.b16 %v8377, %v8377
        %v8408 = vpack.c.b16 %v8378, %v8378
        %v8409 = vpack.c.b16 %v8379, %v8379
        %v8410 = vpack.c.b16 %v8380, %v8380
        %v8411 = vpack.c.b16 %v8381, %v8381
        %v8412 = vpack.c.b16 %v8382, %v8382
        %v8413 = vpack.c.b16 %v8383, %v8383
        %v8414 = vpack.c.b16 %v8384, %v8384
        %v8415 = vpack.c.b16 %v8385, %v8385
        %v8416 = vpack.c.b16 %v8386, %v8386
        %v8417 = vpack.c.b16 %v8387, %v8387
        %v8418 = vpack.c.b16 %v8388, %v8388
        %v8419 = vpack.c.b16 %v8389, %v8389
        %v8420 = vpack.c.b16 %v8390, %v8390
        %v8421 = vpack.c.b16 %v8391, %v8391
        %v8422 = vpack.c.b16 %v8392, %v8392
        %v8423 = vpack.c.b16 %v8393, %v8393
        %v8424 = vpack.c.b16 %v8394, %v8394
        %v8425 = vpack.c.b16 %v8395, %v8395
        %v8426 = vpack.c.b16 %v8396, %v8396
        %v8427 = vpack.c.b16 %v8397, %v8397
        %8458 = vst [vmem:[#allocation2 + $0x8] sm:$0xf] %v1474
        %8459 = vst [vmem:[#allocation2 + $0x2c] sm:$0xf] %v1475
        %8460 = vst [vmem:[#allocation2 + $0x50] sm:$0xf] %v8398
        %8461 = vst [vmem:[#allocation2 + $0x74] sm:$0xf] %v8399
        %8462 = vst [vmem:[#allocation2 + $0x98] sm:$0xf] %v8400
        %8463 = vst [vmem:[#allocation2 + $0xbc] sm:$0xf] %v8401
        %8464 = vst [vmem:[#allocation2 + $0xe0] sm:$0xf] %v8402
        %8465 = vst [vmem:[#allocation2 + $0x104] sm:$0xf] %v8403
        %8466 = vst [vmem:[#allocation2 + $0x128] sm:$0xf] %v8404
        %8467 = vst [vmem:[#allocation2 + $0x14c] sm:$0xf] %v8405
        %8468 = vst [vmem:[#allocation2 + $0x170] sm:$0xf] %v8406
        %8469 = vst [vmem:[#allocation2 + $0x194] sm:$0xf] %v8407
        %8470 = vst [vmem:[#allocation2 + $0x1b8] sm:$0xf] %v8408
        %8471 = vst [vmem:[#allocation2 + $0x1dc] sm:$0xf] %v8409
        %8472 = vst [vmem:[#allocation2 + $0x200] sm:$0xf] %v8410
        %8473 = vst [vmem:[#allocation2 + $0x224] sm:$0xf] %v8411
        %8474 = vst [vmem:[#allocation2 + $0x248] sm:$0xf] %v8412
        %8475 = vst [vmem:[#allocation2 + $0x26c] sm:$0xf] %v8413
        %8476 = vst [vmem:[#allocation2 + $0x290] sm:$0xf] %v8414
        %8477 = vst [vmem:[#allocation2 + $0x2b4] sm:$0xf] %v8415
        %8478 = vst [vmem:[#allocation2 + $0x2d8] sm:$0xf] %v8416
        %8479 = vst [vmem:[#allocation2 + $0x2fc] sm:$0xf] %v8417
        %8480 = vst [vmem:[#allocation2 + $0x320] sm:$0xf] %v8418
        %8481 = vst [vmem:[#allocation2 + $0x344] sm:$0xf] %v8419
        %8482 = vst [vmem:[#allocation2 + $0x368] sm:$0xf] %v8420
        %8483 = vst [vmem:[#allocation2 + $0x38c] sm:$0xf] %v8421
        %8484 = vst [vmem:[#allocation2 + $0x3b0] sm:$0xf] %v8422
        %8485 = vst [vmem:[#allocation2 + $0x3d4] sm:$0xf] %v8423
        %8486 = vst [vmem:[#allocation2 + $0x3f8] sm:$0xf] %v8424
        %8487 = vst [vmem:[#allocation2 + $0x41c] sm:$0xf] %v8425
        %8488 = vst [vmem:[#allocation2 + $0x440] sm:$0xf] %v8426
        %8489 = vst [vmem:[#allocation2 + $0x464] sm:$0xf] %v8427
        %v8491 = vunpack.c.l.b16 %v7852
        %v8492 = vunpack.c.h.b16 %v7852
        %v8493 = vpack.c.b16 %v8491, %v8491
        %v8494 = vpack.c.b16 %v8492, %v8492
        %8497 = vst [vmem:[#allocation2 + $0xc] sm:$0xf] %v7914
        %8498 = vst [vmem:[#allocation2 + $0x30] sm:$0xf] %v7915
        %8499 = vst [vmem:[#allocation2 + $0x54] sm:$0xf] %v7916
        %8500 = vst [vmem:[#allocation2 + $0x78] sm:$0xf] %v7917
        %8501 = vst [vmem:[#allocation2 + $0x9c] sm:$0xf] %v7918
        %8502 = vst [vmem:[#allocation2 + $0xc0] sm:$0xf] %v7919
        %8503 = vst [vmem:[#allocation2 + $0xe4] sm:$0xf] %v7920
        %8504 = vst [vmem:[#allocation2 + $0x108] sm:$0xf] %v7921
        %8505 = vst [vmem:[#allocation2 + $0x12c] sm:$0xf] %v7922
        %8506 = vst [vmem:[#allocation2 + $0x150] sm:$0xf] %v7923
        %8507 = vst [vmem:[#allocation2 + $0x174] sm:$0xf] %v7924
        %8508 = vst [vmem:[#allocation2 + $0x198] sm:$0xf] %v7925
        %8509 = vst [vmem:[#allocation2 + $0x1bc] sm:$0xf] %v7926
        %8510 = vst [vmem:[#allocation2 + $0x1e0] sm:$0xf] %v7927
        %8511 = vst [vmem:[#allocation2 + $0x204] sm:$0xf] %v7928
        %8512 = vst [vmem:[#allocation2 + $0x228] sm:$0xf] %v7929
        %8513 = vst [vmem:[#allocation2 + $0x24c] sm:$0xf] %v7930
        %8514 = vst [vmem:[#allocation2 + $0x270] sm:$0xf] %v7931
        %8515 = vst [vmem:[#allocation2 + $0x294] sm:$0xf] %v7932
        %8516 = vst [vmem:[#allocation2 + $0x2b8] sm:$0xf] %v7933
        %8517 = vst [vmem:[#allocation2 + $0x2dc] sm:$0xf] %v7934
        %8518 = vst [vmem:[#allocation2 + $0x300] sm:$0xf] %v7935
        %8519 = vst [vmem:[#allocation2 + $0x324] sm:$0xf] %v7936
        %8520 = vst [vmem:[#allocation2 + $0x348] sm:$0xf] %v7937
        %8521 = vst [vmem:[#allocation2 + $0x36c] sm:$0xf] %v7938
        %8522 = vst [vmem:[#allocation2 + $0x390] sm:$0xf] %v7939
        %8523 = vst [vmem:[#allocation2 + $0x3b4] sm:$0xf] %v7940
        %8524 = vst [vmem:[#allocation2 + $0x3d8] sm:$0xf] %v7941
        %8525 = vst [vmem:[#allocation2 + $0x3fc] sm:$0xf] %v7942
        %8526 = vst [vmem:[#allocation2 + $0x420] sm:$0xf] %v7943
        %8527 = vst [vmem:[#allocation2 + $0x444] sm:$0xf] %v8493
        %8528 = vst [vmem:[#allocation2 + $0x468] sm:$0xf] %v8494
        %v8530 = vshrl.u32 %v7852, 16
        %v8532 = vshll.u32 %v7852, 16
        %v8534 = vrot.slane %v8532, 1
        %v8535 = vor.u32 %v8530, %v8534
        %v8537 = vshll.u32 %v7868, 16
        %v8539 = vrot.slane %v8537, 1
        %v8540 = vsel %vm1062, %v8535, %v8539
        %v8541 = vunpack.c.l.b16 %v8540
        %v8542 = vunpack.c.h.b16 %v8540
        %v8543 = vpack.c.b16 %v8541, %v8541
        %v8544 = vpack.c.b16 %v8542, %v8542
        %8547 = vst [vmem:[#allocation2 + $0x10] sm:$0xf] %v8216
        %8548 = vst [vmem:[#allocation2 + $0x34] sm:$0xf] %v8217
        %8549 = vst [vmem:[#allocation2 + $0x58] sm:$0xf] %v8218
        %8550 = vst [vmem:[#allocation2 + $0x7c] sm:$0xf] %v8219
        %8551 = vst [vmem:[#allocation2 + $0xa0] sm:$0xf] %v8220
        %8552 = vst [vmem:[#allocation2 + $0xc4] sm:$0xf] %v8221
        %8553 = vst [vmem:[#allocation2 + $0xe8] sm:$0xf] %v8222
        %8554 = vst [vmem:[#allocation2 + $0x10c] sm:$0xf] %v8223
        %8555 = vst [vmem:[#allocation2 + $0x130] sm:$0xf] %v8224
        %8556 = vst [vmem:[#allocation2 + $0x154] sm:$0xf] %v8225
        %8557 = vst [vmem:[#allocation2 + $0x178] sm:$0xf] %v8226
        %8558 = vst [vmem:[#allocation2 + $0x19c] sm:$0xf] %v8227
        %8559 = vst [vmem:[#allocation2 + $0x1c0] sm:$0xf] %v8228
        %8560 = vst [vmem:[#allocation2 + $0x1e4] sm:$0xf] %v8229
        %8561 = vst [vmem:[#allocation2 + $0x208] sm:$0xf] %v8230
        %8562 = vst [vmem:[#allocation2 + $0x22c] sm:$0xf] %v8231
        %8563 = vst [vmem:[#allocation2 + $0x250] sm:$0xf] %v8232
        %8564 = vst [vmem:[#allocation2 + $0x274] sm:$0xf] %v8233
        %8565 = vst [vmem:[#allocation2 + $0x298] sm:$0xf] %v8234
        %8566 = vst [vmem:[#allocation2 + $0x2bc] sm:$0xf] %v8235
        %8567 = vst [vmem:[#allocation2 + $0x2e0] sm:$0xf] %v8236
        %8568 = vst [vmem:[#allocation2 + $0x304] sm:$0xf] %v8237
        %8569 = vst [vmem:[#allocation2 + $0x328] sm:$0xf] %v8238
        %8570 = vst [vmem:[#allocation2 + $0x34c] sm:$0xf] %v8239
        %8571 = vst [vmem:[#allocation2 + $0x370] sm:$0xf] %v8240
        %8572 = vst [vmem:[#allocation2 + $0x394] sm:$0xf] %v8241
        %8573 = vst [vmem:[#allocation2 + $0x3b8] sm:$0xf] %v8242
        %8574 = vst [vmem:[#allocation2 + $0x3dc] sm:$0xf] %v8243
        %8575 = vst [vmem:[#allocation2 + $0x400] sm:$0xf] %v8244
        %8576 = vst [vmem:[#allocation2 + $0x424] sm:$0xf] %v8245
        %8577 = vst [vmem:[#allocation2 + $0x448] sm:$0xf] %v8543
        %8578 = vst [vmem:[#allocation2 + $0x46c] sm:$0xf] %v8544
        %v8580 = vrot.slane %v7852, 1
        %v8581 = vrot.slane %v7868, 1
        %v8582 = vsel %vm1394, %v8580, %v8581
        %v8583 = vunpack.c.l.b16 %v8582
        %v8584 = vunpack.c.h.b16 %v8582
        %v8585 = vpack.c.b16 %v8583, %v8583
        %v8586 = vpack.c.b16 %v8584, %v8584
        %8589 = vst [vmem:[#allocation2 + $0x14] sm:$0xf] %v8398
        %8590 = vst [vmem:[#allocation2 + $0x38] sm:$0xf] %v8399
        %8591 = vst [vmem:[#allocation2 + $0x5c] sm:$0xf] %v8400
        %8592 = vst [vmem:[#allocation2 + $0x80] sm:$0xf] %v8401
        %8593 = vst [vmem:[#allocation2 + $0xa4] sm:$0xf] %v8402
        %8594 = vst [vmem:[#allocation2 + $0xc8] sm:$0xf] %v8403
        %8595 = vst [vmem:[#allocation2 + $0xec] sm:$0xf] %v8404
        %8596 = vst [vmem:[#allocation2 + $0x110] sm:$0xf] %v8405
        %8597 = vst [vmem:[#allocation2 + $0x134] sm:$0xf] %v8406
        %8598 = vst [vmem:[#allocation2 + $0x158] sm:$0xf] %v8407
        %8599 = vst [vmem:[#allocation2 + $0x17c] sm:$0xf] %v8408
        %8600 = vst [vmem:[#allocation2 + $0x1a0] sm:$0xf] %v8409
        %8601 = vst [vmem:[#allocation2 + $0x1c4] sm:$0xf] %v8410
        %8602 = vst [vmem:[#allocation2 + $0x1e8] sm:$0xf] %v8411
        %8603 = vst [vmem:[#allocation2 + $0x20c] sm:$0xf] %v8412
        %8604 = vst [vmem:[#allocation2 + $0x230] sm:$0xf] %v8413
        %8605 = vst [vmem:[#allocation2 + $0x254] sm:$0xf] %v8414
        %8606 = vst [vmem:[#allocation2 + $0x278] sm:$0xf] %v8415
        %8607 = vst [vmem:[#allocation2 + $0x29c] sm:$0xf] %v8416
        %8608 = vst [vmem:[#allocation2 + $0x2c0] sm:$0xf] %v8417
        %8609 = vst [vmem:[#allocation2 + $0x2e4] sm:$0xf] %v8418
        %8610 = vst [vmem:[#allocation2 + $0x308] sm:$0xf] %v8419
        %8611 = vst [vmem:[#allocation2 + $0x32c] sm:$0xf] %v8420
        %8612 = vst [vmem:[#allocation2 + $0x350] sm:$0xf] %v8421
        %8613 = vst [vmem:[#allocation2 + $0x374] sm:$0xf] %v8422
        %8614 = vst [vmem:[#allocation2 + $0x398] sm:$0xf] %v8423
        %8615 = vst [vmem:[#allocation2 + $0x3bc] sm:$0xf] %v8424
        %8616 = vst [vmem:[#allocation2 + $0x3e0] sm:$0xf] %v8425
        %8617 = vst [vmem:[#allocation2 + $0x404] sm:$0xf] %v8426
        %8618 = vst [vmem:[#allocation2 + $0x428] sm:$0xf] %v8427
        %8619 = vst [vmem:[#allocation2 + $0x44c] sm:$0xf] %v8585
        %8620 = vst [vmem:[#allocation2 + $0x470] sm:$0xf] %v8586
        %8621 = vst [vmem:[#allocation2 + $0x18] sm:$0xf] %v7916
        %8622 = vst [vmem:[#allocation2 + $0x3c] sm:$0xf] %v7917
        %8623 = vst [vmem:[#allocation2 + $0x60] sm:$0xf] %v7918
        %8624 = vst [vmem:[#allocation2 + $0x84] sm:$0xf] %v7919
        %8625 = vst [vmem:[#allocation2 + $0xa8] sm:$0xf] %v7920
        %8626 = vst [vmem:[#allocation2 + $0xcc] sm:$0xf] %v7921
        %8627 = vst [vmem:[#allocation2 + $0xf0] sm:$0xf] %v7922
        %8628 = vst [vmem:[#allocation2 + $0x114] sm:$0xf] %v7923
        %8629 = vst [vmem:[#allocation2 + $0x138] sm:$0xf] %v7924
        %8630 = vst [vmem:[#allocation2 + $0x15c] sm:$0xf] %v7925
        %8631 = vst [vmem:[#allocation2 + $0x180] sm:$0xf] %v7926
        %8632 = vst [vmem:[#allocation2 + $0x1a4] sm:$0xf] %v7927
        %8633 = vst [vmem:[#allocation2 + $0x1c8] sm:$0xf] %v7928
        %8634 = vst [vmem:[#allocation2 + $0x1ec] sm:$0xf] %v7929
        %8635 = vst [vmem:[#allocation2 + $0x210] sm:$0xf] %v7930
        %8636 = vst [vmem:[#allocation2 + $0x234] sm:$0xf] %v7931
        %8637 = vst [vmem:[#allocation2 + $0x258] sm:$0xf] %v7932
        %8638 = vst [vmem:[#allocation2 + $0x27c] sm:$0xf] %v7933
        %8639 = vst [vmem:[#allocation2 + $0x2a0] sm:$0xf] %v7934
        %8640 = vst [vmem:[#allocation2 + $0x2c4] sm:$0xf] %v7935
        %8641 = vst [vmem:[#allocation2 + $0x2e8] sm:$0xf] %v7936
        %8642 = vst [vmem:[#allocation2 + $0x30c] sm:$0xf] %v7937
        %8643 = vst [vmem:[#allocation2 + $0x330] sm:$0xf] %v7938
        %8644 = vst [vmem:[#allocation2 + $0x354] sm:$0xf] %v7939
        %8645 = vst [vmem:[#allocation2 + $0x378] sm:$0xf] %v7940
        %8646 = vst [vmem:[#allocation2 + $0x39c] sm:$0xf] %v7941
        %8647 = vst [vmem:[#allocation2 + $0x3c0] sm:$0xf] %v7942
        %8648 = vst [vmem:[#allocation2 + $0x3e4] sm:$0xf] %v7943
        %8649 = vst [vmem:[#allocation2 + $0x408] sm:$0xf] %v8493
        %8650 = vst [vmem:[#allocation2 + $0x42c] sm:$0xf] %v8494
        %8651 = vst [vmem:[#allocation2 + $0x450] sm:$0xf] %v966
        %8652 = vst [vmem:[#allocation2 + $0x474] sm:$0xf] %v967
        %8653 = vst [vmem:[#allocation2 + $0x1c] sm:$0xf] %v8218
        %8654 = vst [vmem:[#allocation2 + $0x40] sm:$0xf] %v8219
        %8655 = vst [vmem:[#allocation2 + $0x64] sm:$0xf] %v8220
        %8656 = vst [vmem:[#allocation2 + $0x88] sm:$0xf] %v8221
        %8657 = vst [vmem:[#allocation2 + $0xac] sm:$0xf] %v8222
        %8658 = vst [vmem:[#allocation2 + $0xd0] sm:$0xf] %v8223
        %8659 = vst [vmem:[#allocation2 + $0xf4] sm:$0xf] %v8224
        %8660 = vst [vmem:[#allocation2 + $0x118] sm:$0xf] %v8225
        %8661 = vst [vmem:[#allocation2 + $0x13c] sm:$0xf] %v8226
        %8662 = vst [vmem:[#allocation2 + $0x160] sm:$0xf] %v8227
        %8663 = vst [vmem:[#allocation2 + $0x184] sm:$0xf] %v8228
        %8664 = vst [vmem:[#allocation2 + $0x1a8] sm:$0xf] %v8229
        %8665 = vst [vmem:[#allocation2 + $0x1cc] sm:$0xf] %v8230
        %8666 = vst [vmem:[#allocation2 + $0x1f0] sm:$0xf] %v8231
        %8667 = vst [vmem:[#allocation2 + $0x214] sm:$0xf] %v8232
        %8668 = vst [vmem:[#allocation2 + $0x238] sm:$0xf] %v8233
        %8669 = vst [vmem:[#allocation2 + $0x25c] sm:$0xf] %v8234
        %8670 = vst [vmem:[#allocation2 + $0x280] sm:$0xf] %v8235
        %8671 = vst [vmem:[#allocation2 + $0x2a4] sm:$0xf] %v8236
        %8672 = vst [vmem:[#allocation2 + $0x2c8] sm:$0xf] %v8237
        %8673 = vst [vmem:[#allocation2 + $0x2ec] sm:$0xf] %v8238
        %8674 = vst [vmem:[#allocation2 + $0x310] sm:$0xf] %v8239
        %8675 = vst [vmem:[#allocation2 + $0x334] sm:$0xf] %v8240
        %8676 = vst [vmem:[#allocation2 + $0x358] sm:$0xf] %v8241
        %8677 = vst [vmem:[#allocation2 + $0x37c] sm:$0xf] %v8242
        %8678 = vst [vmem:[#allocation2 + $0x3a0] sm:$0xf] %v8243
        %8679 = vst [vmem:[#allocation2 + $0x3c4] sm:$0xf] %v8244
        %8680 = vst [vmem:[#allocation2 + $0x3e8] sm:$0xf] %v8245
        %8681 = vst [vmem:[#allocation2 + $0x40c] sm:$0xf] %v8543
        %8682 = vst [vmem:[#allocation2 + $0x430] sm:$0xf] %v8544
        %8683 = vst [vmem:[#allocation2 + $0x454] sm:$0xf] %v1283
        %8684 = vst [vmem:[#allocation2 + $0x478] sm:$0xf] %v1284
        %8685 = vst [vmem:[#allocation2 + $0x20] sm:$0xf] %v8400
        %8686 = vst [vmem:[#allocation2 + $0x44] sm:$0xf] %v8401
        %8687 = vst [vmem:[#allocation2 + $0x68] sm:$0xf] %v8402
        %8688 = vst [vmem:[#allocation2 + $0x8c] sm:$0xf] %v8403
        %8689 = vst [vmem:[#allocation2 + $0xb0] sm:$0xf] %v8404
        %8690 = vst [vmem:[#allocation2 + $0xd4] sm:$0xf] %v8405
        %8691 = vst [vmem:[#allocation2 + $0xf8] sm:$0xf] %v8406
        %8692 = vst [vmem:[#allocation2 + $0x11c] sm:$0xf] %v8407
        %8693 = vst [vmem:[#allocation2 + $0x140] sm:$0xf] %v8408
        %8694 = vst [vmem:[#allocation2 + $0x164] sm:$0xf] %v8409
        %8695 = vst [vmem:[#allocation2 + $0x188] sm:$0xf] %v8410
        %8696 = vst [vmem:[#allocation2 + $0x1ac] sm:$0xf] %v8411
        %8697 = vst [vmem:[#allocation2 + $0x1d0] sm:$0xf] %v8412
        %8698 = vst [vmem:[#allocation2 + $0x1f4] sm:$0xf] %v8413
        %8699 = vst [vmem:[#allocation2 + $0x218] sm:$0xf] %v8414
        %8700 = vst [vmem:[#allocation2 + $0x23c] sm:$0xf] %v8415
        %8701 = vst [vmem:[#allocation2 + $0x260] sm:$0xf] %v8416
        %8702 = vst [vmem:[#allocation2 + $0x284] sm:$0xf] %v8417
        %8703 = vst [vmem:[#allocation2 + $0x2a8] sm:$0xf] %v8418
        %8704 = vst [vmem:[#allocation2 + $0x2cc] sm:$0xf] %v8419
        %8705 = vst [vmem:[#allocation2 + $0x2f0] sm:$0xf] %v8420
        %8706 = vst [vmem:[#allocation2 + $0x314] sm:$0xf] %v8421
        %8707 = vst [vmem:[#allocation2 + $0x338] sm:$0xf] %v8422
        %8708 = vst [vmem:[#allocation2 + $0x35c] sm:$0xf] %v8423
        %8709 = vst [vmem:[#allocation2 + $0x380] sm:$0xf] %v8424
        %8710 = vst [vmem:[#allocation2 + $0x3a4] sm:$0xf] %v8425
        %8711 = vst [vmem:[#allocation2 + $0x3c8] sm:$0xf] %v8426
        %8712 = vst [vmem:[#allocation2 + $0x3ec] sm:$0xf] %v8427
        %8713 = vst [vmem:[#allocation2 + $0x410] sm:$0xf] %v8585
        %8714 = vst [vmem:[#allocation2 + $0x434] sm:$0xf] %v8586
        %8715 = vst [vmem:[#allocation2 + $0x458] sm:$0xf] %v1474
        %8716 = vst [vmem:[#allocation2 + $0x47c] sm:$0xf] %v1475
      $region49: #{drrn_forward.1} parent=43 // loop_footer
        %s1802 = sadd.s32 1, %s1798
      $region50: #{drrn_forward.1} parent=43 // loop_footer_branch
        %1797 = sbr.rel target = $region46
      $region51: #{drrn_forward.1} parent=43 // loop_exit
        _
      %v8717 = vld [vmem:[#allocation2] sm:$0xff]
      %v8718 = vld [vmem:[#allocation2 + $0x8] sm:$0xff]
      %v8719 = vld [vmem:[#allocation2 + $0x10] sm:$0xff]
      %v8720 = vld [vmem:[#allocation2 + $0x18] sm:$0xff]
      %v8721 = vld [vmem:[#allocation2 + $0x20] sm:$0xf]
      %v8722 = vld [vmem:[#allocation2 + $0x24] sm:$0xff]
      %v8723 = vld [vmem:[#allocation2 + $0x2c] sm:$0xff]
      %v8724 = vld [vmem:[#allocation2 + $0x34] sm:$0xff]
      %v8725 = vld [vmem:[#allocation2 + $0x3c] sm:$0xff]
      %v8726 = vld [vmem:[#allocation2 + $0x44] sm:$0xf]
      %v8727 = vld [vmem:[#allocation2 + $0x48] sm:$0xff]
      %v8728 = vld [vmem:[#allocation2 + $0x50] sm:$0xff]
      %v8729 = vld [vmem:[#allocation2 + $0x58] sm:$0xff]
      %v8730 = vld [vmem:[#allocation2 + $0x60] sm:$0xff]
      %v8731 = vld [vmem:[#allocation2 + $0x68] sm:$0xf]
      %v8732 = vld [vmem:[#allocation2 + $0x6c] sm:$0xff]
      %v8733 = vld [vmem:[#allocation2 + $0x74] sm:$0xff]
      %v8734 = vld [vmem:[#allocation2 + $0x7c] sm:$0xff]
      %v8735 = vld [vmem:[#allocation2 + $0x84] sm:$0xff]
      %v8736 = vld [vmem:[#allocation2 + $0x8c] sm:$0xf]
      %v8737 = vld [vmem:[#allocation2 + $0x90] sm:$0xff]
      %v8738 = vld [vmem:[#allocation2 + $0x98] sm:$0xff]
      %v8739 = vld [vmem:[#allocation2 + $0xa0] sm:$0xff]
      %v8740 = vld [vmem:[#allocation2 + $0xa8] sm:$0xff]
      %v8741 = vld [vmem:[#allocation2 + $0xb0] sm:$0xf]
      %v8742 = vld [vmem:[#allocation2 + $0xb4] sm:$0xff]
      %v8743 = vld [vmem:[#allocation2 + $0xbc] sm:$0xff]
      %v8744 = vld [vmem:[#allocation2 + $0xc4] sm:$0xff]
      %v8745 = vld [vmem:[#allocation2 + $0xcc] sm:$0xff]
      %v8746 = vld [vmem:[#allocation2 + $0xd4] sm:$0xf]
      %v8747 = vld [vmem:[#allocation2 + $0xd8] sm:$0xff]
      %v8748 = vld [vmem:[#allocation2 + $0xe0] sm:$0xff]
      %v8749 = vld [vmem:[#allocation2 + $0xe8] sm:$0xff]
      %v8750 = vld [vmem:[#allocation2 + $0xf0] sm:$0xff]
      %v8751 = vld [vmem:[#allocation2 + $0xf8] sm:$0xf]
      %v8752 = vld [vmem:[#allocation2 + $0xfc] sm:$0xff]
      %v8753 = vld [vmem:[#allocation2 + $0x104] sm:$0xff]
      %v8754 = vld [vmem:[#allocation2 + $0x10c] sm:$0xff]
      %v8755 = vld [vmem:[#allocation2 + $0x114] sm:$0xff]
      %v8756 = vld [vmem:[#allocation2 + $0x11c] sm:$0xf]
      %v8757 = vld [vmem:[#allocation2 + $0x120] sm:$0xff]
      %v8758 = vld [vmem:[#allocation2 + $0x128] sm:$0xff]
      %v8759 = vld [vmem:[#allocation2 + $0x130] sm:$0xff]
      %v8760 = vld [vmem:[#allocation2 + $0x138] sm:$0xff]
      %v8761 = vld [vmem:[#allocation2 + $0x140] sm:$0xf]
      %v8762 = vld [vmem:[#allocation2 + $0x144] sm:$0xff]
      %v8763 = vld [vmem:[#allocation2 + $0x14c] sm:$0xff]
      %v8764 = vld [vmem:[#allocation2 + $0x154] sm:$0xff]
      %v8765 = vld [vmem:[#allocation2 + $0x15c] sm:$0xff]
      %v8766 = vld [vmem:[#allocation2 + $0x164] sm:$0xf]
      %v8767 = vld [vmem:[#allocation2 + $0x168] sm:$0xff]
      %v8768 = vld [vmem:[#allocation2 + $0x170] sm:$0xff]
      %v8769 = vld [vmem:[#allocation2 + $0x178] sm:$0xff]
      %v8770 = vld [vmem:[#allocation2 + $0x180] sm:$0xff]
      %v8771 = vld [vmem:[#allocation2 + $0x188] sm:$0xf]
      %v8772 = vld [vmem:[#allocation2 + $0x18c] sm:$0xff]
      %v8773 = vld [vmem:[#allocation2 + $0x194] sm:$0xff]
      %v8774 = vld [vmem:[#allocation2 + $0x19c] sm:$0xff]
      %v8775 = vld [vmem:[#allocation2 + $0x1a4] sm:$0xff]
      %v8776 = vld [vmem:[#allocation2 + $0x1ac] sm:$0xf]
      %v8777 = vld [vmem:[#allocation2 + $0x1b0] sm:$0xff]
      %v8778 = vld [vmem:[#allocation2 + $0x1b8] sm:$0xff]
      %v8779 = vld [vmem:[#allocation2 + $0x1c0] sm:$0xff]
      %v8780 = vld [vmem:[#allocation2 + $0x1c8] sm:$0xff]
      %v8781 = vld [vmem:[#allocation2 + $0x1d0] sm:$0xf]
      %v8782 = vld [vmem:[#allocation2 + $0x1d4] sm:$0xff]
      %v8783 = vld [vmem:[#allocation2 + $0x1dc] sm:$0xff]
      %v8784 = vld [vmem:[#allocation2 + $0x1e4] sm:$0xff]
      %v8785 = vld [vmem:[#allocation2 + $0x1ec] sm:$0xff]
      %v8786 = vld [vmem:[#allocation2 + $0x1f4] sm:$0xf]
      %v8787 = vld [vmem:[#allocation2 + $0x1f8] sm:$0xff]
      %v8788 = vld [vmem:[#allocation2 + $0x200] sm:$0xff]
      %v8789 = vld [vmem:[#allocation2 + $0x208] sm:$0xff]
      %v8790 = vld [vmem:[#allocation2 + $0x210] sm:$0xff]
      %v8791 = vld [vmem:[#allocation2 + $0x218] sm:$0xf]
      %v8792 = vld [vmem:[#allocation2 + $0x21c] sm:$0xff]
      %v8793 = vld [vmem:[#allocation2 + $0x224] sm:$0xff]
      %v8794 = vld [vmem:[#allocation2 + $0x22c] sm:$0xff]
      %v8795 = vld [vmem:[#allocation2 + $0x234] sm:$0xff]
      %v8796 = vld [vmem:[#allocation2 + $0x23c] sm:$0xf]
      %v8797 = vld [vmem:[#allocation2 + $0x240] sm:$0xff]
      %v8798 = vld [vmem:[#allocation2 + $0x248] sm:$0xff]
      %v8799 = vld [vmem:[#allocation2 + $0x250] sm:$0xff]
      %v8800 = vld [vmem:[#allocation2 + $0x258] sm:$0xff]
      %v8801 = vld [vmem:[#allocation2 + $0x260] sm:$0xf]
      %v8802 = vld [vmem:[#allocation2 + $0x264] sm:$0xff]
      %v8803 = vld [vmem:[#allocation2 + $0x26c] sm:$0xff]
      %v8804 = vld [vmem:[#allocation2 + $0x274] sm:$0xff]
      %v8805 = vld [vmem:[#allocation2 + $0x27c] sm:$0xff]
      %v8806 = vld [vmem:[#allocation2 + $0x284] sm:$0xf]
      %v8807 = vld [vmem:[#allocation2 + $0x288] sm:$0xff]
      %v8808 = vld [vmem:[#allocation2 + $0x290] sm:$0xff]
      %v8809 = vld [vmem:[#allocation2 + $0x298] sm:$0xff]
      %v8810 = vld [vmem:[#allocation2 + $0x2a0] sm:$0xff]
      %v8811 = vld [vmem:[#allocation2 + $0x2a8] sm:$0xf]
      %v8812 = vld [vmem:[#allocation2 + $0x2ac] sm:$0xff]
      %v8813 = vld [vmem:[#allocation2 + $0x2b4] sm:$0xff]
      %v8814 = vld [vmem:[#allocation2 + $0x2bc] sm:$0xff]
      %v8815 = vld [vmem:[#allocation2 + $0x2c4] sm:$0xff]
      %v8816 = vld [vmem:[#allocation2 + $0x2cc] sm:$0xf]
      %v8817 = vld [vmem:[#allocation2 + $0x2d0] sm:$0xff]
      %v8818 = vld [vmem:[#allocation2 + $0x2d8] sm:$0xff]
      %v8819 = vld [vmem:[#allocation2 + $0x2e0] sm:$0xff]
      %v8820 = vld [vmem:[#allocation2 + $0x2e8] sm:$0xff]
      %v8821 = vld [vmem:[#allocation2 + $0x2f0] sm:$0xf]
      %v8822 = vld [vmem:[#allocation2 + $0x2f4] sm:$0xff]
      %v8823 = vld [vmem:[#allocation2 + $0x2fc] sm:$0xff]
      %v8824 = vld [vmem:[#allocation2 + $0x304] sm:$0xff]
      %v8825 = vld [vmem:[#allocation2 + $0x30c] sm:$0xff]
      %v8826 = vld [vmem:[#allocation2 + $0x314] sm:$0xf]
      %v8827 = vld [vmem:[#allocation2 + $0x318] sm:$0xff]
      %v8828 = vld [vmem:[#allocation2 + $0x320] sm:$0xff]
      %v8829 = vld [vmem:[#allocation2 + $0x328] sm:$0xff]
      %v8830 = vld [vmem:[#allocation2 + $0x330] sm:$0xff]
      %v8831 = vld [vmem:[#allocation2 + $0x338] sm:$0xf]
      %v8832 = vld [vmem:[#allocation2 + $0x33c] sm:$0xff]
      %v8833 = vld [vmem:[#allocation2 + $0x344] sm:$0xff]
      %v8834 = vld [vmem:[#allocation2 + $0x34c] sm:$0xff]
      %v8835 = vld [vmem:[#allocation2 + $0x354] sm:$0xff]
      %v8836 = vld [vmem:[#allocation2 + $0x35c] sm:$0xf]
      %v8837 = vld [vmem:[#allocation2 + $0x360] sm:$0xff]
      %v8838 = vld [vmem:[#allocation2 + $0x368] sm:$0xff]
      %v8839 = vld [vmem:[#allocation2 + $0x370] sm:$0xff]
      %v8840 = vld [vmem:[#allocation2 + $0x378] sm:$0xff]
      %v8841 = vld [vmem:[#allocation2 + $0x380] sm:$0xf]
      %v8842 = vld [vmem:[#allocation2 + $0x384] sm:$0xff]
      %v8843 = vld [vmem:[#allocation2 + $0x38c] sm:$0xff]
      %v8844 = vld [vmem:[#allocation2 + $0x394] sm:$0xff]
      %v8845 = vld [vmem:[#allocation2 + $0x39c] sm:$0xff]
      %v8846 = vld [vmem:[#allocation2 + $0x3a4] sm:$0xf]
      %v8847 = vld [vmem:[#allocation2 + $0x3a8] sm:$0xff]
      %v8848 = vld [vmem:[#allocation2 + $0x3b0] sm:$0xff]
      %v8849 = vld [vmem:[#allocation2 + $0x3b8] sm:$0xff]
      %v8850 = vld [vmem:[#allocation2 + $0x3c0] sm:$0xff]
      %v8851 = vld [vmem:[#allocation2 + $0x3c8] sm:$0xf]
      %v8852 = vld [vmem:[#allocation2 + $0x3cc] sm:$0xff]
      %v8853 = vld [vmem:[#allocation2 + $0x3d4] sm:$0xff]
      %v8854 = vld [vmem:[#allocation2 + $0x3dc] sm:$0xff]
      %v8855 = vld [vmem:[#allocation2 + $0x3e4] sm:$0xff]
      %v8856 = vld [vmem:[#allocation2 + $0x3ec] sm:$0xf]
      %v8857 = vld [vmem:[#allocation2 + $0x3f0] sm:$0xff]
      %v8858 = vld [vmem:[#allocation2 + $0x3f8] sm:$0xff]
      %v8859 = vld [vmem:[#allocation2 + $0x400] sm:$0xff]
      %v8860 = vld [vmem:[#allocation2 + $0x408] sm:$0xff]
      %v8861 = vld [vmem:[#allocation2 + $0x410] sm:$0xf]
      %v8862 = vld [vmem:[#allocation2 + $0x414] sm:$0xff]
      %v8863 = vld [vmem:[#allocation2 + $0x41c] sm:$0xff]
      %v8864 = vld [vmem:[#allocation2 + $0x424] sm:$0xff]
      %v8865 = vld [vmem:[#allocation2 + $0x42c] sm:$0xff]
      %v8866 = vld [vmem:[#allocation2 + $0x434] sm:$0xf]
      %v8867 = vld [vmem:[#allocation2 + $0x438] sm:$0xff]
      %v8868 = vld [vmem:[#allocation2 + $0x440] sm:$0xff]
      %v8869 = vld [vmem:[#allocation2 + $0x448] sm:$0xff]
      %v8870 = vld [vmem:[#allocation2 + $0x450] sm:$0xff]
      %v8871 = vld [vmem:[#allocation2 + $0x458] sm:$0xf]
      %v8872 = vld [vmem:[#allocation2 + $0x45c] sm:$0xff]
      %v8873 = vld [vmem:[#allocation2 + $0x464] sm:$0xff]
      %v8874 = vld [vmem:[#allocation2 + $0x46c] sm:$0xff]
      %v8875 = vld [vmem:[#allocation2 + $0x474] sm:$0xff]
      %v8876 = vld [vmem:[#allocation2 + $0x47c] sm:$0xf]
      %v8877 = vld [vmem:[%s5] sm:$0xf]
      %v8878 = vld [vmem:[%s5 + $0x4] sm:$0xf]
      %v8879 = vld [vmem:[%s5 + $0x8] sm:$0xf]
      %v8880 = vld [vmem:[%s5 + $0xc] sm:$0xf]
      %v8881 = vld [vmem:[%s5 + $0x10] sm:$0xf]
      %v8882 = vld [vmem:[%s5 + $0x14] sm:$0xf]
      %v8883 = vld [vmem:[%s5 + $0x18] sm:$0xf]
      %v8884 = vld [vmem:[%s5 + $0x1c] sm:$0xf]
      %v8885 = vld [vmem:[%s5 + $0x20] sm:$0xf]
      %v8886 = vld [vmem:[%s5 + $0x24] sm:$0xf]
      %v8887 = vld [vmem:[%s5 + $0x28] sm:$0xf]
      %v8888 = vld [vmem:[%s5 + $0x2c] sm:$0xf]
      %v8889 = vld [vmem:[%s5 + $0x30] sm:$0xf]
      %v8890 = vld [vmem:[%s5 + $0x34] sm:$0xf]
      %v8891 = vld [vmem:[%s5 + $0x38] sm:$0xf]
      %v8892 = vld [vmem:[%s5 + $0x3c] sm:$0xf]
      %v8893 = vld [vmem:[%s5 + $0x40] sm:$0xf]
      %v8894 = vld [vmem:[%s5 + $0x44] sm:$0xf]
      %v8895 = vld [vmem:[%s5 + $0x48] sm:$0xf]
      %v8896 = vld [vmem:[%s5 + $0x4c] sm:$0xf]
      %v8897 = vld [vmem:[%s5 + $0x50] sm:$0xf]
      %v8898 = vld [vmem:[%s5 + $0x54] sm:$0xf]
      %v8899 = vld [vmem:[%s5 + $0x58] sm:$0xf]
      %v8900 = vld [vmem:[%s5 + $0x5c] sm:$0xf]
      %v8901 = vld [vmem:[%s5 + $0x60] sm:$0xf]
      %v8902 = vld [vmem:[%s5 + $0x64] sm:$0xf]
      %v8903 = vld [vmem:[%s5 + $0x68] sm:$0xf]
      %v8904 = vld [vmem:[%s5 + $0x6c] sm:$0xf]
      %v8905 = vld [vmem:[%s5 + $0x70] sm:$0xf]
      %v8906 = vld [vmem:[%s5 + $0x74] sm:$0xf]
      %v8907 = vld [vmem:[%s5 + $0x78] sm:$0xf]
      %v8908 = vld [vmem:[%s5 + $0x7c] sm:$0xf]
      %v8909 = vld [vmem:[%s5 + $0x80] sm:$0xf]
      %v8910 = vld [vmem:[%s5 + $0x84] sm:$0xf]
      %v8911 = vld [vmem:[%s5 + $0x88] sm:$0xf]
      %v8912 = vld [vmem:[%s5 + $0x8c] sm:$0xf]
      %v8913 = vld [vmem:[%s5 + $0x90] sm:$0xf]
      %v8914 = vld [vmem:[%s5 + $0x94] sm:$0xf]
      %v8915 = vld [vmem:[%s5 + $0x98] sm:$0xf]
      %v8916 = vld [vmem:[%s5 + $0x9c] sm:$0xf]
      %v8917 = vld [vmem:[%s5 + $0xa0] sm:$0xf]
      %v8918 = vld [vmem:[%s5 + $0xa4] sm:$0xf]
      %v8919 = vld [vmem:[%s5 + $0xa8] sm:$0xf]
      %v8920 = vld [vmem:[%s5 + $0xac] sm:$0xf]
      %v8921 = vld [vmem:[%s5 + $0xb0] sm:$0xf]
      %v8922 = vld [vmem:[%s5 + $0xb4] sm:$0xf]
      %v8923 = vld [vmem:[%s5 + $0xb8] sm:$0xf]
      %v8924 = vld [vmem:[%s5 + $0xbc] sm:$0xf]
      %v8925 = vld [vmem:[%s5 + $0xc0] sm:$0xf]
      %v8926 = vld [vmem:[%s5 + $0xc4] sm:$0xf]
      %v8927 = vld [vmem:[%s5 + $0xc8] sm:$0xf]
      %v8928 = vld [vmem:[%s5 + $0xcc] sm:$0xf]
      %v8929 = vld [vmem:[%s5 + $0xd0] sm:$0xf]
      %v8930 = vld [vmem:[%s5 + $0xd4] sm:$0xf]
      %v8931 = vld [vmem:[%s5 + $0xd8] sm:$0xf]
      %v8932 = vld [vmem:[%s5 + $0xdc] sm:$0xf]
      %v8933 = vld [vmem:[%s5 + $0xe0] sm:$0xf]
      %v8934 = vld [vmem:[%s5 + $0xe4] sm:$0xf]
      %v8935 = vld [vmem:[%s5 + $0xe8] sm:$0xf]
      %v8936 = vld [vmem:[%s5 + $0xec] sm:$0xf]
      %v8937 = vld [vmem:[%s5 + $0xf0] sm:$0xf]
      %v8938 = vld [vmem:[%s5 + $0xf4] sm:$0xf]
      %v8939 = vld [vmem:[%s5 + $0xf8] sm:$0xf]
      %v8940 = vld [vmem:[%s5 + $0xfc] sm:$0xf]
      %v8941 = vld [vmem:[%s5 + $0x100] sm:$0xf]
      %v8942 = vld [vmem:[%s5 + $0x104] sm:$0xf]
      %v8943 = vld [vmem:[%s5 + $0x108] sm:$0xf]
      %v8944 = vld [vmem:[%s5 + $0x10c] sm:$0xf]
      %v8945 = vld [vmem:[%s5 + $0x110] sm:$0xf]
      %v8946 = vld [vmem:[%s5 + $0x114] sm:$0xf]
      %v8947 = vld [vmem:[%s5 + $0x118] sm:$0xf]
      %v8948 = vld [vmem:[%s5 + $0x11c] sm:$0xf]
      %v8949 = vld [vmem:[%s5 + $0x120] sm:$0xf]
      %v8950 = vld [vmem:[%s5 + $0x124] sm:$0xf]
      %v8951 = vld [vmem:[%s5 + $0x128] sm:$0xf]
      %v8952 = vld [vmem:[%s5 + $0x12c] sm:$0xf]
      %v8953 = vld [vmem:[%s5 + $0x130] sm:$0xf]
      %v8954 = vld [vmem:[%s5 + $0x134] sm:$0xf]
      %v8955 = vld [vmem:[%s5 + $0x138] sm:$0xf]
      %v8956 = vld [vmem:[%s5 + $0x13c] sm:$0xf]
      %v8957 = vld [vmem:[%s5 + $0x140] sm:$0xf]
      %v8958 = vld [vmem:[%s5 + $0x144] sm:$0xf]
      %v8959 = vld [vmem:[%s5 + $0x148] sm:$0xf]
      %v8960 = vld [vmem:[%s5 + $0x14c] sm:$0xf]
      %v8961 = vld [vmem:[%s5 + $0x150] sm:$0xf]
      %v8962 = vld [vmem:[%s5 + $0x154] sm:$0xf]
      %v8963 = vld [vmem:[%s5 + $0x158] sm:$0xf]
      %v8964 = vld [vmem:[%s5 + $0x15c] sm:$0xf]
      %v8965 = vld [vmem:[%s5 + $0x160] sm:$0xf]
      %v8966 = vld [vmem:[%s5 + $0x164] sm:$0xf]
      %v8967 = vld [vmem:[%s5 + $0x168] sm:$0xf]
      %v8968 = vld [vmem:[%s5 + $0x16c] sm:$0xf]
      %v8969 = vld [vmem:[%s5 + $0x170] sm:$0xf]
      %v8970 = vld [vmem:[%s5 + $0x174] sm:$0xf]
      %v8971 = vld [vmem:[%s5 + $0x178] sm:$0xf]
      %v8972 = vld [vmem:[%s5 + $0x17c] sm:$0xf]
      %v8973 = vld [vmem:[%s5 + $0x180] sm:$0xf]
      %v8974 = vld [vmem:[%s5 + $0x184] sm:$0xf]
      %v8975 = vld [vmem:[%s5 + $0x188] sm:$0xf]
      %v8976 = vld [vmem:[%s5 + $0x18c] sm:$0xf]
      %v8977 = vld [vmem:[%s5 + $0x190] sm:$0xf]
      %v8978 = vld [vmem:[%s5 + $0x194] sm:$0xf]
      %v8979 = vld [vmem:[%s5 + $0x198] sm:$0xf]
      %v8980 = vld [vmem:[%s5 + $0x19c] sm:$0xf]
      %v8981 = vld [vmem:[%s5 + $0x1a0] sm:$0xf]
      %v8982 = vld [vmem:[%s5 + $0x1a4] sm:$0xf]
      %v8983 = vld [vmem:[%s5 + $0x1a8] sm:$0xf]
      %v8984 = vld [vmem:[%s5 + $0x1ac] sm:$0xf]
      %v8985 = vld [vmem:[%s5 + $0x1b0] sm:$0xf]
      %v8986 = vld [vmem:[%s5 + $0x1b4] sm:$0xf]
      %v8987 = vld [vmem:[%s5 + $0x1b8] sm:$0xf]
      %v8988 = vld [vmem:[%s5 + $0x1bc] sm:$0xf]
      %v8989 = vld [vmem:[%s5 + $0x1c0] sm:$0xf]
      %v8990 = vld [vmem:[%s5 + $0x1c4] sm:$0xf]
      %v8991 = vld [vmem:[%s5 + $0x1c8] sm:$0xf]
      %v8992 = vld [vmem:[%s5 + $0x1cc] sm:$0xf]
      %v8993 = vld [vmem:[%s5 + $0x1d0] sm:$0xf]
      %v8994 = vld [vmem:[%s5 + $0x1d4] sm:$0xf]
      %v8995 = vld [vmem:[%s5 + $0x1d8] sm:$0xf]
      %v8996 = vld [vmem:[%s5 + $0x1dc] sm:$0xf]
      %v8997 = vld [vmem:[%s5 + $0x1e0] sm:$0xf]
      %v8998 = vld [vmem:[%s5 + $0x1e4] sm:$0xf]
      %v8999 = vld [vmem:[%s5 + $0x1e8] sm:$0xf]
      %v9000 = vld [vmem:[%s5 + $0x1ec] sm:$0xf]
      %v9001 = vld [vmem:[%s5 + $0x1f0] sm:$0xf]
      %v9002 = vld [vmem:[%s5 + $0x1f4] sm:$0xf]
      %v9003 = vld [vmem:[%s5 + $0x1f8] sm:$0xf]
      %v9004 = vld [vmem:[%s5 + $0x1fc] sm:$0xf]
      %v9005 = vld [vmem:[%s5 + $0x200] sm:$0xf]
      %v9006 = vld [vmem:[%s5 + $0x204] sm:$0xf]
      %v9007 = vld [vmem:[%s5 + $0x208] sm:$0xf]
      %v9008 = vld [vmem:[%s5 + $0x20c] sm:$0xf]
      %v9009 = vld [vmem:[%s5 + $0x210] sm:$0xf]
      %v9010 = vld [vmem:[%s5 + $0x214] sm:$0xf]
      %v9011 = vld [vmem:[%s5 + $0x218] sm:$0xf]
      %v9012 = vld [vmem:[%s5 + $0x21c] sm:$0xf]
      %v9013 = vld [vmem:[%s5 + $0x220] sm:$0xf]
      %v9014 = vld [vmem:[%s5 + $0x224] sm:$0xf]
      %v9015 = vld [vmem:[%s5 + $0x228] sm:$0xf]
      %v9016 = vld [vmem:[%s5 + $0x22c] sm:$0xf]
      %v9017 = vld [vmem:[%s5 + $0x230] sm:$0xf]
      %v9018 = vld [vmem:[%s5 + $0x234] sm:$0xf]
      %v9019 = vld [vmem:[%s5 + $0x238] sm:$0xf]
      %v9020 = vld [vmem:[%s5 + $0x23c] sm:$0xf]
      %v9021 = vld [vmem:[%s266] sm:$0xff]
      %v9022 = vld [vmem:[%s266 + $0x8] sm:$0xff]
      %v9023 = vld [vmem:[%s266 + $0x10] sm:$0xff]
      %v9024 = vld [vmem:[%s266 + $0x18] sm:$0xff]
      %v9025 = vld [vmem:[%s266 + $0x20] sm:$0xff]
      %v9026 = vld [vmem:[%s266 + $0x28] sm:$0xff]
      %v9027 = vld [vmem:[%s266 + $0x30] sm:$0xff]
      %v9028 = vld [vmem:[%s266 + $0x38] sm:$0xff]
      %v9029 = vld [vmem:[%s266 + $0x40] sm:$0xff]
      %v9030 = vld [vmem:[%s266 + $0x48] sm:$0xff]
      %v9031 = vld [vmem:[%s266 + $0x50] sm:$0xff]
      %v9032 = vld [vmem:[%s266 + $0x58] sm:$0xff]
      %v9033 = vld [vmem:[%s266 + $0x60] sm:$0xff]
      %v9034 = vld [vmem:[%s266 + $0x68] sm:$0xff]
      %v9035 = vld [vmem:[%s266 + $0x70] sm:$0xff]
      %v9036 = vld [vmem:[%s266 + $0x78] sm:$0xff]
      %v9037 = vld [vmem:[%s266 + $0x80] sm:$0xff]
      %v9038 = vld [vmem:[%s266 + $0x88] sm:$0xff]
      %v9039 = vld [vmem:[%s266 + $0x90] sm:$0xff]
      %v9040 = vld [vmem:[%s266 + $0x98] sm:$0xff]
      %v9041 = vld [vmem:[%s266 + $0xa0] sm:$0xff]
      %v9042 = vld [vmem:[%s266 + $0xa8] sm:$0xff]
      %v9043 = vld [vmem:[%s266 + $0xb0] sm:$0xff]
      %v9044 = vld [vmem:[%s266 + $0xb8] sm:$0xff]
      %v9045 = vld [vmem:[%s266 + $0xc0] sm:$0xff]
      %v9046 = vld [vmem:[%s266 + $0xc8] sm:$0xff]
      %v9047 = vld [vmem:[%s266 + $0xd0] sm:$0xff]
      %v9048 = vld [vmem:[%s266 + $0xd8] sm:$0xff]
      %v9049 = vld [vmem:[%s266 + $0xe0] sm:$0xff]
      %v9050 = vld [vmem:[%s266 + $0xe8] sm:$0xff]
      %v9051 = vld [vmem:[%s266 + $0xf0] sm:$0xff]
      %v9052 = vld [vmem:[%s266 + $0xf8] sm:$0xff]
      %v9213 = vunpack.c.l.b16 %v8717
      %v9214 = vunpack.c.h.b16 %v8717
      %v9215 = vunpack.c.l.b16 %v8718
      %v9216 = vunpack.c.h.b16 %v8718
      %v9217 = vunpack.c.l.b16 %v8719
      %v9218 = vunpack.c.h.b16 %v8719
      %v9219 = vunpack.c.l.b16 %v8720
      %v9220 = vunpack.c.h.b16 %v8720
      %v9221 = vunpack.c.l.b16 %v8721
      %v9222 = vunpack.c.l.b16 %v8722
      %v9223 = vunpack.c.h.b16 %v8722
      %v9224 = vunpack.c.l.b16 %v8723
      %v9225 = vunpack.c.h.b16 %v8723
      %v9226 = vunpack.c.l.b16 %v8724
      %v9227 = vunpack.c.h.b16 %v8724
      %v9228 = vunpack.c.l.b16 %v8725
      %v9229 = vunpack.c.h.b16 %v8725
      %v9230 = vunpack.c.l.b16 %v8726
      %v9231 = vunpack.c.l.b16 %v8727
      %v9232 = vunpack.c.h.b16 %v8727
      %v9233 = vunpack.c.l.b16 %v8728
      %v9234 = vunpack.c.h.b16 %v8728
      %v9235 = vunpack.c.l.b16 %v8729
      %v9236 = vunpack.c.h.b16 %v8729
      %v9237 = vunpack.c.l.b16 %v8730
      %v9238 = vunpack.c.h.b16 %v8730
      %v9239 = vunpack.c.l.b16 %v8731
      %v9240 = vunpack.c.l.b16 %v8732
      %v9241 = vunpack.c.h.b16 %v8732
      %v9242 = vunpack.c.l.b16 %v8733
      %v9243 = vunpack.c.h.b16 %v8733
      %v9244 = vunpack.c.l.b16 %v8734
      %v9245 = vunpack.c.h.b16 %v8734
      %v9246 = vunpack.c.l.b16 %v8735
      %v9247 = vunpack.c.h.b16 %v8735
      %v9248 = vunpack.c.l.b16 %v8736
      %v9249 = vunpack.c.l.b16 %v8737
      %v9250 = vunpack.c.h.b16 %v8737
      %v9251 = vunpack.c.l.b16 %v8738
      %v9252 = vunpack.c.h.b16 %v8738
      %v9253 = vunpack.c.l.b16 %v8739
      %v9254 = vunpack.c.h.b16 %v8739
      %v9255 = vunpack.c.l.b16 %v8740
      %v9256 = vunpack.c.h.b16 %v8740
      %v9257 = vunpack.c.l.b16 %v8741
      %v9258 = vunpack.c.l.b16 %v8742
      %v9259 = vunpack.c.h.b16 %v8742
      %v9260 = vunpack.c.l.b16 %v8743
      %v9261 = vunpack.c.h.b16 %v8743
      %v9262 = vunpack.c.l.b16 %v8744
      %v9263 = vunpack.c.h.b16 %v8744
      %v9264 = vunpack.c.l.b16 %v8745
      %v9265 = vunpack.c.h.b16 %v8745
      %v9266 = vunpack.c.l.b16 %v8746
      %v9267 = vunpack.c.l.b16 %v8747
      %v9268 = vunpack.c.h.b16 %v8747
      %v9269 = vunpack.c.l.b16 %v8748
      %v9270 = vunpack.c.h.b16 %v8748
      %v9271 = vunpack.c.l.b16 %v8749
      %v9272 = vunpack.c.h.b16 %v8749
      %v9273 = vunpack.c.l.b16 %v8750
      %v9274 = vunpack.c.h.b16 %v8750
      %v9275 = vunpack.c.l.b16 %v8751
      %v9276 = vunpack.c.l.b16 %v8752
      %v9277 = vunpack.c.h.b16 %v8752
      %v9278 = vunpack.c.l.b16 %v8753
      %v9279 = vunpack.c.h.b16 %v8753
      %v9280 = vunpack.c.l.b16 %v8754
      %v9281 = vunpack.c.h.b16 %v8754
      %v9282 = vunpack.c.l.b16 %v8755
      %v9283 = vunpack.c.h.b16 %v8755
      %v9284 = vunpack.c.l.b16 %v8756
      %v9285 = vunpack.c.l.b16 %v8757
      %v9286 = vunpack.c.h.b16 %v8757
      %v9287 = vunpack.c.l.b16 %v8758
      %v9288 = vunpack.c.h.b16 %v8758
      %v9289 = vunpack.c.l.b16 %v8759
      %v9290 = vunpack.c.h.b16 %v8759
      %v9291 = vunpack.c.l.b16 %v8760
      %v9292 = vunpack.c.h.b16 %v8760
      %v9293 = vunpack.c.l.b16 %v8761
      %v9294 = vunpack.c.l.b16 %v8762
      %v9295 = vunpack.c.h.b16 %v8762
      %v9296 = vunpack.c.l.b16 %v8763
      %v9297 = vunpack.c.h.b16 %v8763
      %v9298 = vunpack.c.l.b16 %v8764
      %v9299 = vunpack.c.h.b16 %v8764
      %v9300 = vunpack.c.l.b16 %v8765
      %v9301 = vunpack.c.h.b16 %v8765
      %v9302 = vunpack.c.l.b16 %v8766
      %v9303 = vunpack.c.l.b16 %v8767
      %v9304 = vunpack.c.h.b16 %v8767
      %v9305 = vunpack.c.l.b16 %v8768
      %v9306 = vunpack.c.h.b16 %v8768
      %v9307 = vunpack.c.l.b16 %v8769
      %v9308 = vunpack.c.h.b16 %v8769
      %v9309 = vunpack.c.l.b16 %v8770
      %v9310 = vunpack.c.h.b16 %v8770
      %v9311 = vunpack.c.l.b16 %v8771
      %v9312 = vunpack.c.l.b16 %v8772
      %v9313 = vunpack.c.h.b16 %v8772
      %v9314 = vunpack.c.l.b16 %v8773
      %v9315 = vunpack.c.h.b16 %v8773
      %v9316 = vunpack.c.l.b16 %v8774
      %v9317 = vunpack.c.h.b16 %v8774
      %v9318 = vunpack.c.l.b16 %v8775
      %v9319 = vunpack.c.h.b16 %v8775
      %v9320 = vunpack.c.l.b16 %v8776
      %v9321 = vunpack.c.l.b16 %v8777
      %v9322 = vunpack.c.h.b16 %v8777
      %v9323 = vunpack.c.l.b16 %v8778
      %v9324 = vunpack.c.h.b16 %v8778
      %v9325 = vunpack.c.l.b16 %v8779
      %v9326 = vunpack.c.h.b16 %v8779
      %v9327 = vunpack.c.l.b16 %v8780
      %v9328 = vunpack.c.h.b16 %v8780
      %v9329 = vunpack.c.l.b16 %v8781
      %v9330 = vunpack.c.l.b16 %v8782
      %v9331 = vunpack.c.h.b16 %v8782
      %v9332 = vunpack.c.l.b16 %v8783
      %v9333 = vunpack.c.h.b16 %v8783
      %v9334 = vunpack.c.l.b16 %v8784
      %v9335 = vunpack.c.h.b16 %v8784
      %v9336 = vunpack.c.l.b16 %v8785
      %v9337 = vunpack.c.h.b16 %v8785
      %v9338 = vunpack.c.l.b16 %v8786
      %v9339 = vunpack.c.l.b16 %v8787
      %v9340 = vunpack.c.h.b16 %v8787
      %v9341 = vunpack.c.l.b16 %v8788
      %v9342 = vunpack.c.h.b16 %v8788
      %v9343 = vunpack.c.l.b16 %v8789
      %v9344 = vunpack.c.h.b16 %v8789
      %v9345 = vunpack.c.l.b16 %v8790
      %v9346 = vunpack.c.h.b16 %v8790
      %v9347 = vunpack.c.l.b16 %v8791
      %v9348 = vunpack.c.l.b16 %v8792
      %v9349 = vunpack.c.h.b16 %v8792
      %v9350 = vunpack.c.l.b16 %v8793
      %v9351 = vunpack.c.h.b16 %v8793
      %v9352 = vunpack.c.l.b16 %v8794
      %v9353 = vunpack.c.h.b16 %v8794
      %v9354 = vunpack.c.l.b16 %v8795
      %v9355 = vunpack.c.h.b16 %v8795
      %v9356 = vunpack.c.l.b16 %v8796
      %v9357 = vunpack.c.l.b16 %v8797
      %v9358 = vunpack.c.h.b16 %v8797
      %v9359 = vunpack.c.l.b16 %v8798
      %v9360 = vunpack.c.h.b16 %v8798
      %v9361 = vunpack.c.l.b16 %v8799
      %v9362 = vunpack.c.h.b16 %v8799
      %v9363 = vunpack.c.l.b16 %v8800
      %v9364 = vunpack.c.h.b16 %v8800
      %v9365 = vunpack.c.l.b16 %v8801
      %v9366 = vunpack.c.l.b16 %v8802
      %v9367 = vunpack.c.h.b16 %v8802
      %v9368 = vunpack.c.l.b16 %v8803
      %v9369 = vunpack.c.h.b16 %v8803
      %v9370 = vunpack.c.l.b16 %v8804
      %v9371 = vunpack.c.h.b16 %v8804
      %v9372 = vunpack.c.l.b16 %v8805
      %v9373 = vunpack.c.h.b16 %v8805
      %v9374 = vunpack.c.l.b16 %v8806
      %v9375 = vunpack.c.l.b16 %v8807
      %v9376 = vunpack.c.h.b16 %v8807
      %v9377 = vunpack.c.l.b16 %v8808
      %v9378 = vunpack.c.h.b16 %v8808
      %v9379 = vunpack.c.l.b16 %v8809
      %v9380 = vunpack.c.h.b16 %v8809
      %v9381 = vunpack.c.l.b16 %v8810
      %v9382 = vunpack.c.h.b16 %v8810
      %v9383 = vunpack.c.l.b16 %v8811
      %v9384 = vunpack.c.l.b16 %v8812
      %v9385 = vunpack.c.h.b16 %v8812
      %v9386 = vunpack.c.l.b16 %v8813
      %v9387 = vunpack.c.h.b16 %v8813
      %v9388 = vunpack.c.l.b16 %v8814
      %v9389 = vunpack.c.h.b16 %v8814
      %v9390 = vunpack.c.l.b16 %v8815
      %v9391 = vunpack.c.h.b16 %v8815
      %v9392 = vunpack.c.l.b16 %v8816
      %v9393 = vunpack.c.l.b16 %v8817
      %v9394 = vunpack.c.h.b16 %v8817
      %v9395 = vunpack.c.l.b16 %v8818
      %v9396 = vunpack.c.h.b16 %v8818
      %v9397 = vunpack.c.l.b16 %v8819
      %v9398 = vunpack.c.h.b16 %v8819
      %v9399 = vunpack.c.l.b16 %v8820
      %v9400 = vunpack.c.h.b16 %v8820
      %v9401 = vunpack.c.l.b16 %v8821
      %v9402 = vunpack.c.l.b16 %v8822
      %v9403 = vunpack.c.h.b16 %v8822
      %v9404 = vunpack.c.l.b16 %v8823
      %v9405 = vunpack.c.h.b16 %v8823
      %v9406 = vunpack.c.l.b16 %v8824
      %v9407 = vunpack.c.h.b16 %v8824
      %v9408 = vunpack.c.l.b16 %v8825
      %v9409 = vunpack.c.h.b16 %v8825
      %v9410 = vunpack.c.l.b16 %v8826
      %v9411 = vunpack.c.l.b16 %v8827
      %v9412 = vunpack.c.h.b16 %v8827
      %v9413 = vunpack.c.l.b16 %v8828
      %v9414 = vunpack.c.h.b16 %v8828
      %v9415 = vunpack.c.l.b16 %v8829
      %v9416 = vunpack.c.h.b16 %v8829
      %v9417 = vunpack.c.l.b16 %v8830
      %v9418 = vunpack.c.h.b16 %v8830
      %v9419 = vunpack.c.l.b16 %v8831
      %v9420 = vunpack.c.l.b16 %v8832
      %v9421 = vunpack.c.h.b16 %v8832
      %v9422 = vunpack.c.l.b16 %v8833
      %v9423 = vunpack.c.h.b16 %v8833
      %v9424 = vunpack.c.l.b16 %v8834
      %v9425 = vunpack.c.h.b16 %v8834
      %v9426 = vunpack.c.l.b16 %v8835
      %v9427 = vunpack.c.h.b16 %v8835
      %v9428 = vunpack.c.l.b16 %v8836
      %v9429 = vunpack.c.l.b16 %v8837
      %v9430 = vunpack.c.h.b16 %v8837
      %v9431 = vunpack.c.l.b16 %v8838
      %v9432 = vunpack.c.h.b16 %v8838
      %v9433 = vunpack.c.l.b16 %v8839
      %v9434 = vunpack.c.h.b16 %v8839
      %v9435 = vunpack.c.l.b16 %v8840
      %v9436 = vunpack.c.h.b16 %v8840
      %v9437 = vunpack.c.l.b16 %v8841
      %v9438 = vunpack.c.l.b16 %v8842
      %v9439 = vunpack.c.h.b16 %v8842
      %v9440 = vunpack.c.l.b16 %v8843
      %v9441 = vunpack.c.h.b16 %v8843
      %v9442 = vunpack.c.l.b16 %v8844
      %v9443 = vunpack.c.h.b16 %v8844
      %v9444 = vunpack.c.l.b16 %v8845
      %v9445 = vunpack.c.h.b16 %v8845
      %v9446 = vunpack.c.l.b16 %v8846
      %v9447 = vunpack.c.l.b16 %v8847
      %v9448 = vunpack.c.h.b16 %v8847
      %v9449 = vunpack.c.l.b16 %v8848
      %v9450 = vunpack.c.h.b16 %v8848
      %v9451 = vunpack.c.l.b16 %v8849
      %v9452 = vunpack.c.h.b16 %v8849
      %v9453 = vunpack.c.l.b16 %v8850
      %v9454 = vunpack.c.h.b16 %v8850
      %v9455 = vunpack.c.l.b16 %v8851
      %v9456 = vunpack.c.l.b16 %v8852
      %v9457 = vunpack.c.h.b16 %v8852
      %v9458 = vunpack.c.l.b16 %v8853
      %v9459 = vunpack.c.h.b16 %v8853
      %v9460 = vunpack.c.l.b16 %v8854
      %v9461 = vunpack.c.h.b16 %v8854
      %v9462 = vunpack.c.l.b16 %v8855
      %v9463 = vunpack.c.h.b16 %v8855
      %v9464 = vunpack.c.l.b16 %v8856
      %v9465 = vunpack.c.l.b16 %v8857
      %v9466 = vunpack.c.h.b16 %v8857
      %v9467 = vunpack.c.l.b16 %v8858
      %v9468 = vunpack.c.h.b16 %v8858
      %v9469 = vunpack.c.l.b16 %v8859
      %v9470 = vunpack.c.h.b16 %v8859
      %v9471 = vunpack.c.l.b16 %v8860
      %v9472 = vunpack.c.h.b16 %v8860
      %v9473 = vunpack.c.l.b16 %v8861
      %v9474 = vunpack.c.l.b16 %v8862
      %v9475 = vunpack.c.h.b16 %v8862
      %v9476 = vunpack.c.l.b16 %v8863
      %v9477 = vunpack.c.h.b16 %v8863
      %v9478 = vunpack.c.l.b16 %v8864
      %v9479 = vunpack.c.h.b16 %v8864
      %v9480 = vunpack.c.l.b16 %v8865
      %v9481 = vunpack.c.h.b16 %v8865
      %v9482 = vunpack.c.l.b16 %v8866
      %v9483 = vunpack.c.l.b16 %v8867
      %v9484 = vunpack.c.h.b16 %v8867
      %v9485 = vunpack.c.l.b16 %v8868
      %v9486 = vunpack.c.h.b16 %v8868
      %v9487 = vunpack.c.l.b16 %v8869
      %v9488 = vunpack.c.h.b16 %v8869
      %v9489 = vunpack.c.l.b16 %v8870
      %v9490 = vunpack.c.h.b16 %v8870
      %v9491 = vunpack.c.l.b16 %v8871
      %v9492 = vunpack.c.l.b16 %v8872
      %v9493 = vunpack.c.h.b16 %v8872
      %v9494 = vunpack.c.l.b16 %v8873
      %v9495 = vunpack.c.h.b16 %v8873
      %v9496 = vunpack.c.l.b16 %v8874
      %v9497 = vunpack.c.h.b16 %v8874
      %v9498 = vunpack.c.l.b16 %v8875
      %v9499 = vunpack.c.h.b16 %v8875
      %v9500 = vunpack.c.l.b16 %v8876
      %v9501 = vpack.c.b16 %v9222, %v9213
      %v9502 = vpack.c.b16 %v9223, %v9214
      %v9503 = vpack.c.b16 %v9224, %v9215
      %v9504 = vpack.c.b16 %v9225, %v9216
      %v9505 = vpack.c.b16 %v9226, %v9217
      %v9506 = vpack.c.b16 %v9227, %v9218
      %v9507 = vpack.c.b16 %v9228, %v9219
      %v9508 = vpack.c.b16 %v9229, %v9220
      %v9509 = vpack.c.b16 %v9230, %v9221
      %v9510 = vpack.c.b16 %v9240, %v9231
      %v9511 = vpack.c.b16 %v9241, %v9232
      %v9512 = vpack.c.b16 %v9242, %v9233
      %v9513 = vpack.c.b16 %v9243, %v9234
      %v9514 = vpack.c.b16 %v9244, %v9235
      %v9515 = vpack.c.b16 %v9245, %v9236
      %v9516 = vpack.c.b16 %v9246, %v9237
      %v9517 = vpack.c.b16 %v9247, %v9238
      %v9518 = vpack.c.b16 %v9248, %v9239
      %v9519 = vpack.c.b16 %v9258, %v9249
      %v9520 = vpack.c.b16 %v9259, %v9250
      %v9521 = vpack.c.b16 %v9260, %v9251
      %v9522 = vpack.c.b16 %v9261, %v9252
      %v9523 = vpack.c.b16 %v9262, %v9253
      %v9524 = vpack.c.b16 %v9263, %v9254
      %v9525 = vpack.c.b16 %v9264, %v9255
      %v9526 = vpack.c.b16 %v9265, %v9256
      %v9527 = vpack.c.b16 %v9266, %v9257
      %v9528 = vpack.c.b16 %v9276, %v9267
      %v9529 = vpack.c.b16 %v9277, %v9268
      %v9530 = vpack.c.b16 %v9278, %v9269
      %v9531 = vpack.c.b16 %v9279, %v9270
      %v9532 = vpack.c.b16 %v9280, %v9271
      %v9533 = vpack.c.b16 %v9281, %v9272
      %v9534 = vpack.c.b16 %v9282, %v9273
      %v9535 = vpack.c.b16 %v9283, %v9274
      %v9536 = vpack.c.b16 %v9284, %v9275
      %v9537 = vpack.c.b16 %v9294, %v9285
      %v9538 = vpack.c.b16 %v9295, %v9286
      %v9539 = vpack.c.b16 %v9296, %v9287
      %v9540 = vpack.c.b16 %v9297, %v9288
      %v9541 = vpack.c.b16 %v9298, %v9289
      %v9542 = vpack.c.b16 %v9299, %v9290
      %v9543 = vpack.c.b16 %v9300, %v9291
      %v9544 = vpack.c.b16 %v9301, %v9292
      %v9545 = vpack.c.b16 %v9302, %v9293
      %v9546 = vpack.c.b16 %v9312, %v9303
      %v9547 = vpack.c.b16 %v9313, %v9304
      %v9548 = vpack.c.b16 %v9314, %v9305
      %v9549 = vpack.c.b16 %v9315, %v9306
      %v9550 = vpack.c.b16 %v9316, %v9307
      %v9551 = vpack.c.b16 %v9317, %v9308
      %v9552 = vpack.c.b16 %v9318, %v9309
      %v9553 = vpack.c.b16 %v9319, %v9310
      %v9554 = vpack.c.b16 %v9320, %v9311
      %v9555 = vpack.c.b16 %v9330, %v9321
      %v9556 = vpack.c.b16 %v9331, %v9322
      %v9557 = vpack.c.b16 %v9332, %v9323
      %v9558 = vpack.c.b16 %v9333, %v9324
      %v9559 = vpack.c.b16 %v9334, %v9325
      %v9560 = vpack.c.b16 %v9335, %v9326
      %v9561 = vpack.c.b16 %v9336, %v9327
      %v9562 = vpack.c.b16 %v9337, %v9328
      %v9563 = vpack.c.b16 %v9338, %v9329
      %v9564 = vpack.c.b16 %v9348, %v9339
      %v9565 = vpack.c.b16 %v9349, %v9340
      %v9566 = vpack.c.b16 %v9350, %v9341
      %v9567 = vpack.c.b16 %v9351, %v9342
      %v9568 = vpack.c.b16 %v9352, %v9343
      %v9569 = vpack.c.b16 %v9353, %v9344
      %v9570 = vpack.c.b16 %v9354, %v9345
      %v9571 = vpack.c.b16 %v9355, %v9346
      %v9572 = vpack.c.b16 %v9356, %v9347
      %v9573 = vpack.c.b16 %v9366, %v9357
      %v9574 = vpack.c.b16 %v9367, %v9358
      %v9575 = vpack.c.b16 %v9368, %v9359
      %v9576 = vpack.c.b16 %v9369, %v9360
      %v9577 = vpack.c.b16 %v9370, %v9361
      %v9578 = vpack.c.b16 %v9371, %v9362
      %v9579 = vpack.c.b16 %v9372, %v9363
      %v9580 = vpack.c.b16 %v9373, %v9364
      %v9581 = vpack.c.b16 %v9374, %v9365
      %v9582 = vpack.c.b16 %v9384, %v9375
      %v9583 = vpack.c.b16 %v9385, %v9376
      %v9584 = vpack.c.b16 %v9386, %v9377
      %v9585 = vpack.c.b16 %v9387, %v9378
      %v9586 = vpack.c.b16 %v9388, %v9379
      %v9587 = vpack.c.b16 %v9389, %v9380
      %v9588 = vpack.c.b16 %v9390, %v9381
      %v9589 = vpack.c.b16 %v9391, %v9382
      %v9590 = vpack.c.b16 %v9392, %v9383
      %v9591 = vpack.c.b16 %v9402, %v9393
      %v9592 = vpack.c.b16 %v9403, %v9394
      %v9593 = vpack.c.b16 %v9404, %v9395
      %v9594 = vpack.c.b16 %v9405, %v9396
      %v9595 = vpack.c.b16 %v9406, %v9397
      %v9596 = vpack.c.b16 %v9407, %v9398
      %v9597 = vpack.c.b16 %v9408, %v9399
      %v9598 = vpack.c.b16 %v9409, %v9400
      %v9599 = vpack.c.b16 %v9410, %v9401
      %v9600 = vpack.c.b16 %v9420, %v9411
      %v9601 = vpack.c.b16 %v9421, %v9412
      %v9602 = vpack.c.b16 %v9422, %v9413
      %v9603 = vpack.c.b16 %v9423, %v9414
      %v9604 = vpack.c.b16 %v9424, %v9415
      %v9605 = vpack.c.b16 %v9425, %v9416
      %v9606 = vpack.c.b16 %v9426, %v9417
      %v9607 = vpack.c.b16 %v9427, %v9418
      %v9608 = vpack.c.b16 %v9428, %v9419
      %v9609 = vpack.c.b16 %v9438, %v9429
      %v9610 = vpack.c.b16 %v9439, %v9430
      %v9611 = vpack.c.b16 %v9440, %v9431
      %v9612 = vpack.c.b16 %v9441, %v9432
      %v9613 = vpack.c.b16 %v9442, %v9433
      %v9614 = vpack.c.b16 %v9443, %v9434
      %v9615 = vpack.c.b16 %v9444, %v9435
      %v9616 = vpack.c.b16 %v9445, %v9436
      %v9617 = vpack.c.b16 %v9446, %v9437
      %v9618 = vpack.c.b16 %v9456, %v9447
      %v9619 = vpack.c.b16 %v9457, %v9448
      %v9620 = vpack.c.b16 %v9458, %v9449
      %v9621 = vpack.c.b16 %v9459, %v9450
      %v9622 = vpack.c.b16 %v9460, %v9451
      %v9623 = vpack.c.b16 %v9461, %v9452
      %v9624 = vpack.c.b16 %v9462, %v9453
      %v9625 = vpack.c.b16 %v9463, %v9454
      %v9626 = vpack.c.b16 %v9464, %v9455
      %v9627 = vpack.c.b16 %v9474, %v9465
      %v9628 = vpack.c.b16 %v9475, %v9466
      %v9629 = vpack.c.b16 %v9476, %v9467
      %v9630 = vpack.c.b16 %v9477, %v9468
      %v9631 = vpack.c.b16 %v9478, %v9469
      %v9632 = vpack.c.b16 %v9479, %v9470
      %v9633 = vpack.c.b16 %v9480, %v9471
      %v9634 = vpack.c.b16 %v9481, %v9472
      %v9635 = vpack.c.b16 %v9482, %v9473
      %v9636 = vpack.c.b16 %v9492, %v9483
      %v9637 = vpack.c.b16 %v9493, %v9484
      %v9638 = vpack.c.b16 %v9494, %v9485
      %v9639 = vpack.c.b16 %v9495, %v9486
      %v9640 = vpack.c.b16 %v9496, %v9487
      %v9641 = vpack.c.b16 %v9497, %v9488
      %v9642 = vpack.c.b16 %v9498, %v9489
      %v9643 = vpack.c.b16 %v9499, %v9490
      %v9644 = vpack.c.b16 %v9500, %v9491
      %v9933 = vunpack.c.l.b16 %v8877
      %v9934 = vunpack.c.l.b16 %v8878
      %v9935 = vunpack.c.l.b16 %v8879
      %v9936 = vunpack.c.l.b16 %v8880
      %v9937 = vunpack.c.l.b16 %v8881
      %v9938 = vunpack.c.l.b16 %v8882
      %v9939 = vunpack.c.l.b16 %v8883
      %v9940 = vunpack.c.l.b16 %v8884
      %v9941 = vunpack.c.l.b16 %v8885
      %v9942 = vunpack.c.l.b16 %v8886
      %v9943 = vunpack.c.l.b16 %v8887
      %v9944 = vunpack.c.l.b16 %v8888
      %v9945 = vunpack.c.l.b16 %v8889
      %v9946 = vunpack.c.l.b16 %v8890
      %v9947 = vunpack.c.l.b16 %v8891
      %v9948 = vunpack.c.l.b16 %v8892
      %v9949 = vunpack.c.l.b16 %v8893
      %v9950 = vunpack.c.l.b16 %v8894
      %v9951 = vunpack.c.l.b16 %v8895
      %v9952 = vunpack.c.l.b16 %v8896
      %v9953 = vunpack.c.l.b16 %v8897
      %v9954 = vunpack.c.l.b16 %v8898
      %v9955 = vunpack.c.l.b16 %v8899
      %v9956 = vunpack.c.l.b16 %v8900
      %v9957 = vunpack.c.l.b16 %v8901
      %v9958 = vunpack.c.l.b16 %v8902
      %v9959 = vunpack.c.l.b16 %v8903
      %v9960 = vunpack.c.l.b16 %v8904
      %v9961 = vunpack.c.l.b16 %v8905
      %v9962 = vunpack.c.l.b16 %v8906
      %v9963 = vunpack.c.l.b16 %v8907
      %v9964 = vunpack.c.l.b16 %v8908
      %v9965 = vunpack.c.l.b16 %v8909
      %v9966 = vunpack.c.l.b16 %v8910
      %v9967 = vunpack.c.l.b16 %v8911
      %v9968 = vunpack.c.l.b16 %v8912
      %v9969 = vunpack.c.l.b16 %v8913
      %v9970 = vunpack.c.l.b16 %v8914
      %v9971 = vunpack.c.l.b16 %v8915
      %v9972 = vunpack.c.l.b16 %v8916
      %v9973 = vunpack.c.l.b16 %v8917
      %v9974 = vunpack.c.l.b16 %v8918
      %v9975 = vunpack.c.l.b16 %v8919
      %v9976 = vunpack.c.l.b16 %v8920
      %v9977 = vunpack.c.l.b16 %v8921
      %v9978 = vunpack.c.l.b16 %v8922
      %v9979 = vunpack.c.l.b16 %v8923
      %v9980 = vunpack.c.l.b16 %v8924
      %v9981 = vunpack.c.l.b16 %v8925
      %v9982 = vunpack.c.l.b16 %v8926
      %v9983 = vunpack.c.l.b16 %v8927
      %v9984 = vunpack.c.l.b16 %v8928
      %v9985 = vunpack.c.l.b16 %v8929
      %v9986 = vunpack.c.l.b16 %v8930
      %v9987 = vunpack.c.l.b16 %v8931
      %v9988 = vunpack.c.l.b16 %v8932
      %v9989 = vunpack.c.l.b16 %v8933
      %v9990 = vunpack.c.l.b16 %v8934
      %v9991 = vunpack.c.l.b16 %v8935
      %v9992 = vunpack.c.l.b16 %v8936
      %v9993 = vunpack.c.l.b16 %v8937
      %v9994 = vunpack.c.l.b16 %v8938
      %v9995 = vunpack.c.l.b16 %v8939
      %v9996 = vunpack.c.l.b16 %v8940
      %v9997 = vunpack.c.l.b16 %v8941
      %v9998 = vunpack.c.l.b16 %v8942
      %v9999 = vunpack.c.l.b16 %v8943
      %v10000 = vunpack.c.l.b16 %v8944
      %v10001 = vunpack.c.l.b16 %v8945
      %v10002 = vunpack.c.l.b16 %v8946
      %v10003 = vunpack.c.l.b16 %v8947
      %v10004 = vunpack.c.l.b16 %v8948
      %v10005 = vunpack.c.l.b16 %v8949
      %v10006 = vunpack.c.l.b16 %v8950
      %v10007 = vunpack.c.l.b16 %v8951
      %v10008 = vunpack.c.l.b16 %v8952
      %v10009 = vunpack.c.l.b16 %v8953
      %v10010 = vunpack.c.l.b16 %v8954
      %v10011 = vunpack.c.l.b16 %v8955
      %v10012 = vunpack.c.l.b16 %v8956
      %v10013 = vunpack.c.l.b16 %v8957
      %v10014 = vunpack.c.l.b16 %v8958
      %v10015 = vunpack.c.l.b16 %v8959
      %v10016 = vunpack.c.l.b16 %v8960
      %v10017 = vunpack.c.l.b16 %v8961
      %v10018 = vunpack.c.l.b16 %v8962
      %v10019 = vunpack.c.l.b16 %v8963
      %v10020 = vunpack.c.l.b16 %v8964
      %v10021 = vunpack.c.l.b16 %v8965
      %v10022 = vunpack.c.l.b16 %v8966
      %v10023 = vunpack.c.l.b16 %v8967
      %v10024 = vunpack.c.l.b16 %v8968
      %v10025 = vunpack.c.l.b16 %v8969
      %v10026 = vunpack.c.l.b16 %v8970
      %v10027 = vunpack.c.l.b16 %v8971
      %v10028 = vunpack.c.l.b16 %v8972
      %v10029 = vunpack.c.l.b16 %v8973
      %v10030 = vunpack.c.l.b16 %v8974
      %v10031 = vunpack.c.l.b16 %v8975
      %v10032 = vunpack.c.l.b16 %v8976
      %v10033 = vunpack.c.l.b16 %v8977
      %v10034 = vunpack.c.l.b16 %v8978
      %v10035 = vunpack.c.l.b16 %v8979
      %v10036 = vunpack.c.l.b16 %v8980
      %v10037 = vunpack.c.l.b16 %v8981
      %v10038 = vunpack.c.l.b16 %v8982
      %v10039 = vunpack.c.l.b16 %v8983
      %v10040 = vunpack.c.l.b16 %v8984
      %v10041 = vunpack.c.l.b16 %v8985
      %v10042 = vunpack.c.l.b16 %v8986
      %v10043 = vunpack.c.l.b16 %v8987
      %v10044 = vunpack.c.l.b16 %v8988
      %v10045 = vunpack.c.l.b16 %v8989
      %v10046 = vunpack.c.l.b16 %v8990
      %v10047 = vunpack.c.l.b16 %v8991
      %v10048 = vunpack.c.l.b16 %v8992
      %v10049 = vunpack.c.l.b16 %v8993
      %v10050 = vunpack.c.l.b16 %v8994
      %v10051 = vunpack.c.l.b16 %v8995
      %v10052 = vunpack.c.l.b16 %v8996
      %v10053 = vunpack.c.l.b16 %v8997
      %v10054 = vunpack.c.l.b16 %v8998
      %v10055 = vunpack.c.l.b16 %v8999
      %v10056 = vunpack.c.l.b16 %v9000
      %v10057 = vunpack.c.l.b16 %v9001
      %v10058 = vunpack.c.l.b16 %v9002
      %v10059 = vunpack.c.l.b16 %v9003
      %v10060 = vunpack.c.l.b16 %v9004
      %v10061 = vunpack.c.l.b16 %v9005
      %v10062 = vunpack.c.l.b16 %v9006
      %v10063 = vunpack.c.l.b16 %v9007
      %v10064 = vunpack.c.l.b16 %v9008
      %v10065 = vunpack.c.l.b16 %v9009
      %v10066 = vunpack.c.l.b16 %v9010
      %v10067 = vunpack.c.l.b16 %v9011
      %v10068 = vunpack.c.l.b16 %v9012
      %v10069 = vunpack.c.l.b16 %v9013
      %v10070 = vunpack.c.l.b16 %v9014
      %v10071 = vunpack.c.l.b16 %v9015
      %v10072 = vunpack.c.l.b16 %v9016
      %v10073 = vunpack.c.l.b16 %v9017
      %v10074 = vunpack.c.l.b16 %v9018
      %v10075 = vunpack.c.l.b16 %v9019
      %v10076 = vunpack.c.l.b16 %v9020
      %v10077 = vpack.c.b16 %v9934, %v9933
      %v10078 = vpack.c.b16 %v9936, %v9935
      %v10079 = vpack.c.b16 %v9938, %v9937
      %v10080 = vpack.c.b16 %v9940, %v9939
      %v10081 = vpack.c.b16 %v9942, %v9941
      %v10082 = vpack.c.b16 %v9944, %v9943
      %v10083 = vpack.c.b16 %v9946, %v9945
      %v10084 = vpack.c.b16 %v9948, %v9947
      %v10085 = vpack.c.b16 %v9950, %v9949
      %v10086 = vpack.c.b16 %v9952, %v9951
      %v10087 = vpack.c.b16 %v9954, %v9953
      %v10088 = vpack.c.b16 %v9956, %v9955
      %v10089 = vpack.c.b16 %v9958, %v9957
      %v10090 = vpack.c.b16 %v9960, %v9959
      %v10091 = vpack.c.b16 %v9962, %v9961
      %v10092 = vpack.c.b16 %v9964, %v9963
      %v10093 = vpack.c.b16 %v9966, %v9965
      %v10094 = vpack.c.b16 %v9968, %v9967
      %v10095 = vpack.c.b16 %v9970, %v9969
      %v10096 = vpack.c.b16 %v9972, %v9971
      %v10097 = vpack.c.b16 %v9974, %v9973
      %v10098 = vpack.c.b16 %v9976, %v9975
      %v10099 = vpack.c.b16 %v9978, %v9977
      %v10100 = vpack.c.b16 %v9980, %v9979
      %v10101 = vpack.c.b16 %v9982, %v9981
      %v10102 = vpack.c.b16 %v9984, %v9983
      %v10103 = vpack.c.b16 %v9986, %v9985
      %v10104 = vpack.c.b16 %v9988, %v9987
      %v10105 = vpack.c.b16 %v9990, %v9989
      %v10106 = vpack.c.b16 %v9992, %v9991
      %v10107 = vpack.c.b16 %v9994, %v9993
      %v10108 = vpack.c.b16 %v9996, %v9995
      %v10109 = vpack.c.b16 %v9998, %v9997
      %v10110 = vpack.c.b16 %v10000, %v9999
      %v10111 = vpack.c.b16 %v10002, %v10001
      %v10112 = vpack.c.b16 %v10004, %v10003
      %v10113 = vpack.c.b16 %v10006, %v10005
      %v10114 = vpack.c.b16 %v10008, %v10007
      %v10115 = vpack.c.b16 %v10010, %v10009
      %v10116 = vpack.c.b16 %v10012, %v10011
      %v10117 = vpack.c.b16 %v10014, %v10013
      %v10118 = vpack.c.b16 %v10016, %v10015
      %v10119 = vpack.c.b16 %v10018, %v10017
      %v10120 = vpack.c.b16 %v10020, %v10019
      %v10121 = vpack.c.b16 %v10022, %v10021
      %v10122 = vpack.c.b16 %v10024, %v10023
      %v10123 = vpack.c.b16 %v10026, %v10025
      %v10124 = vpack.c.b16 %v10028, %v10027
      %v10125 = vpack.c.b16 %v10030, %v10029
      %v10126 = vpack.c.b16 %v10032, %v10031
      %v10127 = vpack.c.b16 %v10034, %v10033
      %v10128 = vpack.c.b16 %v10036, %v10035
      %v10129 = vpack.c.b16 %v10038, %v10037
      %v10130 = vpack.c.b16 %v10040, %v10039
      %v10131 = vpack.c.b16 %v10042, %v10041
      %v10132 = vpack.c.b16 %v10044, %v10043
      %v10133 = vpack.c.b16 %v10046, %v10045
      %v10134 = vpack.c.b16 %v10048, %v10047
      %v10135 = vpack.c.b16 %v10050, %v10049
      %v10136 = vpack.c.b16 %v10052, %v10051
      %v10137 = vpack.c.b16 %v10054, %v10053
      %v10138 = vpack.c.b16 %v10056, %v10055
      %v10139 = vpack.c.b16 %v10058, %v10057
      %v10140 = vpack.c.b16 %v10060, %v10059
      %v10141 = vpack.c.b16 %v10062, %v10061
      %v10142 = vpack.c.b16 %v10064, %v10063
      %v10143 = vpack.c.b16 %v10066, %v10065
      %v10144 = vpack.c.b16 %v10068, %v10067
      %v10145 = vpack.c.b16 %v10070, %v10069
      %v10146 = vpack.c.b16 %v10072, %v10071
      %v10147 = vpack.c.b16 %v10074, %v10073
      %v10148 = vpack.c.b16 %v10076, %v10075
      %10221 = vmatpush.bf16.msra.mxu0 %v10084
      %10222 = vmatpush.bf16.msra.mxu0 %v10083
      %10223 = vmatpush.bf16.msra.mxu0 %v10082
      %10224 = vmatpush.bf16.msra.mxu0 %v10081
      %10225 = vmatpush.bf16.msra.mxu0 %v10080
      %10226 = vmatpush.bf16.msra.mxu0 %v10079
      %10227 = vmatpush.bf16.msra.mxu0 %v10078
      %10228 = vmatpush.bf16.msra.mxu0 %v10077
      %10229 = vmatmul.bf16.gmra.mxu0 %v9501
      %v10230 = vpop.f32.mrf.mxu0
      %v10231 = vadd.f32 %v9021, %v10230
      %v10232 = vpop.f32.mrf.mxu0
      %v10233 = vadd.f32 %v9022, %v10232
      %10234 = vmatmul.bf16.gmra.mxu0 %v9510
      %v10235 = vpop.f32.mrf.mxu0
      %v10236 = vadd.f32 %v9023, %v10235
      %v10237 = vpop.f32.mrf.mxu0
      %v10238 = vadd.f32 %v9024, %v10237
      %10239 = vmatmul.bf16.gmra.mxu0 %v9519
      %v10240 = vpop.f32.mrf.mxu0
      %v10241 = vadd.f32 %v9025, %v10240
      %v10242 = vpop.f32.mrf.mxu0
      %v10243 = vadd.f32 %v9026, %v10242
      %10244 = vmatmul.bf16.gmra.mxu0 %v9528
      %v10245 = vpop.f32.mrf.mxu0
      %v10246 = vadd.f32 %v9027, %v10245
      %v10247 = vpop.f32.mrf.mxu0
      %v10248 = vadd.f32 %v9028, %v10247
      %10249 = vmatmul.bf16.gmra.mxu0 %v9537
      %v10250 = vpop.f32.mrf.mxu0
      %v10251 = vadd.f32 %v9029, %v10250
      %v10252 = vpop.f32.mrf.mxu0
      %v10253 = vadd.f32 %v9030, %v10252
      %10254 = vmatmul.bf16.gmra.mxu0 %v9546
      %v10255 = vpop.f32.mrf.mxu0
      %v10256 = vadd.f32 %v9031, %v10255
      %v10257 = vpop.f32.mrf.mxu0
      %v10258 = vadd.f32 %v9032, %v10257
      %10259 = vmatmul.bf16.gmra.mxu0 %v9555
      %v10260 = vpop.f32.mrf.mxu0
      %v10261 = vadd.f32 %v9033, %v10260
      %v10262 = vpop.f32.mrf.mxu0
      %v10263 = vadd.f32 %v9034, %v10262
      %10264 = vmatmul.bf16.gmra.mxu0 %v9564
      %v10265 = vpop.f32.mrf.mxu0
      %v10266 = vadd.f32 %v9035, %v10265
      %v10267 = vpop.f32.mrf.mxu0
      %v10268 = vadd.f32 %v9036, %v10267
      %10269 = vmatmul.bf16.gmra.mxu0 %v9573
      %v10270 = vpop.f32.mrf.mxu0
      %v10271 = vadd.f32 %v9037, %v10270
      %v10272 = vpop.f32.mrf.mxu0
      %v10273 = vadd.f32 %v9038, %v10272
      %10274 = vmatmul.bf16.gmra.mxu0 %v9582
      %v10275 = vpop.f32.mrf.mxu0
      %v10276 = vadd.f32 %v9039, %v10275
      %v10277 = vpop.f32.mrf.mxu0
      %v10278 = vadd.f32 %v9040, %v10277
      %10279 = vmatmul.bf16.gmra.mxu0 %v9591
      %v10280 = vpop.f32.mrf.mxu0
      %v10281 = vadd.f32 %v9041, %v10280
      %v10282 = vpop.f32.mrf.mxu0
      %v10283 = vadd.f32 %v9042, %v10282
      %10284 = vmatmul.bf16.gmra.mxu0 %v9600
      %v10285 = vpop.f32.mrf.mxu0
      %v10286 = vadd.f32 %v9043, %v10285
      %v10287 = vpop.f32.mrf.mxu0
      %v10288 = vadd.f32 %v9044, %v10287
      %10289 = vmatmul.bf16.gmra.mxu0 %v9609
      %v10290 = vpop.f32.mrf.mxu0
      %v10291 = vadd.f32 %v9045, %v10290
      %v10292 = vpop.f32.mrf.mxu0
      %v10293 = vadd.f32 %v9046, %v10292
      %10294 = vmatmul.bf16.gmra.mxu0 %v9618
      %v10295 = vpop.f32.mrf.mxu0
      %v10296 = vadd.f32 %v9047, %v10295
      %v10297 = vpop.f32.mrf.mxu0
      %v10298 = vadd.f32 %v9048, %v10297
      %10299 = vmatmul.bf16.gmra.mxu0 %v9627
      %v10300 = vpop.f32.mrf.mxu0
      %v10301 = vadd.f32 %v9049, %v10300
      %v10302 = vpop.f32.mrf.mxu0
      %v10303 = vadd.f32 %v9050, %v10302
      %10304 = vmatmul.bf16.gmra.mxu0 %v9636
      %v10305 = vpop.f32.mrf.mxu0
      %v10306 = vadd.f32 %v9051, %v10305
      %v10307 = vpop.f32.mrf.mxu0
      %v10308 = vadd.f32 %v9052, %v10307
      %10309 = vdwg.mxu0
      %10310 = vmatpush.bf16.msra.mxu0 %v10092
      %10311 = vmatpush.bf16.msra.mxu0 %v10091
      %10312 = vmatpush.bf16.msra.mxu0 %v10090
      %10313 = vmatpush.bf16.msra.mxu0 %v10089
      %10314 = vmatpush.bf16.msra.mxu0 %v10088
      %10315 = vmatpush.bf16.msra.mxu0 %v10087
      %10316 = vmatpush.bf16.msra.mxu0 %v10086
      %10317 = vmatpush.bf16.msra.mxu0 %v10085
      %10318 = vmatmul.bf16.gmra.mxu0 %v9502
      %v10319 = vpop.f32.mrf.mxu0
      %v10320 = vadd.f32 %v10231, %v10319
      %v10321 = vpop.f32.mrf.mxu0
      %v10322 = vadd.f32 %v10233, %v10321
      %10323 = vmatmul.bf16.gmra.mxu0 %v9511
      %v10324 = vpop.f32.mrf.mxu0
      %v10325 = vadd.f32 %v10236, %v10324
      %v10326 = vpop.f32.mrf.mxu0
      %v10327 = vadd.f32 %v10238, %v10326
      %10328 = vmatmul.bf16.gmra.mxu0 %v9520
      %v10329 = vpop.f32.mrf.mxu0
      %v10330 = vadd.f32 %v10241, %v10329
      %v10331 = vpop.f32.mrf.mxu0
      %v10332 = vadd.f32 %v10243, %v10331
      %10333 = vmatmul.bf16.gmra.mxu0 %v9529
      %v10334 = vpop.f32.mrf.mxu0
      %v10335 = vadd.f32 %v10246, %v10334
      %v10336 = vpop.f32.mrf.mxu0
      %v10337 = vadd.f32 %v10248, %v10336
      %10338 = vmatmul.bf16.gmra.mxu0 %v9538
      %v10339 = vpop.f32.mrf.mxu0
      %v10340 = vadd.f32 %v10251, %v10339
      %v10341 = vpop.f32.mrf.mxu0
      %v10342 = vadd.f32 %v10253, %v10341
      %10343 = vmatmul.bf16.gmra.mxu0 %v9547
      %v10344 = vpop.f32.mrf.mxu0
      %v10345 = vadd.f32 %v10256, %v10344
      %v10346 = vpop.f32.mrf.mxu0
      %v10347 = vadd.f32 %v10258, %v10346
      %10348 = vmatmul.bf16.gmra.mxu0 %v9556
      %v10349 = vpop.f32.mrf.mxu0
      %v10350 = vadd.f32 %v10261, %v10349
      %v10351 = vpop.f32.mrf.mxu0
      %v10352 = vadd.f32 %v10263, %v10351
      %10353 = vmatmul.bf16.gmra.mxu0 %v9565
      %v10354 = vpop.f32.mrf.mxu0
      %v10355 = vadd.f32 %v10266, %v10354
      %v10356 = vpop.f32.mrf.mxu0
      %v10357 = vadd.f32 %v10268, %v10356
      %10358 = vmatmul.bf16.gmra.mxu0 %v9574
      %v10359 = vpop.f32.mrf.mxu0
      %v10360 = vadd.f32 %v10271, %v10359
      %v10361 = vpop.f32.mrf.mxu0
      %v10362 = vadd.f32 %v10273, %v10361
      %10363 = vmatmul.bf16.gmra.mxu0 %v9583
      %v10364 = vpop.f32.mrf.mxu0
      %v10365 = vadd.f32 %v10276, %v10364
      %v10366 = vpop.f32.mrf.mxu0
      %v10367 = vadd.f32 %v10278, %v10366
      %10368 = vmatmul.bf16.gmra.mxu0 %v9592
      %v10369 = vpop.f32.mrf.mxu0
      %v10370 = vadd.f32 %v10281, %v10369
      %v10371 = vpop.f32.mrf.mxu0
      %v10372 = vadd.f32 %v10283, %v10371
      %10373 = vmatmul.bf16.gmra.mxu0 %v9601
      %v10374 = vpop.f32.mrf.mxu0
      %v10375 = vadd.f32 %v10286, %v10374
      %v10376 = vpop.f32.mrf.mxu0
      %v10377 = vadd.f32 %v10288, %v10376
      %10378 = vmatmul.bf16.gmra.mxu0 %v9610
      %v10379 = vpop.f32.mrf.mxu0
      %v10380 = vadd.f32 %v10291, %v10379
      %v10381 = vpop.f32.mrf.mxu0
      %v10382 = vadd.f32 %v10293, %v10381
      %10383 = vmatmul.bf16.gmra.mxu0 %v9619
      %v10384 = vpop.f32.mrf.mxu0
      %v10385 = vadd.f32 %v10296, %v10384
      %v10386 = vpop.f32.mrf.mxu0
      %v10387 = vadd.f32 %v10298, %v10386
      %10388 = vmatmul.bf16.gmra.mxu0 %v9628
      %v10389 = vpop.f32.mrf.mxu0
      %v10390 = vadd.f32 %v10301, %v10389
      %v10391 = vpop.f32.mrf.mxu0
      %v10392 = vadd.f32 %v10303, %v10391
      %10393 = vmatmul.bf16.gmra.mxu0 %v9637
      %v10394 = vpop.f32.mrf.mxu0
      %v10395 = vadd.f32 %v10306, %v10394
      %v10396 = vpop.f32.mrf.mxu0
      %v10397 = vadd.f32 %v10308, %v10396
      %10398 = vdwg.mxu0
      %10399 = vmatpush.bf16.msra.mxu0 %v10100
      %10400 = vmatpush.bf16.msra.mxu0 %v10099
      %10401 = vmatpush.bf16.msra.mxu0 %v10098
      %10402 = vmatpush.bf16.msra.mxu0 %v10097
      %10403 = vmatpush.bf16.msra.mxu0 %v10096
      %10404 = vmatpush.bf16.msra.mxu0 %v10095
      %10405 = vmatpush.bf16.msra.mxu0 %v10094
      %10406 = vmatpush.bf16.msra.mxu0 %v10093
      %10407 = vmatmul.bf16.gmra.mxu0 %v9503
      %v10408 = vpop.f32.mrf.mxu0
      %v10409 = vadd.f32 %v10320, %v10408
      %v10410 = vpop.f32.mrf.mxu0
      %v10411 = vadd.f32 %v10322, %v10410
      %10412 = vmatmul.bf16.gmra.mxu0 %v9512
      %v10413 = vpop.f32.mrf.mxu0
      %v10414 = vadd.f32 %v10325, %v10413
      %v10415 = vpop.f32.mrf.mxu0
      %v10416 = vadd.f32 %v10327, %v10415
      %10417 = vmatmul.bf16.gmra.mxu0 %v9521
      %v10418 = vpop.f32.mrf.mxu0
      %v10419 = vadd.f32 %v10330, %v10418
      %v10420 = vpop.f32.mrf.mxu0
      %v10421 = vadd.f32 %v10332, %v10420
      %10422 = vmatmul.bf16.gmra.mxu0 %v9530
      %v10423 = vpop.f32.mrf.mxu0
      %v10424 = vadd.f32 %v10335, %v10423
      %v10425 = vpop.f32.mrf.mxu0
      %v10426 = vadd.f32 %v10337, %v10425
      %10427 = vmatmul.bf16.gmra.mxu0 %v9539
      %v10428 = vpop.f32.mrf.mxu0
      %v10429 = vadd.f32 %v10340, %v10428
      %v10430 = vpop.f32.mrf.mxu0
      %v10431 = vadd.f32 %v10342, %v10430
      %10432 = vmatmul.bf16.gmra.mxu0 %v9548
      %v10433 = vpop.f32.mrf.mxu0
      %v10434 = vadd.f32 %v10345, %v10433
      %v10435 = vpop.f32.mrf.mxu0
      %v10436 = vadd.f32 %v10347, %v10435
      %10437 = vmatmul.bf16.gmra.mxu0 %v9557
      %v10438 = vpop.f32.mrf.mxu0
      %v10439 = vadd.f32 %v10350, %v10438
      %v10440 = vpop.f32.mrf.mxu0
      %v10441 = vadd.f32 %v10352, %v10440
      %10442 = vmatmul.bf16.gmra.mxu0 %v9566
      %v10443 = vpop.f32.mrf.mxu0
      %v10444 = vadd.f32 %v10355, %v10443
      %v10445 = vpop.f32.mrf.mxu0
      %v10446 = vadd.f32 %v10357, %v10445
      %10447 = vmatmul.bf16.gmra.mxu0 %v9575
      %v10448 = vpop.f32.mrf.mxu0
      %v10449 = vadd.f32 %v10360, %v10448
      %v10450 = vpop.f32.mrf.mxu0
      %v10451 = vadd.f32 %v10362, %v10450
      %10452 = vmatmul.bf16.gmra.mxu0 %v9584
      %v10453 = vpop.f32.mrf.mxu0
      %v10454 = vadd.f32 %v10365, %v10453
      %v10455 = vpop.f32.mrf.mxu0
      %v10456 = vadd.f32 %v10367, %v10455
      %10457 = vmatmul.bf16.gmra.mxu0 %v9593
      %v10458 = vpop.f32.mrf.mxu0
      %v10459 = vadd.f32 %v10370, %v10458
      %v10460 = vpop.f32.mrf.mxu0
      %v10461 = vadd.f32 %v10372, %v10460
      %10462 = vmatmul.bf16.gmra.mxu0 %v9602
      %v10463 = vpop.f32.mrf.mxu0
      %v10464 = vadd.f32 %v10375, %v10463
      %v10465 = vpop.f32.mrf.mxu0
      %v10466 = vadd.f32 %v10377, %v10465
      %10467 = vmatmul.bf16.gmra.mxu0 %v9611
      %v10468 = vpop.f32.mrf.mxu0
      %v10469 = vadd.f32 %v10380, %v10468
      %v10470 = vpop.f32.mrf.mxu0
      %v10471 = vadd.f32 %v10382, %v10470
      %10472 = vmatmul.bf16.gmra.mxu0 %v9620
      %v10473 = vpop.f32.mrf.mxu0
      %v10474 = vadd.f32 %v10385, %v10473
      %v10475 = vpop.f32.mrf.mxu0
      %v10476 = vadd.f32 %v10387, %v10475
      %10477 = vmatmul.bf16.gmra.mxu0 %v9629
      %v10478 = vpop.f32.mrf.mxu0
      %v10479 = vadd.f32 %v10390, %v10478
      %v10480 = vpop.f32.mrf.mxu0
      %v10481 = vadd.f32 %v10392, %v10480
      %10482 = vmatmul.bf16.gmra.mxu0 %v9638
      %v10483 = vpop.f32.mrf.mxu0
      %v10484 = vadd.f32 %v10395, %v10483
      %v10485 = vpop.f32.mrf.mxu0
      %v10486 = vadd.f32 %v10397, %v10485
      %10487 = vdwg.mxu0
      %10488 = vmatpush.bf16.msra.mxu0 %v10108
      %10489 = vmatpush.bf16.msra.mxu0 %v10107
      %10490 = vmatpush.bf16.msra.mxu0 %v10106
      %10491 = vmatpush.bf16.msra.mxu0 %v10105
      %10492 = vmatpush.bf16.msra.mxu0 %v10104
      %10493 = vmatpush.bf16.msra.mxu0 %v10103
      %10494 = vmatpush.bf16.msra.mxu0 %v10102
      %10495 = vmatpush.bf16.msra.mxu0 %v10101
      %10496 = vmatmul.bf16.gmra.mxu0 %v9504
      %v10497 = vpop.f32.mrf.mxu0
      %v10498 = vadd.f32 %v10409, %v10497
      %v10499 = vpop.f32.mrf.mxu0
      %v10500 = vadd.f32 %v10411, %v10499
      %10501 = vmatmul.bf16.gmra.mxu0 %v9513
      %v10502 = vpop.f32.mrf.mxu0
      %v10503 = vadd.f32 %v10414, %v10502
      %v10504 = vpop.f32.mrf.mxu0
      %v10505 = vadd.f32 %v10416, %v10504
      %10506 = vmatmul.bf16.gmra.mxu0 %v9522
      %v10507 = vpop.f32.mrf.mxu0
      %v10508 = vadd.f32 %v10419, %v10507
      %v10509 = vpop.f32.mrf.mxu0
      %v10510 = vadd.f32 %v10421, %v10509
      %10511 = vmatmul.bf16.gmra.mxu0 %v9531
      %v10512 = vpop.f32.mrf.mxu0
      %v10513 = vadd.f32 %v10424, %v10512
      %v10514 = vpop.f32.mrf.mxu0
      %v10515 = vadd.f32 %v10426, %v10514
      %10516 = vmatmul.bf16.gmra.mxu0 %v9540
      %v10517 = vpop.f32.mrf.mxu0
      %v10518 = vadd.f32 %v10429, %v10517
      %v10519 = vpop.f32.mrf.mxu0
      %v10520 = vadd.f32 %v10431, %v10519
      %10521 = vmatmul.bf16.gmra.mxu0 %v9549
      %v10522 = vpop.f32.mrf.mxu0
      %v10523 = vadd.f32 %v10434, %v10522
      %v10524 = vpop.f32.mrf.mxu0
      %v10525 = vadd.f32 %v10436, %v10524
      %10526 = vmatmul.bf16.gmra.mxu0 %v9558
      %v10527 = vpop.f32.mrf.mxu0
      %v10528 = vadd.f32 %v10439, %v10527
      %v10529 = vpop.f32.mrf.mxu0
      %v10530 = vadd.f32 %v10441, %v10529
      %10531 = vmatmul.bf16.gmra.mxu0 %v9567
      %v10532 = vpop.f32.mrf.mxu0
      %v10533 = vadd.f32 %v10444, %v10532
      %v10534 = vpop.f32.mrf.mxu0
      %v10535 = vadd.f32 %v10446, %v10534
      %10536 = vmatmul.bf16.gmra.mxu0 %v9576
      %v10537 = vpop.f32.mrf.mxu0
      %v10538 = vadd.f32 %v10449, %v10537
      %v10539 = vpop.f32.mrf.mxu0
      %v10540 = vadd.f32 %v10451, %v10539
      %10541 = vmatmul.bf16.gmra.mxu0 %v9585
      %v10542 = vpop.f32.mrf.mxu0
      %v10543 = vadd.f32 %v10454, %v10542
      %v10544 = vpop.f32.mrf.mxu0
      %v10545 = vadd.f32 %v10456, %v10544
      %10546 = vmatmul.bf16.gmra.mxu0 %v9594
      %v10547 = vpop.f32.mrf.mxu0
      %v10548 = vadd.f32 %v10459, %v10547
      %v10549 = vpop.f32.mrf.mxu0
      %v10550 = vadd.f32 %v10461, %v10549
      %10551 = vmatmul.bf16.gmra.mxu0 %v9603
      %v10552 = vpop.f32.mrf.mxu0
      %v10553 = vadd.f32 %v10464, %v10552
      %v10554 = vpop.f32.mrf.mxu0
      %v10555 = vadd.f32 %v10466, %v10554
      %10556 = vmatmul.bf16.gmra.mxu0 %v9612
      %v10557 = vpop.f32.mrf.mxu0
      %v10558 = vadd.f32 %v10469, %v10557
      %v10559 = vpop.f32.mrf.mxu0
      %v10560 = vadd.f32 %v10471, %v10559
      %10561 = vmatmul.bf16.gmra.mxu0 %v9621
      %v10562 = vpop.f32.mrf.mxu0
      %v10563 = vadd.f32 %v10474, %v10562
      %v10564 = vpop.f32.mrf.mxu0
      %v10565 = vadd.f32 %v10476, %v10564
      %10566 = vmatmul.bf16.gmra.mxu0 %v9630
      %v10567 = vpop.f32.mrf.mxu0
      %v10568 = vadd.f32 %v10479, %v10567
      %v10569 = vpop.f32.mrf.mxu0
      %v10570 = vadd.f32 %v10481, %v10569
      %10571 = vmatmul.bf16.gmra.mxu0 %v9639
      %v10572 = vpop.f32.mrf.mxu0
      %v10573 = vadd.f32 %v10484, %v10572
      %v10574 = vpop.f32.mrf.mxu0
      %v10575 = vadd.f32 %v10486, %v10574
      %10576 = vdwg.mxu0
      %10577 = vmatpush.bf16.msra.mxu0 %v10116
      %10578 = vmatpush.bf16.msra.mxu0 %v10115
      %10579 = vmatpush.bf16.msra.mxu0 %v10114
      %10580 = vmatpush.bf16.msra.mxu0 %v10113
      %10581 = vmatpush.bf16.msra.mxu0 %v10112
      %10582 = vmatpush.bf16.msra.mxu0 %v10111
      %10583 = vmatpush.bf16.msra.mxu0 %v10110
      %10584 = vmatpush.bf16.msra.mxu0 %v10109
      %10585 = vmatmul.bf16.gmra.mxu0 %v9505
      %v10586 = vpop.f32.mrf.mxu0
      %v10587 = vadd.f32 %v10498, %v10586
      %v10588 = vpop.f32.mrf.mxu0
      %v10589 = vadd.f32 %v10500, %v10588
      %10590 = vmatmul.bf16.gmra.mxu0 %v9514
      %v10591 = vpop.f32.mrf.mxu0
      %v10592 = vadd.f32 %v10503, %v10591
      %v10593 = vpop.f32.mrf.mxu0
      %v10594 = vadd.f32 %v10505, %v10593
      %10595 = vmatmul.bf16.gmra.mxu0 %v9523
      %v10596 = vpop.f32.mrf.mxu0
      %v10597 = vadd.f32 %v10508, %v10596
      %v10598 = vpop.f32.mrf.mxu0
      %v10599 = vadd.f32 %v10510, %v10598
      %10600 = vmatmul.bf16.gmra.mxu0 %v9532
      %v10601 = vpop.f32.mrf.mxu0
      %v10602 = vadd.f32 %v10513, %v10601
      %v10603 = vpop.f32.mrf.mxu0
      %v10604 = vadd.f32 %v10515, %v10603
      %10605 = vmatmul.bf16.gmra.mxu0 %v9541
      %v10606 = vpop.f32.mrf.mxu0
      %v10607 = vadd.f32 %v10518, %v10606
      %v10608 = vpop.f32.mrf.mxu0
      %v10609 = vadd.f32 %v10520, %v10608
      %10610 = vmatmul.bf16.gmra.mxu0 %v9550
      %v10611 = vpop.f32.mrf.mxu0
      %v10612 = vadd.f32 %v10523, %v10611
      %v10613 = vpop.f32.mrf.mxu0
      %v10614 = vadd.f32 %v10525, %v10613
      %10615 = vmatmul.bf16.gmra.mxu0 %v9559
      %v10616 = vpop.f32.mrf.mxu0
      %v10617 = vadd.f32 %v10528, %v10616
      %v10618 = vpop.f32.mrf.mxu0
      %v10619 = vadd.f32 %v10530, %v10618
      %10620 = vmatmul.bf16.gmra.mxu0 %v9568
      %v10621 = vpop.f32.mrf.mxu0
      %v10622 = vadd.f32 %v10533, %v10621
      %v10623 = vpop.f32.mrf.mxu0
      %v10624 = vadd.f32 %v10535, %v10623
      %10625 = vmatmul.bf16.gmra.mxu0 %v9577
      %v10626 = vpop.f32.mrf.mxu0
      %v10627 = vadd.f32 %v10538, %v10626
      %v10628 = vpop.f32.mrf.mxu0
      %v10629 = vadd.f32 %v10540, %v10628
      %10630 = vmatmul.bf16.gmra.mxu0 %v9586
      %v10631 = vpop.f32.mrf.mxu0
      %v10632 = vadd.f32 %v10543, %v10631
      %v10633 = vpop.f32.mrf.mxu0
      %v10634 = vadd.f32 %v10545, %v10633
      %10635 = vmatmul.bf16.gmra.mxu0 %v9595
      %v10636 = vpop.f32.mrf.mxu0
      %v10637 = vadd.f32 %v10548, %v10636
      %v10638 = vpop.f32.mrf.mxu0
      %v10639 = vadd.f32 %v10550, %v10638
      %10640 = vmatmul.bf16.gmra.mxu0 %v9604
      %v10641 = vpop.f32.mrf.mxu0
      %v10642 = vadd.f32 %v10553, %v10641
      %v10643 = vpop.f32.mrf.mxu0
      %v10644 = vadd.f32 %v10555, %v10643
      %10645 = vmatmul.bf16.gmra.mxu0 %v9613
      %v10646 = vpop.f32.mrf.mxu0
      %v10647 = vadd.f32 %v10558, %v10646
      %v10648 = vpop.f32.mrf.mxu0
      %v10649 = vadd.f32 %v10560, %v10648
      %10650 = vmatmul.bf16.gmra.mxu0 %v9622
      %v10651 = vpop.f32.mrf.mxu0
      %v10652 = vadd.f32 %v10563, %v10651
      %v10653 = vpop.f32.mrf.mxu0
      %v10654 = vadd.f32 %v10565, %v10653
      %10655 = vmatmul.bf16.gmra.mxu0 %v9631
      %v10656 = vpop.f32.mrf.mxu0
      %v10657 = vadd.f32 %v10568, %v10656
      %v10658 = vpop.f32.mrf.mxu0
      %v10659 = vadd.f32 %v10570, %v10658
      %10660 = vmatmul.bf16.gmra.mxu0 %v9640
      %v10661 = vpop.f32.mrf.mxu0
      %v10662 = vadd.f32 %v10573, %v10661
      %v10663 = vpop.f32.mrf.mxu0
      %v10664 = vadd.f32 %v10575, %v10663
      %10665 = vdwg.mxu0
      %10666 = vmatpush.bf16.msra.mxu0 %v10124
      %10667 = vmatpush.bf16.msra.mxu0 %v10123
      %10668 = vmatpush.bf16.msra.mxu0 %v10122
      %10669 = vmatpush.bf16.msra.mxu0 %v10121
      %10670 = vmatpush.bf16.msra.mxu0 %v10120
      %10671 = vmatpush.bf16.msra.mxu0 %v10119
      %10672 = vmatpush.bf16.msra.mxu0 %v10118
      %10673 = vmatpush.bf16.msra.mxu0 %v10117
      %10674 = vmatmul.bf16.gmra.mxu0 %v9506
      %v10675 = vpop.f32.mrf.mxu0
      %v10676 = vadd.f32 %v10587, %v10675
      %v10677 = vpop.f32.mrf.mxu0
      %v10678 = vadd.f32 %v10589, %v10677
      %10679 = vmatmul.bf16.gmra.mxu0 %v9515
      %v10680 = vpop.f32.mrf.mxu0
      %v10681 = vadd.f32 %v10592, %v10680
      %v10682 = vpop.f32.mrf.mxu0
      %v10683 = vadd.f32 %v10594, %v10682
      %10684 = vmatmul.bf16.gmra.mxu0 %v9524
      %v10685 = vpop.f32.mrf.mxu0
      %v10686 = vadd.f32 %v10597, %v10685
      %v10687 = vpop.f32.mrf.mxu0
      %v10688 = vadd.f32 %v10599, %v10687
      %10689 = vmatmul.bf16.gmra.mxu0 %v9533
      %v10690 = vpop.f32.mrf.mxu0
      %v10691 = vadd.f32 %v10602, %v10690
      %v10692 = vpop.f32.mrf.mxu0
      %v10693 = vadd.f32 %v10604, %v10692
      %10694 = vmatmul.bf16.gmra.mxu0 %v9542
      %v10695 = vpop.f32.mrf.mxu0
      %v10696 = vadd.f32 %v10607, %v10695
      %v10697 = vpop.f32.mrf.mxu0
      %v10698 = vadd.f32 %v10609, %v10697
      %10699 = vmatmul.bf16.gmra.mxu0 %v9551
      %v10700 = vpop.f32.mrf.mxu0
      %v10701 = vadd.f32 %v10612, %v10700
      %v10702 = vpop.f32.mrf.mxu0
      %v10703 = vadd.f32 %v10614, %v10702
      %10704 = vmatmul.bf16.gmra.mxu0 %v9560
      %v10705 = vpop.f32.mrf.mxu0
      %v10706 = vadd.f32 %v10617, %v10705
      %v10707 = vpop.f32.mrf.mxu0
      %v10708 = vadd.f32 %v10619, %v10707
      %10709 = vmatmul.bf16.gmra.mxu0 %v9569
      %v10710 = vpop.f32.mrf.mxu0
      %v10711 = vadd.f32 %v10622, %v10710
      %v10712 = vpop.f32.mrf.mxu0
      %v10713 = vadd.f32 %v10624, %v10712
      %10714 = vmatmul.bf16.gmra.mxu0 %v9578
      %v10715 = vpop.f32.mrf.mxu0
      %v10716 = vadd.f32 %v10627, %v10715
      %v10717 = vpop.f32.mrf.mxu0
      %v10718 = vadd.f32 %v10629, %v10717
      %10719 = vmatmul.bf16.gmra.mxu0 %v9587
      %v10720 = vpop.f32.mrf.mxu0
      %v10721 = vadd.f32 %v10632, %v10720
      %v10722 = vpop.f32.mrf.mxu0
      %v10723 = vadd.f32 %v10634, %v10722
      %10724 = vmatmul.bf16.gmra.mxu0 %v9596
      %v10725 = vpop.f32.mrf.mxu0
      %v10726 = vadd.f32 %v10637, %v10725
      %v10727 = vpop.f32.mrf.mxu0
      %v10728 = vadd.f32 %v10639, %v10727
      %10729 = vmatmul.bf16.gmra.mxu0 %v9605
      %v10730 = vpop.f32.mrf.mxu0
      %v10731 = vadd.f32 %v10642, %v10730
      %v10732 = vpop.f32.mrf.mxu0
      %v10733 = vadd.f32 %v10644, %v10732
      %10734 = vmatmul.bf16.gmra.mxu0 %v9614
      %v10735 = vpop.f32.mrf.mxu0
      %v10736 = vadd.f32 %v10647, %v10735
      %v10737 = vpop.f32.mrf.mxu0
      %v10738 = vadd.f32 %v10649, %v10737
      %10739 = vmatmul.bf16.gmra.mxu0 %v9623
      %v10740 = vpop.f32.mrf.mxu0
      %v10741 = vadd.f32 %v10652, %v10740
      %v10742 = vpop.f32.mrf.mxu0
      %v10743 = vadd.f32 %v10654, %v10742
      %10744 = vmatmul.bf16.gmra.mxu0 %v9632
      %v10745 = vpop.f32.mrf.mxu0
      %v10746 = vadd.f32 %v10657, %v10745
      %v10747 = vpop.f32.mrf.mxu0
      %v10748 = vadd.f32 %v10659, %v10747
      %10749 = vmatmul.bf16.gmra.mxu0 %v9641
      %v10750 = vpop.f32.mrf.mxu0
      %v10751 = vadd.f32 %v10662, %v10750
      %v10752 = vpop.f32.mrf.mxu0
      %v10753 = vadd.f32 %v10664, %v10752
      %10754 = vdwg.mxu0
      %10755 = vmatpush.bf16.msra.mxu0 %v10132
      %10756 = vmatpush.bf16.msra.mxu0 %v10131
      %10757 = vmatpush.bf16.msra.mxu0 %v10130
      %10758 = vmatpush.bf16.msra.mxu0 %v10129
      %10759 = vmatpush.bf16.msra.mxu0 %v10128
      %10760 = vmatpush.bf16.msra.mxu0 %v10127
      %10761 = vmatpush.bf16.msra.mxu0 %v10126
      %10762 = vmatpush.bf16.msra.mxu0 %v10125
      %10763 = vmatmul.bf16.gmra.mxu0 %v9507
      %v10764 = vpop.f32.mrf.mxu0
      %v10765 = vadd.f32 %v10676, %v10764
      %v10766 = vpop.f32.mrf.mxu0
      %v10767 = vadd.f32 %v10678, %v10766
      %10768 = vmatmul.bf16.gmra.mxu0 %v9516
      %v10769 = vpop.f32.mrf.mxu0
      %v10770 = vadd.f32 %v10681, %v10769
      %v10771 = vpop.f32.mrf.mxu0
      %v10772 = vadd.f32 %v10683, %v10771
      %10773 = vmatmul.bf16.gmra.mxu0 %v9525
      %v10774 = vpop.f32.mrf.mxu0
      %v10775 = vadd.f32 %v10686, %v10774
      %v10776 = vpop.f32.mrf.mxu0
      %v10777 = vadd.f32 %v10688, %v10776
      %10778 = vmatmul.bf16.gmra.mxu0 %v9534
      %v10779 = vpop.f32.mrf.mxu0
      %v10780 = vadd.f32 %v10691, %v10779
      %v10781 = vpop.f32.mrf.mxu0
      %v10782 = vadd.f32 %v10693, %v10781
      %10783 = vmatmul.bf16.gmra.mxu0 %v9543
      %v10784 = vpop.f32.mrf.mxu0
      %v10785 = vadd.f32 %v10696, %v10784
      %v10786 = vpop.f32.mrf.mxu0
      %v10787 = vadd.f32 %v10698, %v10786
      %10788 = vmatmul.bf16.gmra.mxu0 %v9552
      %v10789 = vpop.f32.mrf.mxu0
      %v10790 = vadd.f32 %v10701, %v10789
      %v10791 = vpop.f32.mrf.mxu0
      %v10792 = vadd.f32 %v10703, %v10791
      %10793 = vmatmul.bf16.gmra.mxu0 %v9561
      %v10794 = vpop.f32.mrf.mxu0
      %v10795 = vadd.f32 %v10706, %v10794
      %v10796 = vpop.f32.mrf.mxu0
      %v10797 = vadd.f32 %v10708, %v10796
      %10798 = vmatmul.bf16.gmra.mxu0 %v9570
      %v10799 = vpop.f32.mrf.mxu0
      %v10800 = vadd.f32 %v10711, %v10799
      %v10801 = vpop.f32.mrf.mxu0
      %v10802 = vadd.f32 %v10713, %v10801
      %10803 = vmatmul.bf16.gmra.mxu0 %v9579
      %v10804 = vpop.f32.mrf.mxu0
      %v10805 = vadd.f32 %v10716, %v10804
      %v10806 = vpop.f32.mrf.mxu0
      %v10807 = vadd.f32 %v10718, %v10806
      %10808 = vmatmul.bf16.gmra.mxu0 %v9588
      %v10809 = vpop.f32.mrf.mxu0
      %v10810 = vadd.f32 %v10721, %v10809
      %v10811 = vpop.f32.mrf.mxu0
      %v10812 = vadd.f32 %v10723, %v10811
      %10813 = vmatmul.bf16.gmra.mxu0 %v9597
      %v10814 = vpop.f32.mrf.mxu0
      %v10815 = vadd.f32 %v10726, %v10814
      %v10816 = vpop.f32.mrf.mxu0
      %v10817 = vadd.f32 %v10728, %v10816
      %10818 = vmatmul.bf16.gmra.mxu0 %v9606
      %v10819 = vpop.f32.mrf.mxu0
      %v10820 = vadd.f32 %v10731, %v10819
      %v10821 = vpop.f32.mrf.mxu0
      %v10822 = vadd.f32 %v10733, %v10821
      %10823 = vmatmul.bf16.gmra.mxu0 %v9615
      %v10824 = vpop.f32.mrf.mxu0
      %v10825 = vadd.f32 %v10736, %v10824
      %v10826 = vpop.f32.mrf.mxu0
      %v10827 = vadd.f32 %v10738, %v10826
      %10828 = vmatmul.bf16.gmra.mxu0 %v9624
      %v10829 = vpop.f32.mrf.mxu0
      %v10830 = vadd.f32 %v10741, %v10829
      %v10831 = vpop.f32.mrf.mxu0
      %v10832 = vadd.f32 %v10743, %v10831
      %10833 = vmatmul.bf16.gmra.mxu0 %v9633
      %v10834 = vpop.f32.mrf.mxu0
      %v10835 = vadd.f32 %v10746, %v10834
      %v10836 = vpop.f32.mrf.mxu0
      %v10837 = vadd.f32 %v10748, %v10836
      %10838 = vmatmul.bf16.gmra.mxu0 %v9642
      %v10839 = vpop.f32.mrf.mxu0
      %v10840 = vadd.f32 %v10751, %v10839
      %v10841 = vpop.f32.mrf.mxu0
      %v10842 = vadd.f32 %v10753, %v10841
      %10843 = vdwg.mxu0
      %10844 = vmatpush.bf16.msra.mxu0 %v10140
      %10845 = vmatpush.bf16.msra.mxu0 %v10139
      %10846 = vmatpush.bf16.msra.mxu0 %v10138
      %10847 = vmatpush.bf16.msra.mxu0 %v10137
      %10848 = vmatpush.bf16.msra.mxu0 %v10136
      %10849 = vmatpush.bf16.msra.mxu0 %v10135
      %10850 = vmatpush.bf16.msra.mxu0 %v10134
      %10851 = vmatpush.bf16.msra.mxu0 %v10133
      %10852 = vmatmul.bf16.gmra.mxu0 %v9508
      %v10853 = vpop.f32.mrf.mxu0
      %v10854 = vadd.f32 %v10765, %v10853
      %v10855 = vpop.f32.mrf.mxu0
      %v10856 = vadd.f32 %v10767, %v10855
      %10857 = vmatmul.bf16.gmra.mxu0 %v9517
      %v10858 = vpop.f32.mrf.mxu0
      %v10859 = vadd.f32 %v10770, %v10858
      %v10860 = vpop.f32.mrf.mxu0
      %v10861 = vadd.f32 %v10772, %v10860
      %10862 = vmatmul.bf16.gmra.mxu0 %v9526
      %v10863 = vpop.f32.mrf.mxu0
      %v10864 = vadd.f32 %v10775, %v10863
      %v10865 = vpop.f32.mrf.mxu0
      %v10866 = vadd.f32 %v10777, %v10865
      %10867 = vmatmul.bf16.gmra.mxu0 %v9535
      %v10868 = vpop.f32.mrf.mxu0
      %v10869 = vadd.f32 %v10780, %v10868
      %v10870 = vpop.f32.mrf.mxu0
      %v10871 = vadd.f32 %v10782, %v10870
      %10872 = vmatmul.bf16.gmra.mxu0 %v9544
      %v10873 = vpop.f32.mrf.mxu0
      %v10874 = vadd.f32 %v10785, %v10873
      %v10875 = vpop.f32.mrf.mxu0
      %v10876 = vadd.f32 %v10787, %v10875
      %10877 = vmatmul.bf16.gmra.mxu0 %v9553
      %v10878 = vpop.f32.mrf.mxu0
      %v10879 = vadd.f32 %v10790, %v10878
      %v10880 = vpop.f32.mrf.mxu0
      %v10881 = vadd.f32 %v10792, %v10880
      %10882 = vmatmul.bf16.gmra.mxu0 %v9562
      %v10883 = vpop.f32.mrf.mxu0
      %v10884 = vadd.f32 %v10795, %v10883
      %v10885 = vpop.f32.mrf.mxu0
      %v10886 = vadd.f32 %v10797, %v10885
      %10887 = vmatmul.bf16.gmra.mxu0 %v9571
      %v10888 = vpop.f32.mrf.mxu0
      %v10889 = vadd.f32 %v10800, %v10888
      %v10890 = vpop.f32.mrf.mxu0
      %v10891 = vadd.f32 %v10802, %v10890
      %10892 = vmatmul.bf16.gmra.mxu0 %v9580
      %v10893 = vpop.f32.mrf.mxu0
      %v10894 = vadd.f32 %v10805, %v10893
      %v10895 = vpop.f32.mrf.mxu0
      %v10896 = vadd.f32 %v10807, %v10895
      %10897 = vmatmul.bf16.gmra.mxu0 %v9589
      %v10898 = vpop.f32.mrf.mxu0
      %v10899 = vadd.f32 %v10810, %v10898
      %v10900 = vpop.f32.mrf.mxu0
      %v10901 = vadd.f32 %v10812, %v10900
      %10902 = vmatmul.bf16.gmra.mxu0 %v9598
      %v10903 = vpop.f32.mrf.mxu0
      %v10904 = vadd.f32 %v10815, %v10903
      %v10905 = vpop.f32.mrf.mxu0
      %v10906 = vadd.f32 %v10817, %v10905
      %10907 = vmatmul.bf16.gmra.mxu0 %v9607
      %v10908 = vpop.f32.mrf.mxu0
      %v10909 = vadd.f32 %v10820, %v10908
      %v10910 = vpop.f32.mrf.mxu0
      %v10911 = vadd.f32 %v10822, %v10910
      %10912 = vmatmul.bf16.gmra.mxu0 %v9616
      %v10913 = vpop.f32.mrf.mxu0
      %v10914 = vadd.f32 %v10825, %v10913
      %v10915 = vpop.f32.mrf.mxu0
      %v10916 = vadd.f32 %v10827, %v10915
      %10917 = vmatmul.bf16.gmra.mxu0 %v9625
      %v10918 = vpop.f32.mrf.mxu0
      %v10919 = vadd.f32 %v10830, %v10918
      %v10920 = vpop.f32.mrf.mxu0
      %v10921 = vadd.f32 %v10832, %v10920
      %10922 = vmatmul.bf16.gmra.mxu0 %v9634
      %v10923 = vpop.f32.mrf.mxu0
      %v10924 = vadd.f32 %v10835, %v10923
      %v10925 = vpop.f32.mrf.mxu0
      %v10926 = vadd.f32 %v10837, %v10925
      %10927 = vmatmul.bf16.gmra.mxu0 %v9643
      %v10928 = vpop.f32.mrf.mxu0
      %v10929 = vadd.f32 %v10840, %v10928
      %v10930 = vpop.f32.mrf.mxu0
      %v10931 = vadd.f32 %v10842, %v10930
      %10932 = vdwg.mxu0
      %10933 = vmatpush.bf16.msra.mxu0 %v10148
      %10934 = vmatpush.bf16.msra.mxu0 %v10147
      %10935 = vmatpush.bf16.msra.mxu0 %v10146
      %10936 = vmatpush.bf16.msra.mxu0 %v10145
      %10937 = vmatpush.bf16.msra.mxu0 %v10144
      %10938 = vmatpush.bf16.msra.mxu0 %v10143
      %10939 = vmatpush.bf16.msra.mxu0 %v10142
      %10940 = vmatpush.bf16.msra.mxu0 %v10141
      %10941 = vmatmul.bf16.gmra.mxu0 %v9509
      %v10942 = vpop.f32.mrf.mxu0
      %v10943 = vadd.f32 %v10854, %v10942
      %v10944 = vpop.f32.mrf.mxu0
      %v10945 = vadd.f32 %v10856, %v10944
      %10946 = vmatmul.bf16.gmra.mxu0 %v9518
      %v10947 = vpop.f32.mrf.mxu0
      %v10948 = vadd.f32 %v10859, %v10947
      %v10949 = vpop.f32.mrf.mxu0
      %v10950 = vadd.f32 %v10861, %v10949
      %10951 = vmatmul.bf16.gmra.mxu0 %v9527
      %v10952 = vpop.f32.mrf.mxu0
      %v10953 = vadd.f32 %v10864, %v10952
      %v10954 = vpop.f32.mrf.mxu0
      %v10955 = vadd.f32 %v10866, %v10954
      %10956 = vmatmul.bf16.gmra.mxu0 %v9536
      %v10957 = vpop.f32.mrf.mxu0
      %v10958 = vadd.f32 %v10869, %v10957
      %v10959 = vpop.f32.mrf.mxu0
      %v10960 = vadd.f32 %v10871, %v10959
      %10961 = vmatmul.bf16.gmra.mxu0 %v9545
      %v10962 = vpop.f32.mrf.mxu0
      %v10963 = vadd.f32 %v10874, %v10962
      %v10964 = vpop.f32.mrf.mxu0
      %v10965 = vadd.f32 %v10876, %v10964
      %10966 = vmatmul.bf16.gmra.mxu0 %v9554
      %v10967 = vpop.f32.mrf.mxu0
      %v10968 = vadd.f32 %v10879, %v10967
      %v10969 = vpop.f32.mrf.mxu0
      %v10970 = vadd.f32 %v10881, %v10969
      %10971 = vmatmul.bf16.gmra.mxu0 %v9563
      %v10972 = vpop.f32.mrf.mxu0
      %v10973 = vadd.f32 %v10884, %v10972
      %v10974 = vpop.f32.mrf.mxu0
      %v10975 = vadd.f32 %v10886, %v10974
      %10976 = vmatmul.bf16.gmra.mxu0 %v9572
      %v10977 = vpop.f32.mrf.mxu0
      %v10978 = vadd.f32 %v10889, %v10977
      %v10979 = vpop.f32.mrf.mxu0
      %v10980 = vadd.f32 %v10891, %v10979
      %10981 = vmatmul.bf16.gmra.mxu0 %v9581
      %v10982 = vpop.f32.mrf.mxu0
      %v10983 = vadd.f32 %v10894, %v10982
      %v10984 = vpop.f32.mrf.mxu0
      %v10985 = vadd.f32 %v10896, %v10984
      %10986 = vmatmul.bf16.gmra.mxu0 %v9590
      %v10987 = vpop.f32.mrf.mxu0
      %v10988 = vadd.f32 %v10899, %v10987
      %v10989 = vpop.f32.mrf.mxu0
      %v10990 = vadd.f32 %v10901, %v10989
      %10991 = vmatmul.bf16.gmra.mxu0 %v9599
      %v10992 = vpop.f32.mrf.mxu0
      %v10993 = vadd.f32 %v10904, %v10992
      %v10994 = vpop.f32.mrf.mxu0
      %v10995 = vadd.f32 %v10906, %v10994
      %10996 = vmatmul.bf16.gmra.mxu0 %v9608
      %v10997 = vpop.f32.mrf.mxu0
      %v10998 = vadd.f32 %v10909, %v10997
      %v10999 = vpop.f32.mrf.mxu0
      %v11000 = vadd.f32 %v10911, %v10999
      %11001 = vmatmul.bf16.gmra.mxu0 %v9617
      %v11002 = vpop.f32.mrf.mxu0
      %v11003 = vadd.f32 %v10914, %v11002
      %v11004 = vpop.f32.mrf.mxu0
      %v11005 = vadd.f32 %v10916, %v11004
      %11006 = vmatmul.bf16.gmra.mxu0 %v9626
      %v11007 = vpop.f32.mrf.mxu0
      %v11008 = vadd.f32 %v10919, %v11007
      %v11009 = vpop.f32.mrf.mxu0
      %v11010 = vadd.f32 %v10921, %v11009
      %11011 = vmatmul.bf16.gmra.mxu0 %v9635
      %v11012 = vpop.f32.mrf.mxu0
      %v11013 = vadd.f32 %v10924, %v11012
      %v11014 = vpop.f32.mrf.mxu0
      %v11015 = vadd.f32 %v10926, %v11014
      %11016 = vmatmul.bf16.gmra.mxu0 %v9644
      %v11017 = vpop.f32.mrf.mxu0
      %v11018 = vadd.f32 %v10929, %v11017
      %v11019 = vpop.f32.mrf.mxu0
      %v11020 = vadd.f32 %v10931, %v11019
      %11021 = vdwg.mxu0
      %vm11022 = vcmask 64512
      %11023 = vst.msk [vmem:[%s271] sm:$0xff] %vm11022, %v10943
      %11024 = vst.msk [vmem:[%s271 + $0x8] sm:$0xff] %vm11022, %v10945
      %11025 = vst.msk [vmem:[%s271 + $0x10] sm:$0xff] %vm11022, %v10948
      %11026 = vst.msk [vmem:[%s271 + $0x18] sm:$0xff] %vm11022, %v10950
      %11027 = vst.msk [vmem:[%s271 + $0x20] sm:$0xff] %vm11022, %v10953
      %11028 = vst.msk [vmem:[%s271 + $0x28] sm:$0xff] %vm11022, %v10955
      %11029 = vst.msk [vmem:[%s271 + $0x30] sm:$0xff] %vm11022, %v10958
      %11030 = vst.msk [vmem:[%s271 + $0x38] sm:$0xff] %vm11022, %v10960
      %11031 = vst.msk [vmem:[%s271 + $0x40] sm:$0xff] %vm11022, %v10963
      %11032 = vst.msk [vmem:[%s271 + $0x48] sm:$0xff] %vm11022, %v10965
      %11033 = vst.msk [vmem:[%s271 + $0x50] sm:$0xff] %vm11022, %v10968
      %11034 = vst.msk [vmem:[%s271 + $0x58] sm:$0xff] %vm11022, %v10970
      %11035 = vst.msk [vmem:[%s271 + $0x60] sm:$0xff] %vm11022, %v10973
      %11036 = vst.msk [vmem:[%s271 + $0x68] sm:$0xff] %vm11022, %v10975
      %11037 = vst.msk [vmem:[%s271 + $0x70] sm:$0xff] %vm11022, %v10978
      %11038 = vst.msk [vmem:[%s271 + $0x78] sm:$0xff] %vm11022, %v10980
      %11039 = vst.msk [vmem:[%s271 + $0x80] sm:$0xff] %vm11022, %v10983
      %11040 = vst.msk [vmem:[%s271 + $0x88] sm:$0xff] %vm11022, %v10985
      %11041 = vst.msk [vmem:[%s271 + $0x90] sm:$0xff] %vm11022, %v10988
      %11042 = vst.msk [vmem:[%s271 + $0x98] sm:$0xff] %vm11022, %v10990
      %11043 = vst.msk [vmem:[%s271 + $0xa0] sm:$0xff] %vm11022, %v10993
      %11044 = vst.msk [vmem:[%s271 + $0xa8] sm:$0xff] %vm11022, %v10995
      %11045 = vst.msk [vmem:[%s271 + $0xb0] sm:$0xff] %vm11022, %v10998
      %11046 = vst.msk [vmem:[%s271 + $0xb8] sm:$0xff] %vm11022, %v11000
      %11047 = vst.msk [vmem:[%s271 + $0xc0] sm:$0xff] %vm11022, %v11003
      %11048 = vst.msk [vmem:[%s271 + $0xc8] sm:$0xff] %vm11022, %v11005
      %11049 = vst.msk [vmem:[%s271 + $0xd0] sm:$0xff] %vm11022, %v11008
      %11050 = vst.msk [vmem:[%s271 + $0xd8] sm:$0xff] %vm11022, %v11010
      %11051 = vst.msk [vmem:[%s271 + $0xe0] sm:$0xff] %vm11022, %v11013
      %11052 = vst.msk [vmem:[%s271 + $0xe8] sm:$0xff] %vm11022, %v11015
      %11053 = vst.msk [vmem:[%s271 + $0xf0] sm:$0xff] %vm11022, %v11018
      %11054 = vst.msk [vmem:[%s271 + $0xf8] sm:$0xff] %vm11022, %v11020
      %p11055 = scmp.lt.s32.totalorder %s17, 1
      %s11056 = scalar_select %p11055, %s17, 1
      %s11057 = smul.addr %s11056, 32
      %s11058 = smul.addr %s11057, 8
      %s11059 = scalar_lea.vmem %s6, %s11058
      // Predicated region
      $region52: #{drrn_forward.1} parent=43 // pred_check
        %p11060 = pneg %p171
      $region53: #{drrn_forward.1} parent=43 // pred_check_branch
        %11062 = sbr.rel (%p11060) target = $region55
      $region54: #{drrn_forward.1} parent=43 // pred_region
        _
      $region55: #{drrn_forward.1} parent=43 // pred_fallthru
        _
    $region44: #{drrn_forward.1} parent=5 // pred_fallthru
      _
    %p11063 = scmp.le.s32.totalorder 2, %s12
    // Predicated region
    $region56: #{drrn_forward.1} parent=5 // pred_check
      %p11064 = pneg %p11063
    $region57: #{drrn_forward.1} parent=5 // pred_check_branch
      %11066 = sbr.rel (%p11064) target = $region59
    $region58: #{drrn_forward.1} parent=5 // pred_region
      %s11067 = ssub.s32 %s12, 2
      // Predicated region
      $region60: #{drrn_forward.1} parent=58 // pred_check
        %p11068 = pneg %p177
      $region61: #{drrn_forward.1} parent=58 // pred_check_branch
        %11070 = sbr.rel (%p11068) target = $region63
      $region62: #{drrn_forward.1} parent=58 // pred_region
        %p11071 = scmp.lt.s32.totalorder %s18, 1
        %s11072 = scalar_select %p11071, %s18, 1
        %s11073 = smul.addr %s11072, 32
        %s11074 = smul.addr %s11073, 8
        %s11075 = scalar_lea.vmem %s6, %s11074
      $region63: #{drrn_forward.1} parent=58 // pred_fallthru
        _
    $region59: #{drrn_forward.1} parent=5 // pred_fallthru
      _
  $region6: #{drrn_forward.1} parent=0 // loop_footer
    %s16 = sadd.s32 1, %s12
  $region7: #{drrn_forward.1} parent=0 // loop_footer_branch
    %11 = sbr.rel target = $region3
  $region8: #{drrn_forward.1} parent=0 // loop_exit
    _

</llo_original>
